<compile_context>
chip_gen: v7x
topology: tpu7x:2x2x1
jax: 0.10.0
libtpu: 0.0.40
codegen_flags: <defaults>
</compile_context>

<pallas_src>
import functools

import jax
import jax.numpy as jnp
from jax import lax
from jax.experimental import pallas as pl
from jax.experimental.pallas import tpu as pltpu

LANE = 128


def _round_up(x, m):
    return (x + m - 1) // m * m


def _largest_div(n, cap, unit):
    """Largest multiple of `unit` that divides `n` and is <= max(cap, unit)."""
    t = min(cap, n)
    t -= t % unit
    t = max(t, unit)
    while n % t:
        t -= unit
    return t


# ----------------------------------------------------------------------------
# Pallas matmul kernels (bf16 operands, f32 accumulation on the MXU)
# ----------------------------------------------------------------------------
def _mm1_kernel(a_ref, b_ref, bias_ref, o_ref, *, relu):
    """Single-K-block: out = relu?(a @ b + bias), written directly (no scratch)."""
    r = jnp.dot(a_ref[...], b_ref[...], preferred_element_type=jnp.float32)
    r = r + bias_ref[...]
    if relu:
        r = jnp.maximum(r, 0.0)
    o_ref[...] = r.astype(o_ref.dtype)


def _mm1_res_kernel(a_ref, b_ref, bias_ref, res_ref, o_ref):
    """Single-K-block fused bottleneck epilogue: relu(a @ b + bias + residual)."""
    r = jnp.dot(a_ref[...], b_ref[...], preferred_element_type=jnp.float32)
    r = r + bias_ref[...] + res_ref[...].astype(jnp.float32)
    o_ref[...] = jnp.maximum(r, 0.0).astype(o_ref.dtype)


def _mmk_kernel(a_ref, b_ref, bias_ref, o_ref, acc_ref, *, relu):
    """K-blocked fallback; accumulator initialized with the first dot (no zero-init)."""
    d = jnp.dot(a_ref[...], b_ref[...], preferred_element_type=jnp.float32)
    k = pl.program_id(2)

    @pl.when(k == 0)
    def _():
        acc_ref[...] = d

    @pl.when(k != 0)
    def _():
        acc_ref[...] += d

    @pl.when(k == pl.num_programs(2) - 1)
    def _():
        r = acc_ref[...] + bias_ref[...]
        if relu:
            r = jnp.maximum(r, 0.0)
        o_ref[...] = r.astype(o_ref.dtype)


def _mmk_res_kernel(a_ref, b_ref, bias_ref, res_ref, o_ref, acc_ref):
    d = jnp.dot(a_ref[...], b_ref[...], preferred_element_type=jnp.float32)
    k = pl.program_id(2)

    @pl.when(k == 0)
    def _():
        acc_ref[...] = d

    @pl.when(k != 0)
    def _():
        acc_ref[...] += d

    @pl.when(k == pl.num_programs(2) - 1)
    def _():
        r = acc_ref[...] + bias_ref[...] + res_ref[...].astype(jnp.float32)
        o_ref[...] = jnp.maximum(r, 0.0).astype(o_ref.dtype)


def _mm_dims(M, K, N):
    Mp = _round_up(M, 8)
    if Mp >= 1024:
        # Big tiles for v5e/v6e (single TC) while still leaving >= 2 M blocks.
        TM = _largest_div(Mp, 512, 8)
    elif Mp >= 128:
        # >= 2 parallel M blocks so v7x's second TensorCore has work; on
        # v5e/v6e this only costs a tiny extra weight-block fetch.
        TM = _largest_div(Mp, Mp // 2, 8)
    else:
        TM = Mp                      # tiny late-stage matmuls: one block
    TK = K if K <= 1024 else _largest_div(K, 512, LANE)
    TN = N if N <= 256 else _largest_div(N, 256, LANE)
    return Mp, TM, TK, TN


@functools.lru_cache(maxsize=None)
def _build_mm(Mp, Kp, Np, TM, TK, TN, relu, with_res):
    if Kp == TK:
        grid = (Mp // TM, Np // TN)
        in_specs = [
            pl.BlockSpec((TM, TK), lambda i, j: (i, 0)),
            pl.BlockSpec((TK, TN), lambda i, j: (0, j)),
            pl.BlockSpec((1, TN), lambda i, j: (0, j)),
        ]
        if with_res:
            in_specs.append(pl.BlockSpec((TM, TN), lambda i, j: (i, j)))
            kernel = _mm1_res_kernel
        else:
            kernel = functools.partial(_mm1_kernel, relu=relu)
        out_specs = pl.BlockSpec((TM, TN), lambda i, j: (i, j))
        scratch = []
        semantics = ("parallel", "parallel")
    else:
        grid = (Mp // TM, Np // TN, Kp // TK)
        in_specs = [
            pl.BlockSpec((TM, TK), lambda i, j, k: (i, k)),
            pl.BlockSpec((TK, TN), lambda i, j, k: (k, j)),
            pl.BlockSpec((1, TN), lambda i, j, k: (0, j)),
        ]
        if with_res:
            in_specs.append(pl.BlockSpec((TM, TN), lambda i, j, k: (i, j)))
            kernel = _mmk_res_kernel
        else:
            kernel = functools.partial(_mmk_kernel, relu=relu)
        out_specs = pl.BlockSpec((TM, TN), lambda i, j, k: (i, j))
        scratch = [pltpu.VMEM((TM, TN), jnp.float32)]
        semantics = ("parallel", "parallel", "arbitrary")

    return pl.pallas_call(
        kernel,
        out_shape=jax.ShapeDtypeStruct((Mp, Np), jnp.bfloat16),
        grid_spec=pltpu.PrefetchScalarGridSpec(
            num_scalar_prefetch=0,
            grid=grid,
            in_specs=in_specs,
            out_specs=out_specs,
            scratch_shapes=scratch,
        ),
        compiler_params=pltpu.CompilerParams(dimension_semantics=semantics),
    )


def matmul_bias_act(a, b, bias, relu, residual=None):
    """relu?(a @ b + bias [+ residual]).

    a: (M, K); b: (Kp, Np) bf16 already K/N padded; bias: (1, Np) f32;
    residual: (M, Np) or None.  Returns (M, Np) bf16 (channels stay lane-padded).
    """
    M, K = a.shape
    Kp, Np = b.shape
    if Kp > K:                                   # pad K once (e.g. 72 -> 128)
        a = jnp.pad(a, ((0, 0), (0, Kp - K)))
    Mp, TM, TK, TN = _mm_dims(M, Kp, Np)
    if Mp > M:                                   # only the tiny M=2 tail here
        a = jnp.pad(a, ((0, Mp - M), (0, 0)))
        if residual is not None:
            residual = jnp.pad(residual, ((0, Mp - M), (0, 0)))
    a = a.astype(jnp.bfloat16)
    fn = _build_mm(Mp, Kp, Np, TM, TK, TN, bool(relu), residual is not None)
    if residual is not None:
        out = fn(a, b, bias, residual.astype(jnp.bfloat16))
    else:
        out = fn(a, b, bias)
    if Mp > M:
        out = out[:M]
    return out


# ----------------------------------------------------------------------------
# Conv = im2col at REAL cin (in-jit glue) + Pallas matmul with folded BN
# ----------------------------------------------------------------------------
def _im2col(x, kh, kw, stride, pad, cin):
    n, h, w, _ = x.shape
    x = x[..., :cin]                 # drop lane padding before gathering taps
    if pad > 0:
        x = jnp.pad(x, ((0, 0), (pad, pad), (pad, pad), (0, 0)))
    oh = (h + 2 * pad - kh) // stride + 1
    ow = (w + 2 * pad - kw) // stride + 1
    cols = [x[:, i:i + stride * oh:stride, j:j + stride * ow:stride, :]
            for i in range(kh) for j in range(kw)]
    patches = jnp.concatenate(cols, axis=-1)     # (n, oh, ow, kh*kw*cin)
    return patches.reshape(n * oh * ow, kh * kw * cin), (n, oh, ow)


def conv_apply(x, w_mat, bias, kh, kw, stride, pad, relu, residual=None, cin=None):
    """x: (n,h,w,Cp) bf16; w_mat: (Kp, cout_p) bf16 -> (n,oh,ow,cout_p) bf16."""
    n = x.shape[0]
    if kh == 1 and kw == 1 and pad == 0:
        if stride > 1:
            x = x[:, ::stride, ::stride, :]
        oh, ow = x.shape[1], x.shape[2]
        a = x.reshape(n * oh * ow, x.shape[3])
    else:
        a, (n, oh, ow) = _im2col(x, kh, kw, stride, pad, cin)
    out = matmul_bias_act(a, w_mat, bias, relu, residual)
    return out.reshape(n, oh, ow, w_mat.shape[1])


def max_pool_3x3_s2(x):
    return lax.reduce_window(x, jnp.array(-jnp.inf, x.dtype), lax.max,
                             (1, 3, 3, 1), (1, 2, 2, 1),
                             [(0, 0), (1, 1), (1, 1), (0, 0)])


# ----------------------------------------------------------------------------
# Fused GAP + MLP head kernel (Dropout = identity in eval mode)
# ----------------------------------------------------------------------------
def _head_kernel(x_ref, w1_ref, b1_ref, w2_ref, b2_ref, w3_ref, b3_ref, o_ref,
                 *, inv_hw):
    xm = jnp.sum(x_ref[...].astype(jnp.float32), axis=1) * inv_hw   # GAP
    h = jnp.dot(xm.astype(jnp.bfloat16), w1_ref[...],
                preferred_element_type=jnp.float32)
    h = jnp.maximum(h + b1_ref[...], 0.0)
    h = jnp.dot(h.astype(jnp.bfloat16), w2_ref[...],
                preferred_element_type=jnp.float32)
    h = jnp.maximum(h + b2_ref[...], 0.0)
    h = jnp.dot(h.astype(jnp.bfloat16), w3_ref[...],
                preferred_element_type=jnp.float32)
    o_ref[...] = h + b3_ref[...]


@functools.lru_cache(maxsize=None)
def _build_head(n, hw, cp, h1, h2, ncp):
    vmem = lambda: pl.BlockSpec(memory_space=pltpu.MemorySpace.VMEM)
    return pl.pallas_call(
        functools.partial(_head_kernel, inv_hw=1.0 / hw),
        out_shape=jax.ShapeDtypeStruct((n, ncp), jnp.float32),
        in_specs=[vmem() for _ in range(7)],
        out_specs=vmem(),
    )


# ----------------------------------------------------------------------------
# Deterministic parameter initialization (synthetic "pretrained" weights)
# ----------------------------------------------------------------------------
def _conv_w(key, cout, cin, kh, kw):
    fan_in = cin * kh * kw
    return jax.random.normal(key, (cout, cin, kh, kw), jnp.float32) \
        * (2.0 / fan_in) ** 0.5


def _bn_params(key, c):
    k1, k2, k3, k4 = jax.random.split(key, 4)
    gamma = 1.0 + 0.1 * jax.random.normal(k1, (c,), jnp.float32)
    beta = 0.1 * jax.random.normal(k2, (c,), jnp.float32)
    mean = 0.1 * jax.random.normal(k3, (c,), jnp.float32)
    var = 0.5 + jax.random.uniform(k4, (c,), jnp.float32)
    return (gamma, beta, mean, var)


def _bottleneck_params(key, cin, planes, stride):
    cout = planes * 4
    keys = jax.random.split(key, 8)
    p = {
        "conv1": _conv_w(keys[0], planes, cin, 1, 1),
        "bn1": _bn_params(keys[1], planes),
        "conv2": _conv_w(keys[2], planes, planes, 3, 3),
        "bn2": _bn_params(keys[3], planes),
        "conv3": _conv_w(keys[4], cout, planes, 1, 1),
        "bn3": _bn_params(keys[5], cout),
        "stride": stride,
    }
    if stride != 1 or cin != cout:
        p["down_conv"] = _conv_w(keys[6], cout, cin, 1, 1)
        p["down_bn"] = _bn_params(keys[7], cout)
    return p


def init_params(key, num_classes=6, width=8):
    keys = jax.random.split(key, 16)
    params = {
        "conv1": _conv_w(keys[0], width, 3, 7, 7),
        "bn1": _bn_params(keys[1], width),
    }
    layer_cfg = [(width, 3, 1), (width * 2, 4, 2),
                 (width * 4, 6, 2), (width * 8, 3, 2)]
    cin = width
    layers = []
    for li, (planes, blocks, stride) in enumerate(layer_cfg):
        blks = []
        for b in range(blocks):
            bkey = jax.random.fold_in(keys[2 + li], b)
            blks.append(_bottleneck_params(bkey, cin, planes,
                                           stride if b == 0 else 1))
            cin = planes * 4
        layers.append(blks)
    params["layers"] = layers

    feat = width * 8 * 4  # fc.in_features (2048 at real width 64)

    def lin(k, i, o):
        k1, k2 = jax.random.split(k)
        w = jax.random.normal(k1, (o, i), jnp.float32) * (1.0 / i) ** 0.5
        b = 0.01 * jax.random.normal(k2, (o,), jnp.float32)
        return (w, b)

    params["fc1"] = lin(keys[6], feat, 1024)
    params["fc2"] = lin(keys[7], 1024, 512)
    params["fc3"] = lin(keys[8], 512, num_classes)
    return params


# ----------------------------------------------------------------------------
# One-time weight preparation (BN fold, transpose, pad, bf16 cast)
# ----------------------------------------------------------------------------
def _fold_bn(w, bn):
    gamma, beta, mean, var = bn
    scale = gamma / jnp.sqrt(var + 1e-5)
    return w * scale[:, None, None, None], beta - mean * scale


def _prep_conv(w, bn):
    """PyTorch (cout,cin,kh,kw) + BN -> ((Kp, cout_p) bf16, (1, cout_p) f32)."""
    w_eff, b_eff = _fold_bn(w, bn)
    cout, cin, kh, kw = w.shape
    cout_p = _round_up(cout, LANE)
    # 1x1 convs consume the lane-padded activation directly; kh*kw>1 convs use
    # real cin (K = kh*kw*cin, padded to 128 ONCE) so zero columns don't get 9x'd.
    cin_k = _round_up(cin, LANE) if (kh == 1 and kw == 1) else cin
    w_t = jnp.transpose(w_eff, (2, 3, 1, 0))                 # (kh,kw,cin,cout)
    w_t = jnp.pad(w_t, ((0, 0), (0, 0), (0, cin_k - cin), (0, cout_p - cout)))
    w_mat = w_t.reshape(kh * kw * cin_k, cout_p)
    kp = _round_up(w_mat.shape[0], LANE)
    w_mat = jnp.pad(w_mat, ((0, kp - w_mat.shape[0]), (0, 0)))
    bias = jnp.pad(b_eff, (0, cout_p - cout)).reshape(1, cout_p)
    return w_mat.astype(jnp.bfloat16), bias.astype(jnp.float32)


def _prep_fc(wb):
    w, b = wb
    o, i = w.shape
    in_p, out_p = _round_up(i, LANE), _round_up(o, LANE)
    w_mat = jnp.pad(w.T, ((0, in_p - i), (0, out_p - o))).astype(jnp.bfloat16)
    bias = jnp.pad(b, (0, out_p - o)).reshape(1, out_p).astype(jnp.float32)
    return w_mat, bias


def prepare_params(params):
    """Fold BN and pre-pad/cast all weights once (eager, outside the jit).

    Returns (prep, meta): prep contains arrays only (jit pytree); meta contains the
    static per-block (stride, real 3x3 cin) needed for im2col slicing.
    """
    prep = {"conv1": _prep_conv(params["conv1"], params["bn1"])}
    blocks, meta = [], []
    for layer in params["layers"]:
        for p in layer:
            blk = {
                "c1": _prep_conv(p["conv1"], p["bn1"]),
                "c2": _prep_conv(p["conv2"], p["bn2"]),
                "c3": _prep_conv(p["conv3"], p["bn3"]),
            }
            if "down_conv" in p:
                blk["d"] = _prep_conv(p["down_conv"], p["down_bn"])
            blocks.append(blk)
            meta.append((int(p["stride"]), int(p["conv2"].shape[1])))
    prep["blocks"] = blocks
    prep["fc1"] = _prep_fc(params["fc1"])
    prep["fc2"] = _prep_fc(params["fc2"])
    prep["fc3"] = _prep_fc(params["fc3"])
    return prep, tuple(meta)


# ----------------------------------------------------------------------------
# Forward pass (entirely inside one jax.jit)
# ----------------------------------------------------------------------------
def _forward_impl(prep, x_nchw, meta, num_classes):
    # NCHW (PyTorch convention) -> NHWC bf16; channels stay 128-lane padded.
    x = jnp.transpose(x_nchw, (0, 2, 3, 1)).astype(jnp.bfloat16)
    cw, cb = prep["conv1"]
    x = conv_apply(x, cw, cb, 7, 7, 2, 3, relu=True, cin=3)
    x = max_pool_3x3_s2(x)

    for blk, (stride, cin2) in zip(prep["blocks"], meta):
        w1, b1 = blk["c1"]
        w2, b2 = blk["c2"]
        w3, b3 = blk["c3"]
        out = conv_apply(x, w1, b1, 1, 1, 1, 0, relu=True)
        out = conv_apply(out, w2, b2, 3, 3, stride, 1, relu=True, cin=cin2)
        if "d" in blk:
            dw, db = blk["d"]
            identity = conv_apply(x, dw, db, 1, 1, stride, 0, relu=False)
        else:
            identity = x
        n, oh, ow, cp = identity.shape
        # conv3 + BN + residual add + ReLU fused into one Pallas epilogue.
        x = conv_apply(out, w3, b3, 1, 1, 1, 0, relu=False,
                       residual=identity.reshape(n * oh * ow, cp))

    # GAP fused into the single head kernel (Dropout layers = identity in eval).
    n, h, w, cp = x.shape
    head_fn = _build_head(n, h * w, cp,
                          prep["fc1"][0].shape[1],
                          prep["fc2"][0].shape[1],
                          prep["fc3"][0].shape[1])
    logits = head_fn(x.reshape(n, h * w, cp),
                     prep["fc1"][0], prep["fc1"][1],
                     prep["fc2"][0], prep["fc2"][1],
                     prep["fc3"][0], prep["fc3"][1])
    return logits[:, :num_classes]


def make_forward(meta, num_classes):
    def fwd(prep, x):
        return _forward_impl(prep, x, meta, num_classes)
    return jax.jit(fwd)


if __name__ == "__main__":
    key = jax.random.PRNGKey(0)
    pkey, xkey = jax.random.split(key)
    num_classes = 6
    raw_params = init_params(pkey, num_classes=num_classes, width=8)
    prep, meta = prepare_params(raw_params)      # one-time weight prep (eager)
    forward = make_forward(meta, num_classes)    # single jit for the forward

    # Small PyTorch-style NCHW input: batch=2, 3 channels, 32x32 spatial.
    x = jax.random.normal(xkey, (2, 3, 32, 32), jnp.float32)
    out = jax.block_until_ready(forward(prep, x))
    assert out.shape == (2, num_classes), out.shape
    assert bool(jnp.all(jnp.isfinite(out)))
    print("KERNEL_OK")
</pallas_src>

<mosaic_0001>
module attributes {stable_mosaic.version = 11 : i64} {
  func.func @_mm1_kernel(%arg0: i32, %arg1: i32, %arg2: memref<64x128xbf16, #tpu.memory_space<vmem>>, %arg3: memref<128x128xbf16, #tpu.memory_space<vmem>>, %arg4: memref<1x128xf32, #tpu.memory_space<vmem>>, %arg5: memref<64x128xbf16, #tpu.memory_space<vmem>>) attributes {dimension_semantics = [#tpu.dimension_semantics<parallel>, #tpu.dimension_semantics<parallel>], iteration_bounds = array<i64: 2, 1>, scalar_prefetch = 0 : i64, scratch_operands = 0 : i64, tpu.core_type = #tpu.core_type<tc>, window_params = [{transform_indices = @transform_0, window_bounds = array<i64: 64, 128>}, {transform_indices = @transform_1, window_bounds = array<i64: 128, 128>}, {transform_indices = @transform_2, window_bounds = array<i64: 1, 128>}, {transform_indices = @transform_3, window_bounds = array<i64: 64, 128>}]} {
    %c0 = arith.constant 0 : index
    %c0_0 = arith.constant 0 : index
    %0 = vector.load %arg2[%c0, %c0_0] : memref<64x128xbf16, #tpu.memory_space<vmem>>, vector<64x128xbf16>
    %c0_1 = arith.constant 0 : index
    %c0_2 = arith.constant 0 : index
    %1 = vector.load %arg3[%c0_1, %c0_2] : memref<128x128xbf16, #tpu.memory_space<vmem>>, vector<128x128xbf16>
    %cst = arith.constant dense<0.000000e+00> : vector<64x128xf32>
    %2 = tpu.matmul %0, %1, %cst {dimension_numbers = #tpu.dot_dimension_numbers<[1], [0], [0], [1], [0, 0, 1, 1], [], []>} : vector<64x128xbf16>, vector<128x128xbf16>, vector<64x128xf32> -> vector<64x128xf32>
    %c0_3 = arith.constant 0 : index
    %c0_4 = arith.constant 0 : index
    %3 = vector.load %arg4[%c0_3, %c0_4] : memref<1x128xf32, #tpu.memory_space<vmem>>, vector<1x128xf32>
    %4 = vector.broadcast %3 : vector<1x128xf32> to vector<64x128xf32>
    %5 = arith.addf %2, %4 : vector<64x128xf32>
    %cst_5 = arith.constant 0.000000e+00 : f32
    %6 = vector.broadcast %cst_5 : f32 to vector<64x128xf32>
    %7 = arith.maximumf %5, %6 : vector<64x128xf32>
    %8 = arith.truncf %7 : vector<64x128xf32> to vector<64x128xbf16>
    %c0_6 = arith.constant 0 : index
    %c0_7 = arith.constant 0 : index
    %9 = vector.load %arg5[%c0_6, %c0_7] : memref<64x128xbf16, #tpu.memory_space<vmem>>, vector<64x128xbf16>
    tpu.vector_store %arg5[%c0_6, %c0_7], %8 {strides = array<i32>} : memref<64x128xbf16, #tpu.memory_space<vmem>>, vector<64x128xbf16>,
    return
  }
  func.func @transform_0(%arg0: i32, %arg1: i32) -> (i32, i32) {
    %c0_i32 = arith.constant 0 : i32
    %c0_i32_0 = arith.constant 0 : i32
    return %arg0, %c0_i32 : i32, i32
  }
  func.func @transform_1(%arg0: i32, %arg1: i32) -> (i32, i32) {
    %c0_i32 = arith.constant 0 : i32
    %c0_i32_0 = arith.constant 0 : i32
    return %c0_i32, %arg1 : i32, i32
  }
  func.func @transform_2(%arg0: i32, %arg1: i32) -> (i32, i32) {
    %c0_i32 = arith.constant 0 : i32
    %c0_i32_0 = arith.constant 0 : i32
    return %c0_i32, %arg1 : i32, i32
  }
  func.func @transform_3(%arg0: i32, %arg1: i32) -> (i32, i32) {
    %c0_i32 = arith.constant 0 : i32
    return %arg0, %arg1 : i32, i32
  }
}

module attributes {stable_mosaic.version = 11 : i64} {
  func.func @_mm1_kernel(%arg0: i32, %arg1: i32, %arg2: memref<256x256xbf16, #tpu.memory_space<vmem>>, %arg3: memref<256x128xbf16, #tpu.memory_space<vmem>>, %arg4: memref<1x128xf32, #tpu.memory_space<vmem>>, %arg5: memref<256x128xbf16, #tpu.memory_space<vmem>>) attributes {dimension_semantics = [#tpu.dimension_semantics<parallel>, #tpu.dimension_semantics<parallel>], iteration_bounds = array<i64: 2, 1>, scalar_prefetch = 0 : i64, scratch_operands = 0 : i64, tpu.core_type = #tpu.core_type<tc>, window_params = [{transform_indices = @transform_0, window_bounds = array<i64: 256, 256>}, {transform_indices = @transform_1, window_bounds = array<i64: 256, 128>}, {transform_indices = @transform_2, window_bounds = array<i64: 1, 128>}, {transform_indices = @transform_3, window_bounds = array<i64: 256, 128>}]} {
    %c0 = arith.constant 0 : index
    %c0_0 = arith.constant 0 : index
    %0 = vector.load %arg2[%c0, %c0_0] : memref<256x256xbf16, #tpu.memory_space<vmem>>, vector<256x256xbf16>
    %c0_1 = arith.constant 0 : index
    %c0_2 = arith.constant 0 : index
    %1 = vector.load %arg3[%c0_1, %c0_2] : memref<256x128xbf16, #tpu.memory_space<vmem>>, vector<256x128xbf16>
    %cst = arith.constant dense<0.000000e+00> : vector<256x128xf32>
    %2 = tpu.matmul %0, %1, %cst {dimension_numbers = #tpu.dot_dimension_numbers<[1], [0], [0], [1], [0, 0, 1, 1], [], []>} : vector<256x256xbf16>, vector<256x128xbf16>, vector<256x128xf32> -> vector<256x128xf32>
    %c0_3 = arith.constant 0 : index
    %c0_4 = arith.constant 0 : index
    %3 = vector.load %arg4[%c0_3, %c0_4] : memref<1x128xf32, #tpu.memory_space<vmem>>, vector<1x128xf32>
    %4 = vector.broadcast %3 : vector<1x128xf32> to vector<256x128xf32>
    %5 = arith.addf %2, %4 : vector<256x128xf32>
    %cst_5 = arith.constant 0.000000e+00 : f32
    %6 = vector.broadcast %cst_5 : f32 to vector<256x128xf32>
    %7 = arith.maximumf %5, %6 : vector<256x128xf32>
    %8 = arith.truncf %7 : vector<256x128xf32> to vector<256x128xbf16>
    %c0_6 = arith.constant 0 : index
    %c0_7 = arith.constant 0 : index
    %9 = vector.load %arg5[%c0_6, %c0_7] : memref<256x128xbf16, #tpu.memory_space<vmem>>, vector<256x128xbf16>
    tpu.vector_store %arg5[%c0_6, %c0_7], %8 {strides = array<i32>} : memref<256x128xbf16, #tpu.memory_space<vmem>>, vector<256x128xbf16>,
    return
  }
  func.func @transform_0(%arg0: i32, %arg1: i32) -> (i32, i32) {
    %c0_i32 = arith.constant 0 : i32
    %c0_i32_0 = arith.constant 0 : i32
    return %arg0, %c0_i32 : i32, i32
  }
  func.func @transform_1(%arg0: i32, %arg1: i32) -> (i32, i32) {
    %c0_i32 = arith.constant 0 : i32
    %c0_i32_0 = arith.constant 0 : i32
    return %c0_i32, %arg1 : i32, i32
  }
  func.func @transform_2(%arg0: i32, %arg1: i32) -> (i32, i32) {
    %c0_i32 = arith.constant 0 : i32
    %c0_i32_0 = arith.constant 0 : i32
    return %c0_i32, %arg1 : i32, i32
  }
  func.func @transform_3(%arg0: i32, %arg1: i32) -> (i32, i32) {
    %c0_i32 = arith.constant 0 : i32
    return %arg0, %arg1 : i32, i32
  }
}

module attributes {stable_mosaic.version = 11 : i64} {
  func.func @_mm1_kernel(%arg0: i32, %arg1: i32, %arg2: memref<64x128xbf16, #tpu.memory_space<vmem>>, %arg3: memref<128x128xbf16, #tpu.memory_space<vmem>>, %arg4: memref<1x128xf32, #tpu.memory_space<vmem>>, %arg5: memref<64x128xbf16, #tpu.memory_space<vmem>>) attributes {dimension_semantics = [#tpu.dimension_semantics<parallel>, #tpu.dimension_semantics<parallel>], iteration_bounds = array<i64: 2, 1>, scalar_prefetch = 0 : i64, scratch_operands = 0 : i64, tpu.core_type = #tpu.core_type<tc>, window_params = [{transform_indices = @transform_0, window_bounds = array<i64: 64, 128>}, {transform_indices = @transform_1, window_bounds = array<i64: 128, 128>}, {transform_indices = @transform_2, window_bounds = array<i64: 1, 128>}, {transform_indices = @transform_3, window_bounds = array<i64: 64, 128>}]} {
    %c0 = arith.constant 0 : index
    %c0_0 = arith.constant 0 : index
    %0 = vector.load %arg2[%c0, %c0_0] : memref<64x128xbf16, #tpu.memory_space<vmem>>, vector<64x128xbf16>
    %c0_1 = arith.constant 0 : index
    %c0_2 = arith.constant 0 : index
    %1 = vector.load %arg3[%c0_1, %c0_2] : memref<128x128xbf16, #tpu.memory_space<vmem>>, vector<128x128xbf16>
    %cst = arith.constant dense<0.000000e+00> : vector<64x128xf32>
    %2 = tpu.matmul %0, %1, %cst {dimension_numbers = #tpu.dot_dimension_numbers<[1], [0], [0], [1], [0, 0, 1, 1], [], []>} : vector<64x128xbf16>, vector<128x128xbf16>, vector<64x128xf32> -> vector<64x128xf32>
    %c0_3 = arith.constant 0 : index
    %c0_4 = arith.constant 0 : index
    %3 = vector.load %arg4[%c0_3, %c0_4] : memref<1x128xf32, #tpu.memory_space<vmem>>, vector<1x128xf32>
    %4 = vector.broadcast %3 : vector<1x128xf32> to vector<64x128xf32>
    %5 = arith.addf %2, %4 : vector<64x128xf32>
    %6 = arith.truncf %5 : vector<64x128xf32> to vector<64x128xbf16>
    %c0_5 = arith.constant 0 : index
    %c0_6 = arith.constant 0 : index
    %7 = vector.load %arg5[%c0_5, %c0_6] : memref<64x128xbf16, #tpu.memory_space<vmem>>, vector<64x128xbf16>
    tpu.vector_store %arg5[%c0_5, %c0_6], %6 {strides = array<i32>} : memref<64x128xbf16, #tpu.memory_space<vmem>>, vector<64x128xbf16>,
    return
  }
  func.func @transform_0(%arg0: i32, %arg1: i32) -> (i32, i32) {
    %c0_i32 = arith.constant 0 : i32
    %c0_i32_0 = arith.constant 0 : i32
    return %arg0, %c0_i32 : i32, i32
  }
  func.func @transform_1(%arg0: i32, %arg1: i32) -> (i32, i32) {
    %c0_i32 = arith.constant 0 : i32
    %c0_i32_0 = arith.constant 0 : i32
    return %c0_i32, %arg1 : i32, i32
  }
  func.func @transform_2(%arg0: i32, %arg1: i32) -> (i32, i32) {
    %c0_i32 = arith.constant 0 : i32
    %c0_i32_0 = arith.constant 0 : i32
    return %c0_i32, %arg1 : i32, i32
  }
  func.func @transform_3(%arg0: i32, %arg1: i32) -> (i32, i32) {
    %c0_i32 = arith.constant 0 : i32
    return %arg0, %arg1 : i32, i32
  }
}

module attributes {stable_mosaic.version = 11 : i64} {
  func.func @_mm1_res_kernel(%arg0: i32, %arg1: i32, %arg2: memref<64x128xbf16, #tpu.memory_space<vmem>>, %arg3: memref<128x128xbf16, #tpu.memory_space<vmem>>, %arg4: memref<1x128xf32, #tpu.memory_space<vmem>>, %arg5: memref<64x128xbf16, #tpu.memory_space<vmem>>, %arg6: memref<64x128xbf16, #tpu.memory_space<vmem>>) attributes {dimension_semantics = [#tpu.dimension_semantics<parallel>, #tpu.dimension_semantics<parallel>], iteration_bounds = array<i64: 2, 1>, scalar_prefetch = 0 : i64, scratch_operands = 0 : i64, tpu.core_type = #tpu.core_type<tc>, window_params = [{transform_indices = @transform_0, window_bounds = array<i64: 64, 128>}, {transform_indices = @transform_1, window_bounds = array<i64: 128, 128>}, {transform_indices = @transform_2, window_bounds = array<i64: 1, 128>}, {transform_indices = @transform_3, window_bounds = array<i64: 64, 128>}, {transform_indices = @transform_4, window_bounds = array<i64: 64, 128>}]} {
    %c0 = arith.constant 0 : index
    %c0_0 = arith.constant 0 : index
    %0 = vector.load %arg2[%c0, %c0_0] : memref<64x128xbf16, #tpu.memory_space<vmem>>, vector<64x128xbf16>
    %c0_1 = arith.constant 0 : index
    %c0_2 = arith.constant 0 : index
    %1 = vector.load %arg3[%c0_1, %c0_2] : memref<128x128xbf16, #tpu.memory_space<vmem>>, vector<128x128xbf16>
    %cst = arith.constant dense<0.000000e+00> : vector<64x128xf32>
    %2 = tpu.matmul %0, %1, %cst {dimension_numbers = #tpu.dot_dimension_numbers<[1], [0], [0], [1], [0, 0, 1, 1], [], []>} : vector<64x128xbf16>, vector<128x128xbf16>, vector<64x128xf32> -> vector<64x128xf32>
    %c0_3 = arith.constant 0 : index
    %c0_4 = arith.constant 0 : index
    %3 = vector.load %arg4[%c0_3, %c0_4] : memref<1x128xf32, #tpu.memory_space<vmem>>, vector<1x128xf32>
    %4 = vector.broadcast %3 : vector<1x128xf32> to vector<64x128xf32>
    %5 = arith.addf %2, %4 : vector<64x128xf32>
    %c0_5 = arith.constant 0 : index
    %c0_6 = arith.constant 0 : index
    %6 = vector.load %arg5[%c0_5, %c0_6] : memref<64x128xbf16, #tpu.memory_space<vmem>>, vector<64x128xbf16>
    %7 = arith.extf %6 : vector<64x128xbf16> to vector<64x128xf32>
    %8 = arith.addf %5, %7 : vector<64x128xf32>
    %cst_7 = arith.constant 0.000000e+00 : f32
    %9 = vector.broadcast %cst_7 : f32 to vector<64x128xf32>
    %10 = arith.maximumf %8, %9 : vector<64x128xf32>
    %11 = arith.truncf %10 : vector<64x128xf32> to vector<64x128xbf16>
    %c0_8 = arith.constant 0 : index
    %c0_9 = arith.constant 0 : index
    %12 = vector.load %arg6[%c0_8, %c0_9] : memref<64x128xbf16, #tpu.memory_space<vmem>>, vector<64x128xbf16>
    tpu.vector_store %arg6[%c0_8, %c0_9], %11 {strides = array<i32>} : memref<64x128xbf16, #tpu.memory_space<vmem>>, vector<64x128xbf16>,
    return
  }
  func.func @transform_0(%arg0: i32, %arg1: i32) -> (i32, i32) {
    %c0_i32 = arith.constant 0 : i32
    %c0_i32_0 = arith.constant 0 : i32
    return %arg0, %c0_i32 : i32, i32
  }
  func.func @transform_1(%arg0: i32, %arg1: i32) -> (i32, i32) {
    %c0_i32 = arith.constant 0 : i32
    %c0_i32_0 = arith.constant 0 : i32
    return %c0_i32, %arg1 : i32, i32
  }
  func.func @transform_2(%arg0: i32, %arg1: i32) -> (i32, i32) {
    %c0_i32 = arith.constant 0 : i32
    %c0_i32_0 = arith.constant 0 : i32
    return %c0_i32, %arg1 : i32, i32
  }
  func.func @transform_3(%arg0: i32, %arg1: i32) -> (i32, i32) {
    %c0_i32 = arith.constant 0 : i32
    return %arg0, %arg1 : i32, i32
  }
  func.func @transform_4(%arg0: i32, %arg1: i32) -> (i32, i32) {
    %c0_i32 = arith.constant 0 : i32
    return %arg0, %arg1 : i32, i32
  }
}

module attributes {stable_mosaic.version = 11 : i64} {
  func.func @_mm1_kernel(%arg0: i32, %arg1: i32, %arg2: memref<32x256xbf16, #tpu.memory_space<vmem>>, %arg3: memref<256x128xbf16, #tpu.memory_space<vmem>>, %arg4: memref<1x128xf32, #tpu.memory_space<vmem>>, %arg5: memref<32x128xbf16, #tpu.memory_space<vmem>>) attributes {dimension_semantics = [#tpu.dimension_semantics<parallel>, #tpu.dimension_semantics<parallel>], iteration_bounds = array<i64: 1, 1>, scalar_prefetch = 0 : i64, scratch_operands = 0 : i64, tpu.core_type = #tpu.core_type<tc>, window_params = [{transform_indices = @transform_0, window_bounds = array<i64: 32, 256>}, {transform_indices = @transform_1, window_bounds = array<i64: 256, 128>}, {transform_indices = @transform_2, window_bounds = array<i64: 1, 128>}, {transform_indices = @transform_3, window_bounds = array<i64: 32, 128>}]} {
    %c0 = arith.constant 0 : index
    %c0_0 = arith.constant 0 : index
    %0 = vector.load %arg2[%c0, %c0_0] : memref<32x256xbf16, #tpu.memory_space<vmem>>, vector<32x256xbf16>
    %c0_1 = arith.constant 0 : index
    %c0_2 = arith.constant 0 : index
    %1 = vector.load %arg3[%c0_1, %c0_2] : memref<256x128xbf16, #tpu.memory_space<vmem>>, vector<256x128xbf16>
    %cst = arith.constant dense<0.000000e+00> : vector<32x128xf32>
    %2 = tpu.matmul %0, %1, %cst {dimension_numbers = #tpu.dot_dimension_numbers<[1], [0], [0], [1], [0, 0, 1, 1], [], []>} : vector<32x256xbf16>, vector<256x128xbf16>, vector<32x128xf32> -> vector<32x128xf32>
    %c0_3 = arith.constant 0 : index
    %c0_4 = arith.constant 0 : index
    %3 = vector.load %arg4[%c0_3, %c0_4] : memref<1x128xf32, #tpu.memory_space<vmem>>, vector<1x128xf32>
    %4 = vector.broadcast %3 : vector<1x128xf32> to vector<32x128xf32>
    %5 = arith.addf %2, %4 : vector<32x128xf32>
    %cst_5 = arith.constant 0.000000e+00 : f32
    %6 = vector.broadcast %cst_5 : f32 to vector<32x128xf32>
    %7 = arith.maximumf %5, %6 : vector<32x128xf32>
    %8 = arith.truncf %7 : vector<32x128xf32> to vector<32x128xbf16>
    %c0_6 = arith.constant 0 : index
    %c0_7 = arith.constant 0 : index
    %9 = vector.load %arg5[%c0_6, %c0_7] : memref<32x128xbf16, #tpu.memory_space<vmem>>, vector<32x128xbf16>
    tpu.vector_store %arg5[%c0_6, %c0_7], %8 {strides = array<i32>} : memref<32x128xbf16, #tpu.memory_space<vmem>>, vector<32x128xbf16>,
    return
  }
  func.func @transform_0(%arg0: i32, %arg1: i32) -> (i32, i32) {
    %c0_i32 = arith.constant 0 : i32
    %c0_i32_0 = arith.constant 0 : i32
    return %arg0, %c0_i32 : i32, i32
  }
  func.func @transform_1(%arg0: i32, %arg1: i32) -> (i32, i32) {
    %c0_i32 = arith.constant 0 : i32
    %c0_i32_0 = arith.constant 0 : i32
    return %c0_i32, %arg1 : i32, i32
  }
  func.func @transform_2(%arg0: i32, %arg1: i32) -> (i32, i32) {
    %c0_i32 = arith.constant 0 : i32
    %c0_i32_0 = arith.constant 0 : i32
    return %c0_i32, %arg1 : i32, i32
  }
  func.func @transform_3(%arg0: i32, %arg1: i32) -> (i32, i32) {
    %c0_i32 = arith.constant 0 : i32
    return %arg0, %arg1 : i32, i32
  }
}

module attributes {stable_mosaic.version = 11 : i64} {
  func.func @_mm1_kernel(%arg0: i32, %arg1: i32, %arg2: memref<32x128xbf16, #tpu.memory_space<vmem>>, %arg3: memref<128x128xbf16, #tpu.memory_space<vmem>>, %arg4: memref<1x128xf32, #tpu.memory_space<vmem>>, %arg5: memref<32x128xbf16, #tpu.memory_space<vmem>>) attributes {dimension_semantics = [#tpu.dimension_semantics<parallel>, #tpu.dimension_semantics<parallel>], iteration_bounds = array<i64: 1, 1>, scalar_prefetch = 0 : i64, scratch_operands = 0 : i64, tpu.core_type = #tpu.core_type<tc>, window_params = [{transform_indices = @transform_0, window_bounds = array<i64: 32, 128>}, {transform_indices = @transform_1, window_bounds = array<i64: 128, 128>}, {transform_indices = @transform_2, window_bounds = array<i64: 1, 128>}, {transform_indices = @transform_3, window_bounds = array<i64: 32, 128>}]} {
    %c0 = arith.constant 0 : index
    %c0_0 = arith.constant 0 : index
    %0 = vector.load %arg2[%c0, %c0_0] : memref<32x128xbf16, #tpu.memory_space<vmem>>, vector<32x128xbf16>
    %c0_1 = arith.constant 0 : index
    %c0_2 = arith.constant 0 : index
    %1 = vector.load %arg3[%c0_1, %c0_2] : memref<128x128xbf16, #tpu.memory_space<vmem>>, vector<128x128xbf16>
    %cst = arith.constant dense<0.000000e+00> : vector<32x128xf32>
    %2 = tpu.matmul %0, %1, %cst {dimension_numbers = #tpu.dot_dimension_numbers<[1], [0], [0], [1], [0, 0, 1, 1], [], []>} : vector<32x128xbf16>, vector<128x128xbf16>, vector<32x128xf32> -> vector<32x128xf32>
    %c0_3 = arith.constant 0 : index
    %c0_4 = arith.constant 0 : index
    %3 = vector.load %arg4[%c0_3, %c0_4] : memref<1x128xf32, #tpu.memory_space<vmem>>, vector<1x128xf32>
    %4 = vector.broadcast %3 : vector<1x128xf32> to vector<32x128xf32>
    %5 = arith.addf %2, %4 : vector<32x128xf32>
    %6 = arith.truncf %5 : vector<32x128xf32> to vector<32x128xbf16>
    %c0_5 = arith.constant 0 : index
    %c0_6 = arith.constant 0 : index
    %7 = vector.load %arg5[%c0_5, %c0_6] : memref<32x128xbf16, #tpu.memory_space<vmem>>, vector<32x128xbf16>
    tpu.vector_store %arg5[%c0_5, %c0_6], %6 {strides = array<i32>} : memref<32x128xbf16, #tpu.memory_space<vmem>>, vector<32x128xbf16>,
    return
  }
  func.func @transform_0(%arg0: i32, %arg1: i32) -> (i32, i32) {
    %c0_i32 = arith.constant 0 : i32
    %c0_i32_0 = arith.constant 0 : i32
    return %arg0, %c0_i32 : i32, i32
  }
  func.func @transform_1(%arg0: i32, %arg1: i32) -> (i32, i32) {
    %c0_i32 = arith.constant 0 : i32
    %c0_i32_0 = arith.constant 0 : i32
    return %c0_i32, %arg1 : i32, i32
  }
  func.func @transform_2(%arg0: i32, %arg1: i32) -> (i32, i32) {
    %c0_i32 = arith.constant 0 : i32
    %c0_i32_0 = arith.constant 0 : i32
    return %c0_i32, %arg1 : i32, i32
  }
  func.func @transform_3(%arg0: i32, %arg1: i32) -> (i32, i32) {
    %c0_i32 = arith.constant 0 : i32
    return %arg0, %arg1 : i32, i32
  }
}

module attributes {stable_mosaic.version = 11 : i64} {
  func.func @_mm1_res_kernel(%arg0: i32, %arg1: i32, %arg2: memref<32x128xbf16, #tpu.memory_space<vmem>>, %arg3: memref<128x128xbf16, #tpu.memory_space<vmem>>, %arg4: memref<1x128xf32, #tpu.memory_space<vmem>>, %arg5: memref<32x128xbf16, #tpu.memory_space<vmem>>, %arg6: memref<32x128xbf16, #tpu.memory_space<vmem>>) attributes {dimension_semantics = [#tpu.dimension_semantics<parallel>, #tpu.dimension_semantics<parallel>], iteration_bounds = array<i64: 1, 1>, scalar_prefetch = 0 : i64, scratch_operands = 0 : i64, tpu.core_type = #tpu.core_type<tc>, window_params = [{transform_indices = @transform_0, window_bounds = array<i64: 32, 128>}, {transform_indices = @transform_1, window_bounds = array<i64: 128, 128>}, {transform_indices = @transform_2, window_bounds = array<i64: 1, 128>}, {transform_indices = @transform_3, window_bounds = array<i64: 32, 128>}, {transform_indices = @transform_4, window_bounds = array<i64: 32, 128>}]} {
    %c0 = arith.constant 0 : index
    %c0_0 = arith.constant 0 : index
    %0 = vector.load %arg2[%c0, %c0_0] : memref<32x128xbf16, #tpu.memory_space<vmem>>, vector<32x128xbf16>
    %c0_1 = arith.constant 0 : index
    %c0_2 = arith.constant 0 : index
    %1 = vector.load %arg3[%c0_1, %c0_2] : memref<128x128xbf16, #tpu.memory_space<vmem>>, vector<128x128xbf16>
    %cst = arith.constant dense<0.000000e+00> : vector<32x128xf32>
    %2 = tpu.matmul %0, %1, %cst {dimension_numbers = #tpu.dot_dimension_numbers<[1], [0], [0], [1], [0, 0, 1, 1], [], []>} : vector<32x128xbf16>, vector<128x128xbf16>, vector<32x128xf32> -> vector<32x128xf32>
    %c0_3 = arith.constant 0 : index
    %c0_4 = arith.constant 0 : index
    %3 = vector.load %arg4[%c0_3, %c0_4] : memref<1x128xf32, #tpu.memory_space<vmem>>, vector<1x128xf32>
    %4 = vector.broadcast %3 : vector<1x128xf32> to vector<32x128xf32>
    %5 = arith.addf %2, %4 : vector<32x128xf32>
    %c0_5 = arith.constant 0 : index
    %c0_6 = arith.constant 0 : index
    %6 = vector.load %arg5[%c0_5, %c0_6] : memref<32x128xbf16, #tpu.memory_space<vmem>>, vector<32x128xbf16>
    %7 = arith.extf %6 : vector<32x128xbf16> to vector<32x128xf32>
    %8 = arith.addf %5, %7 : vector<32x128xf32>
    %cst_7 = arith.constant 0.000000e+00 : f32
    %9 = vector.broadcast %cst_7 : f32 to vector<32x128xf32>
    %10 = arith.maximumf %8, %9 : vector<32x128xf32>
    %11 = arith.truncf %10 : vector<32x128xf32> to vector<32x128xbf16>
    %c0_8 = arith.constant 0 : index
    %c0_9 = arith.constant 0 : index
    %12 = vector.load %arg6[%c0_8, %c0_9] : memref<32x128xbf16, #tpu.memory_space<vmem>>, vector<32x128xbf16>
    tpu.vector_store %arg6[%c0_8, %c0_9], %11 {strides = array<i32>} : memref<32x128xbf16, #tpu.memory_space<vmem>>, vector<32x128xbf16>,
    return
  }
  func.func @transform_0(%arg0: i32, %arg1: i32) -> (i32, i32) {
    %c0_i32 = arith.constant 0 : i32
    %c0_i32_0 = arith.constant 0 : i32
    return %arg0, %c0_i32 : i32, i32
  }
  func.func @transform_1(%arg0: i32, %arg1: i32) -> (i32, i32) {
    %c0_i32 = arith.constant 0 : i32
    %c0_i32_0 = arith.constant 0 : i32
    return %c0_i32, %arg1 : i32, i32
  }
  func.func @transform_2(%arg0: i32, %arg1: i32) -> (i32, i32) {
    %c0_i32 = arith.constant 0 : i32
    %c0_i32_0 = arith.constant 0 : i32
    return %c0_i32, %arg1 : i32, i32
  }
  func.func @transform_3(%arg0: i32, %arg1: i32) -> (i32, i32) {
    %c0_i32 = arith.constant 0 : i32
    return %arg0, %arg1 : i32, i32
  }
  func.func @transform_4(%arg0: i32, %arg1: i32) -> (i32, i32) {
    %c0_i32 = arith.constant 0 : i32
    return %arg0, %arg1 : i32, i32
  }
}

module attributes {stable_mosaic.version = 11 : i64} {
  func.func @_mm1_kernel(%arg0: i32, %arg1: i32, %arg2: memref<32x128xbf16, #tpu.memory_space<vmem>>, %arg3: memref<128x128xbf16, #tpu.memory_space<vmem>>, %arg4: memref<1x128xf32, #tpu.memory_space<vmem>>, %arg5: memref<32x128xbf16, #tpu.memory_space<vmem>>) attributes {dimension_semantics = [#tpu.dimension_semantics<parallel>, #tpu.dimension_semantics<parallel>], iteration_bounds = array<i64: 1, 1>, scalar_prefetch = 0 : i64, scratch_operands = 0 : i64, tpu.core_type = #tpu.core_type<tc>, window_params = [{transform_indices = @transform_0, window_bounds = array<i64: 32, 128>}, {transform_indices = @transform_1, window_bounds = array<i64: 128, 128>}, {transform_indices = @transform_2, window_bounds = array<i64: 1, 128>}, {transform_indices = @transform_3, window_bounds = array<i64: 32, 128>}]} {
    %c0 = arith.constant 0 : index
    %c0_0 = arith.constant 0 : index
    %0 = vector.load %arg2[%c0, %c0_0] : memref<32x128xbf16, #tpu.memory_space<vmem>>, vector<32x128xbf16>
    %c0_1 = arith.constant 0 : index
    %c0_2 = arith.constant 0 : index
    %1 = vector.load %arg3[%c0_1, %c0_2] : memref<128x128xbf16, #tpu.memory_space<vmem>>, vector<128x128xbf16>
    %cst = arith.constant dense<0.000000e+00> : vector<32x128xf32>
    %2 = tpu.matmul %0, %1, %cst {dimension_numbers = #tpu.dot_dimension_numbers<[1], [0], [0], [1], [0, 0, 1, 1], [], []>} : vector<32x128xbf16>, vector<128x128xbf16>, vector<32x128xf32> -> vector<32x128xf32>
    %c0_3 = arith.constant 0 : index
    %c0_4 = arith.constant 0 : index
    %3 = vector.load %arg4[%c0_3, %c0_4] : memref<1x128xf32, #tpu.memory_space<vmem>>, vector<1x128xf32>
    %4 = vector.broadcast %3 : vector<1x128xf32> to vector<32x128xf32>
    %5 = arith.addf %2, %4 : vector<32x128xf32>
    %cst_5 = arith.constant 0.000000e+00 : f32
    %6 = vector.broadcast %cst_5 : f32 to vector<32x128xf32>
    %7 = arith.maximumf %5, %6 : vector<32x128xf32>
    %8 = arith.truncf %7 : vector<32x128xf32> to vector<32x128xbf16>
    %c0_6 = arith.constant 0 : index
    %c0_7 = arith.constant 0 : index
    %9 = vector.load %arg5[%c0_6, %c0_7] : memref<32x128xbf16, #tpu.memory_space<vmem>>, vector<32x128xbf16>
    tpu.vector_store %arg5[%c0_6, %c0_7], %8 {strides = array<i32>} : memref<32x128xbf16, #tpu.memory_space<vmem>>, vector<32x128xbf16>,
    return
  }
  func.func @transform_0(%arg0: i32, %arg1: i32) -> (i32, i32) {
    %c0_i32 = arith.constant 0 : i32
    %c0_i32_0 = arith.constant 0 : i32
    return %arg0, %c0_i32 : i32, i32
  }
  func.func @transform_1(%arg0: i32, %arg1: i32) -> (i32, i32) {
    %c0_i32 = arith.constant 0 : i32
    %c0_i32_0 = arith.constant 0 : i32
    return %c0_i32, %arg1 : i32, i32
  }
  func.func @transform_2(%arg0: i32, %arg1: i32) -> (i32, i32) {
    %c0_i32 = arith.constant 0 : i32
    %c0_i32_0 = arith.constant 0 : i32
    return %c0_i32, %arg1 : i32, i32
  }
  func.func @transform_3(%arg0: i32, %arg1: i32) -> (i32, i32) {
    %c0_i32 = arith.constant 0 : i32
    return %arg0, %arg1 : i32, i32
  }
}

module attributes {stable_mosaic.version = 11 : i64} {
  func.func @_mm1_kernel(%arg0: i32, %arg1: i32, %arg2: memref<8x128xbf16, #tpu.memory_space<vmem>>, %arg3: memref<128x128xbf16, #tpu.memory_space<vmem>>, %arg4: memref<1x128xf32, #tpu.memory_space<vmem>>, %arg5: memref<8x128xbf16, #tpu.memory_space<vmem>>) attributes {dimension_semantics = [#tpu.dimension_semantics<parallel>, #tpu.dimension_semantics<parallel>], iteration_bounds = array<i64: 1, 1>, scalar_prefetch = 0 : i64, scratch_operands = 0 : i64, tpu.core_type = #tpu.core_type<tc>, window_params = [{transform_indices = @transform_0, window_bounds = array<i64: 8, 128>}, {transform_indices = @transform_1, window_bounds = array<i64: 128, 128>}, {transform_indices = @transform_2, window_bounds = array<i64: 1, 128>}, {transform_indices = @transform_3, window_bounds = array<i64: 8, 128>}]} {
    %c0 = arith.constant 0 : index
    %c0_0 = arith.constant 0 : index
    %0 = vector.load %arg2[%c0, %c0_0] : memref<8x128xbf16, #tpu.memory_space<vmem>>, vector<8x128xbf16>
    %c0_1 = arith.constant 0 : index
    %c0_2 = arith.constant 0 : index
    %1 = vector.load %arg3[%c0_1, %c0_2] : memref<128x128xbf16, #tpu.memory_space<vmem>>, vector<128x128xbf16>
    %cst = arith.constant dense<0.000000e+00> : vector<8x128xf32>
    %2 = tpu.matmul %0, %1, %cst {dimension_numbers = #tpu.dot_dimension_numbers<[1], [0], [0], [1], [0, 0, 1, 1], [], []>} : vector<8x128xbf16>, vector<128x128xbf16>, vector<8x128xf32> -> vector<8x128xf32>
    %c0_3 = arith.constant 0 : index
    %c0_4 = arith.constant 0 : index
    %3 = vector.load %arg4[%c0_3, %c0_4] : memref<1x128xf32, #tpu.memory_space<vmem>>, vector<1x128xf32>
    %4 = vector.broadcast %3 : vector<1x128xf32> to vector<8x128xf32>
    %5 = arith.addf %2, %4 : vector<8x128xf32>
    %6 = arith.truncf %5 : vector<8x128xf32> to vector<8x128xbf16>
    %c0_5 = arith.constant 0 : index
    %c0_6 = arith.constant 0 : index
    %7 = vector.load %arg5[%c0_5, %c0_6] : memref<8x128xbf16, #tpu.memory_space<vmem>>, vector<8x128xbf16>
    tpu.vector_store %arg5[%c0_5, %c0_6], %6 {strides = array<i32>} : memref<8x128xbf16, #tpu.memory_space<vmem>>, vector<8x128xbf16>,
    return
  }
  func.func @transform_0(%arg0: i32, %arg1: i32) -> (i32, i32) {
    %c0_i32 = arith.constant 0 : i32
    %c0_i32_0 = arith.constant 0 : i32
    return %arg0, %c0_i32 : i32, i32
  }
  func.func @transform_1(%arg0: i32, %arg1: i32) -> (i32, i32) {
    %c0_i32 = arith.constant 0 : i32
    %c0_i32_0 = arith.constant 0 : i32
    return %c0_i32, %arg1 : i32, i32
  }
  func.func @transform_2(%arg0: i32, %arg1: i32) -> (i32, i32) {
    %c0_i32 = arith.constant 0 : i32
    %c0_i32_0 = arith.constant 0 : i32
    return %c0_i32, %arg1 : i32, i32
  }
  func.func @transform_3(%arg0: i32, %arg1: i32) -> (i32, i32) {
    %c0_i32 = arith.constant 0 : i32
    return %arg0, %arg1 : i32, i32
  }
}

module attributes {stable_mosaic.version = 11 : i64} {
  func.func @_mm1_kernel(%arg0: i32, %arg1: i32, %arg2: memref<8x384xbf16, #tpu.memory_space<vmem>>, %arg3: memref<384x128xbf16, #tpu.memory_space<vmem>>, %arg4: memref<1x128xf32, #tpu.memory_space<vmem>>, %arg5: memref<8x128xbf16, #tpu.memory_space<vmem>>) attributes {dimension_semantics = [#tpu.dimension_semantics<parallel>, #tpu.dimension_semantics<parallel>], iteration_bounds = array<i64: 1, 1>, scalar_prefetch = 0 : i64, scratch_operands = 0 : i64, tpu.core_type = #tpu.core_type<tc>, window_params = [{transform_indices = @transform_0, window_bounds = array<i64: 8, 384>}, {transform_indices = @transform_1, window_bounds = array<i64: 384, 128>}, {transform_indices = @transform_2, window_bounds = array<i64: 1, 128>}, {transform_indices = @transform_3, window_bounds = array<i64: 8, 128>}]} {
    %c0 = arith.constant 0 : index
    %c0_0 = arith.constant 0 : index
    %0 = vector.load %arg2[%c0, %c0_0] : memref<8x384xbf16, #tpu.memory_space<vmem>>, vector<8x384xbf16>
    %c0_1 = arith.constant 0 : index
    %c0_2 = arith.constant 0 : index
    %1 = vector.load %arg3[%c0_1, %c0_2] : memref<384x128xbf16, #tpu.memory_space<vmem>>, vector<384x128xbf16>
    %cst = arith.constant dense<0.000000e+00> : vector<8x128xf32>
    %2 = tpu.matmul %0, %1, %cst {dimension_numbers = #tpu.dot_dimension_numbers<[1], [0], [0], [1], [0, 0, 1, 1], [], []>} : vector<8x384xbf16>, vector<384x128xbf16>, vector<8x128xf32> -> vector<8x128xf32>
    %c0_3 = arith.constant 0 : index
    %c0_4 = arith.constant 0 : index
    %3 = vector.load %arg4[%c0_3, %c0_4] : memref<1x128xf32, #tpu.memory_space<vmem>>, vector<1x128xf32>
    %4 = vector.broadcast %3 : vector<1x128xf32> to vector<8x128xf32>
    %5 = arith.addf %2, %4 : vector<8x128xf32>
    %cst_5 = arith.constant 0.000000e+00 : f32
    %6 = vector.broadcast %cst_5 : f32 to vector<8x128xf32>
    %7 = arith.maximumf %5, %6 : vector<8x128xf32>
    %8 = arith.truncf %7 : vector<8x128xf32> to vector<8x128xbf16>
    %c0_6 = arith.constant 0 : index
    %c0_7 = arith.constant 0 : index
    %9 = vector.load %arg5[%c0_6, %c0_7] : memref<8x128xbf16, #tpu.memory_space<vmem>>, vector<8x128xbf16>
    tpu.vector_store %arg5[%c0_6, %c0_7], %8 {strides = array<i32>} : memref<8x128xbf16, #tpu.memory_space<vmem>>, vector<8x128xbf16>,
    return
  }
  func.func @transform_0(%arg0: i32, %arg1: i32) -> (i32, i32) {
    %c0_i32 = arith.constant 0 : i32
    %c0_i32_0 = arith.constant 0 : i32
    return %arg0, %c0_i32 : i32, i32
  }
  func.func @transform_1(%arg0: i32, %arg1: i32) -> (i32, i32) {
    %c0_i32 = arith.constant 0 : i32
    %c0_i32_0 = arith.constant 0 : i32
    return %c0_i32, %arg1 : i32, i32
  }
  func.func @transform_2(%arg0: i32, %arg1: i32) -> (i32, i32) {
    %c0_i32 = arith.constant 0 : i32
    %c0_i32_0 = arith.constant 0 : i32
    return %c0_i32, %arg1 : i32, i32
  }
  func.func @transform_3(%arg0: i32, %arg1: i32) -> (i32, i32) {
    %c0_i32 = arith.constant 0 : i32
    return %arg0, %arg1 : i32, i32
  }
}

module attributes {stable_mosaic.version = 11 : i64} {
  func.func @_mm1_res_kernel(%arg0: i32, %arg1: i32, %arg2: memref<8x128xbf16, #tpu.memory_space<vmem>>, %arg3: memref<128x128xbf16, #tpu.memory_space<vmem>>, %arg4: memref<1x128xf32, #tpu.memory_space<vmem>>, %arg5: memref<8x128xbf16, #tpu.memory_space<vmem>>, %arg6: memref<8x128xbf16, #tpu.memory_space<vmem>>) attributes {dimension_semantics = [#tpu.dimension_semantics<parallel>, #tpu.dimension_semantics<parallel>], iteration_bounds = array<i64: 1, 1>, scalar_prefetch = 0 : i64, scratch_operands = 0 : i64, tpu.core_type = #tpu.core_type<tc>, window_params = [{transform_indices = @transform_0, window_bounds = array<i64: 8, 128>}, {transform_indices = @transform_1, window_bounds = array<i64: 128, 128>}, {transform_indices = @transform_2, window_bounds = array<i64: 1, 128>}, {transform_indices = @transform_3, window_bounds = array<i64: 8, 128>}, {transform_indices = @transform_4, window_bounds = array<i64: 8, 128>}]} {
    %c0 = arith.constant 0 : index
    %c0_0 = arith.constant 0 : index
    %0 = vector.load %arg2[%c0, %c0_0] : memref<8x128xbf16, #tpu.memory_space<vmem>>, vector<8x128xbf16>
    %c0_1 = arith.constant 0 : index
    %c0_2 = arith.constant 0 : index
    %1 = vector.load %arg3[%c0_1, %c0_2] : memref<128x128xbf16, #tpu.memory_space<vmem>>, vector<128x128xbf16>
    %cst = arith.constant dense<0.000000e+00> : vector<8x128xf32>
    %2 = tpu.matmul %0, %1, %cst {dimension_numbers = #tpu.dot_dimension_numbers<[1], [0], [0], [1], [0, 0, 1, 1], [], []>} : vector<8x128xbf16>, vector<128x128xbf16>, vector<8x128xf32> -> vector<8x128xf32>
    %c0_3 = arith.constant 0 : index
    %c0_4 = arith.constant 0 : index
    %3 = vector.load %arg4[%c0_3, %c0_4] : memref<1x128xf32, #tpu.memory_space<vmem>>, vector<1x128xf32>
    %4 = vector.broadcast %3 : vector<1x128xf32> to vector<8x128xf32>
    %5 = arith.addf %2, %4 : vector<8x128xf32>
    %c0_5 = arith.constant 0 : index
    %c0_6 = arith.constant 0 : index
    %6 = vector.load %arg5[%c0_5, %c0_6] : memref<8x128xbf16, #tpu.memory_space<vmem>>, vector<8x128xbf16>
    %7 = arith.extf %6 : vector<8x128xbf16> to vector<8x128xf32>
    %8 = arith.addf %5, %7 : vector<8x128xf32>
    %cst_7 = arith.constant 0.000000e+00 : f32
    %9 = vector.broadcast %cst_7 : f32 to vector<8x128xf32>
    %10 = arith.maximumf %8, %9 : vector<8x128xf32>
    %11 = arith.truncf %10 : vector<8x128xf32> to vector<8x128xbf16>
    %c0_8 = arith.constant 0 : index
    %c0_9 = arith.constant 0 : index
    %12 = vector.load %arg6[%c0_8, %c0_9] : memref<8x128xbf16, #tpu.memory_space<vmem>>, vector<8x128xbf16>
    tpu.vector_store %arg6[%c0_8, %c0_9], %11 {strides = array<i32>} : memref<8x128xbf16, #tpu.memory_space<vmem>>, vector<8x128xbf16>,
    return
  }
  func.func @transform_0(%arg0: i32, %arg1: i32) -> (i32, i32) {
    %c0_i32 = arith.constant 0 : i32
    %c0_i32_0 = arith.constant 0 : i32
    return %arg0, %c0_i32 : i32, i32
  }
  func.func @transform_1(%arg0: i32, %arg1: i32) -> (i32, i32) {
    %c0_i32 = arith.constant 0 : i32
    %c0_i32_0 = arith.constant 0 : i32
    return %c0_i32, %arg1 : i32, i32
  }
  func.func @transform_2(%arg0: i32, %arg1: i32) -> (i32, i32) {
    %c0_i32 = arith.constant 0 : i32
    %c0_i32_0 = arith.constant 0 : i32
    return %c0_i32, %arg1 : i32, i32
  }
  func.func @transform_3(%arg0: i32, %arg1: i32) -> (i32, i32) {
    %c0_i32 = arith.constant 0 : i32
    return %arg0, %arg1 : i32, i32
  }
  func.func @transform_4(%arg0: i32, %arg1: i32) -> (i32, i32) {
    %c0_i32 = arith.constant 0 : i32
    return %arg0, %arg1 : i32, i32
  }
}

module attributes {stable_mosaic.version = 11 : i64} {
  func.func @_mm1_kernel(%arg0: i32, %arg1: i32, %arg2: memref<8x128xbf16, #tpu.memory_space<vmem>>, %arg3: memref<128x128xbf16, #tpu.memory_space<vmem>>, %arg4: memref<1x128xf32, #tpu.memory_space<vmem>>, %arg5: memref<8x128xbf16, #tpu.memory_space<vmem>>) attributes {dimension_semantics = [#tpu.dimension_semantics<parallel>, #tpu.dimension_semantics<parallel>], iteration_bounds = array<i64: 1, 1>, scalar_prefetch = 0 : i64, scratch_operands = 0 : i64, tpu.core_type = #tpu.core_type<tc>, window_params = [{transform_indices = @transform_0, window_bounds = array<i64: 8, 128>}, {transform_indices = @transform_1, window_bounds = array<i64: 128, 128>}, {transform_indices = @transform_2, window_bounds = array<i64: 1, 128>}, {transform_indices = @transform_3, window_bounds = array<i64: 8, 128>}]} {
    %c0 = arith.constant 0 : index
    %c0_0 = arith.constant 0 : index
    %0 = vector.load %arg2[%c0, %c0_0] : memref<8x128xbf16, #tpu.memory_space<vmem>>, vector<8x128xbf16>
    %c0_1 = arith.constant 0 : index
    %c0_2 = arith.constant 0 : index
    %1 = vector.load %arg3[%c0_1, %c0_2] : memref<128x128xbf16, #tpu.memory_space<vmem>>, vector<128x128xbf16>
    %cst = arith.constant dense<0.000000e+00> : vector<8x128xf32>
    %2 = tpu.matmul %0, %1, %cst {dimension_numbers = #tpu.dot_dimension_numbers<[1], [0], [0], [1], [0, 0, 1, 1], [], []>} : vector<8x128xbf16>, vector<128x128xbf16>, vector<8x128xf32> -> vector<8x128xf32>
    %c0_3 = arith.constant 0 : index
    %c0_4 = arith.constant 0 : index
    %3 = vector.load %arg4[%c0_3, %c0_4] : memref<1x128xf32, #tpu.memory_space<vmem>>, vector<1x128xf32>
    %4 = vector.broadcast %3 : vector<1x128xf32> to vector<8x128xf32>
    %5 = arith.addf %2, %4 : vector<8x128xf32>
    %cst_5 = arith.constant 0.000000e+00 : f32
    %6 = vector.broadcast %cst_5 : f32 to vector<8x128xf32>
    %7 = arith.maximumf %5, %6 : vector<8x128xf32>
    %8 = arith.truncf %7 : vector<8x128xf32> to vector<8x128xbf16>
    %c0_6 = arith.constant 0 : index
    %c0_7 = arith.constant 0 : index
    %9 = vector.load %arg5[%c0_6, %c0_7] : memref<8x128xbf16, #tpu.memory_space<vmem>>, vector<8x128xbf16>
    tpu.vector_store %arg5[%c0_6, %c0_7], %8 {strides = array<i32>} : memref<8x128xbf16, #tpu.memory_space<vmem>>, vector<8x128xbf16>,
    return
  }
  func.func @transform_0(%arg0: i32, %arg1: i32) -> (i32, i32) {
    %c0_i32 = arith.constant 0 : i32
    %c0_i32_0 = arith.constant 0 : i32
    return %arg0, %c0_i32 : i32, i32
  }
  func.func @transform_1(%arg0: i32, %arg1: i32) -> (i32, i32) {
    %c0_i32 = arith.constant 0 : i32
    %c0_i32_0 = arith.constant 0 : i32
    return %c0_i32, %arg1 : i32, i32
  }
  func.func @transform_2(%arg0: i32, %arg1: i32) -> (i32, i32) {
    %c0_i32 = arith.constant 0 : i32
    %c0_i32_0 = arith.constant 0 : i32
    return %c0_i32, %arg1 : i32, i32
  }
  func.func @transform_3(%arg0: i32, %arg1: i32) -> (i32, i32) {
    %c0_i32 = arith.constant 0 : i32
    return %arg0, %arg1 : i32, i32
  }
}

module attributes {stable_mosaic.version = 11 : i64} {
  func.func @_mm1_kernel(%arg0: i32, %arg1: i32, %arg2: memref<8x640xbf16, #tpu.memory_space<vmem>>, %arg3: memref<640x128xbf16, #tpu.memory_space<vmem>>, %arg4: memref<1x128xf32, #tpu.memory_space<vmem>>, %arg5: memref<8x128xbf16, #tpu.memory_space<vmem>>) attributes {dimension_semantics = [#tpu.dimension_semantics<parallel>, #tpu.dimension_semantics<parallel>], iteration_bounds = array<i64: 1, 1>, scalar_prefetch = 0 : i64, scratch_operands = 0 : i64, tpu.core_type = #tpu.core_type<tc>, window_params = [{transform_indices = @transform_0, window_bounds = array<i64: 8, 640>}, {transform_indices = @transform_1, window_bounds = array<i64: 640, 128>}, {transform_indices = @transform_2, window_bounds = array<i64: 1, 128>}, {transform_indices = @transform_3, window_bounds = array<i64: 8, 128>}]} {
    %c0 = arith.constant 0 : index
    %c0_0 = arith.constant 0 : index
    %0 = vector.load %arg2[%c0, %c0_0] : memref<8x640xbf16, #tpu.memory_space<vmem>>, vector<8x640xbf16>
    %c0_1 = arith.constant 0 : index
    %c0_2 = arith.constant 0 : index
    %1 = vector.load %arg3[%c0_1, %c0_2] : memref<640x128xbf16, #tpu.memory_space<vmem>>, vector<640x128xbf16>
    %cst = arith.constant dense<0.000000e+00> : vector<8x128xf32>
    %2 = tpu.matmul %0, %1, %cst {dimension_numbers = #tpu.dot_dimension_numbers<[1], [0], [0], [1], [0, 0, 1, 1], [], []>} : vector<8x640xbf16>, vector<640x128xbf16>, vector<8x128xf32> -> vector<8x128xf32>
    %c0_3 = arith.constant 0 : index
    %c0_4 = arith.constant 0 : index
    %3 = vector.load %arg4[%c0_3, %c0_4] : memref<1x128xf32, #tpu.memory_space<vmem>>, vector<1x128xf32>
    %4 = vector.broadcast %3 : vector<1x128xf32> to vector<8x128xf32>
    %5 = arith.addf %2, %4 : vector<8x128xf32>
    %cst_5 = arith.constant 0.000000e+00 : f32
    %6 = vector.broadcast %cst_5 : f32 to vector<8x128xf32>
    %7 = arith.maximumf %5, %6 : vector<8x128xf32>
    %8 = arith.truncf %7 : vector<8x128xf32> to vector<8x128xbf16>
    %c0_6 = arith.constant 0 : index
    %c0_7 = arith.constant 0 : index
    %9 = vector.load %arg5[%c0_6, %c0_7] : memref<8x128xbf16, #tpu.memory_space<vmem>>, vector<8x128xbf16>
    tpu.vector_store %arg5[%c0_6, %c0_7], %8 {strides = array<i32>} : memref<8x128xbf16, #tpu.memory_space<vmem>>, vector<8x128xbf16>,
    return
  }
  func.func @transform_0(%arg0: i32, %arg1: i32) -> (i32, i32) {
    %c0_i32 = arith.constant 0 : i32
    %c0_i32_0 = arith.constant 0 : i32
    return %arg0, %c0_i32 : i32, i32
  }
  func.func @transform_1(%arg0: i32, %arg1: i32) -> (i32, i32) {
    %c0_i32 = arith.constant 0 : i32
    %c0_i32_0 = arith.constant 0 : i32
    return %c0_i32, %arg1 : i32, i32
  }
  func.func @transform_2(%arg0: i32, %arg1: i32) -> (i32, i32) {
    %c0_i32 = arith.constant 0 : i32
    %c0_i32_0 = arith.constant 0 : i32
    return %c0_i32, %arg1 : i32, i32
  }
  func.func @transform_3(%arg0: i32, %arg1: i32) -> (i32, i32) {
    %c0_i32 = arith.constant 0 : i32
    return %arg0, %arg1 : i32, i32
  }
}

module attributes {stable_mosaic.version = 11 : i64} {
  func.func @_mm1_kernel(%arg0: i32, %arg1: i32, %arg2: memref<8x256xbf16, #tpu.memory_space<vmem>>, %arg3: memref<256x128xbf16, #tpu.memory_space<vmem>>, %arg4: memref<1x128xf32, #tpu.memory_space<vmem>>, %arg5: memref<8x128xbf16, #tpu.memory_space<vmem>>) attributes {dimension_semantics = [#tpu.dimension_semantics<parallel>, #tpu.dimension_semantics<parallel>], iteration_bounds = array<i64: 1, 1>, scalar_prefetch = 0 : i64, scratch_operands = 0 : i64, tpu.core_type = #tpu.core_type<tc>, window_params = [{transform_indices = @transform_0, window_bounds = array<i64: 8, 256>}, {transform_indices = @transform_1, window_bounds = array<i64: 256, 128>}, {transform_indices = @transform_2, window_bounds = array<i64: 1, 128>}, {transform_indices = @transform_3, window_bounds = array<i64: 8, 128>}]} {
    %c0 = arith.constant 0 : index
    %c0_0 = arith.constant 0 : index
    %0 = vector.load %arg2[%c0, %c0_0] : memref<8x256xbf16, #tpu.memory_space<vmem>>, vector<8x256xbf16>
    %c0_1 = arith.constant 0 : index
    %c0_2 = arith.constant 0 : index
    %1 = vector.load %arg3[%c0_1, %c0_2] : memref<256x128xbf16, #tpu.memory_space<vmem>>, vector<256x128xbf16>
    %cst = arith.constant dense<0.000000e+00> : vector<8x128xf32>
    %2 = tpu.matmul %0, %1, %cst {dimension_numbers = #tpu.dot_dimension_numbers<[1], [0], [0], [1], [0, 0, 1, 1], [], []>} : vector<8x256xbf16>, vector<256x128xbf16>, vector<8x128xf32> -> vector<8x128xf32>
    %c0_3 = arith.constant 0 : index
    %c0_4 = arith.constant 0 : index
    %3 = vector.load %arg4[%c0_3, %c0_4] : memref<1x128xf32, #tpu.memory_space<vmem>>, vector<1x128xf32>
    %4 = vector.broadcast %3 : vector<1x128xf32> to vector<8x128xf32>
    %5 = arith.addf %2, %4 : vector<8x128xf32>
    %cst_5 = arith.constant 0.000000e+00 : f32
    %6 = vector.broadcast %cst_5 : f32 to vector<8x128xf32>
    %7 = arith.maximumf %5, %6 : vector<8x128xf32>
    %8 = arith.truncf %7 : vector<8x128xf32> to vector<8x128xbf16>
    %c0_6 = arith.constant 0 : index
    %c0_7 = arith.constant 0 : index
    %9 = vector.load %arg5[%c0_6, %c0_7] : memref<8x128xbf16, #tpu.memory_space<vmem>>, vector<8x128xbf16>
    tpu.vector_store %arg5[%c0_6, %c0_7], %8 {strides = array<i32>} : memref<8x128xbf16, #tpu.memory_space<vmem>>, vector<8x128xbf16>,
    return
  }
  func.func @transform_0(%arg0: i32, %arg1: i32) -> (i32, i32) {
    %c0_i32 = arith.constant 0 : i32
    %c0_i32_0 = arith.constant 0 : i32
    return %arg0, %c0_i32 : i32, i32
  }
  func.func @transform_1(%arg0: i32, %arg1: i32) -> (i32, i32) {
    %c0_i32 = arith.constant 0 : i32
    %c0_i32_0 = arith.constant 0 : i32
    return %c0_i32, %arg1 : i32, i32
  }
  func.func @transform_2(%arg0: i32, %arg1: i32) -> (i32, i32) {
    %c0_i32 = arith.constant 0 : i32
    %c0_i32_0 = arith.constant 0 : i32
    return %c0_i32, %arg1 : i32, i32
  }
  func.func @transform_3(%arg0: i32, %arg1: i32) -> (i32, i32) {
    %c0_i32 = arith.constant 0 : i32
    return %arg0, %arg1 : i32, i32
  }
}

module attributes {stable_mosaic.version = 11 : i64} {
  func.func @_mm1_res_kernel(%arg0: i32, %arg1: i32, %arg2: memref<8x128xbf16, #tpu.memory_space<vmem>>, %arg3: memref<128x256xbf16, #tpu.memory_space<vmem>>, %arg4: memref<1x256xf32, #tpu.memory_space<vmem>>, %arg5: memref<8x256xbf16, #tpu.memory_space<vmem>>, %arg6: memref<8x256xbf16, #tpu.memory_space<vmem>>) attributes {dimension_semantics = [#tpu.dimension_semantics<parallel>, #tpu.dimension_semantics<parallel>], iteration_bounds = array<i64: 1, 1>, scalar_prefetch = 0 : i64, scratch_operands = 0 : i64, tpu.core_type = #tpu.core_type<tc>, window_params = [{transform_indices = @transform_0, window_bounds = array<i64: 8, 128>}, {transform_indices = @transform_1, window_bounds = array<i64: 128, 256>}, {transform_indices = @transform_2, window_bounds = array<i64: 1, 256>}, {transform_indices = @transform_3, window_bounds = array<i64: 8, 256>}, {transform_indices = @transform_4, window_bounds = array<i64: 8, 256>}]} {
    %c0 = arith.constant 0 : index
    %c0_0 = arith.constant 0 : index
    %0 = vector.load %arg2[%c0, %c0_0] : memref<8x128xbf16, #tpu.memory_space<vmem>>, vector<8x128xbf16>
    %c0_1 = arith.constant 0 : index
    %c0_2 = arith.constant 0 : index
    %1 = vector.load %arg3[%c0_1, %c0_2] : memref<128x256xbf16, #tpu.memory_space<vmem>>, vector<128x256xbf16>
    %cst = arith.constant dense<0.000000e+00> : vector<8x256xf32>
    %2 = tpu.matmul %0, %1, %cst {dimension_numbers = #tpu.dot_dimension_numbers<[1], [0], [0], [1], [0, 0, 1, 1], [], []>} : vector<8x128xbf16>, vector<128x256xbf16>, vector<8x256xf32> -> vector<8x256xf32>
    %c0_3 = arith.constant 0 : index
    %c0_4 = arith.constant 0 : index
    %3 = vector.load %arg4[%c0_3, %c0_4] : memref<1x256xf32, #tpu.memory_space<vmem>>, vector<1x256xf32>
    %4 = vector.broadcast %3 : vector<1x256xf32> to vector<8x256xf32>
    %5 = arith.addf %2, %4 : vector<8x256xf32>
    %c0_5 = arith.constant 0 : index
    %c0_6 = arith.constant 0 : index
    %6 = vector.load %arg5[%c0_5, %c0_6] : memref<8x256xbf16, #tpu.memory_space<vmem>>, vector<8x256xbf16>
    %7 = arith.extf %6 : vector<8x256xbf16> to vector<8x256xf32>
    %8 = arith.addf %5, %7 : vector<8x256xf32>
    %cst_7 = arith.constant 0.000000e+00 : f32
    %9 = vector.broadcast %cst_7 : f32 to vector<8x256xf32>
    %10 = arith.maximumf %8, %9 : vector<8x256xf32>
    %11 = arith.truncf %10 : vector<8x256xf32> to vector<8x256xbf16>
    %c0_8 = arith.constant 0 : index
    %c0_9 = arith.constant 0 : index
    %12 = vector.load %arg6[%c0_8, %c0_9] : memref<8x256xbf16, #tpu.memory_space<vmem>>, vector<8x256xbf16>
    tpu.vector_store %arg6[%c0_8, %c0_9], %11 {strides = array<i32>} : memref<8x256xbf16, #tpu.memory_space<vmem>>, vector<8x256xbf16>,
    return
  }
  func.func @transform_0(%arg0: i32, %arg1: i32) -> (i32, i32) {
    %c0_i32 = arith.constant 0 : i32
    %c0_i32_0 = arith.constant 0 : i32
    return %arg0, %c0_i32 : i32, i32
  }
  func.func @transform_1(%arg0: i32, %arg1: i32) -> (i32, i32) {
    %c0_i32 = arith.constant 0 : i32
    %c0_i32_0 = arith.constant 0 : i32
    return %c0_i32, %arg1 : i32, i32
  }
  func.func @transform_2(%arg0: i32, %arg1: i32) -> (i32, i32) {
    %c0_i32 = arith.constant 0 : i32
    %c0_i32_0 = arith.constant 0 : i32
    return %c0_i32, %arg1 : i32, i32
  }
  func.func @transform_3(%arg0: i32, %arg1: i32) -> (i32, i32) {
    %c0_i32 = arith.constant 0 : i32
    return %arg0, %arg1 : i32, i32
  }
  func.func @transform_4(%arg0: i32, %arg1: i32) -> (i32, i32) {
    %c0_i32 = arith.constant 0 : i32
    return %arg0, %arg1 : i32, i32
  }
}

module attributes {stable_mosaic.version = 11 : i64} {
  func.func @_mm1_kernel(%arg0: i32, %arg1: i32, %arg2: memref<8x128xbf16, #tpu.memory_space<vmem>>, %arg3: memref<128x256xbf16, #tpu.memory_space<vmem>>, %arg4: memref<1x256xf32, #tpu.memory_space<vmem>>, %arg5: memref<8x256xbf16, #tpu.memory_space<vmem>>) attributes {dimension_semantics = [#tpu.dimension_semantics<parallel>, #tpu.dimension_semantics<parallel>], iteration_bounds = array<i64: 1, 1>, scalar_prefetch = 0 : i64, scratch_operands = 0 : i64, tpu.core_type = #tpu.core_type<tc>, window_params = [{transform_indices = @transform_0, window_bounds = array<i64: 8, 128>}, {transform_indices = @transform_1, window_bounds = array<i64: 128, 256>}, {transform_indices = @transform_2, window_bounds = array<i64: 1, 256>}, {transform_indices = @transform_3, window_bounds = array<i64: 8, 256>}]} {
    %c0 = arith.constant 0 : index
    %c0_0 = arith.constant 0 : index
    %0 = vector.load %arg2[%c0, %c0_0] : memref<8x128xbf16, #tpu.memory_space<vmem>>, vector<8x128xbf16>
    %c0_1 = arith.constant 0 : index
    %c0_2 = arith.constant 0 : index
    %1 = vector.load %arg3[%c0_1, %c0_2] : memref<128x256xbf16, #tpu.memory_space<vmem>>, vector<128x256xbf16>
    %cst = arith.constant dense<0.000000e+00> : vector<8x256xf32>
    %2 = tpu.matmul %0, %1, %cst {dimension_numbers = #tpu.dot_dimension_numbers<[1], [0], [0], [1], [0, 0, 1, 1], [], []>} : vector<8x128xbf16>, vector<128x256xbf16>, vector<8x256xf32> -> vector<8x256xf32>
    %c0_3 = arith.constant 0 : index
    %c0_4 = arith.constant 0 : index
    %3 = vector.load %arg4[%c0_3, %c0_4] : memref<1x256xf32, #tpu.memory_space<vmem>>, vector<1x256xf32>
    %4 = vector.broadcast %3 : vector<1x256xf32> to vector<8x256xf32>
    %5 = arith.addf %2, %4 : vector<8x256xf32>
    %6 = arith.truncf %5 : vector<8x256xf32> to vector<8x256xbf16>
    %c0_5 = arith.constant 0 : index
    %c0_6 = arith.constant 0 : index
    %7 = vector.load %arg5[%c0_5, %c0_6] : memref<8x256xbf16, #tpu.memory_space<vmem>>, vector<8x256xbf16>
    tpu.vector_store %arg5[%c0_5, %c0_6], %6 {strides = array<i32>} : memref<8x256xbf16, #tpu.memory_space<vmem>>, vector<8x256xbf16>,
    return
  }
  func.func @transform_0(%arg0: i32, %arg1: i32) -> (i32, i32) {
    %c0_i32 = arith.constant 0 : i32
    %c0_i32_0 = arith.constant 0 : i32
    return %arg0, %c0_i32 : i32, i32
  }
  func.func @transform_1(%arg0: i32, %arg1: i32) -> (i32, i32) {
    %c0_i32 = arith.constant 0 : i32
    %c0_i32_0 = arith.constant 0 : i32
    return %c0_i32, %arg1 : i32, i32
  }
  func.func @transform_2(%arg0: i32, %arg1: i32) -> (i32, i32) {
    %c0_i32 = arith.constant 0 : i32
    %c0_i32_0 = arith.constant 0 : i32
    return %c0_i32, %arg1 : i32, i32
  }
  func.func @transform_3(%arg0: i32, %arg1: i32) -> (i32, i32) {
    %c0_i32 = arith.constant 0 : i32
    return %arg0, %arg1 : i32, i32
  }
}

module attributes {stable_mosaic.version = 11 : i64} {
  func.func @_mm1_res_kernel(%arg0: i32, %arg1: i32, %arg2: memref<8x128xbf16, #tpu.memory_space<vmem>>, %arg3: memref<128x256xbf16, #tpu.memory_space<vmem>>, %arg4: memref<1x256xf32, #tpu.memory_space<vmem>>, %arg5: memref<8x256xbf16, #tpu.memory_space<vmem>>, %arg6: memref<8x256xbf16, #tpu.memory_space<vmem>>) attributes {dimension_semantics = [#tpu.dimension_semantics<parallel>, #tpu.dimension_semantics<parallel>], iteration_bounds = array<i64: 1, 1>, scalar_prefetch = 0 : i64, scratch_operands = 0 : i64, tpu.core_type = #tpu.core_type<tc>, window_params = [{transform_indices = @transform_0, window_bounds = array<i64: 8, 128>}, {transform_indices = @transform_1, window_bounds = array<i64: 128, 256>}, {transform_indices = @transform_2, window_bounds = array<i64: 1, 256>}, {transform_indices = @transform_3, window_bounds = array<i64: 8, 256>}, {transform_indices = @transform_4, window_bounds = array<i64: 8, 256>}]} {
    %c0 = arith.constant 0 : index
    %c0_0 = arith.constant 0 : index
    %0 = vector.load %arg2[%c0, %c0_0] : memref<8x128xbf16, #tpu.memory_space<vmem>>, vector<8x128xbf16>
    %c0_1 = arith.constant 0 : index
    %c0_2 = arith.constant 0 : index
    %1 = vector.load %arg3[%c0_1, %c0_2] : memref<128x256xbf16, #tpu.memory_space<vmem>>, vector<128x256xbf16>
    %cst = arith.constant dense<0.000000e+00> : vector<8x256xf32>
    %2 = tpu.matmul %0, %1, %cst {dimension_numbers = #tpu.dot_dimension_numbers<[1], [0], [0], [1], [0, 0, 1, 1], [], []>} : vector<8x128xbf16>, vector<128x256xbf16>, vector<8x256xf32> -> vector<8x256xf32>
    %c0_3 = arith.constant 0 : index
    %c0_4 = arith.constant 0 : index
    %3 = vector.load %arg4[%c0_3, %c0_4] : memref<1x256xf32, #tpu.memory_space<vmem>>, vector<1x256xf32>
    %4 = vector.broadcast %3 : vector<1x256xf32> to vector<8x256xf32>
    %5 = arith.addf %2, %4 : vector<8x256xf32>
    %c0_5 = arith.constant 0 : index
    %c0_6 = arith.constant 0 : index
    %6 = vector.load %arg5[%c0_5, %c0_6] : memref<8x256xbf16, #tpu.memory_space<vmem>>, vector<8x256xbf16>
    %7 = arith.extf %6 : vector<8x256xbf16> to vector<8x256xf32>
    %8 = arith.addf %5, %7 : vector<8x256xf32>
    %cst_7 = arith.constant 0.000000e+00 : f32
    %9 = vector.broadcast %cst_7 : f32 to vector<8x256xf32>
    %10 = arith.maximumf %8, %9 : vector<8x256xf32>
    %11 = arith.truncf %10 : vector<8x256xf32> to vector<8x256xbf16>
    %c0_8 = arith.constant 0 : index
    %c0_9 = arith.constant 0 : index
    %12 = vector.load %arg6[%c0_8, %c0_9] : memref<8x256xbf16, #tpu.memory_space<vmem>>, vector<8x256xbf16>
    tpu.vector_store %arg6[%c0_8, %c0_9], %11 {strides = array<i32>} : memref<8x256xbf16, #tpu.memory_space<vmem>>, vector<8x256xbf16>,
    return
  }
  func.func @transform_0(%arg0: i32, %arg1: i32) -> (i32, i32) {
    %c0_i32 = arith.constant 0 : i32
    %c0_i32_0 = arith.constant 0 : i32
    return %arg0, %c0_i32 : i32, i32
  }
  func.func @transform_1(%arg0: i32, %arg1: i32) -> (i32, i32) {
    %c0_i32 = arith.constant 0 : i32
    %c0_i32_0 = arith.constant 0 : i32
    return %c0_i32, %arg1 : i32, i32
  }
  func.func @transform_2(%arg0: i32, %arg1: i32) -> (i32, i32) {
    %c0_i32 = arith.constant 0 : i32
    %c0_i32_0 = arith.constant 0 : i32
    return %c0_i32, %arg1 : i32, i32
  }
  func.func @transform_3(%arg0: i32, %arg1: i32) -> (i32, i32) {
    %c0_i32 = arith.constant 0 : i32
    return %arg0, %arg1 : i32, i32
  }
  func.func @transform_4(%arg0: i32, %arg1: i32) -> (i32, i32) {
    %c0_i32 = arith.constant 0 : i32
    return %arg0, %arg1 : i32, i32
  }
}

module attributes {stable_mosaic.version = 11 : i64} {
  func.func @_head_kernel(%arg0: memref<2x1x256xbf16, #tpu.memory_space<vmem>>, %arg1: memref<256x1024xbf16, #tpu.memory_space<vmem>>, %arg2: memref<1x1024xf32, #tpu.memory_space<vmem>>, %arg3: memref<1024x512xbf16, #tpu.memory_space<vmem>>, %arg4: memref<1x512xf32, #tpu.memory_space<vmem>>, %arg5: memref<512x128xbf16, #tpu.memory_space<vmem>>, %arg6: memref<1x128xf32, #tpu.memory_space<vmem>>, %arg7: memref<2x128xf32, #tpu.memory_space<vmem>>) attributes {dimension_semantics = [], scalar_prefetch = 0 : i64, scratch_operands = 0 : i64, tpu.core_type = #tpu.core_type<tc>} {
    %c0 = arith.constant 0 : index
    %c0_0 = arith.constant 0 : index
    %c0_1 = arith.constant 0 : index
    %0 = vector.load %arg0[%c0, %c0_0, %c0_1] : memref<2x1x256xbf16, #tpu.memory_space<vmem>>, vector<2x1x256xbf16>
    %1 = arith.extf %0 : vector<2x1x256xbf16> to vector<2x1x256xf32>
    %cst = arith.constant dense<0.000000e+00> : vector<2x256xf32>
    %2 = vector.multi_reduction <add>, %1, %cst [1] : vector<2x1x256xf32> to vector<2x256xf32>
    %cst_2 = arith.constant 1.000000e+00 : f32
    %3 = vector.broadcast %cst_2 : f32 to vector<2x256xf32>
    %4 = arith.mulf %2, %3 : vector<2x256xf32>
    %5 = arith.truncf %4 : vector<2x256xf32> to vector<2x256xbf16>
    %c0_3 = arith.constant 0 : index
    %c0_4 = arith.constant 0 : index
    %6 = vector.load %arg1[%c0_3, %c0_4] : memref<256x1024xbf16, #tpu.memory_space<vmem>>, vector<256x1024xbf16>
    %cst_5 = arith.constant dense<0.000000e+00> : vector<2x1024xf32>
    %7 = tpu.matmul %5, %6, %cst_5 {dimension_numbers = #tpu.dot_dimension_numbers<[1], [0], [0], [1], [0, 0, 1, 1], [], []>} : vector<2x256xbf16>, vector<256x1024xbf16>, vector<2x1024xf32> -> vector<2x1024xf32>
    %c0_6 = arith.constant 0 : index
    %c0_7 = arith.constant 0 : index
    %8 = vector.load %arg2[%c0_6, %c0_7] : memref<1x1024xf32, #tpu.memory_space<vmem>>, vector<1x1024xf32>
    %9 = vector.broadcast %8 : vector<1x1024xf32> to vector<2x1024xf32>
    %10 = arith.addf %7, %9 : vector<2x1024xf32>
    %cst_8 = arith.constant 0.000000e+00 : f32
    %11 = vector.broadcast %cst_8 : f32 to vector<2x1024xf32>
    %12 = arith.maximumf %10, %11 : vector<2x1024xf32>
    %13 = arith.truncf %12 : vector<2x1024xf32> to vector<2x1024xbf16>
    %c0_9 = arith.constant 0 : index
    %c0_10 = arith.constant 0 : index
    %14 = vector.load %arg3[%c0_9, %c0_10] : memref<1024x512xbf16, #tpu.memory_space<vmem>>, vector<1024x512xbf16>
    %cst_11 = arith.constant dense<0.000000e+00> : vector<2x512xf32>
    %15 = tpu.matmul %13, %14, %cst_11 {dimension_numbers = #tpu.dot_dimension_numbers<[1], [0], [0], [1], [0, 0, 1, 1], [], []>} : vector<2x1024xbf16>, vector<1024x512xbf16>, vector<2x512xf32> -> vector<2x512xf32>
    %c0_12 = arith.constant 0 : index
    %c0_13 = arith.constant 0 : index
    %16 = vector.load %arg4[%c0_12, %c0_13] : memref<1x512xf32, #tpu.memory_space<vmem>>, vector<1x512xf32>
    %17 = vector.broadcast %16 : vector<1x512xf32> to vector<2x512xf32>
    %18 = arith.addf %15, %17 : vector<2x512xf32>
    %cst_14 = arith.constant 0.000000e+00 : f32
    %19 = vector.broadcast %cst_14 : f32 to vector<2x512xf32>
    %20 = arith.maximumf %18, %19 : vector<2x512xf32>
    %21 = arith.truncf %20 : vector<2x512xf32> to vector<2x512xbf16>
    %c0_15 = arith.constant 0 : index
    %c0_16 = arith.constant 0 : index
    %22 = vector.load %arg5[%c0_15, %c0_16] : memref<512x128xbf16, #tpu.memory_space<vmem>>, vector<512x128xbf16>
    %cst_17 = arith.constant dense<0.000000e+00> : vector<2x128xf32>
    %23 = tpu.matmul %21, %22, %cst_17 {dimension_numbers = #tpu.dot_dimension_numbers<[1], [0], [0], [1], [0, 0, 1, 1], [], []>} : vector<2x512xbf16>, vector<512x128xbf16>, vector<2x128xf32> -> vector<2x128xf32>
    %c0_18 = arith.constant 0 : index
    %c0_19 = arith.constant 0 : index
    %24 = vector.load %arg6[%c0_18, %c0_19] : memref<1x128xf32, #tpu.memory_space<vmem>>, vector<1x128xf32>
    %25 = vector.broadcast %24 : vector<1x128xf32> to vector<2x128xf32>
    %26 = arith.addf %23, %25 : vector<2x128xf32>
    %c0_20 = arith.constant 0 : index
    %c0_21 = arith.constant 0 : index
    %27 = vector.load %arg7[%c0_20, %c0_21] : memref<2x128xf32, #tpu.memory_space<vmem>>, vector<2x128xf32>
    tpu.vector_store %arg7[%c0_20, %c0_21], %26 {strides = array<i32>} : memref<2x128xf32, #tpu.memory_space<vmem>>, vector<2x128xf32>,
    return
  }
}

</mosaic_0001>

<llo_original>
// kernel: fwd.55
$region0: #{fwd.55}
  #allocation0 [shape = 'u32[]', space=smem, size = 0x4, offset = 0x4, fixed_abs, tag = 'smem constant byte address 0x4 - core index']
  #allocation1 [shape = 'u32[144,128]{1,0:T(1,128)}', space=vmem, size = 0x12000, scoped, tag = 'internal scratch']
  %s0 = inlined_call_operand.vmem [shape: bf16[128,128], index: 0, kind: input, shape index: {}]
  %s1 = inlined_call_operand.vmem [shape: bf16[128,128], index: 1, kind: input, shape index: {}]
  %s2 = inlined_call_operand.vmem [shape: f32[1,128], index: 2, kind: input, shape index: {}]
  %s3 = inlined_call_operand.vmem [shape: bf16[128,128], index: 3, kind: output, shape index: {}]
  %s4 = sld [smem:[#allocation0]]
  $region45: #{fwd.55} parent=0
    _
  %s6 = ssub.s32 1, %s4
  %s7 = scalar_select 0, %s6, %s4
  loop: start=0, step=1, limit=4
  $region2: #{fwd.55} parent=0 // loop_pre_header
    _
  $region3: #{fwd.55} parent=0 // loop_header
    %s9 = sphi 0, %s13
    %p10 = scmp.ge.s32.totalorder %s9, 4
    %s16 = sphi 0, %s28
    %s17 = sphi 0, %s24
    %s18 = sphi 0, %s16
    %s19 = sphi 0, %s17
    %s20 = sphi 0, %s18
    %s21 = sphi 0, %s19
    %s31 = sphi 0, %s33
    %s34 = sphi 0, %s31
    %s35 = sphi 0, %s34
    %s51 = sphi 0, %s35
    %s57 = sphi 0, %s59
    %s60 = sphi 0, %s57
    %s61 = sphi 0, %s60
    %s77 = sphi 0, %s61
    %s83 = sphi 0, %s85
    %s86 = sphi 0, %s83
    %s87 = sphi 0, %s86
    %s103 = sphi 0, %s87
    %s111 = sphi 0, %s113
    %s114 = sphi 0, %s111
    %s115 = sphi 0, %s114
    %s131 = sphi 0, %s115
  $region4: #{fwd.55} parent=0 // loop_header_branch
    %12 = sbr.rel (%p10) target = $region8
  $region5: #{fwd.55} parent=0 // loop_body
    %s14 = ssub.s32 %s9, 1
    %s15 = ssub.s32 %s9, 2
    %s22 = sadd.s32 1, %s17
    %p23 = scmp.ge.s32.totalorder %s22, 1
    %s24 = scalar_select %p23, 0, %s22
    %s25 = sadd.s32 1, %s16
    %s26 = scalar_select %p23, %s25, %s16
    %p27 = scmp.ge.s32.totalorder %s26, 2
    %s28 = scalar_select %p27, 0, %s26
    %s29 = ssub.s32 %s16, %s28
    %p30 = scmp.eq.s32.totalorder %s29, 0
    %s32 = sadd.s32 %s31, 1
    %s33 = scalar_select %p30, %s31, %s32
    %p36 = pneg %p30
    %p37 = scmp.eq.s32.totalorder %s9, 1
    %p38 = por %p36, %p37
    %p39 = scmp.ne.s32.totalorder %s31, %s34
    %p40 = scmp.eq.s32.totalorder %s9, 0
    %p41 = por %p39, %p40
    %p42 = scmp.ne.s32.totalorder %s31, %s34
    %p43 = scmp.eq.s32.totalorder %s14, 1
    %p44 = por %p42, %p43
    %p45 = scmp.ne.s32.totalorder %s34, %s35
    %p46 = scmp.eq.s32.totalorder %s14, 0
    %p47 = por %p45, %p46
    %p48 = scmp.ne.s32.totalorder %s34, %s35
    %p49 = scmp.eq.s32.totalorder %s15, 1
    %p50 = por %p48, %p49
    %p52 = scmp.ne.s32.totalorder %s35, %s51
    %p53 = scmp.eq.s32.totalorder %s15, 0
    %p54 = por %p52, %p53
    %s55 = ssub.s32 %s17, %s24
    %p56 = scmp.eq.s32.totalorder %s55, 0
    %s58 = sadd.s32 %s57, 1
    %s59 = scalar_select %p56, %s57, %s58
    %p62 = pneg %p56
    %p63 = scmp.eq.s32.totalorder %s9, 1
    %p64 = por %p62, %p63
    %p65 = scmp.ne.s32.totalorder %s57, %s60
    %p66 = scmp.eq.s32.totalorder %s9, 0
    %p67 = por %p65, %p66
    %p68 = scmp.ne.s32.totalorder %s57, %s60
    %p69 = scmp.eq.s32.totalorder %s14, 1
    %p70 = por %p68, %p69
    %p71 = scmp.ne.s32.totalorder %s60, %s61
    %p72 = scmp.eq.s32.totalorder %s14, 0
    %p73 = por %p71, %p72
    %p74 = scmp.ne.s32.totalorder %s60, %s61
    %p75 = scmp.eq.s32.totalorder %s15, 1
    %p76 = por %p74, %p75
    %p78 = scmp.ne.s32.totalorder %s61, %s77
    %p79 = scmp.eq.s32.totalorder %s15, 0
    %p80 = por %p78, %p79
    %s81 = ssub.s32 %s17, %s24
    %p82 = scmp.eq.s32.totalorder %s81, 0
    %s84 = sadd.s32 %s83, 1
    %s85 = scalar_select %p82, %s83, %s84
    %p88 = pneg %p82
    %p89 = scmp.eq.s32.totalorder %s9, 1
    %p90 = por %p88, %p89
    %p91 = scmp.ne.s32.totalorder %s83, %s86
    %p92 = scmp.eq.s32.totalorder %s9, 0
    %p93 = por %p91, %p92
    %p94 = scmp.ne.s32.totalorder %s83, %s86
    %p95 = scmp.eq.s32.totalorder %s14, 1
    %p96 = por %p94, %p95
    %p97 = scmp.ne.s32.totalorder %s86, %s87
    %p98 = scmp.eq.s32.totalorder %s14, 0
    %p99 = por %p97, %p98
    %p100 = scmp.ne.s32.totalorder %s86, %s87
    %p101 = scmp.eq.s32.totalorder %s15, 1
    %p102 = por %p100, %p101
    %p104 = scmp.ne.s32.totalorder %s87, %s103
    %p105 = scmp.eq.s32.totalorder %s15, 0
    %p106 = por %p104, %p105
    %s107 = ssub.s32 %s16, %s28
    %s108 = ssub.s32 %s17, %s24
    %s109 = sor.u32 %s107, %s108
    %p110 = scmp.eq.s32.totalorder %s109, 0
    %s112 = sadd.s32 %s111, 1
    %s113 = scalar_select %p110, %s111, %s112
    %p116 = pneg %p110
    %p117 = scmp.eq.s32.totalorder %s9, 1
    %p118 = por %p116, %p117
    %p119 = scmp.ne.s32.totalorder %s111, %s114
    %p120 = scmp.eq.s32.totalorder %s9, 0
    %p121 = por %p119, %p120
    %p122 = scmp.ne.s32.totalorder %s111, %s114
    %p123 = scmp.eq.s32.totalorder %s14, 1
    %p124 = por %p122, %p123
    %p125 = scmp.ne.s32.totalorder %s114, %s115
    %p126 = scmp.eq.s32.totalorder %s14, 0
    %p127 = por %p125, %p126
    %p128 = scmp.ne.s32.totalorder %s114, %s115
    %p129 = scmp.eq.s32.totalorder %s15, 1
    %p130 = por %p128, %p129
    %p132 = scmp.ne.s32.totalorder %s115, %s131
    %p133 = scmp.eq.s32.totalorder %s15, 0
    %p134 = por %p132, %p133
    %p135 = scmp.le.s32.totalorder 1, %s9
    %p136 = scmp.lt.s32.totalorder %s9, 3
    %p137 = pnand %p135, %p136
    %p138 = pneg %p137
    // Predicated region
    $region9: #{fwd.55} parent=5 // pred_check
      _
    $region10: #{fwd.55} parent=5 // pred_check_branch
      %140 = sbr.rel (%p137) target = $region12
    $region11: #{fwd.55} parent=5 // pred_region
      %s141 = ssub.s32 %s9, 1
      // Predicated region
      $region13: #{fwd.55} parent=11 // pred_check
        %p142 = pneg %p73
      $region14: #{fwd.55} parent=11 // pred_check_branch
        %144 = sbr.rel (%p142) target = $region16
      $region15: #{fwd.55} parent=11 // pred_region
        %p145 = scmp.lt.s32.totalorder %s19, 0
        %s146 = scalar_select %p145, %s19, 0
        %s147 = smul.addr %s146, 4
        %s148 = scalar_lea.vmem %s1, %s147
      $region16: #{fwd.55} parent=11 // pred_fallthru
        _
      // Predicated region
      $region17: #{fwd.55} parent=11 // pred_check
        %p149 = pneg %p99
      $region18: #{fwd.55} parent=11 // pred_check_branch
        %151 = sbr.rel (%p149) target = $region20
      $region19: #{fwd.55} parent=11 // pred_region
        %p152 = scmp.lt.s32.totalorder %s19, 0
        %s153 = scalar_select %p152, %s19, 0
        %s154 = scalar_lea.vmem %s2, %s153
      $region20: #{fwd.55} parent=11 // pred_fallthru
        _
    $region12: #{fwd.55} parent=5 // pred_fallthru
      _
    %p155 = scmp.lt.s32.totalorder %s9, 2
    // Predicated region
    $region21: #{fwd.55} parent=5 // pred_check
      %p156 = pneg %p155
    $region22: #{fwd.55} parent=5 // pred_check_branch
      %158 = sbr.rel (%p156) target = $region24
    $region23: #{fwd.55} parent=5 // pred_region
      // Predicated region
      $region25: #{fwd.55} parent=23 // pred_check
        %p159 = pneg %p41
      $region26: #{fwd.55} parent=23 // pred_check_branch
        %161 = sbr.rel (%p159) target = $region28
      $region27: #{fwd.55} parent=23 // pred_region
        %s162 = smul.u32 8, %s16
        %p163 = scmp.lt.s32.totalorder %s162, 15
        %s164 = scalar_select %p163, %s162, 15
        %s165 = smul.addr %s164, 4
        %s166 = scalar_lea.vmem %s0, %s165
        %s167 = smul.u32 8, %s16
      $region28: #{fwd.55} parent=23 // pred_fallthru
        _
    $region24: #{fwd.55} parent=5 // pred_fallthru
      _
    %p168 = scmp.le.s32.totalorder 1, %s9
    %p169 = scmp.lt.s32.totalorder %s9, 3
    %p170 = pnand %p168, %p169
    %p171 = pneg %p170
    // Predicated region
    $region29: #{fwd.55} parent=5 // pred_check
      _
    $region30: #{fwd.55} parent=5 // pred_check_branch
      %173 = sbr.rel (%p170) target = $region32
    $region31: #{fwd.55} parent=5 // pred_region
      %s174 = ssub.s32 %s9, 1
      %s175 = smul.u32 8, %s18
      %p176 = scmp.lt.s32.totalorder %s175, 15
      %s177 = scalar_select %p176, %s175, 15
      %s178 = smul.addr %s177, 4
      %s179 = scalar_lea.vmem %s0, %s178
      %p180 = pneg %p47
      %p181 = pneg %p44
      %p182 = scmp.lt.s32.totalorder %s19, 0
      %s183 = scalar_select %p182, %s19, 0
      %s184 = smul.addr %s183, 4
      %s185 = scalar_lea.vmem %s1, %s184
      %p186 = pneg %p73
      %p187 = pneg %p70
      %p188 = scmp.lt.s32.totalorder %s19, 0
      %s189 = scalar_select %p188, %s19, 0
      %s190 = scalar_lea.vmem %s2, %s189
      %p191 = pneg %p99
      %p192 = pneg %p96
      %p193 = pneg %p127
      %p194 = pneg %p124
      %s195 = smul.u32 8, %s18
      %p196 = scmp.lt.s32.totalorder %s195, 15
      %s197 = scalar_select %p196, %s195, 15
      %p198 = scmp.lt.s32.totalorder %s19, 0
      %s199 = scalar_select %p198, %s19, 0
      %s200 = sadd.s32 %s199, %s197
      %s201 = smul.addr %s200, 4
      %s202 = scalar_lea.vmem %s3, %s201
      %s203 = smul.u32 8, %s18
      %p204 = scmp.lt.s32.totalorder %s203, 15
      %s205 = scalar_select %p204, %s203, 15
      %s206 = smul.addr %s205, 4
      %s207 = scalar_lea.vmem %s0, %s206
      %s208 = smul.u32 8, %s18
      %p209 = scmp.lt.s32.totalorder %s19, 0
      %s210 = scalar_select %p209, %s19, 0
      %s211 = smul.addr %s210, 4
      %s212 = scalar_lea.vmem %s1, %s211
      %p213 = scmp.lt.s32.totalorder %s19, 0
      %s214 = scalar_select %p213, %s19, 0
      %s215 = scalar_lea.vmem %s2, %s214
      %s216 = smul.u32 8, %s18
      %p217 = scmp.lt.s32.totalorder %s216, 15
      %s218 = scalar_select %p217, %s216, 15
      %p219 = scmp.lt.s32.totalorder %s19, 0
      %s220 = scalar_select %p219, %s19, 0
      %s221 = sadd.s32 %s220, %s218
      %s222 = smul.addr %s221, 4
      %s223 = scalar_lea.vmem %s3, %s222
      %s224 = smul.u32 8, %s18
      %v226 = vld [vmem:[%s207] sm:$0xf]
      %v227 = vld [vmem:[%s207 + $0x4] sm:$0xf]
      %v228 = vld [vmem:[%s207 + $0x8] sm:$0xf]
      %v229 = vld [vmem:[%s207 + $0xc] sm:$0xf]
      %v230 = vld [vmem:[%s207 + $0x10] sm:$0xf]
      %v231 = vld [vmem:[%s207 + $0x14] sm:$0xf]
      %v232 = vld [vmem:[%s207 + $0x18] sm:$0xf]
      %v233 = vld [vmem:[%s207 + $0x1c] sm:$0xf]
      %v234 = vld [vmem:[%s212] sm:$0xf]
      %v235 = vld [vmem:[%s212 + $0x4] sm:$0xf]
      %v236 = vld [vmem:[%s212 + $0x8] sm:$0xf]
      %v237 = vld [vmem:[%s212 + $0xc] sm:$0xf]
      %v238 = vld [vmem:[%s212 + $0x10] sm:$0xf]
      %v239 = vld [vmem:[%s212 + $0x14] sm:$0xf]
      %v240 = vld [vmem:[%s212 + $0x18] sm:$0xf]
      %v241 = vld [vmem:[%s212 + $0x1c] sm:$0xf]
      %v242 = vld [vmem:[%s212 + $0x20] sm:$0xf]
      %v243 = vld [vmem:[%s212 + $0x24] sm:$0xf]
      %v244 = vld [vmem:[%s212 + $0x28] sm:$0xf]
      %v245 = vld [vmem:[%s212 + $0x2c] sm:$0xf]
      %v246 = vld [vmem:[%s212 + $0x30] sm:$0xf]
      %v247 = vld [vmem:[%s212 + $0x34] sm:$0xf]
      %v248 = vld [vmem:[%s212 + $0x38] sm:$0xf]
      %v249 = vld [vmem:[%s212 + $0x3c] sm:$0xf]
      %v250 = vld [vmem:[%s215] sm:$0x1]
      %v252 = vlaneseq
      %v253 = vshrl.u32 %v252, 7
      %v254 = vsub.s32 0, %v253
      %v255 = vrot.slane %v250, %v254
      %v265 = vunpack.c.l.b16 %v226
      %v266 = vunpack.c.l.b16 %v227
      %v267 = vunpack.c.l.b16 %v228
      %v268 = vunpack.c.l.b16 %v229
      %v269 = vunpack.c.l.b16 %v230
      %v270 = vunpack.c.l.b16 %v231
      %v271 = vunpack.c.l.b16 %v232
      %v272 = vunpack.c.l.b16 %v233
      %v273 = vpack.c.b16 %v266, %v265
      %v274 = vpack.c.b16 %v268, %v267
      %v275 = vpack.c.b16 %v270, %v269
      %v276 = vpack.c.b16 %v272, %v271
      %v297 = vunpack.c.l.b16 %v234
      %v298 = vunpack.c.l.b16 %v235
      %v299 = vunpack.c.l.b16 %v236
      %v300 = vunpack.c.l.b16 %v237
      %v301 = vunpack.c.l.b16 %v238
      %v302 = vunpack.c.l.b16 %v239
      %v303 = vunpack.c.l.b16 %v240
      %v304 = vunpack.c.l.b16 %v241
      %v305 = vunpack.c.l.b16 %v242
      %v306 = vunpack.c.l.b16 %v243
      %v307 = vunpack.c.l.b16 %v244
      %v308 = vunpack.c.l.b16 %v245
      %v309 = vunpack.c.l.b16 %v246
      %v310 = vunpack.c.l.b16 %v247
      %v311 = vunpack.c.l.b16 %v248
      %v312 = vunpack.c.l.b16 %v249
      %v313 = vpack.c.b16 %v298, %v297
      %v314 = vpack.c.b16 %v300, %v299
      %v315 = vpack.c.b16 %v302, %v301
      %v316 = vpack.c.b16 %v304, %v303
      %v317 = vpack.c.b16 %v306, %v305
      %v318 = vpack.c.b16 %v308, %v307
      %v319 = vpack.c.b16 %v310, %v309
      %v320 = vpack.c.b16 %v312, %v311
      %329 = vmatprep.subr.bf16.mxu0 0
      %330 = vmatpush1.bf16.msra.mxu0 %v313
      %331 = vmatprep.subr.bf16.mxu0 0
      %332 = vmatpush1.bf16.msra.mxu0 %v314
      %333 = vmatprep.subr.bf16.mxu0 0
      %334 = vmatpush1.bf16.msra.mxu0 %v315
      %335 = vmatprep.subr.bf16.mxu0 0
      %336 = vmatpush1.bf16.msra.mxu0 %v316
      %337 = vmatprep.subr.bf16.mxu0 0
      %338 = vmatpush1.bf16.msra.mxu0 %v317
      %339 = vmatprep.subr.bf16.mxu0 0
      %340 = vmatpush1.bf16.msra.mxu0 %v318
      %341 = vmatprep.subr.bf16.mxu0 0
      %342 = vmatpush1.bf16.msra.mxu0 %v319
      %343 = vmatprep.subr.bf16.mxu0 0
      %344 = vmatpush1.bf16.msra.mxu0 %v320
      %345 = vmatprep.subr.bf16.mxu0 0
      %346 = vmatpush1.bf16.msra.mxu0 0
      %347 = vmatprep.subr.bf16.mxu0 0
      %348 = vmatpush1.bf16.msra.mxu0 0
      %349 = vmatprep.subr.bf16.mxu0 0
      %350 = vmatpush1.bf16.msra.mxu0 0
      %351 = vmatprep.subr.bf16.mxu0 0
      %352 = vmatpush1.bf16.msra.mxu0 0
      %353 = vmatprep.subr.bf16.mxu0 0
      %354 = vmatpush1.bf16.msra.mxu0 0
      %355 = vmatprep.subr.bf16.mxu0 0
      %356 = vmatpush1.bf16.msra.mxu0 0
      %357 = vmatprep.subr.bf16.mxu0 0
      %358 = vmatpush1.bf16.msra.mxu0 0
      %359 = vmatprep.subr.bf16.mxu0 0
      %360 = vmatpush1.bf16.msra.mxu0 0
      %361 = vmatprep.mubr.bf16.mxu0 0
      %362 = vmatmul.mubr.bf16.gmra.mrb[0].mxu0 %v273
      %v363 = vpop.f32.mrb[0].mxu0
      %v364 = vadd.f32 %v255, %v363
      %v365 = vpop.f32.mrb[0].mxu0
      %v366 = vpop.f32.mrb[0].mxu0
      %v367 = vadd.f32 %v255, %v366
      %v368 = vpop.f32.mrb[0].mxu0
      %369 = vmatprep.mubr.bf16.mxu0 0
      %370 = vmatmul.mubr.bf16.gmra.mrb[0].mxu0 %v274
      %v371 = vpop.f32.mrb[0].mxu0
      %v372 = vadd.f32 %v255, %v371
      %v373 = vpop.f32.mrb[0].mxu0
      %v374 = vpop.f32.mrb[0].mxu0
      %v375 = vadd.f32 %v255, %v374
      %v376 = vpop.f32.mrb[0].mxu0
      %377 = vmatprep.mubr.bf16.mxu0 0
      %378 = vmatmul.mubr.bf16.gmra.mrb[0].mxu0 %v275
      %v379 = vpop.f32.mrb[0].mxu0
      %v380 = vadd.f32 %v255, %v379
      %v381 = vpop.f32.mrb[0].mxu0
      %v382 = vpop.f32.mrb[0].mxu0
      %v383 = vadd.f32 %v255, %v382
      %v384 = vpop.f32.mrb[0].mxu0
      %385 = vmatprep.mubr.bf16.mxu0 0
      %386 = vmatmul.mubr.bf16.gmra.mrb[0].mxu0 %v276
      %v387 = vpop.f32.mrb[0].mxu0
      %v388 = vadd.f32 %v255, %v387
      %v389 = vpop.f32.mrb[0].mxu0
      %v390 = vpop.f32.mrb[0].mxu0
      %v391 = vadd.f32 %v255, %v390
      %v392 = vpop.f32.mrb[0].mxu0
      %393 = vdwg.mxu0
      %v394 = vmax.f32 %v364, 0.0
      %v395 = vmax.f32 %v367, 0.0
      %v396 = vmax.f32 %v372, 0.0
      %v397 = vmax.f32 %v375, 0.0
      %v398 = vmax.f32 %v380, 0.0
      %v399 = vmax.f32 %v383, 0.0
      %v400 = vmax.f32 %v388, 0.0
      %v401 = vmax.f32 %v391, 0.0
      %v402 = vpack.c.bf16 %v395, %v394
      %v403 = vpack.c.bf16 %v397, %v396
      %v404 = vpack.c.bf16 %v399, %v398
      %v405 = vpack.c.bf16 %v401, %v400
      %v410 = vunpack.c.l.b16 %v402
      %v411 = vunpack.c.h.b16 %v402
      %v412 = vunpack.c.l.b16 %v403
      %v413 = vunpack.c.h.b16 %v403
      %v414 = vunpack.c.l.b16 %v404
      %v415 = vunpack.c.h.b16 %v404
      %v416 = vunpack.c.l.b16 %v405
      %v417 = vunpack.c.h.b16 %v405
      %v418 = vpack.c.b16 %v410, %v410
      %v419 = vpack.c.b16 %v411, %v411
      %v420 = vpack.c.b16 %v412, %v412
      %v421 = vpack.c.b16 %v413, %v413
      %v422 = vpack.c.b16 %v414, %v414
      %v423 = vpack.c.b16 %v415, %v415
      %v424 = vpack.c.b16 %v416, %v416
      %v425 = vpack.c.b16 %v417, %v417
      %434 = vst [vmem:[%s223] sm:$0xf] %v418
      %435 = vst [vmem:[%s223 + $0x4] sm:$0xf] %v419
      %436 = vst [vmem:[%s223 + $0x8] sm:$0xf] %v420
      %437 = vst [vmem:[%s223 + $0xc] sm:$0xf] %v421
      %438 = vst [vmem:[%s223 + $0x10] sm:$0xf] %v422
      %439 = vst [vmem:[%s223 + $0x14] sm:$0xf] %v423
      %440 = vst [vmem:[%s223 + $0x18] sm:$0xf] %v424
      %441 = vst [vmem:[%s223 + $0x1c] sm:$0xf] %v425
      %s442 = smul.u32 8, %s18
      %p443 = scmp.lt.s32.totalorder %s442, 15
      %s444 = scalar_select %p443, %s442, 15
      %p445 = scmp.lt.s32.totalorder %s19, 0
      %s446 = scalar_select %p445, %s19, 0
      %s447 = sadd.s32 %s446, %s444
      %s448 = smul.addr %s447, 4
      %s449 = scalar_lea.vmem %s3, %s448
      // Predicated region
      $region33: #{fwd.55} parent=31 // pred_check
        %p450 = pneg %p124
      $region34: #{fwd.55} parent=31 // pred_check_branch
        %452 = sbr.rel (%p450) target = $region36
      $region35: #{fwd.55} parent=31 // pred_region
        %s453 = smul.u32 8, %s18
      $region36: #{fwd.55} parent=31 // pred_fallthru
        _
    $region32: #{fwd.55} parent=5 // pred_fallthru
      _
    %p454 = scmp.le.s32.totalorder 2, %s9
    // Predicated region
    $region37: #{fwd.55} parent=5 // pred_check
      %p455 = pneg %p454
    $region38: #{fwd.55} parent=5 // pred_check_branch
      %457 = sbr.rel (%p455) target = $region40
    $region39: #{fwd.55} parent=5 // pred_region
      %s458 = ssub.s32 %s9, 2
      // Predicated region
      $region41: #{fwd.55} parent=39 // pred_check
        %p459 = pneg %p130
      $region42: #{fwd.55} parent=39 // pred_check_branch
        %461 = sbr.rel (%p459) target = $region44
      $region43: #{fwd.55} parent=39 // pred_region
        %s462 = smul.u32 8, %s20
        %p463 = scmp.lt.s32.totalorder %s462, 15
        %s464 = scalar_select %p463, %s462, 15
        %p465 = scmp.lt.s32.totalorder %s21, 0
        %s466 = scalar_select %p465, %s21, 0
        %s467 = sadd.s32 %s466, %s464
        %s468 = smul.addr %s467, 4
        %s469 = scalar_lea.vmem %s3, %s468
      $region44: #{fwd.55} parent=39 // pred_fallthru
        _
    $region40: #{fwd.55} parent=5 // pred_fallthru
      _
  $region6: #{fwd.55} parent=0 // loop_footer
    %s13 = sadd.s32 1, %s9
  $region7: #{fwd.55} parent=0 // loop_footer_branch
    %8 = sbr.rel target = $region3
  $region8: #{fwd.55} parent=0 // loop_exit
    _

// kernel: fwd.54
$region0: #{fwd.54}
  #allocation0 [shape = 'u32[]', space=smem, size = 0x4, offset = 0x4, fixed_abs, tag = 'smem constant byte address 0x4 - core index']
  #allocation1 [shape = 'u32[144,128]{1,0:T(1,128)}', space=vmem, size = 0x12000, scoped, tag = 'internal scratch']
  %s0 = inlined_call_operand.vmem [shape: bf16[512,256], index: 0, kind: input, shape index: {}]
  %s1 = inlined_call_operand.vmem [shape: bf16[256,128], index: 1, kind: input, shape index: {}]
  %s2 = inlined_call_operand.vmem [shape: f32[1,128], index: 2, kind: input, shape index: {}]
  %s3 = inlined_call_operand.vmem [shape: bf16[512,128], index: 3, kind: output, shape index: {}]
  %s4 = sld [smem:[#allocation0]]
  $region45: #{fwd.54} parent=0
    _
  %s6 = ssub.s32 1, %s4
  %s7 = scalar_select 0, %s6, %s4
  loop: start=0, step=1, limit=4
  $region2: #{fwd.54} parent=0 // loop_pre_header
    _
  $region3: #{fwd.54} parent=0 // loop_header
    %s9 = sphi 0, %s13
    %p10 = scmp.ge.s32.totalorder %s9, 4
    %s16 = sphi 0, %s28
    %s17 = sphi 0, %s24
    %s18 = sphi 0, %s16
    %s19 = sphi 0, %s17
    %s20 = sphi 0, %s18
    %s21 = sphi 0, %s19
    %s31 = sphi 0, %s33
    %s34 = sphi 0, %s31
    %s35 = sphi 0, %s34
    %s51 = sphi 0, %s35
    %s57 = sphi 0, %s59
    %s60 = sphi 0, %s57
    %s61 = sphi 0, %s60
    %s77 = sphi 0, %s61
    %s83 = sphi 0, %s85
    %s86 = sphi 0, %s83
    %s87 = sphi 0, %s86
    %s103 = sphi 0, %s87
    %s111 = sphi 0, %s113
    %s114 = sphi 0, %s111
    %s115 = sphi 0, %s114
    %s131 = sphi 0, %s115
  $region4: #{fwd.54} parent=0 // loop_header_branch
    %12 = sbr.rel (%p10) target = $region8
  $region5: #{fwd.54} parent=0 // loop_body
    %s14 = ssub.s32 %s9, 1
    %s15 = ssub.s32 %s9, 2
    %s22 = sadd.s32 1, %s17
    %p23 = scmp.ge.s32.totalorder %s22, 1
    %s24 = scalar_select %p23, 0, %s22
    %s25 = sadd.s32 1, %s16
    %s26 = scalar_select %p23, %s25, %s16
    %p27 = scmp.ge.s32.totalorder %s26, 2
    %s28 = scalar_select %p27, 0, %s26
    %s29 = ssub.s32 %s16, %s28
    %p30 = scmp.eq.s32.totalorder %s29, 0
    %s32 = sadd.s32 %s31, 1
    %s33 = scalar_select %p30, %s31, %s32
    %p36 = pneg %p30
    %p37 = scmp.eq.s32.totalorder %s9, 1
    %p38 = por %p36, %p37
    %p39 = scmp.ne.s32.totalorder %s31, %s34
    %p40 = scmp.eq.s32.totalorder %s9, 0
    %p41 = por %p39, %p40
    %p42 = scmp.ne.s32.totalorder %s31, %s34
    %p43 = scmp.eq.s32.totalorder %s14, 1
    %p44 = por %p42, %p43
    %p45 = scmp.ne.s32.totalorder %s34, %s35
    %p46 = scmp.eq.s32.totalorder %s14, 0
    %p47 = por %p45, %p46
    %p48 = scmp.ne.s32.totalorder %s34, %s35
    %p49 = scmp.eq.s32.totalorder %s15, 1
    %p50 = por %p48, %p49
    %p52 = scmp.ne.s32.totalorder %s35, %s51
    %p53 = scmp.eq.s32.totalorder %s15, 0
    %p54 = por %p52, %p53
    %s55 = ssub.s32 %s17, %s24
    %p56 = scmp.eq.s32.totalorder %s55, 0
    %s58 = sadd.s32 %s57, 1
    %s59 = scalar_select %p56, %s57, %s58
    %p62 = pneg %p56
    %p63 = scmp.eq.s32.totalorder %s9, 1
    %p64 = por %p62, %p63
    %p65 = scmp.ne.s32.totalorder %s57, %s60
    %p66 = scmp.eq.s32.totalorder %s9, 0
    %p67 = por %p65, %p66
    %p68 = scmp.ne.s32.totalorder %s57, %s60
    %p69 = scmp.eq.s32.totalorder %s14, 1
    %p70 = por %p68, %p69
    %p71 = scmp.ne.s32.totalorder %s60, %s61
    %p72 = scmp.eq.s32.totalorder %s14, 0
    %p73 = por %p71, %p72
    %p74 = scmp.ne.s32.totalorder %s60, %s61
    %p75 = scmp.eq.s32.totalorder %s15, 1
    %p76 = por %p74, %p75
    %p78 = scmp.ne.s32.totalorder %s61, %s77
    %p79 = scmp.eq.s32.totalorder %s15, 0
    %p80 = por %p78, %p79
    %s81 = ssub.s32 %s17, %s24
    %p82 = scmp.eq.s32.totalorder %s81, 0
    %s84 = sadd.s32 %s83, 1
    %s85 = scalar_select %p82, %s83, %s84
    %p88 = pneg %p82
    %p89 = scmp.eq.s32.totalorder %s9, 1
    %p90 = por %p88, %p89
    %p91 = scmp.ne.s32.totalorder %s83, %s86
    %p92 = scmp.eq.s32.totalorder %s9, 0
    %p93 = por %p91, %p92
    %p94 = scmp.ne.s32.totalorder %s83, %s86
    %p95 = scmp.eq.s32.totalorder %s14, 1
    %p96 = por %p94, %p95
    %p97 = scmp.ne.s32.totalorder %s86, %s87
    %p98 = scmp.eq.s32.totalorder %s14, 0
    %p99 = por %p97, %p98
    %p100 = scmp.ne.s32.totalorder %s86, %s87
    %p101 = scmp.eq.s32.totalorder %s15, 1
    %p102 = por %p100, %p101
    %p104 = scmp.ne.s32.totalorder %s87, %s103
    %p105 = scmp.eq.s32.totalorder %s15, 0
    %p106 = por %p104, %p105
    %s107 = ssub.s32 %s16, %s28
    %s108 = ssub.s32 %s17, %s24
    %s109 = sor.u32 %s107, %s108
    %p110 = scmp.eq.s32.totalorder %s109, 0
    %s112 = sadd.s32 %s111, 1
    %s113 = scalar_select %p110, %s111, %s112
    %p116 = pneg %p110
    %p117 = scmp.eq.s32.totalorder %s9, 1
    %p118 = por %p116, %p117
    %p119 = scmp.ne.s32.totalorder %s111, %s114
    %p120 = scmp.eq.s32.totalorder %s9, 0
    %p121 = por %p119, %p120
    %p122 = scmp.ne.s32.totalorder %s111, %s114
    %p123 = scmp.eq.s32.totalorder %s14, 1
    %p124 = por %p122, %p123
    %p125 = scmp.ne.s32.totalorder %s114, %s115
    %p126 = scmp.eq.s32.totalorder %s14, 0
    %p127 = por %p125, %p126
    %p128 = scmp.ne.s32.totalorder %s114, %s115
    %p129 = scmp.eq.s32.totalorder %s15, 1
    %p130 = por %p128, %p129
    %p132 = scmp.ne.s32.totalorder %s115, %s131
    %p133 = scmp.eq.s32.totalorder %s15, 0
    %p134 = por %p132, %p133
    %p135 = scmp.le.s32.totalorder 1, %s9
    %p136 = scmp.lt.s32.totalorder %s9, 3
    %p137 = pnand %p135, %p136
    %p138 = pneg %p137
    // Predicated region
    $region9: #{fwd.54} parent=5 // pred_check
      _
    $region10: #{fwd.54} parent=5 // pred_check_branch
      %140 = sbr.rel (%p137) target = $region12
    $region11: #{fwd.54} parent=5 // pred_region
      %s141 = ssub.s32 %s9, 1
      // Predicated region
      $region13: #{fwd.54} parent=11 // pred_check
        %p142 = pneg %p73
      $region14: #{fwd.54} parent=11 // pred_check_branch
        %144 = sbr.rel (%p142) target = $region16
      $region15: #{fwd.54} parent=11 // pred_region
        %p145 = scmp.lt.s32.totalorder %s19, 0
        %s146 = scalar_select %p145, %s19, 0
        %s147 = smul.addr %s146, 4
        %s148 = scalar_lea.vmem %s1, %s147
      $region16: #{fwd.54} parent=11 // pred_fallthru
        _
      // Predicated region
      $region17: #{fwd.54} parent=11 // pred_check
        %p149 = pneg %p99
      $region18: #{fwd.54} parent=11 // pred_check_branch
        %151 = sbr.rel (%p149) target = $region20
      $region19: #{fwd.54} parent=11 // pred_region
        %p152 = scmp.lt.s32.totalorder %s19, 0
        %s153 = scalar_select %p152, %s19, 0
        %s154 = scalar_lea.vmem %s2, %s153
      $region20: #{fwd.54} parent=11 // pred_fallthru
        _
    $region12: #{fwd.54} parent=5 // pred_fallthru
      _
    %p155 = scmp.lt.s32.totalorder %s9, 2
    // Predicated region
    $region21: #{fwd.54} parent=5 // pred_check
      %p156 = pneg %p155
    $region22: #{fwd.54} parent=5 // pred_check_branch
      %158 = sbr.rel (%p156) target = $region24
    $region23: #{fwd.54} parent=5 // pred_region
      // Predicated region
      $region25: #{fwd.54} parent=23 // pred_check
        %p159 = pneg %p41
      $region26: #{fwd.54} parent=23 // pred_check_branch
        %161 = sbr.rel (%p159) target = $region28
      $region27: #{fwd.54} parent=23 // pred_region
        %s162 = smul.u32 32, %s16
        %p163 = scmp.lt.s32.totalorder %s162, 63
        %s164 = scalar_select %p163, %s162, 63
        %s165 = smul.addr %s164, 2
        %s166 = smul.addr %s165, 4
        %s167 = scalar_lea.vmem %s0, %s166
        %s168 = smul.u32 32, %s16
      $region28: #{fwd.54} parent=23 // pred_fallthru
        _
    $region24: #{fwd.54} parent=5 // pred_fallthru
      _
    %p169 = scmp.le.s32.totalorder 1, %s9
    %p170 = scmp.lt.s32.totalorder %s9, 3
    %p171 = pnand %p169, %p170
    %p172 = pneg %p171
    // Predicated region
    $region29: #{fwd.54} parent=5 // pred_check
      _
    $region30: #{fwd.54} parent=5 // pred_check_branch
      %174 = sbr.rel (%p171) target = $region32
    $region31: #{fwd.54} parent=5 // pred_region
      %s175 = ssub.s32 %s9, 1
      %s176 = smul.u32 32, %s18
      %p177 = scmp.lt.s32.totalorder %s176, 63
      %s178 = scalar_select %p177, %s176, 63
      %s179 = smul.addr %s178, 2
      %s180 = smul.addr %s179, 4
      %s181 = scalar_lea.vmem %s0, %s180
      %p182 = pneg %p47
      %p183 = pneg %p44
      %p184 = scmp.lt.s32.totalorder %s19, 0
      %s185 = scalar_select %p184, %s19, 0
      %s186 = smul.addr %s185, 4
      %s187 = scalar_lea.vmem %s1, %s186
      %p188 = pneg %p73
      %p189 = pneg %p70
      %p190 = scmp.lt.s32.totalorder %s19, 0
      %s191 = scalar_select %p190, %s19, 0
      %s192 = scalar_lea.vmem %s2, %s191
      %p193 = pneg %p99
      %p194 = pneg %p96
      %p195 = pneg %p127
      %p196 = pneg %p124
      %s197 = smul.u32 32, %s18
      %p198 = scmp.lt.s32.totalorder %s197, 63
      %s199 = scalar_select %p198, %s197, 63
      %p200 = scmp.lt.s32.totalorder %s19, 0
      %s201 = scalar_select %p200, %s19, 0
      %s202 = sadd.s32 %s201, %s199
      %s203 = smul.addr %s202, 4
      %s204 = scalar_lea.vmem %s3, %s203
      %s205 = smul.u32 32, %s18
      %p206 = scmp.lt.s32.totalorder %s205, 63
      %s207 = scalar_select %p206, %s205, 63
      %s208 = smul.addr %s207, 2
      %s209 = smul.addr %s208, 4
      %s210 = scalar_lea.vmem %s0, %s209
      %s211 = smul.u32 32, %s18
      %p212 = scmp.lt.s32.totalorder %s19, 0
      %s213 = scalar_select %p212, %s19, 0
      %s214 = smul.addr %s213, 4
      %s215 = scalar_lea.vmem %s1, %s214
      %p216 = scmp.lt.s32.totalorder %s19, 0
      %s217 = scalar_select %p216, %s19, 0
      %s218 = scalar_lea.vmem %s2, %s217
      %s219 = smul.u32 32, %s18
      %p220 = scmp.lt.s32.totalorder %s219, 63
      %s221 = scalar_select %p220, %s219, 63
      %p222 = scmp.lt.s32.totalorder %s19, 0
      %s223 = scalar_select %p222, %s19, 0
      %s224 = sadd.s32 %s223, %s221
      %s225 = smul.addr %s224, 4
      %s226 = scalar_lea.vmem %s3, %s225
      %s227 = smul.u32 32, %s18
      %v229 = vld [vmem:[%s210] sm:$0xff]
      %v230 = vld [vmem:[%s210 + $0x8] sm:$0xff]
      %v231 = vld [vmem:[%s210 + $0x10] sm:$0xff]
      %v232 = vld [vmem:[%s210 + $0x18] sm:$0xff]
      %v233 = vld [vmem:[%s210 + $0x20] sm:$0xff]
      %v234 = vld [vmem:[%s210 + $0x28] sm:$0xff]
      %v235 = vld [vmem:[%s210 + $0x30] sm:$0xff]
      %v236 = vld [vmem:[%s210 + $0x38] sm:$0xff]
      %v237 = vld [vmem:[%s210 + $0x40] sm:$0xff]
      %v238 = vld [vmem:[%s210 + $0x48] sm:$0xff]
      %v239 = vld [vmem:[%s210 + $0x50] sm:$0xff]
      %v240 = vld [vmem:[%s210 + $0x58] sm:$0xff]
      %v241 = vld [vmem:[%s210 + $0x60] sm:$0xff]
      %v242 = vld [vmem:[%s210 + $0x68] sm:$0xff]
      %v243 = vld [vmem:[%s210 + $0x70] sm:$0xff]
      %v244 = vld [vmem:[%s210 + $0x78] sm:$0xff]
      %v245 = vld [vmem:[%s210 + $0x80] sm:$0xff]
      %v246 = vld [vmem:[%s210 + $0x88] sm:$0xff]
      %v247 = vld [vmem:[%s210 + $0x90] sm:$0xff]
      %v248 = vld [vmem:[%s210 + $0x98] sm:$0xff]
      %v249 = vld [vmem:[%s210 + $0xa0] sm:$0xff]
      %v250 = vld [vmem:[%s210 + $0xa8] sm:$0xff]
      %v251 = vld [vmem:[%s210 + $0xb0] sm:$0xff]
      %v252 = vld [vmem:[%s210 + $0xb8] sm:$0xff]
      %v253 = vld [vmem:[%s210 + $0xc0] sm:$0xff]
      %v254 = vld [vmem:[%s210 + $0xc8] sm:$0xff]
      %v255 = vld [vmem:[%s210 + $0xd0] sm:$0xff]
      %v256 = vld [vmem:[%s210 + $0xd8] sm:$0xff]
      %v257 = vld [vmem:[%s210 + $0xe0] sm:$0xff]
      %v258 = vld [vmem:[%s210 + $0xe8] sm:$0xff]
      %v259 = vld [vmem:[%s210 + $0xf0] sm:$0xff]
      %v260 = vld [vmem:[%s210 + $0xf8] sm:$0xff]
      %v261 = vld [vmem:[%s215] sm:$0xf]
      %v262 = vld [vmem:[%s215 + $0x4] sm:$0xf]
      %v263 = vld [vmem:[%s215 + $0x8] sm:$0xf]
      %v264 = vld [vmem:[%s215 + $0xc] sm:$0xf]
      %v265 = vld [vmem:[%s215 + $0x10] sm:$0xf]
      %v266 = vld [vmem:[%s215 + $0x14] sm:$0xf]
      %v267 = vld [vmem:[%s215 + $0x18] sm:$0xf]
      %v268 = vld [vmem:[%s215 + $0x1c] sm:$0xf]
      %v269 = vld [vmem:[%s215 + $0x20] sm:$0xf]
      %v270 = vld [vmem:[%s215 + $0x24] sm:$0xf]
      %v271 = vld [vmem:[%s215 + $0x28] sm:$0xf]
      %v272 = vld [vmem:[%s215 + $0x2c] sm:$0xf]
      %v273 = vld [vmem:[%s215 + $0x30] sm:$0xf]
      %v274 = vld [vmem:[%s215 + $0x34] sm:$0xf]
      %v275 = vld [vmem:[%s215 + $0x38] sm:$0xf]
      %v276 = vld [vmem:[%s215 + $0x3c] sm:$0xf]
      %v277 = vld [vmem:[%s215 + $0x40] sm:$0xf]
      %v278 = vld [vmem:[%s215 + $0x44] sm:$0xf]
      %v279 = vld [vmem:[%s215 + $0x48] sm:$0xf]
      %v280 = vld [vmem:[%s215 + $0x4c] sm:$0xf]
      %v281 = vld [vmem:[%s215 + $0x50] sm:$0xf]
      %v282 = vld [vmem:[%s215 + $0x54] sm:$0xf]
      %v283 = vld [vmem:[%s215 + $0x58] sm:$0xf]
      %v284 = vld [vmem:[%s215 + $0x5c] sm:$0xf]
      %v285 = vld [vmem:[%s215 + $0x60] sm:$0xf]
      %v286 = vld [vmem:[%s215 + $0x64] sm:$0xf]
      %v287 = vld [vmem:[%s215 + $0x68] sm:$0xf]
      %v288 = vld [vmem:[%s215 + $0x6c] sm:$0xf]
      %v289 = vld [vmem:[%s215 + $0x70] sm:$0xf]
      %v290 = vld [vmem:[%s215 + $0x74] sm:$0xf]
      %v291 = vld [vmem:[%s215 + $0x78] sm:$0xf]
      %v292 = vld [vmem:[%s215 + $0x7c] sm:$0xf]
      %v293 = vld [vmem:[%s218] sm:$0x1]
      %v295 = vlaneseq
      %v296 = vshrl.u32 %v295, 7
      %v297 = vsub.s32 0, %v296
      %v298 = vrot.slane %v293, %v297
      %v332 = vunpack.c.l.b16 %v229
      %v333 = vunpack.c.h.b16 %v229
      %v334 = vunpack.c.l.b16 %v230
      %v335 = vunpack.c.h.b16 %v230
      %v336 = vunpack.c.l.b16 %v231
      %v337 = vunpack.c.h.b16 %v231
      %v338 = vunpack.c.l.b16 %v232
      %v339 = vunpack.c.h.b16 %v232
      %v340 = vunpack.c.l.b16 %v233
      %v341 = vunpack.c.h.b16 %v233
      %v342 = vunpack.c.l.b16 %v234
      %v343 = vunpack.c.h.b16 %v234
      %v344 = vunpack.c.l.b16 %v235
      %v345 = vunpack.c.h.b16 %v235
      %v346 = vunpack.c.l.b16 %v236
      %v347 = vunpack.c.h.b16 %v236
      %v348 = vunpack.c.l.b16 %v237
      %v349 = vunpack.c.h.b16 %v237
      %v350 = vunpack.c.l.b16 %v238
      %v351 = vunpack.c.h.b16 %v238
      %v352 = vunpack.c.l.b16 %v239
      %v353 = vunpack.c.h.b16 %v239
      %v354 = vunpack.c.l.b16 %v240
      %v355 = vunpack.c.h.b16 %v240
      %v356 = vunpack.c.l.b16 %v241
      %v357 = vunpack.c.h.b16 %v241
      %v358 = vunpack.c.l.b16 %v242
      %v359 = vunpack.c.h.b16 %v242
      %v360 = vunpack.c.l.b16 %v243
      %v361 = vunpack.c.h.b16 %v243
      %v362 = vunpack.c.l.b16 %v244
      %v363 = vunpack.c.h.b16 %v244
      %v364 = vunpack.c.l.b16 %v245
      %v365 = vunpack.c.h.b16 %v245
      %v366 = vunpack.c.l.b16 %v246
      %v367 = vunpack.c.h.b16 %v246
      %v368 = vunpack.c.l.b16 %v247
      %v369 = vunpack.c.h.b16 %v247
      %v370 = vunpack.c.l.b16 %v248
      %v371 = vunpack.c.h.b16 %v248
      %v372 = vunpack.c.l.b16 %v249
      %v373 = vunpack.c.h.b16 %v249
      %v374 = vunpack.c.l.b16 %v250
      %v375 = vunpack.c.h.b16 %v250
      %v376 = vunpack.c.l.b16 %v251
      %v377 = vunpack.c.h.b16 %v251
      %v378 = vunpack.c.l.b16 %v252
      %v379 = vunpack.c.h.b16 %v252
      %v380 = vunpack.c.l.b16 %v253
      %v381 = vunpack.c.h.b16 %v253
      %v382 = vunpack.c.l.b16 %v254
      %v383 = vunpack.c.h.b16 %v254
      %v384 = vunpack.c.l.b16 %v255
      %v385 = vunpack.c.h.b16 %v255
      %v386 = vunpack.c.l.b16 %v256
      %v387 = vunpack.c.h.b16 %v256
      %v388 = vunpack.c.l.b16 %v257
      %v389 = vunpack.c.h.b16 %v257
      %v390 = vunpack.c.l.b16 %v258
      %v391 = vunpack.c.h.b16 %v258
      %v392 = vunpack.c.l.b16 %v259
      %v393 = vunpack.c.h.b16 %v259
      %v394 = vunpack.c.l.b16 %v260
      %v395 = vunpack.c.h.b16 %v260
      %v396 = vpack.c.b16 %v334, %v332
      %v397 = vpack.c.b16 %v335, %v333
      %v398 = vpack.c.b16 %v338, %v336
      %v399 = vpack.c.b16 %v339, %v337
      %v400 = vpack.c.b16 %v342, %v340
      %v401 = vpack.c.b16 %v343, %v341
      %v402 = vpack.c.b16 %v346, %v344
      %v403 = vpack.c.b16 %v347, %v345
      %v404 = vpack.c.b16 %v350, %v348
      %v405 = vpack.c.b16 %v351, %v349
      %v406 = vpack.c.b16 %v354, %v352
      %v407 = vpack.c.b16 %v355, %v353
      %v408 = vpack.c.b16 %v358, %v356
      %v409 = vpack.c.b16 %v359, %v357
      %v410 = vpack.c.b16 %v362, %v360
      %v411 = vpack.c.b16 %v363, %v361
      %v412 = vpack.c.b16 %v366, %v364
      %v413 = vpack.c.b16 %v367, %v365
      %v414 = vpack.c.b16 %v370, %v368
      %v415 = vpack.c.b16 %v371, %v369
      %v416 = vpack.c.b16 %v374, %v372
      %v417 = vpack.c.b16 %v375, %v373
      %v418 = vpack.c.b16 %v378, %v376
      %v419 = vpack.c.b16 %v379, %v377
      %v420 = vpack.c.b16 %v382, %v380
      %v421 = vpack.c.b16 %v383, %v381
      %v422 = vpack.c.b16 %v386, %v384
      %v423 = vpack.c.b16 %v387, %v385
      %v424 = vpack.c.b16 %v390, %v388
      %v425 = vpack.c.b16 %v391, %v389
      %v426 = vpack.c.b16 %v394, %v392
      %v427 = vpack.c.b16 %v395, %v393
      %v492 = vunpack.c.l.b16 %v261
      %v493 = vunpack.c.l.b16 %v262
      %v494 = vunpack.c.l.b16 %v263
      %v495 = vunpack.c.l.b16 %v264
      %v496 = vunpack.c.l.b16 %v265
      %v497 = vunpack.c.l.b16 %v266
      %v498 = vunpack.c.l.b16 %v267
      %v499 = vunpack.c.l.b16 %v268
      %v500 = vunpack.c.l.b16 %v269
      %v501 = vunpack.c.l.b16 %v270
      %v502 = vunpack.c.l.b16 %v271
      %v503 = vunpack.c.l.b16 %v272
      %v504 = vunpack.c.l.b16 %v273
      %v505 = vunpack.c.l.b16 %v274
      %v506 = vunpack.c.l.b16 %v275
      %v507 = vunpack.c.l.b16 %v276
      %v508 = vunpack.c.l.b16 %v277
      %v509 = vunpack.c.l.b16 %v278
      %v510 = vunpack.c.l.b16 %v279
      %v511 = vunpack.c.l.b16 %v280
      %v512 = vunpack.c.l.b16 %v281
      %v513 = vunpack.c.l.b16 %v282
      %v514 = vunpack.c.l.b16 %v283
      %v515 = vunpack.c.l.b16 %v284
      %v516 = vunpack.c.l.b16 %v285
      %v517 = vunpack.c.l.b16 %v286
      %v518 = vunpack.c.l.b16 %v287
      %v519 = vunpack.c.l.b16 %v288
      %v520 = vunpack.c.l.b16 %v289
      %v521 = vunpack.c.l.b16 %v290
      %v522 = vunpack.c.l.b16 %v291
      %v523 = vunpack.c.l.b16 %v292
      %v524 = vpack.c.b16 %v493, %v492
      %v525 = vpack.c.b16 %v495, %v494
      %v526 = vpack.c.b16 %v497, %v496
      %v527 = vpack.c.b16 %v499, %v498
      %v528 = vpack.c.b16 %v501, %v500
      %v529 = vpack.c.b16 %v503, %v502
      %v530 = vpack.c.b16 %v505, %v504
      %v531 = vpack.c.b16 %v507, %v506
      %v532 = vpack.c.b16 %v509, %v508
      %v533 = vpack.c.b16 %v511, %v510
      %v534 = vpack.c.b16 %v513, %v512
      %v535 = vpack.c.b16 %v515, %v514
      %v536 = vpack.c.b16 %v517, %v516
      %v537 = vpack.c.b16 %v519, %v518
      %v538 = vpack.c.b16 %v521, %v520
      %v539 = vpack.c.b16 %v523, %v522
      %556 = vmatprep.subr.bf16.mxu0 0
      %557 = vmatpush1.bf16.msra.mxu0 %v524
      %558 = vmatprep.subr.bf16.mxu0 0
      %559 = vmatpush1.bf16.msra.mxu0 %v525
      %560 = vmatprep.subr.bf16.mxu0 0
      %561 = vmatpush1.bf16.msra.mxu0 %v526
      %562 = vmatprep.subr.bf16.mxu0 0
      %563 = vmatpush1.bf16.msra.mxu0 %v527
      %564 = vmatprep.subr.bf16.mxu0 0
      %565 = vmatpush1.bf16.msra.mxu0 %v528
      %566 = vmatprep.subr.bf16.mxu0 0
      %567 = vmatpush1.bf16.msra.mxu0 %v529
      %568 = vmatprep.subr.bf16.mxu0 0
      %569 = vmatpush1.bf16.msra.mxu0 %v530
      %570 = vmatprep.subr.bf16.mxu0 0
      %571 = vmatpush1.bf16.msra.mxu0 %v531
      %572 = vmatprep.subr.bf16.mxu0 0
      %573 = vmatpush1.bf16.msra.mxu0 %v532
      %574 = vmatprep.subr.bf16.mxu0 0
      %575 = vmatpush1.bf16.msra.mxu0 %v533
      %576 = vmatprep.subr.bf16.mxu0 0
      %577 = vmatpush1.bf16.msra.mxu0 %v534
      %578 = vmatprep.subr.bf16.mxu0 0
      %579 = vmatpush1.bf16.msra.mxu0 %v535
      %580 = vmatprep.subr.bf16.mxu0 0
      %581 = vmatpush1.bf16.msra.mxu0 %v536
      %582 = vmatprep.subr.bf16.mxu0 0
      %583 = vmatpush1.bf16.msra.mxu0 %v537
      %584 = vmatprep.subr.bf16.mxu0 0
      %585 = vmatpush1.bf16.msra.mxu0 %v538
      %586 = vmatprep.subr.bf16.mxu0 0
      %587 = vmatpush1.bf16.msra.mxu0 %v539
      %588 = vmatprep.mubr.bf16.mxu0 %v397
      %589 = vmatmul.mubr.bf16.gmra.mrb[0].mxu0 %v396
      %v590 = vpop.f32.mrb[0].mxu0
      %v591 = vadd.f32 %v298, %v590
      %v592 = vpop.f32.mrb[0].mxu0
      %v593 = vpop.f32.mrb[0].mxu0
      %v594 = vadd.f32 %v298, %v593
      %v595 = vpop.f32.mrb[0].mxu0
      %596 = vmatprep.mubr.bf16.mxu0 %v399
      %597 = vmatmul.mubr.bf16.gmra.mrb[0].mxu0 %v398
      %v598 = vpop.f32.mrb[0].mxu0
      %v599 = vadd.f32 %v298, %v598
      %v600 = vpop.f32.mrb[0].mxu0
      %v601 = vpop.f32.mrb[0].mxu0
      %v602 = vadd.f32 %v298, %v601
      %v603 = vpop.f32.mrb[0].mxu0
      %604 = vmatprep.mubr.bf16.mxu0 %v401
      %605 = vmatmul.mubr.bf16.gmra.mrb[0].mxu0 %v400
      %v606 = vpop.f32.mrb[0].mxu0
      %v607 = vadd.f32 %v298, %v606
      %v608 = vpop.f32.mrb[0].mxu0
      %v609 = vpop.f32.mrb[0].mxu0
      %v610 = vadd.f32 %v298, %v609
      %v611 = vpop.f32.mrb[0].mxu0
      %612 = vmatprep.mubr.bf16.mxu0 %v403
      %613 = vmatmul.mubr.bf16.gmra.mrb[0].mxu0 %v402
      %v614 = vpop.f32.mrb[0].mxu0
      %v615 = vadd.f32 %v298, %v614
      %v616 = vpop.f32.mrb[0].mxu0
      %v617 = vpop.f32.mrb[0].mxu0
      %v618 = vadd.f32 %v298, %v617
      %v619 = vpop.f32.mrb[0].mxu0
      %620 = vmatprep.mubr.bf16.mxu0 %v405
      %621 = vmatmul.mubr.bf16.gmra.mrb[0].mxu0 %v404
      %v622 = vpop.f32.mrb[0].mxu0
      %v623 = vadd.f32 %v298, %v622
      %v624 = vpop.f32.mrb[0].mxu0
      %v625 = vpop.f32.mrb[0].mxu0
      %v626 = vadd.f32 %v298, %v625
      %v627 = vpop.f32.mrb[0].mxu0
      %628 = vmatprep.mubr.bf16.mxu0 %v407
      %629 = vmatmul.mubr.bf16.gmra.mrb[0].mxu0 %v406
      %v630 = vpop.f32.mrb[0].mxu0
      %v631 = vadd.f32 %v298, %v630
      %v632 = vpop.f32.mrb[0].mxu0
      %v633 = vpop.f32.mrb[0].mxu0
      %v634 = vadd.f32 %v298, %v633
      %v635 = vpop.f32.mrb[0].mxu0
      %636 = vmatprep.mubr.bf16.mxu0 %v409
      %637 = vmatmul.mubr.bf16.gmra.mrb[0].mxu0 %v408
      %v638 = vpop.f32.mrb[0].mxu0
      %v639 = vadd.f32 %v298, %v638
      %v640 = vpop.f32.mrb[0].mxu0
      %v641 = vpop.f32.mrb[0].mxu0
      %v642 = vadd.f32 %v298, %v641
      %v643 = vpop.f32.mrb[0].mxu0
      %644 = vmatprep.mubr.bf16.mxu0 %v411
      %645 = vmatmul.mubr.bf16.gmra.mrb[0].mxu0 %v410
      %v646 = vpop.f32.mrb[0].mxu0
      %v647 = vadd.f32 %v298, %v646
      %v648 = vpop.f32.mrb[0].mxu0
      %v649 = vpop.f32.mrb[0].mxu0
      %v650 = vadd.f32 %v298, %v649
      %v651 = vpop.f32.mrb[0].mxu0
      %652 = vmatprep.mubr.bf16.mxu0 %v413
      %653 = vmatmul.mubr.bf16.gmra.mrb[0].mxu0 %v412
      %v654 = vpop.f32.mrb[0].mxu0
      %v655 = vadd.f32 %v298, %v654
      %v656 = vpop.f32.mrb[0].mxu0
      %v657 = vpop.f32.mrb[0].mxu0
      %v658 = vadd.f32 %v298, %v657
      %v659 = vpop.f32.mrb[0].mxu0
      %660 = vmatprep.mubr.bf16.mxu0 %v415
      %661 = vmatmul.mubr.bf16.gmra.mrb[0].mxu0 %v414
      %v662 = vpop.f32.mrb[0].mxu0
      %v663 = vadd.f32 %v298, %v662
      %v664 = vpop.f32.mrb[0].mxu0
      %v665 = vpop.f32.mrb[0].mxu0
      %v666 = vadd.f32 %v298, %v665
      %v667 = vpop.f32.mrb[0].mxu0
      %668 = vmatprep.mubr.bf16.mxu0 %v417
      %669 = vmatmul.mubr.bf16.gmra.mrb[0].mxu0 %v416
      %v670 = vpop.f32.mrb[0].mxu0
      %v671 = vadd.f32 %v298, %v670
      %v672 = vpop.f32.mrb[0].mxu0
      %v673 = vpop.f32.mrb[0].mxu0
      %v674 = vadd.f32 %v298, %v673
      %v675 = vpop.f32.mrb[0].mxu0
      %676 = vmatprep.mubr.bf16.mxu0 %v419
      %677 = vmatmul.mubr.bf16.gmra.mrb[0].mxu0 %v418
      %v678 = vpop.f32.mrb[0].mxu0
      %v679 = vadd.f32 %v298, %v678
      %v680 = vpop.f32.mrb[0].mxu0
      %v681 = vpop.f32.mrb[0].mxu0
      %v682 = vadd.f32 %v298, %v681
      %v683 = vpop.f32.mrb[0].mxu0
      %684 = vmatprep.mubr.bf16.mxu0 %v421
      %685 = vmatmul.mubr.bf16.gmra.mrb[0].mxu0 %v420
      %v686 = vpop.f32.mrb[0].mxu0
      %v687 = vadd.f32 %v298, %v686
      %v688 = vpop.f32.mrb[0].mxu0
      %v689 = vpop.f32.mrb[0].mxu0
      %v690 = vadd.f32 %v298, %v689
      %v691 = vpop.f32.mrb[0].mxu0
      %692 = vmatprep.mubr.bf16.mxu0 %v423
      %693 = vmatmul.mubr.bf16.gmra.mrb[0].mxu0 %v422
      %v694 = vpop.f32.mrb[0].mxu0
      %v695 = vadd.f32 %v298, %v694
      %v696 = vpop.f32.mrb[0].mxu0
      %v697 = vpop.f32.mrb[0].mxu0
      %v698 = vadd.f32 %v298, %v697
      %v699 = vpop.f32.mrb[0].mxu0
      %700 = vmatprep.mubr.bf16.mxu0 %v425
      %701 = vmatmul.mubr.bf16.gmra.mrb[0].mxu0 %v424
      %v702 = vpop.f32.mrb[0].mxu0
      %v703 = vadd.f32 %v298, %v702
      %v704 = vpop.f32.mrb[0].mxu0
      %v705 = vpop.f32.mrb[0].mxu0
      %v706 = vadd.f32 %v298, %v705
      %v707 = vpop.f32.mrb[0].mxu0
      %708 = vmatprep.mubr.bf16.mxu0 %v427
      %709 = vmatmul.mubr.bf16.gmra.mrb[0].mxu0 %v426
      %v710 = vpop.f32.mrb[0].mxu0
      %v711 = vadd.f32 %v298, %v710
      %v712 = vpop.f32.mrb[0].mxu0
      %v713 = vpop.f32.mrb[0].mxu0
      %v714 = vadd.f32 %v298, %v713
      %v715 = vpop.f32.mrb[0].mxu0
      %716 = vdwg.mxu0
      %v717 = vmax.f32 %v591, 0.0
      %v718 = vmax.f32 %v594, 0.0
      %v719 = vmax.f32 %v599, 0.0
      %v720 = vmax.f32 %v602, 0.0
      %v721 = vmax.f32 %v607, 0.0
      %v722 = vmax.f32 %v610, 0.0
      %v723 = vmax.f32 %v615, 0.0
      %v724 = vmax.f32 %v618, 0.0
      %v725 = vmax.f32 %v623, 0.0
      %v726 = vmax.f32 %v626, 0.0
      %v727 = vmax.f32 %v631, 0.0
      %v728 = vmax.f32 %v634, 0.0
      %v729 = vmax.f32 %v639, 0.0
      %v730 = vmax.f32 %v642, 0.0
      %v731 = vmax.f32 %v647, 0.0
      %v732 = vmax.f32 %v650, 0.0
      %v733 = vmax.f32 %v655, 0.0
      %v734 = vmax.f32 %v658, 0.0
      %v735 = vmax.f32 %v663, 0.0
      %v736 = vmax.f32 %v666, 0.0
      %v737 = vmax.f32 %v671, 0.0
      %v738 = vmax.f32 %v674, 0.0
      %v739 = vmax.f32 %v679, 0.0
      %v740 = vmax.f32 %v682, 0.0
      %v741 = vmax.f32 %v687, 0.0
      %v742 = vmax.f32 %v690, 0.0
      %v743 = vmax.f32 %v695, 0.0
      %v744 = vmax.f32 %v698, 0.0
      %v745 = vmax.f32 %v703, 0.0
      %v746 = vmax.f32 %v706, 0.0
      %v747 = vmax.f32 %v711, 0.0
      %v748 = vmax.f32 %v714, 0.0
      %v749 = vpack.c.bf16 %v718, %v717
      %v750 = vpack.c.bf16 %v720, %v719
      %v751 = vpack.c.bf16 %v722, %v721
      %v752 = vpack.c.bf16 %v724, %v723
      %v753 = vpack.c.bf16 %v726, %v725
      %v754 = vpack.c.bf16 %v728, %v727
      %v755 = vpack.c.bf16 %v730, %v729
      %v756 = vpack.c.bf16 %v732, %v731
      %v757 = vpack.c.bf16 %v734, %v733
      %v758 = vpack.c.bf16 %v736, %v735
      %v759 = vpack.c.bf16 %v738, %v737
      %v760 = vpack.c.bf16 %v740, %v739
      %v761 = vpack.c.bf16 %v742, %v741
      %v762 = vpack.c.bf16 %v744, %v743
      %v763 = vpack.c.bf16 %v746, %v745
      %v764 = vpack.c.bf16 %v748, %v747
      %v781 = vunpack.c.l.b16 %v749
      %v782 = vunpack.c.h.b16 %v749
      %v783 = vunpack.c.l.b16 %v750
      %v784 = vunpack.c.h.b16 %v750
      %v785 = vunpack.c.l.b16 %v751
      %v786 = vunpack.c.h.b16 %v751
      %v787 = vunpack.c.l.b16 %v752
      %v788 = vunpack.c.h.b16 %v752
      %v789 = vunpack.c.l.b16 %v753
      %v790 = vunpack.c.h.b16 %v753
      %v791 = vunpack.c.l.b16 %v754
      %v792 = vunpack.c.h.b16 %v754
      %v793 = vunpack.c.l.b16 %v755
      %v794 = vunpack.c.h.b16 %v755
      %v795 = vunpack.c.l.b16 %v756
      %v796 = vunpack.c.h.b16 %v756
      %v797 = vunpack.c.l.b16 %v757
      %v798 = vunpack.c.h.b16 %v757
      %v799 = vunpack.c.l.b16 %v758
      %v800 = vunpack.c.h.b16 %v758
      %v801 = vunpack.c.l.b16 %v759
      %v802 = vunpack.c.h.b16 %v759
      %v803 = vunpack.c.l.b16 %v760
      %v804 = vunpack.c.h.b16 %v760
      %v805 = vunpack.c.l.b16 %v761
      %v806 = vunpack.c.h.b16 %v761
      %v807 = vunpack.c.l.b16 %v762
      %v808 = vunpack.c.h.b16 %v762
      %v809 = vunpack.c.l.b16 %v763
      %v810 = vunpack.c.h.b16 %v763
      %v811 = vunpack.c.l.b16 %v764
      %v812 = vunpack.c.h.b16 %v764
      %v813 = vpack.c.b16 %v781, %v781
      %v814 = vpack.c.b16 %v782, %v782
      %v815 = vpack.c.b16 %v783, %v783
      %v816 = vpack.c.b16 %v784, %v784
      %v817 = vpack.c.b16 %v785, %v785
      %v818 = vpack.c.b16 %v786, %v786
      %v819 = vpack.c.b16 %v787, %v787
      %v820 = vpack.c.b16 %v788, %v788
      %v821 = vpack.c.b16 %v789, %v789
      %v822 = vpack.c.b16 %v790, %v790
      %v823 = vpack.c.b16 %v791, %v791
      %v824 = vpack.c.b16 %v792, %v792
      %v825 = vpack.c.b16 %v793, %v793
      %v826 = vpack.c.b16 %v794, %v794
      %v827 = vpack.c.b16 %v795, %v795
      %v828 = vpack.c.b16 %v796, %v796
      %v829 = vpack.c.b16 %v797, %v797
      %v830 = vpack.c.b16 %v798, %v798
      %v831 = vpack.c.b16 %v799, %v799
      %v832 = vpack.c.b16 %v800, %v800
      %v833 = vpack.c.b16 %v801, %v801
      %v834 = vpack.c.b16 %v802, %v802
      %v835 = vpack.c.b16 %v803, %v803
      %v836 = vpack.c.b16 %v804, %v804
      %v837 = vpack.c.b16 %v805, %v805
      %v838 = vpack.c.b16 %v806, %v806
      %v839 = vpack.c.b16 %v807, %v807
      %v840 = vpack.c.b16 %v808, %v808
      %v841 = vpack.c.b16 %v809, %v809
      %v842 = vpack.c.b16 %v810, %v810
      %v843 = vpack.c.b16 %v811, %v811
      %v844 = vpack.c.b16 %v812, %v812
      %877 = vst [vmem:[%s226] sm:$0xf] %v813
      %878 = vst [vmem:[%s226 + $0x4] sm:$0xf] %v814
      %879 = vst [vmem:[%s226 + $0x8] sm:$0xf] %v815
      %880 = vst [vmem:[%s226 + $0xc] sm:$0xf] %v816
      %881 = vst [vmem:[%s226 + $0x10] sm:$0xf] %v817
      %882 = vst [vmem:[%s226 + $0x14] sm:$0xf] %v818
      %883 = vst [vmem:[%s226 + $0x18] sm:$0xf] %v819
      %884 = vst [vmem:[%s226 + $0x1c] sm:$0xf] %v820
      %885 = vst [vmem:[%s226 + $0x20] sm:$0xf] %v821
      %886 = vst [vmem:[%s226 + $0x24] sm:$0xf] %v822
      %887 = vst [vmem:[%s226 + $0x28] sm:$0xf] %v823
      %888 = vst [vmem:[%s226 + $0x2c] sm:$0xf] %v824
      %889 = vst [vmem:[%s226 + $0x30] sm:$0xf] %v825
      %890 = vst [vmem:[%s226 + $0x34] sm:$0xf] %v826
      %891 = vst [vmem:[%s226 + $0x38] sm:$0xf] %v827
      %892 = vst [vmem:[%s226 + $0x3c] sm:$0xf] %v828
      %893 = vst [vmem:[%s226 + $0x40] sm:$0xf] %v829
      %894 = vst [vmem:[%s226 + $0x44] sm:$0xf] %v830
      %895 = vst [vmem:[%s226 + $0x48] sm:$0xf] %v831
      %896 = vst [vmem:[%s226 + $0x4c] sm:$0xf] %v832
      %897 = vst [vmem:[%s226 + $0x50] sm:$0xf] %v833
      %898 = vst [vmem:[%s226 + $0x54] sm:$0xf] %v834
      %899 = vst [vmem:[%s226 + $0x58] sm:$0xf] %v835
      %900 = vst [vmem:[%s226 + $0x5c] sm:$0xf] %v836
      %901 = vst [vmem:[%s226 + $0x60] sm:$0xf] %v837
      %902 = vst [vmem:[%s226 + $0x64] sm:$0xf] %v838
      %903 = vst [vmem:[%s226 + $0x68] sm:$0xf] %v839
      %904 = vst [vmem:[%s226 + $0x6c] sm:$0xf] %v840
      %905 = vst [vmem:[%s226 + $0x70] sm:$0xf] %v841
      %906 = vst [vmem:[%s226 + $0x74] sm:$0xf] %v842
      %907 = vst [vmem:[%s226 + $0x78] sm:$0xf] %v843
      %908 = vst [vmem:[%s226 + $0x7c] sm:$0xf] %v844
      %s909 = smul.u32 32, %s18
      %p910 = scmp.lt.s32.totalorder %s909, 63
      %s911 = scalar_select %p910, %s909, 63
      %p912 = scmp.lt.s32.totalorder %s19, 0
      %s913 = scalar_select %p912, %s19, 0
      %s914 = sadd.s32 %s913, %s911
      %s915 = smul.addr %s914, 4
      %s916 = scalar_lea.vmem %s3, %s915
      // Predicated region
      $region33: #{fwd.54} parent=31 // pred_check
        %p917 = pneg %p124
      $region34: #{fwd.54} parent=31 // pred_check_branch
        %919 = sbr.rel (%p917) target = $region36
      $region35: #{fwd.54} parent=31 // pred_region
        %s920 = smul.u32 32, %s18
      $region36: #{fwd.54} parent=31 // pred_fallthru
        _
    $region32: #{fwd.54} parent=5 // pred_fallthru
      _
    %p921 = scmp.le.s32.totalorder 2, %s9
    // Predicated region
    $region37: #{fwd.54} parent=5 // pred_check
      %p922 = pneg %p921
    $region38: #{fwd.54} parent=5 // pred_check_branch
      %924 = sbr.rel (%p922) target = $region40
    $region39: #{fwd.54} parent=5 // pred_region
      %s925 = ssub.s32 %s9, 2
      // Predicated region
      $region41: #{fwd.54} parent=39 // pred_check
        %p926 = pneg %p130
      $region42: #{fwd.54} parent=39 // pred_check_branch
        %928 = sbr.rel (%p926) target = $region44
      $region43: #{fwd.54} parent=39 // pred_region
        %s929 = smul.u32 32, %s20
        %p930 = scmp.lt.s32.totalorder %s929, 63
        %s931 = scalar_select %p930, %s929, 63
        %p932 = scmp.lt.s32.totalorder %s21, 0
        %s933 = scalar_select %p932, %s21, 0
        %s934 = sadd.s32 %s933, %s931
        %s935 = smul.addr %s934, 4
        %s936 = scalar_lea.vmem %s3, %s935
      $region44: #{fwd.54} parent=39 // pred_fallthru
        _
    $region40: #{fwd.54} parent=5 // pred_fallthru
      _
  $region6: #{fwd.54} parent=0 // loop_footer
    %s13 = sadd.s32 1, %s9
  $region7: #{fwd.54} parent=0 // loop_footer_branch
    %8 = sbr.rel target = $region3
  $region8: #{fwd.54} parent=0 // loop_exit
    _

// kernel: fwd.57
$region0: #{fwd.57}
  #allocation0 [shape = 'u32[]', space=smem, size = 0x4, offset = 0x4, fixed_abs, tag = 'smem constant byte address 0x4 - core index']
  #allocation1 [shape = 'u32[144,128]{1,0:T(1,128)}', space=vmem, size = 0x12000, scoped, tag = 'internal scratch']
  %s0 = inlined_call_operand.vmem [shape: bf16[128,128], index: 0, kind: input, shape index: {}]
  %s1 = inlined_call_operand.vmem [shape: bf16[128,128], index: 1, kind: input, shape index: {}]
  %s2 = inlined_call_operand.vmem [shape: f32[1,128], index: 2, kind: input, shape index: {}]
  %s3 = inlined_call_operand.vmem [shape: bf16[128,128], index: 3, kind: output, shape index: {}]
  %s4 = sld [smem:[#allocation0]]
  $region45: #{fwd.57} parent=0
    _
  %s6 = ssub.s32 1, %s4
  %s7 = scalar_select 0, %s6, %s4
  loop: start=0, step=1, limit=4
  $region2: #{fwd.57} parent=0 // loop_pre_header
    _
  $region3: #{fwd.57} parent=0 // loop_header
    %s9 = sphi 0, %s13
    %p10 = scmp.ge.s32.totalorder %s9, 4
    %s16 = sphi 0, %s28
    %s17 = sphi 0, %s24
    %s18 = sphi 0, %s16
    %s19 = sphi 0, %s17
    %s20 = sphi 0, %s18
    %s21 = sphi 0, %s19
    %s31 = sphi 0, %s33
    %s34 = sphi 0, %s31
    %s35 = sphi 0, %s34
    %s51 = sphi 0, %s35
    %s57 = sphi 0, %s59
    %s60 = sphi 0, %s57
    %s61 = sphi 0, %s60
    %s77 = sphi 0, %s61
    %s83 = sphi 0, %s85
    %s86 = sphi 0, %s83
    %s87 = sphi 0, %s86
    %s103 = sphi 0, %s87
    %s111 = sphi 0, %s113
    %s114 = sphi 0, %s111
    %s115 = sphi 0, %s114
    %s131 = sphi 0, %s115
  $region4: #{fwd.57} parent=0 // loop_header_branch
    %12 = sbr.rel (%p10) target = $region8
  $region5: #{fwd.57} parent=0 // loop_body
    %s14 = ssub.s32 %s9, 1
    %s15 = ssub.s32 %s9, 2
    %s22 = sadd.s32 1, %s17
    %p23 = scmp.ge.s32.totalorder %s22, 1
    %s24 = scalar_select %p23, 0, %s22
    %s25 = sadd.s32 1, %s16
    %s26 = scalar_select %p23, %s25, %s16
    %p27 = scmp.ge.s32.totalorder %s26, 2
    %s28 = scalar_select %p27, 0, %s26
    %s29 = ssub.s32 %s16, %s28
    %p30 = scmp.eq.s32.totalorder %s29, 0
    %s32 = sadd.s32 %s31, 1
    %s33 = scalar_select %p30, %s31, %s32
    %p36 = pneg %p30
    %p37 = scmp.eq.s32.totalorder %s9, 1
    %p38 = por %p36, %p37
    %p39 = scmp.ne.s32.totalorder %s31, %s34
    %p40 = scmp.eq.s32.totalorder %s9, 0
    %p41 = por %p39, %p40
    %p42 = scmp.ne.s32.totalorder %s31, %s34
    %p43 = scmp.eq.s32.totalorder %s14, 1
    %p44 = por %p42, %p43
    %p45 = scmp.ne.s32.totalorder %s34, %s35
    %p46 = scmp.eq.s32.totalorder %s14, 0
    %p47 = por %p45, %p46
    %p48 = scmp.ne.s32.totalorder %s34, %s35
    %p49 = scmp.eq.s32.totalorder %s15, 1
    %p50 = por %p48, %p49
    %p52 = scmp.ne.s32.totalorder %s35, %s51
    %p53 = scmp.eq.s32.totalorder %s15, 0
    %p54 = por %p52, %p53
    %s55 = ssub.s32 %s17, %s24
    %p56 = scmp.eq.s32.totalorder %s55, 0
    %s58 = sadd.s32 %s57, 1
    %s59 = scalar_select %p56, %s57, %s58
    %p62 = pneg %p56
    %p63 = scmp.eq.s32.totalorder %s9, 1
    %p64 = por %p62, %p63
    %p65 = scmp.ne.s32.totalorder %s57, %s60
    %p66 = scmp.eq.s32.totalorder %s9, 0
    %p67 = por %p65, %p66
    %p68 = scmp.ne.s32.totalorder %s57, %s60
    %p69 = scmp.eq.s32.totalorder %s14, 1
    %p70 = por %p68, %p69
    %p71 = scmp.ne.s32.totalorder %s60, %s61
    %p72 = scmp.eq.s32.totalorder %s14, 0
    %p73 = por %p71, %p72
    %p74 = scmp.ne.s32.totalorder %s60, %s61
    %p75 = scmp.eq.s32.totalorder %s15, 1
    %p76 = por %p74, %p75
    %p78 = scmp.ne.s32.totalorder %s61, %s77
    %p79 = scmp.eq.s32.totalorder %s15, 0
    %p80 = por %p78, %p79
    %s81 = ssub.s32 %s17, %s24
    %p82 = scmp.eq.s32.totalorder %s81, 0
    %s84 = sadd.s32 %s83, 1
    %s85 = scalar_select %p82, %s83, %s84
    %p88 = pneg %p82
    %p89 = scmp.eq.s32.totalorder %s9, 1
    %p90 = por %p88, %p89
    %p91 = scmp.ne.s32.totalorder %s83, %s86
    %p92 = scmp.eq.s32.totalorder %s9, 0
    %p93 = por %p91, %p92
    %p94 = scmp.ne.s32.totalorder %s83, %s86
    %p95 = scmp.eq.s32.totalorder %s14, 1
    %p96 = por %p94, %p95
    %p97 = scmp.ne.s32.totalorder %s86, %s87
    %p98 = scmp.eq.s32.totalorder %s14, 0
    %p99 = por %p97, %p98
    %p100 = scmp.ne.s32.totalorder %s86, %s87
    %p101 = scmp.eq.s32.totalorder %s15, 1
    %p102 = por %p100, %p101
    %p104 = scmp.ne.s32.totalorder %s87, %s103
    %p105 = scmp.eq.s32.totalorder %s15, 0
    %p106 = por %p104, %p105
    %s107 = ssub.s32 %s16, %s28
    %s108 = ssub.s32 %s17, %s24
    %s109 = sor.u32 %s107, %s108
    %p110 = scmp.eq.s32.totalorder %s109, 0
    %s112 = sadd.s32 %s111, 1
    %s113 = scalar_select %p110, %s111, %s112
    %p116 = pneg %p110
    %p117 = scmp.eq.s32.totalorder %s9, 1
    %p118 = por %p116, %p117
    %p119 = scmp.ne.s32.totalorder %s111, %s114
    %p120 = scmp.eq.s32.totalorder %s9, 0
    %p121 = por %p119, %p120
    %p122 = scmp.ne.s32.totalorder %s111, %s114
    %p123 = scmp.eq.s32.totalorder %s14, 1
    %p124 = por %p122, %p123
    %p125 = scmp.ne.s32.totalorder %s114, %s115
    %p126 = scmp.eq.s32.totalorder %s14, 0
    %p127 = por %p125, %p126
    %p128 = scmp.ne.s32.totalorder %s114, %s115
    %p129 = scmp.eq.s32.totalorder %s15, 1
    %p130 = por %p128, %p129
    %p132 = scmp.ne.s32.totalorder %s115, %s131
    %p133 = scmp.eq.s32.totalorder %s15, 0
    %p134 = por %p132, %p133
    %p135 = scmp.le.s32.totalorder 1, %s9
    %p136 = scmp.lt.s32.totalorder %s9, 3
    %p137 = pnand %p135, %p136
    %p138 = pneg %p137
    // Predicated region
    $region9: #{fwd.57} parent=5 // pred_check
      _
    $region10: #{fwd.57} parent=5 // pred_check_branch
      %140 = sbr.rel (%p137) target = $region12
    $region11: #{fwd.57} parent=5 // pred_region
      %s141 = ssub.s32 %s9, 1
      // Predicated region
      $region13: #{fwd.57} parent=11 // pred_check
        %p142 = pneg %p73
      $region14: #{fwd.57} parent=11 // pred_check_branch
        %144 = sbr.rel (%p142) target = $region16
      $region15: #{fwd.57} parent=11 // pred_region
        %p145 = scmp.lt.s32.totalorder %s19, 0
        %s146 = scalar_select %p145, %s19, 0
        %s147 = smul.addr %s146, 4
        %s148 = scalar_lea.vmem %s1, %s147
      $region16: #{fwd.57} parent=11 // pred_fallthru
        _
      // Predicated region
      $region17: #{fwd.57} parent=11 // pred_check
        %p149 = pneg %p99
      $region18: #{fwd.57} parent=11 // pred_check_branch
        %151 = sbr.rel (%p149) target = $region20
      $region19: #{fwd.57} parent=11 // pred_region
        %p152 = scmp.lt.s32.totalorder %s19, 0
        %s153 = scalar_select %p152, %s19, 0
        %s154 = scalar_lea.vmem %s2, %s153
      $region20: #{fwd.57} parent=11 // pred_fallthru
        _
    $region12: #{fwd.57} parent=5 // pred_fallthru
      _
    %p155 = scmp.lt.s32.totalorder %s9, 2
    // Predicated region
    $region21: #{fwd.57} parent=5 // pred_check
      %p156 = pneg %p155
    $region22: #{fwd.57} parent=5 // pred_check_branch
      %158 = sbr.rel (%p156) target = $region24
    $region23: #{fwd.57} parent=5 // pred_region
      // Predicated region
      $region25: #{fwd.57} parent=23 // pred_check
        %p159 = pneg %p41
      $region26: #{fwd.57} parent=23 // pred_check_branch
        %161 = sbr.rel (%p159) target = $region28
      $region27: #{fwd.57} parent=23 // pred_region
        %s162 = smul.u32 8, %s16
        %p163 = scmp.lt.s32.totalorder %s162, 15
        %s164 = scalar_select %p163, %s162, 15
        %s165 = smul.addr %s164, 4
        %s166 = scalar_lea.vmem %s0, %s165
        %s167 = smul.u32 8, %s16
      $region28: #{fwd.57} parent=23 // pred_fallthru
        _
    $region24: #{fwd.57} parent=5 // pred_fallthru
      _
    %p168 = scmp.le.s32.totalorder 1, %s9
    %p169 = scmp.lt.s32.totalorder %s9, 3
    %p170 = pnand %p168, %p169
    %p171 = pneg %p170
    // Predicated region
    $region29: #{fwd.57} parent=5 // pred_check
      _
    $region30: #{fwd.57} parent=5 // pred_check_branch
      %173 = sbr.rel (%p170) target = $region32
    $region31: #{fwd.57} parent=5 // pred_region
      %s174 = ssub.s32 %s9, 1
      %s175 = smul.u32 8, %s18
      %p176 = scmp.lt.s32.totalorder %s175, 15
      %s177 = scalar_select %p176, %s175, 15
      %s178 = smul.addr %s177, 4
      %s179 = scalar_lea.vmem %s0, %s178
      %p180 = pneg %p47
      %p181 = pneg %p44
      %p182 = scmp.lt.s32.totalorder %s19, 0
      %s183 = scalar_select %p182, %s19, 0
      %s184 = smul.addr %s183, 4
      %s185 = scalar_lea.vmem %s1, %s184
      %p186 = pneg %p73
      %p187 = pneg %p70
      %p188 = scmp.lt.s32.totalorder %s19, 0
      %s189 = scalar_select %p188, %s19, 0
      %s190 = scalar_lea.vmem %s2, %s189
      %p191 = pneg %p99
      %p192 = pneg %p96
      %p193 = pneg %p127
      %p194 = pneg %p124
      %s195 = smul.u32 8, %s18
      %p196 = scmp.lt.s32.totalorder %s195, 15
      %s197 = scalar_select %p196, %s195, 15
      %p198 = scmp.lt.s32.totalorder %s19, 0
      %s199 = scalar_select %p198, %s19, 0
      %s200 = sadd.s32 %s199, %s197
      %s201 = smul.addr %s200, 4
      %s202 = scalar_lea.vmem %s3, %s201
      %s203 = smul.u32 8, %s18
      %p204 = scmp.lt.s32.totalorder %s203, 15
      %s205 = scalar_select %p204, %s203, 15
      %s206 = smul.addr %s205, 4
      %s207 = scalar_lea.vmem %s0, %s206
      %s208 = smul.u32 8, %s18
      %p209 = scmp.lt.s32.totalorder %s19, 0
      %s210 = scalar_select %p209, %s19, 0
      %s211 = smul.addr %s210, 4
      %s212 = scalar_lea.vmem %s1, %s211
      %p213 = scmp.lt.s32.totalorder %s19, 0
      %s214 = scalar_select %p213, %s19, 0
      %s215 = scalar_lea.vmem %s2, %s214
      %s216 = smul.u32 8, %s18
      %p217 = scmp.lt.s32.totalorder %s216, 15
      %s218 = scalar_select %p217, %s216, 15
      %p219 = scmp.lt.s32.totalorder %s19, 0
      %s220 = scalar_select %p219, %s19, 0
      %s221 = sadd.s32 %s220, %s218
      %s222 = smul.addr %s221, 4
      %s223 = scalar_lea.vmem %s3, %s222
      %s224 = smul.u32 8, %s18
      %v226 = vld [vmem:[%s207] sm:$0xf]
      %v227 = vld [vmem:[%s207 + $0x4] sm:$0xf]
      %v228 = vld [vmem:[%s207 + $0x8] sm:$0xf]
      %v229 = vld [vmem:[%s207 + $0xc] sm:$0xf]
      %v230 = vld [vmem:[%s207 + $0x10] sm:$0xf]
      %v231 = vld [vmem:[%s207 + $0x14] sm:$0xf]
      %v232 = vld [vmem:[%s207 + $0x18] sm:$0xf]
      %v233 = vld [vmem:[%s207 + $0x1c] sm:$0xf]
      %v234 = vld [vmem:[%s212] sm:$0xf]
      %v235 = vld [vmem:[%s212 + $0x4] sm:$0xf]
      %v236 = vld [vmem:[%s212 + $0x8] sm:$0xf]
      %v237 = vld [vmem:[%s212 + $0xc] sm:$0xf]
      %v238 = vld [vmem:[%s212 + $0x10] sm:$0xf]
      %v239 = vld [vmem:[%s212 + $0x14] sm:$0xf]
      %v240 = vld [vmem:[%s212 + $0x18] sm:$0xf]
      %v241 = vld [vmem:[%s212 + $0x1c] sm:$0xf]
      %v242 = vld [vmem:[%s212 + $0x20] sm:$0xf]
      %v243 = vld [vmem:[%s212 + $0x24] sm:$0xf]
      %v244 = vld [vmem:[%s212 + $0x28] sm:$0xf]
      %v245 = vld [vmem:[%s212 + $0x2c] sm:$0xf]
      %v246 = vld [vmem:[%s212 + $0x30] sm:$0xf]
      %v247 = vld [vmem:[%s212 + $0x34] sm:$0xf]
      %v248 = vld [vmem:[%s212 + $0x38] sm:$0xf]
      %v249 = vld [vmem:[%s212 + $0x3c] sm:$0xf]
      %v250 = vld [vmem:[%s215] sm:$0x1]
      %v252 = vlaneseq
      %v253 = vshrl.u32 %v252, 7
      %v254 = vsub.s32 0, %v253
      %v255 = vrot.slane %v250, %v254
      %v265 = vunpack.c.l.b16 %v226
      %v266 = vunpack.c.l.b16 %v227
      %v267 = vunpack.c.l.b16 %v228
      %v268 = vunpack.c.l.b16 %v229
      %v269 = vunpack.c.l.b16 %v230
      %v270 = vunpack.c.l.b16 %v231
      %v271 = vunpack.c.l.b16 %v232
      %v272 = vunpack.c.l.b16 %v233
      %v273 = vpack.c.b16 %v266, %v265
      %v274 = vpack.c.b16 %v268, %v267
      %v275 = vpack.c.b16 %v270, %v269
      %v276 = vpack.c.b16 %v272, %v271
      %v297 = vunpack.c.l.b16 %v234
      %v298 = vunpack.c.l.b16 %v235
      %v299 = vunpack.c.l.b16 %v236
      %v300 = vunpack.c.l.b16 %v237
      %v301 = vunpack.c.l.b16 %v238
      %v302 = vunpack.c.l.b16 %v239
      %v303 = vunpack.c.l.b16 %v240
      %v304 = vunpack.c.l.b16 %v241
      %v305 = vunpack.c.l.b16 %v242
      %v306 = vunpack.c.l.b16 %v243
      %v307 = vunpack.c.l.b16 %v244
      %v308 = vunpack.c.l.b16 %v245
      %v309 = vunpack.c.l.b16 %v246
      %v310 = vunpack.c.l.b16 %v247
      %v311 = vunpack.c.l.b16 %v248
      %v312 = vunpack.c.l.b16 %v249
      %v313 = vpack.c.b16 %v298, %v297
      %v314 = vpack.c.b16 %v300, %v299
      %v315 = vpack.c.b16 %v302, %v301
      %v316 = vpack.c.b16 %v304, %v303
      %v317 = vpack.c.b16 %v306, %v305
      %v318 = vpack.c.b16 %v308, %v307
      %v319 = vpack.c.b16 %v310, %v309
      %v320 = vpack.c.b16 %v312, %v311
      %329 = vmatprep.subr.bf16.mxu0 0
      %330 = vmatpush1.bf16.msra.mxu0 %v313
      %331 = vmatprep.subr.bf16.mxu0 0
      %332 = vmatpush1.bf16.msra.mxu0 %v314
      %333 = vmatprep.subr.bf16.mxu0 0
      %334 = vmatpush1.bf16.msra.mxu0 %v315
      %335 = vmatprep.subr.bf16.mxu0 0
      %336 = vmatpush1.bf16.msra.mxu0 %v316
      %337 = vmatprep.subr.bf16.mxu0 0
      %338 = vmatpush1.bf16.msra.mxu0 %v317
      %339 = vmatprep.subr.bf16.mxu0 0
      %340 = vmatpush1.bf16.msra.mxu0 %v318
      %341 = vmatprep.subr.bf16.mxu0 0
      %342 = vmatpush1.bf16.msra.mxu0 %v319
      %343 = vmatprep.subr.bf16.mxu0 0
      %344 = vmatpush1.bf16.msra.mxu0 %v320
      %345 = vmatprep.subr.bf16.mxu0 0
      %346 = vmatpush1.bf16.msra.mxu0 0
      %347 = vmatprep.subr.bf16.mxu0 0
      %348 = vmatpush1.bf16.msra.mxu0 0
      %349 = vmatprep.subr.bf16.mxu0 0
      %350 = vmatpush1.bf16.msra.mxu0 0
      %351 = vmatprep.subr.bf16.mxu0 0
      %352 = vmatpush1.bf16.msra.mxu0 0
      %353 = vmatprep.subr.bf16.mxu0 0
      %354 = vmatpush1.bf16.msra.mxu0 0
      %355 = vmatprep.subr.bf16.mxu0 0
      %356 = vmatpush1.bf16.msra.mxu0 0
      %357 = vmatprep.subr.bf16.mxu0 0
      %358 = vmatpush1.bf16.msra.mxu0 0
      %359 = vmatprep.subr.bf16.mxu0 0
      %360 = vmatpush1.bf16.msra.mxu0 0
      %361 = vmatprep.mubr.bf16.mxu0 0
      %362 = vmatmul.mubr.bf16.gmra.mrb[0].mxu0 %v273
      %v363 = vpop.f32.mrb[0].mxu0
      %v364 = vadd.f32 %v255, %v363
      %v365 = vpop.f32.mrb[0].mxu0
      %v366 = vpop.f32.mrb[0].mxu0
      %v367 = vadd.f32 %v255, %v366
      %v368 = vpop.f32.mrb[0].mxu0
      %369 = vmatprep.mubr.bf16.mxu0 0
      %370 = vmatmul.mubr.bf16.gmra.mrb[0].mxu0 %v274
      %v371 = vpop.f32.mrb[0].mxu0
      %v372 = vadd.f32 %v255, %v371
      %v373 = vpop.f32.mrb[0].mxu0
      %v374 = vpop.f32.mrb[0].mxu0
      %v375 = vadd.f32 %v255, %v374
      %v376 = vpop.f32.mrb[0].mxu0
      %377 = vmatprep.mubr.bf16.mxu0 0
      %378 = vmatmul.mubr.bf16.gmra.mrb[0].mxu0 %v275
      %v379 = vpop.f32.mrb[0].mxu0
      %v380 = vadd.f32 %v255, %v379
      %v381 = vpop.f32.mrb[0].mxu0
      %v382 = vpop.f32.mrb[0].mxu0
      %v383 = vadd.f32 %v255, %v382
      %v384 = vpop.f32.mrb[0].mxu0
      %385 = vmatprep.mubr.bf16.mxu0 0
      %386 = vmatmul.mubr.bf16.gmra.mrb[0].mxu0 %v276
      %v387 = vpop.f32.mrb[0].mxu0
      %v388 = vadd.f32 %v255, %v387
      %v389 = vpop.f32.mrb[0].mxu0
      %v390 = vpop.f32.mrb[0].mxu0
      %v391 = vadd.f32 %v255, %v390
      %v392 = vpop.f32.mrb[0].mxu0
      %393 = vdwg.mxu0
      %v394 = vpack.c.bf16 %v367, %v364
      %v395 = vpack.c.bf16 %v375, %v372
      %v396 = vpack.c.bf16 %v383, %v380
      %v397 = vpack.c.bf16 %v391, %v388
      %v402 = vunpack.c.l.b16 %v394
      %v403 = vunpack.c.h.b16 %v394
      %v404 = vunpack.c.l.b16 %v395
      %v405 = vunpack.c.h.b16 %v395
      %v406 = vunpack.c.l.b16 %v396
      %v407 = vunpack.c.h.b16 %v396
      %v408 = vunpack.c.l.b16 %v397
      %v409 = vunpack.c.h.b16 %v397
      %v410 = vpack.c.b16 %v402, %v402
      %v411 = vpack.c.b16 %v403, %v403
      %v412 = vpack.c.b16 %v404, %v404
      %v413 = vpack.c.b16 %v405, %v405
      %v414 = vpack.c.b16 %v406, %v406
      %v415 = vpack.c.b16 %v407, %v407
      %v416 = vpack.c.b16 %v408, %v408
      %v417 = vpack.c.b16 %v409, %v409
      %426 = vst [vmem:[%s223] sm:$0xf] %v410
      %427 = vst [vmem:[%s223 + $0x4] sm:$0xf] %v411
      %428 = vst [vmem:[%s223 + $0x8] sm:$0xf] %v412
      %429 = vst [vmem:[%s223 + $0xc] sm:$0xf] %v413
      %430 = vst [vmem:[%s223 + $0x10] sm:$0xf] %v414
      %431 = vst [vmem:[%s223 + $0x14] sm:$0xf] %v415
      %432 = vst [vmem:[%s223 + $0x18] sm:$0xf] %v416
      %433 = vst [vmem:[%s223 + $0x1c] sm:$0xf] %v417
      %s434 = smul.u32 8, %s18
      %p435 = scmp.lt.s32.totalorder %s434, 15
      %s436 = scalar_select %p435, %s434, 15
      %p437 = scmp.lt.s32.totalorder %s19, 0
      %s438 = scalar_select %p437, %s19, 0
      %s439 = sadd.s32 %s438, %s436
      %s440 = smul.addr %s439, 4
      %s441 = scalar_lea.vmem %s3, %s440
      // Predicated region
      $region33: #{fwd.57} parent=31 // pred_check
        %p442 = pneg %p124
      $region34: #{fwd.57} parent=31 // pred_check_branch
        %444 = sbr.rel (%p442) target = $region36
      $region35: #{fwd.57} parent=31 // pred_region
        %s445 = smul.u32 8, %s18
      $region36: #{fwd.57} parent=31 // pred_fallthru
        _
    $region32: #{fwd.57} parent=5 // pred_fallthru
      _
    %p446 = scmp.le.s32.totalorder 2, %s9
    // Predicated region
    $region37: #{fwd.57} parent=5 // pred_check
      %p447 = pneg %p446
    $region38: #{fwd.57} parent=5 // pred_check_branch
      %449 = sbr.rel (%p447) target = $region40
    $region39: #{fwd.57} parent=5 // pred_region
      %s450 = ssub.s32 %s9, 2
      // Predicated region
      $region41: #{fwd.57} parent=39 // pred_check
        %p451 = pneg %p130
      $region42: #{fwd.57} parent=39 // pred_check_branch
        %453 = sbr.rel (%p451) target = $region44
      $region43: #{fwd.57} parent=39 // pred_region
        %s454 = smul.u32 8, %s20
        %p455 = scmp.lt.s32.totalorder %s454, 15
        %s456 = scalar_select %p455, %s454, 15
        %p457 = scmp.lt.s32.totalorder %s21, 0
        %s458 = scalar_select %p457, %s21, 0
        %s459 = sadd.s32 %s458, %s456
        %s460 = smul.addr %s459, 4
        %s461 = scalar_lea.vmem %s3, %s460
      $region44: #{fwd.57} parent=39 // pred_fallthru
        _
    $region40: #{fwd.57} parent=5 // pred_fallthru
      _
  $region6: #{fwd.57} parent=0 // loop_footer
    %s13 = sadd.s32 1, %s9
  $region7: #{fwd.57} parent=0 // loop_footer_branch
    %8 = sbr.rel target = $region3
  $region8: #{fwd.57} parent=0 // loop_exit
    _

// kernel: fwd.58
$region0: #{fwd.58}
  #allocation0 [shape = 'u32[]', space=smem, size = 0x4, offset = 0x4, fixed_abs, tag = 'smem constant byte address 0x4 - core index']
  #allocation1 [shape = 'u32[144,128]{1,0:T(1,128)}', space=vmem, size = 0x12000, scoped, tag = 'internal scratch']
  %s0 = inlined_call_operand.vmem [shape: bf16[128,128], index: 0, kind: input, shape index: {}]
  %s1 = inlined_call_operand.vmem [shape: bf16[128,128], index: 1, kind: input, shape index: {}]
  %s2 = inlined_call_operand.vmem [shape: f32[1,128], index: 2, kind: input, shape index: {}]
  %s3 = inlined_call_operand.vmem [shape: bf16[128,128], index: 3, kind: input, shape index: {}]
  %s4 = inlined_call_operand.vmem [shape: bf16[128,128], index: 4, kind: output, shape index: {}]
  %s5 = sld [smem:[#allocation0]]
  $region49: #{fwd.58} parent=0
    _
  %s7 = ssub.s32 1, %s5
  %s8 = scalar_select 0, %s7, %s5
  loop: start=0, step=1, limit=4
  $region2: #{fwd.58} parent=0 // loop_pre_header
    _
  $region3: #{fwd.58} parent=0 // loop_header
    %s10 = sphi 0, %s14
    %p11 = scmp.ge.s32.totalorder %s10, 4
    %s17 = sphi 0, %s29
    %s18 = sphi 0, %s25
    %s19 = sphi 0, %s17
    %s20 = sphi 0, %s18
    %s21 = sphi 0, %s19
    %s22 = sphi 0, %s20
    %s32 = sphi 0, %s34
    %s35 = sphi 0, %s32
    %s36 = sphi 0, %s35
    %s52 = sphi 0, %s36
    %s58 = sphi 0, %s60
    %s61 = sphi 0, %s58
    %s62 = sphi 0, %s61
    %s78 = sphi 0, %s62
    %s84 = sphi 0, %s86
    %s87 = sphi 0, %s84
    %s88 = sphi 0, %s87
    %s104 = sphi 0, %s88
    %s112 = sphi 0, %s114
    %s115 = sphi 0, %s112
    %s116 = sphi 0, %s115
    %s132 = sphi 0, %s116
    %s140 = sphi 0, %s142
    %s143 = sphi 0, %s140
    %s144 = sphi 0, %s143
    %s160 = sphi 0, %s144
  $region4: #{fwd.58} parent=0 // loop_header_branch
    %13 = sbr.rel (%p11) target = $region8
  $region5: #{fwd.58} parent=0 // loop_body
    %s15 = ssub.s32 %s10, 1
    %s16 = ssub.s32 %s10, 2
    %s23 = sadd.s32 1, %s18
    %p24 = scmp.ge.s32.totalorder %s23, 1
    %s25 = scalar_select %p24, 0, %s23
    %s26 = sadd.s32 1, %s17
    %s27 = scalar_select %p24, %s26, %s17
    %p28 = scmp.ge.s32.totalorder %s27, 2
    %s29 = scalar_select %p28, 0, %s27
    %s30 = ssub.s32 %s17, %s29
    %p31 = scmp.eq.s32.totalorder %s30, 0
    %s33 = sadd.s32 %s32, 1
    %s34 = scalar_select %p31, %s32, %s33
    %p37 = pneg %p31
    %p38 = scmp.eq.s32.totalorder %s10, 1
    %p39 = por %p37, %p38
    %p40 = scmp.ne.s32.totalorder %s32, %s35
    %p41 = scmp.eq.s32.totalorder %s10, 0
    %p42 = por %p40, %p41
    %p43 = scmp.ne.s32.totalorder %s32, %s35
    %p44 = scmp.eq.s32.totalorder %s15, 1
    %p45 = por %p43, %p44
    %p46 = scmp.ne.s32.totalorder %s35, %s36
    %p47 = scmp.eq.s32.totalorder %s15, 0
    %p48 = por %p46, %p47
    %p49 = scmp.ne.s32.totalorder %s35, %s36
    %p50 = scmp.eq.s32.totalorder %s16, 1
    %p51 = por %p49, %p50
    %p53 = scmp.ne.s32.totalorder %s36, %s52
    %p54 = scmp.eq.s32.totalorder %s16, 0
    %p55 = por %p53, %p54
    %s56 = ssub.s32 %s18, %s25
    %p57 = scmp.eq.s32.totalorder %s56, 0
    %s59 = sadd.s32 %s58, 1
    %s60 = scalar_select %p57, %s58, %s59
    %p63 = pneg %p57
    %p64 = scmp.eq.s32.totalorder %s10, 1
    %p65 = por %p63, %p64
    %p66 = scmp.ne.s32.totalorder %s58, %s61
    %p67 = scmp.eq.s32.totalorder %s10, 0
    %p68 = por %p66, %p67
    %p69 = scmp.ne.s32.totalorder %s58, %s61
    %p70 = scmp.eq.s32.totalorder %s15, 1
    %p71 = por %p69, %p70
    %p72 = scmp.ne.s32.totalorder %s61, %s62
    %p73 = scmp.eq.s32.totalorder %s15, 0
    %p74 = por %p72, %p73
    %p75 = scmp.ne.s32.totalorder %s61, %s62
    %p76 = scmp.eq.s32.totalorder %s16, 1
    %p77 = por %p75, %p76
    %p79 = scmp.ne.s32.totalorder %s62, %s78
    %p80 = scmp.eq.s32.totalorder %s16, 0
    %p81 = por %p79, %p80
    %s82 = ssub.s32 %s18, %s25
    %p83 = scmp.eq.s32.totalorder %s82, 0
    %s85 = sadd.s32 %s84, 1
    %s86 = scalar_select %p83, %s84, %s85
    %p89 = pneg %p83
    %p90 = scmp.eq.s32.totalorder %s10, 1
    %p91 = por %p89, %p90
    %p92 = scmp.ne.s32.totalorder %s84, %s87
    %p93 = scmp.eq.s32.totalorder %s10, 0
    %p94 = por %p92, %p93
    %p95 = scmp.ne.s32.totalorder %s84, %s87
    %p96 = scmp.eq.s32.totalorder %s15, 1
    %p97 = por %p95, %p96
    %p98 = scmp.ne.s32.totalorder %s87, %s88
    %p99 = scmp.eq.s32.totalorder %s15, 0
    %p100 = por %p98, %p99
    %p101 = scmp.ne.s32.totalorder %s87, %s88
    %p102 = scmp.eq.s32.totalorder %s16, 1
    %p103 = por %p101, %p102
    %p105 = scmp.ne.s32.totalorder %s88, %s104
    %p106 = scmp.eq.s32.totalorder %s16, 0
    %p107 = por %p105, %p106
    %s108 = ssub.s32 %s17, %s29
    %s109 = ssub.s32 %s18, %s25
    %s110 = sor.u32 %s108, %s109
    %p111 = scmp.eq.s32.totalorder %s110, 0
    %s113 = sadd.s32 %s112, 1
    %s114 = scalar_select %p111, %s112, %s113
    %p117 = pneg %p111
    %p118 = scmp.eq.s32.totalorder %s10, 1
    %p119 = por %p117, %p118
    %p120 = scmp.ne.s32.totalorder %s112, %s115
    %p121 = scmp.eq.s32.totalorder %s10, 0
    %p122 = por %p120, %p121
    %p123 = scmp.ne.s32.totalorder %s112, %s115
    %p124 = scmp.eq.s32.totalorder %s15, 1
    %p125 = por %p123, %p124
    %p126 = scmp.ne.s32.totalorder %s115, %s116
    %p127 = scmp.eq.s32.totalorder %s15, 0
    %p128 = por %p126, %p127
    %p129 = scmp.ne.s32.totalorder %s115, %s116
    %p130 = scmp.eq.s32.totalorder %s16, 1
    %p131 = por %p129, %p130
    %p133 = scmp.ne.s32.totalorder %s116, %s132
    %p134 = scmp.eq.s32.totalorder %s16, 0
    %p135 = por %p133, %p134
    %s136 = ssub.s32 %s17, %s29
    %s137 = ssub.s32 %s18, %s25
    %s138 = sor.u32 %s136, %s137
    %p139 = scmp.eq.s32.totalorder %s138, 0
    %s141 = sadd.s32 %s140, 1
    %s142 = scalar_select %p139, %s140, %s141
    %p145 = pneg %p139
    %p146 = scmp.eq.s32.totalorder %s10, 1
    %p147 = por %p145, %p146
    %p148 = scmp.ne.s32.totalorder %s140, %s143
    %p149 = scmp.eq.s32.totalorder %s10, 0
    %p150 = por %p148, %p149
    %p151 = scmp.ne.s32.totalorder %s140, %s143
    %p152 = scmp.eq.s32.totalorder %s15, 1
    %p153 = por %p151, %p152
    %p154 = scmp.ne.s32.totalorder %s143, %s144
    %p155 = scmp.eq.s32.totalorder %s15, 0
    %p156 = por %p154, %p155
    %p157 = scmp.ne.s32.totalorder %s143, %s144
    %p158 = scmp.eq.s32.totalorder %s16, 1
    %p159 = por %p157, %p158
    %p161 = scmp.ne.s32.totalorder %s144, %s160
    %p162 = scmp.eq.s32.totalorder %s16, 0
    %p163 = por %p161, %p162
    %p164 = scmp.le.s32.totalorder 1, %s10
    %p165 = scmp.lt.s32.totalorder %s10, 3
    %p166 = pnand %p164, %p165
    %p167 = pneg %p166
    // Predicated region
    $region9: #{fwd.58} parent=5 // pred_check
      _
    $region10: #{fwd.58} parent=5 // pred_check_branch
      %169 = sbr.rel (%p166) target = $region12
    $region11: #{fwd.58} parent=5 // pred_region
      %s170 = ssub.s32 %s10, 1
      // Predicated region
      $region13: #{fwd.58} parent=11 // pred_check
        %p171 = pneg %p74
      $region14: #{fwd.58} parent=11 // pred_check_branch
        %173 = sbr.rel (%p171) target = $region16
      $region15: #{fwd.58} parent=11 // pred_region
        %p174 = scmp.lt.s32.totalorder %s20, 0
        %s175 = scalar_select %p174, %s20, 0
        %s176 = smul.addr %s175, 4
        %s177 = scalar_lea.vmem %s1, %s176
      $region16: #{fwd.58} parent=11 // pred_fallthru
        _
      // Predicated region
      $region17: #{fwd.58} parent=11 // pred_check
        %p178 = pneg %p100
      $region18: #{fwd.58} parent=11 // pred_check_branch
        %180 = sbr.rel (%p178) target = $region20
      $region19: #{fwd.58} parent=11 // pred_region
        %p181 = scmp.lt.s32.totalorder %s20, 0
        %s182 = scalar_select %p181, %s20, 0
        %s183 = scalar_lea.vmem %s2, %s182
      $region20: #{fwd.58} parent=11 // pred_fallthru
        _
    $region12: #{fwd.58} parent=5 // pred_fallthru
      _
    %p184 = scmp.lt.s32.totalorder %s10, 2
    // Predicated region
    $region21: #{fwd.58} parent=5 // pred_check
      %p185 = pneg %p184
    $region22: #{fwd.58} parent=5 // pred_check_branch
      %187 = sbr.rel (%p185) target = $region24
    $region23: #{fwd.58} parent=5 // pred_region
      // Predicated region
      $region25: #{fwd.58} parent=23 // pred_check
        %p188 = pneg %p42
      $region26: #{fwd.58} parent=23 // pred_check_branch
        %190 = sbr.rel (%p188) target = $region28
      $region27: #{fwd.58} parent=23 // pred_region
        %s191 = smul.u32 8, %s17
        %p192 = scmp.lt.s32.totalorder %s191, 15
        %s193 = scalar_select %p192, %s191, 15
        %s194 = smul.addr %s193, 4
        %s195 = scalar_lea.vmem %s0, %s194
        %s196 = smul.u32 8, %s17
      $region28: #{fwd.58} parent=23 // pred_fallthru
        _
      // Predicated region
      $region29: #{fwd.58} parent=23 // pred_check
        %p197 = pneg %p122
      $region30: #{fwd.58} parent=23 // pred_check_branch
        %199 = sbr.rel (%p197) target = $region32
      $region31: #{fwd.58} parent=23 // pred_region
        %s200 = smul.u32 8, %s17
        %p201 = scmp.lt.s32.totalorder %s200, 15
        %s202 = scalar_select %p201, %s200, 15
        %p203 = scmp.lt.s32.totalorder %s18, 0
        %s204 = scalar_select %p203, %s18, 0
        %s205 = sadd.s32 %s204, %s202
        %s206 = smul.addr %s205, 4
        %s207 = scalar_lea.vmem %s3, %s206
        %s208 = smul.u32 8, %s17
      $region32: #{fwd.58} parent=23 // pred_fallthru
        _
    $region24: #{fwd.58} parent=5 // pred_fallthru
      _
    %p209 = scmp.le.s32.totalorder 1, %s10
    %p210 = scmp.lt.s32.totalorder %s10, 3
    %p211 = pnand %p209, %p210
    %p212 = pneg %p211
    // Predicated region
    $region33: #{fwd.58} parent=5 // pred_check
      _
    $region34: #{fwd.58} parent=5 // pred_check_branch
      %214 = sbr.rel (%p211) target = $region36
    $region35: #{fwd.58} parent=5 // pred_region
      %s215 = ssub.s32 %s10, 1
      %s216 = smul.u32 8, %s19
      %p217 = scmp.lt.s32.totalorder %s216, 15
      %s218 = scalar_select %p217, %s216, 15
      %s219 = smul.addr %s218, 4
      %s220 = scalar_lea.vmem %s0, %s219
      %p221 = pneg %p48
      %p222 = pneg %p45
      %p223 = scmp.lt.s32.totalorder %s20, 0
      %s224 = scalar_select %p223, %s20, 0
      %s225 = smul.addr %s224, 4
      %s226 = scalar_lea.vmem %s1, %s225
      %p227 = pneg %p74
      %p228 = pneg %p71
      %p229 = scmp.lt.s32.totalorder %s20, 0
      %s230 = scalar_select %p229, %s20, 0
      %s231 = scalar_lea.vmem %s2, %s230
      %p232 = pneg %p100
      %p233 = pneg %p97
      %s234 = smul.u32 8, %s19
      %p235 = scmp.lt.s32.totalorder %s234, 15
      %s236 = scalar_select %p235, %s234, 15
      %p237 = scmp.lt.s32.totalorder %s20, 0
      %s238 = scalar_select %p237, %s20, 0
      %s239 = sadd.s32 %s238, %s236
      %s240 = smul.addr %s239, 4
      %s241 = scalar_lea.vmem %s3, %s240
      %p242 = pneg %p128
      %p243 = pneg %p125
      %p244 = pneg %p156
      %p245 = pneg %p153
      %s246 = smul.u32 8, %s19
      %p247 = scmp.lt.s32.totalorder %s246, 15
      %s248 = scalar_select %p247, %s246, 15
      %p249 = scmp.lt.s32.totalorder %s20, 0
      %s250 = scalar_select %p249, %s20, 0
      %s251 = sadd.s32 %s250, %s248
      %s252 = smul.addr %s251, 4
      %s253 = scalar_lea.vmem %s4, %s252
      %s254 = smul.u32 8, %s19
      %p255 = scmp.lt.s32.totalorder %s254, 15
      %s256 = scalar_select %p255, %s254, 15
      %s257 = smul.addr %s256, 4
      %s258 = scalar_lea.vmem %s0, %s257
      %s259 = smul.u32 8, %s19
      %p260 = scmp.lt.s32.totalorder %s20, 0
      %s261 = scalar_select %p260, %s20, 0
      %s262 = smul.addr %s261, 4
      %s263 = scalar_lea.vmem %s1, %s262
      %p264 = scmp.lt.s32.totalorder %s20, 0
      %s265 = scalar_select %p264, %s20, 0
      %s266 = scalar_lea.vmem %s2, %s265
      %s267 = smul.u32 8, %s19
      %p268 = scmp.lt.s32.totalorder %s267, 15
      %s269 = scalar_select %p268, %s267, 15
      %p270 = scmp.lt.s32.totalorder %s20, 0
      %s271 = scalar_select %p270, %s20, 0
      %s272 = sadd.s32 %s271, %s269
      %s273 = smul.addr %s272, 4
      %s274 = scalar_lea.vmem %s3, %s273
      %s275 = smul.u32 8, %s19
      %s276 = smul.u32 8, %s19
      %p277 = scmp.lt.s32.totalorder %s276, 15
      %s278 = scalar_select %p277, %s276, 15
      %p279 = scmp.lt.s32.totalorder %s20, 0
      %s280 = scalar_select %p279, %s20, 0
      %s281 = sadd.s32 %s280, %s278
      %s282 = smul.addr %s281, 4
      %s283 = scalar_lea.vmem %s4, %s282
      %s284 = smul.u32 8, %s19
      %v286 = vld [vmem:[%s258] sm:$0xf]
      %v287 = vld [vmem:[%s258 + $0x4] sm:$0xf]
      %v288 = vld [vmem:[%s258 + $0x8] sm:$0xf]
      %v289 = vld [vmem:[%s258 + $0xc] sm:$0xf]
      %v290 = vld [vmem:[%s258 + $0x10] sm:$0xf]
      %v291 = vld [vmem:[%s258 + $0x14] sm:$0xf]
      %v292 = vld [vmem:[%s258 + $0x18] sm:$0xf]
      %v293 = vld [vmem:[%s258 + $0x1c] sm:$0xf]
      %v294 = vld [vmem:[%s263] sm:$0xf]
      %v295 = vld [vmem:[%s263 + $0x4] sm:$0xf]
      %v296 = vld [vmem:[%s263 + $0x8] sm:$0xf]
      %v297 = vld [vmem:[%s263 + $0xc] sm:$0xf]
      %v298 = vld [vmem:[%s263 + $0x10] sm:$0xf]
      %v299 = vld [vmem:[%s263 + $0x14] sm:$0xf]
      %v300 = vld [vmem:[%s263 + $0x18] sm:$0xf]
      %v301 = vld [vmem:[%s263 + $0x1c] sm:$0xf]
      %v302 = vld [vmem:[%s263 + $0x20] sm:$0xf]
      %v303 = vld [vmem:[%s263 + $0x24] sm:$0xf]
      %v304 = vld [vmem:[%s263 + $0x28] sm:$0xf]
      %v305 = vld [vmem:[%s263 + $0x2c] sm:$0xf]
      %v306 = vld [vmem:[%s263 + $0x30] sm:$0xf]
      %v307 = vld [vmem:[%s263 + $0x34] sm:$0xf]
      %v308 = vld [vmem:[%s263 + $0x38] sm:$0xf]
      %v309 = vld [vmem:[%s263 + $0x3c] sm:$0xf]
      %v310 = vld [vmem:[%s266] sm:$0x1]
      %v312 = vlaneseq
      %v313 = vshrl.u32 %v312, 7
      %v314 = vsub.s32 0, %v313
      %v315 = vrot.slane %v310, %v314
      %v325 = vunpack.c.l.b16 %v286
      %v326 = vunpack.c.l.b16 %v287
      %v327 = vunpack.c.l.b16 %v288
      %v328 = vunpack.c.l.b16 %v289
      %v329 = vunpack.c.l.b16 %v290
      %v330 = vunpack.c.l.b16 %v291
      %v331 = vunpack.c.l.b16 %v292
      %v332 = vunpack.c.l.b16 %v293
      %v333 = vpack.c.b16 %v326, %v325
      %v334 = vpack.c.b16 %v328, %v327
      %v335 = vpack.c.b16 %v330, %v329
      %v336 = vpack.c.b16 %v332, %v331
      %v357 = vunpack.c.l.b16 %v294
      %v358 = vunpack.c.l.b16 %v295
      %v359 = vunpack.c.l.b16 %v296
      %v360 = vunpack.c.l.b16 %v297
      %v361 = vunpack.c.l.b16 %v298
      %v362 = vunpack.c.l.b16 %v299
      %v363 = vunpack.c.l.b16 %v300
      %v364 = vunpack.c.l.b16 %v301
      %v365 = vunpack.c.l.b16 %v302
      %v366 = vunpack.c.l.b16 %v303
      %v367 = vunpack.c.l.b16 %v304
      %v368 = vunpack.c.l.b16 %v305
      %v369 = vunpack.c.l.b16 %v306
      %v370 = vunpack.c.l.b16 %v307
      %v371 = vunpack.c.l.b16 %v308
      %v372 = vunpack.c.l.b16 %v309
      %v373 = vpack.c.b16 %v358, %v357
      %v374 = vpack.c.b16 %v360, %v359
      %v375 = vpack.c.b16 %v362, %v361
      %v376 = vpack.c.b16 %v364, %v363
      %v377 = vpack.c.b16 %v366, %v365
      %v378 = vpack.c.b16 %v368, %v367
      %v379 = vpack.c.b16 %v370, %v369
      %v380 = vpack.c.b16 %v372, %v371
      %389 = vmatprep.subr.bf16.mxu0 0
      %390 = vmatpush1.bf16.msra.mxu0 %v373
      %391 = vmatprep.subr.bf16.mxu0 0
      %392 = vmatpush1.bf16.msra.mxu0 %v374
      %393 = vmatprep.subr.bf16.mxu0 0
      %394 = vmatpush1.bf16.msra.mxu0 %v375
      %395 = vmatprep.subr.bf16.mxu0 0
      %396 = vmatpush1.bf16.msra.mxu0 %v376
      %397 = vmatprep.subr.bf16.mxu0 0
      %398 = vmatpush1.bf16.msra.mxu0 %v377
      %399 = vmatprep.subr.bf16.mxu0 0
      %400 = vmatpush1.bf16.msra.mxu0 %v378
      %401 = vmatprep.subr.bf16.mxu0 0
      %402 = vmatpush1.bf16.msra.mxu0 %v379
      %403 = vmatprep.subr.bf16.mxu0 0
      %404 = vmatpush1.bf16.msra.mxu0 %v380
      %405 = vmatprep.subr.bf16.mxu0 0
      %406 = vmatpush1.bf16.msra.mxu0 0
      %407 = vmatprep.subr.bf16.mxu0 0
      %408 = vmatpush1.bf16.msra.mxu0 0
      %409 = vmatprep.subr.bf16.mxu0 0
      %410 = vmatpush1.bf16.msra.mxu0 0
      %411 = vmatprep.subr.bf16.mxu0 0
      %412 = vmatpush1.bf16.msra.mxu0 0
      %413 = vmatprep.subr.bf16.mxu0 0
      %414 = vmatpush1.bf16.msra.mxu0 0
      %415 = vmatprep.subr.bf16.mxu0 0
      %416 = vmatpush1.bf16.msra.mxu0 0
      %417 = vmatprep.subr.bf16.mxu0 0
      %418 = vmatpush1.bf16.msra.mxu0 0
      %419 = vmatprep.subr.bf16.mxu0 0
      %420 = vmatpush1.bf16.msra.mxu0 0
      %421 = vmatprep.mubr.bf16.mxu0 0
      %422 = vmatmul.mubr.bf16.gmra.mrb[0].mxu0 %v333
      %v423 = vpop.f32.mrb[0].mxu0
      %v424 = vadd.f32 %v315, %v423
      %v425 = vpop.f32.mrb[0].mxu0
      %v426 = vpop.f32.mrb[0].mxu0
      %v427 = vadd.f32 %v315, %v426
      %v428 = vpop.f32.mrb[0].mxu0
      %429 = vmatprep.mubr.bf16.mxu0 0
      %430 = vmatmul.mubr.bf16.gmra.mrb[0].mxu0 %v334
      %v431 = vpop.f32.mrb[0].mxu0
      %v432 = vadd.f32 %v315, %v431
      %v433 = vpop.f32.mrb[0].mxu0
      %v434 = vpop.f32.mrb[0].mxu0
      %v435 = vadd.f32 %v315, %v434
      %v436 = vpop.f32.mrb[0].mxu0
      %437 = vmatprep.mubr.bf16.mxu0 0
      %438 = vmatmul.mubr.bf16.gmra.mrb[0].mxu0 %v335
      %v439 = vpop.f32.mrb[0].mxu0
      %v440 = vadd.f32 %v315, %v439
      %v441 = vpop.f32.mrb[0].mxu0
      %v442 = vpop.f32.mrb[0].mxu0
      %v443 = vadd.f32 %v315, %v442
      %v444 = vpop.f32.mrb[0].mxu0
      %445 = vmatprep.mubr.bf16.mxu0 0
      %446 = vmatmul.mubr.bf16.gmra.mrb[0].mxu0 %v336
      %v447 = vpop.f32.mrb[0].mxu0
      %v448 = vadd.f32 %v315, %v447
      %v449 = vpop.f32.mrb[0].mxu0
      %v450 = vpop.f32.mrb[0].mxu0
      %v451 = vadd.f32 %v315, %v450
      %v452 = vpop.f32.mrb[0].mxu0
      %453 = vdwg.mxu0
      %v454 = vld [vmem:[%s274] sm:$0xf]
      %v455 = vld [vmem:[%s274 + $0x4] sm:$0xf]
      %v456 = vld [vmem:[%s274 + $0x8] sm:$0xf]
      %v457 = vld [vmem:[%s274 + $0xc] sm:$0xf]
      %v458 = vld [vmem:[%s274 + $0x10] sm:$0xf]
      %v459 = vld [vmem:[%s274 + $0x14] sm:$0xf]
      %v460 = vld [vmem:[%s274 + $0x18] sm:$0xf]
      %v461 = vld [vmem:[%s274 + $0x1c] sm:$0xf]
      %v462 = vunpack.c.l.bf16 %v454
      %v463 = vunpack.c.l.bf16 %v455
      %v464 = vunpack.c.l.bf16 %v456
      %v465 = vunpack.c.l.bf16 %v457
      %v466 = vunpack.c.l.bf16 %v458
      %v467 = vunpack.c.l.bf16 %v459
      %v468 = vunpack.c.l.bf16 %v460
      %v469 = vunpack.c.l.bf16 %v461
      %v470 = vadd.f32 %v424, %v462
      %v471 = vadd.f32 %v427, %v463
      %v472 = vadd.f32 %v432, %v464
      %v473 = vadd.f32 %v435, %v465
      %v474 = vadd.f32 %v440, %v466
      %v475 = vadd.f32 %v443, %v467
      %v476 = vadd.f32 %v448, %v468
      %v477 = vadd.f32 %v451, %v469
      %v478 = vmax.f32 %v470, 0.0
      %v479 = vmax.f32 %v471, 0.0
      %v480 = vmax.f32 %v472, 0.0
      %v481 = vmax.f32 %v473, 0.0
      %v482 = vmax.f32 %v474, 0.0
      %v483 = vmax.f32 %v475, 0.0
      %v484 = vmax.f32 %v476, 0.0
      %v485 = vmax.f32 %v477, 0.0
      %v486 = vpack.c.bf16 %v479, %v478
      %v487 = vpack.c.bf16 %v481, %v480
      %v488 = vpack.c.bf16 %v483, %v482
      %v489 = vpack.c.bf16 %v485, %v484
      %v494 = vunpack.c.l.b16 %v486
      %v495 = vunpack.c.h.b16 %v486
      %v496 = vunpack.c.l.b16 %v487
      %v497 = vunpack.c.h.b16 %v487
      %v498 = vunpack.c.l.b16 %v488
      %v499 = vunpack.c.h.b16 %v488
      %v500 = vunpack.c.l.b16 %v489
      %v501 = vunpack.c.h.b16 %v489
      %v502 = vpack.c.b16 %v494, %v494
      %v503 = vpack.c.b16 %v495, %v495
      %v504 = vpack.c.b16 %v496, %v496
      %v505 = vpack.c.b16 %v497, %v497
      %v506 = vpack.c.b16 %v498, %v498
      %v507 = vpack.c.b16 %v499, %v499
      %v508 = vpack.c.b16 %v500, %v500
      %v509 = vpack.c.b16 %v501, %v501
      %518 = vst [vmem:[%s283] sm:$0xf] %v502
      %519 = vst [vmem:[%s283 + $0x4] sm:$0xf] %v503
      %520 = vst [vmem:[%s283 + $0x8] sm:$0xf] %v504
      %521 = vst [vmem:[%s283 + $0xc] sm:$0xf] %v505
      %522 = vst [vmem:[%s283 + $0x10] sm:$0xf] %v506
      %523 = vst [vmem:[%s283 + $0x14] sm:$0xf] %v507
      %524 = vst [vmem:[%s283 + $0x18] sm:$0xf] %v508
      %525 = vst [vmem:[%s283 + $0x1c] sm:$0xf] %v509
      %s526 = smul.u32 8, %s19
      %p527 = scmp.lt.s32.totalorder %s526, 15
      %s528 = scalar_select %p527, %s526, 15
      %p529 = scmp.lt.s32.totalorder %s20, 0
      %s530 = scalar_select %p529, %s20, 0
      %s531 = sadd.s32 %s530, %s528
      %s532 = smul.addr %s531, 4
      %s533 = scalar_lea.vmem %s4, %s532
      // Predicated region
      $region37: #{fwd.58} parent=35 // pred_check
        %p534 = pneg %p153
      $region38: #{fwd.58} parent=35 // pred_check_branch
        %536 = sbr.rel (%p534) target = $region40
      $region39: #{fwd.58} parent=35 // pred_region
        %s537 = smul.u32 8, %s19
      $region40: #{fwd.58} parent=35 // pred_fallthru
        _
    $region36: #{fwd.58} parent=5 // pred_fallthru
      _
    %p538 = scmp.le.s32.totalorder 2, %s10
    // Predicated region
    $region41: #{fwd.58} parent=5 // pred_check
      %p539 = pneg %p538
    $region42: #{fwd.58} parent=5 // pred_check_branch
      %541 = sbr.rel (%p539) target = $region44
    $region43: #{fwd.58} parent=5 // pred_region
      %s542 = ssub.s32 %s10, 2
      // Predicated region
      $region45: #{fwd.58} parent=43 // pred_check
        %p543 = pneg %p159
      $region46: #{fwd.58} parent=43 // pred_check_branch
        %545 = sbr.rel (%p543) target = $region48
      $region47: #{fwd.58} parent=43 // pred_region
        %s546 = smul.u32 8, %s21
        %p547 = scmp.lt.s32.totalorder %s546, 15
        %s548 = scalar_select %p547, %s546, 15
        %p549 = scmp.lt.s32.totalorder %s22, 0
        %s550 = scalar_select %p549, %s22, 0
        %s551 = sadd.s32 %s550, %s548
        %s552 = smul.addr %s551, 4
        %s553 = scalar_lea.vmem %s4, %s552
      $region48: #{fwd.58} parent=43 // pred_fallthru
        _
    $region44: #{fwd.58} parent=5 // pred_fallthru
      _
  $region6: #{fwd.58} parent=0 // loop_footer
    %s14 = sadd.s32 1, %s10
  $region7: #{fwd.58} parent=0 // loop_footer_branch
    %9 = sbr.rel target = $region3
  $region8: #{fwd.58} parent=0 // loop_exit
    _

// kernel: fwd.67
$region0: #{fwd.67}
  #allocation0 [shape = 'u32[]', space=smem, size = 0x4, offset = 0x4, fixed_abs, tag = 'smem constant byte address 0x4 - core index']
  #allocation1 [shape = 'u32[144,128]{1,0:T(1,128)}', space=vmem, size = 0x12000, scoped, tag = 'internal scratch']
  %s0 = inlined_call_operand.vmem [shape: bf16[32,128], index: 0, kind: input, shape index: {}]
  %s1 = inlined_call_operand.vmem [shape: bf16[128,128], index: 1, kind: input, shape index: {}]
  %s2 = inlined_call_operand.vmem [shape: f32[1,128], index: 2, kind: input, shape index: {}]
  %s3 = inlined_call_operand.vmem [shape: bf16[32,128], index: 3, kind: output, shape index: {}]
  %s4 = sld [smem:[#allocation0]]
  $region22: #{fwd.67} parent=0
    _
  %s6 = ssub.s32 1, %s4
  %s7 = scalar_select 0, %s6, %s4
  // Predicated region
  $region2: #{fwd.67} parent=0 // pred_check
    _
  $region3: #{fwd.67} parent=0 // pred_check_branch
    %9 = sbr.rel (0) target = $region5
  $region4: #{fwd.67} parent=0 // pred_region
    _
  $region5: #{fwd.67} parent=0 // pred_fallthru
    _
  // Predicated region
  $region6: #{fwd.67} parent=0 // pred_check
    _
  $region7: #{fwd.67} parent=0 // pred_check_branch
    %11 = sbr.rel (0) target = $region9
  $region8: #{fwd.67} parent=0 // pred_region
    _
  $region9: #{fwd.67} parent=0 // pred_fallthru
    _
  // Predicated region
  $region10: #{fwd.67} parent=0 // pred_check
    _
  $region11: #{fwd.67} parent=0 // pred_check_branch
    %13 = sbr.rel (0) target = $region13
  $region12: #{fwd.67} parent=0 // pred_region
    _
  $region13: #{fwd.67} parent=0 // pred_fallthru
    _
  %v15 = vld [vmem:[%s0] sm:$0xf]
  %v16 = vld [vmem:[%s0 + $0x4] sm:$0xf]
  %v17 = vld [vmem:[%s0 + $0x8] sm:$0xf]
  %v18 = vld [vmem:[%s0 + $0xc] sm:$0xf]
  %v19 = vld [vmem:[%s1] sm:$0xf]
  %v20 = vld [vmem:[%s1 + $0x4] sm:$0xf]
  %v21 = vld [vmem:[%s1 + $0x8] sm:$0xf]
  %v22 = vld [vmem:[%s1 + $0xc] sm:$0xf]
  %v23 = vld [vmem:[%s1 + $0x10] sm:$0xf]
  %v24 = vld [vmem:[%s1 + $0x14] sm:$0xf]
  %v25 = vld [vmem:[%s1 + $0x18] sm:$0xf]
  %v26 = vld [vmem:[%s1 + $0x1c] sm:$0xf]
  %v27 = vld [vmem:[%s1 + $0x20] sm:$0xf]
  %v28 = vld [vmem:[%s1 + $0x24] sm:$0xf]
  %v29 = vld [vmem:[%s1 + $0x28] sm:$0xf]
  %v30 = vld [vmem:[%s1 + $0x2c] sm:$0xf]
  %v31 = vld [vmem:[%s1 + $0x30] sm:$0xf]
  %v32 = vld [vmem:[%s1 + $0x34] sm:$0xf]
  %v33 = vld [vmem:[%s1 + $0x38] sm:$0xf]
  %v34 = vld [vmem:[%s1 + $0x3c] sm:$0xf]
  %v35 = vld [vmem:[%s2] sm:$0x1]
  %v37 = vlaneseq
  %v38 = vshrl.u32 %v37, 7
  %v39 = vsub.s32 0, %v38
  %v40 = vrot.slane %v35, %v39
  %v46 = vunpack.c.l.b16 %v15
  %v47 = vunpack.c.l.b16 %v16
  %v48 = vunpack.c.l.b16 %v17
  %v49 = vunpack.c.l.b16 %v18
  %v50 = vpack.c.b16 %v47, %v46
  %v51 = vpack.c.b16 %v49, %v48
  %v70 = vunpack.c.l.b16 %v19
  %v71 = vunpack.c.l.b16 %v20
  %v72 = vunpack.c.l.b16 %v21
  %v73 = vunpack.c.l.b16 %v22
  %v74 = vunpack.c.l.b16 %v23
  %v75 = vunpack.c.l.b16 %v24
  %v76 = vunpack.c.l.b16 %v25
  %v77 = vunpack.c.l.b16 %v26
  %v78 = vunpack.c.l.b16 %v27
  %v79 = vunpack.c.l.b16 %v28
  %v80 = vunpack.c.l.b16 %v29
  %v81 = vunpack.c.l.b16 %v30
  %v82 = vunpack.c.l.b16 %v31
  %v83 = vunpack.c.l.b16 %v32
  %v84 = vunpack.c.l.b16 %v33
  %v85 = vunpack.c.l.b16 %v34
  %v86 = vpack.c.b16 %v71, %v70
  %v87 = vpack.c.b16 %v73, %v72
  %v88 = vpack.c.b16 %v75, %v74
  %v89 = vpack.c.b16 %v77, %v76
  %v90 = vpack.c.b16 %v79, %v78
  %v91 = vpack.c.b16 %v81, %v80
  %v92 = vpack.c.b16 %v83, %v82
  %v93 = vpack.c.b16 %v85, %v84
  %102 = vmatprep.subr.bf16.mxu0 0
  %103 = vmatpush1.bf16.msra.mxu0 %v86
  %104 = vmatprep.subr.bf16.mxu0 0
  %105 = vmatpush1.bf16.msra.mxu0 %v87
  %106 = vmatprep.subr.bf16.mxu0 0
  %107 = vmatpush1.bf16.msra.mxu0 %v88
  %108 = vmatprep.subr.bf16.mxu0 0
  %109 = vmatpush1.bf16.msra.mxu0 %v89
  %110 = vmatprep.subr.bf16.mxu0 0
  %111 = vmatpush1.bf16.msra.mxu0 %v90
  %112 = vmatprep.subr.bf16.mxu0 0
  %113 = vmatpush1.bf16.msra.mxu0 %v91
  %114 = vmatprep.subr.bf16.mxu0 0
  %115 = vmatpush1.bf16.msra.mxu0 %v92
  %116 = vmatprep.subr.bf16.mxu0 0
  %117 = vmatpush1.bf16.msra.mxu0 %v93
  %118 = vmatprep.subr.bf16.mxu0 0
  %119 = vmatpush1.bf16.msra.mxu0 0
  %120 = vmatprep.subr.bf16.mxu0 0
  %121 = vmatpush1.bf16.msra.mxu0 0
  %122 = vmatprep.subr.bf16.mxu0 0
  %123 = vmatpush1.bf16.msra.mxu0 0
  %124 = vmatprep.subr.bf16.mxu0 0
  %125 = vmatpush1.bf16.msra.mxu0 0
  %126 = vmatprep.subr.bf16.mxu0 0
  %127 = vmatpush1.bf16.msra.mxu0 0
  %128 = vmatprep.subr.bf16.mxu0 0
  %129 = vmatpush1.bf16.msra.mxu0 0
  %130 = vmatprep.subr.bf16.mxu0 0
  %131 = vmatpush1.bf16.msra.mxu0 0
  %132 = vmatprep.subr.bf16.mxu0 0
  %133 = vmatpush1.bf16.msra.mxu0 0
  %134 = vmatprep.mubr.bf16.mxu0 0
  %135 = vmatmul.mubr.bf16.gmra.mrb[0].mxu0 %v50
  %v136 = vpop.f32.mrb[0].mxu0
  %v137 = vadd.f32 %v40, %v136
  %v138 = vpop.f32.mrb[0].mxu0
  %v139 = vpop.f32.mrb[0].mxu0
  %v140 = vadd.f32 %v40, %v139
  %v141 = vpop.f32.mrb[0].mxu0
  %142 = vmatprep.mubr.bf16.mxu0 0
  %143 = vmatmul.mubr.bf16.gmra.mrb[0].mxu0 %v51
  %v144 = vpop.f32.mrb[0].mxu0
  %v145 = vadd.f32 %v40, %v144
  %v146 = vpop.f32.mrb[0].mxu0
  %v147 = vpop.f32.mrb[0].mxu0
  %v148 = vadd.f32 %v40, %v147
  %v149 = vpop.f32.mrb[0].mxu0
  %150 = vdwg.mxu0
  %v151 = vpack.c.bf16 %v140, %v137
  %v152 = vpack.c.bf16 %v148, %v145
  %v155 = vunpack.c.l.b16 %v151
  %v156 = vunpack.c.h.b16 %v151
  %v157 = vunpack.c.l.b16 %v152
  %v158 = vunpack.c.h.b16 %v152
  %v159 = vpack.c.b16 %v155, %v155
  %v160 = vpack.c.b16 %v156, %v156
  %v161 = vpack.c.b16 %v157, %v157
  %v162 = vpack.c.b16 %v158, %v158
  %167 = vst [vmem:[%s3] sm:$0xf] %v159
  %168 = vst [vmem:[%s3 + $0x4] sm:$0xf] %v160
  %169 = vst [vmem:[%s3 + $0x8] sm:$0xf] %v161
  %170 = vst [vmem:[%s3 + $0xc] sm:$0xf] %v162
  // Predicated region
  $region14: #{fwd.67} parent=0 // pred_check
    _
  $region15: #{fwd.67} parent=0 // pred_check_branch
    %172 = sbr.rel (0) target = $region17
  $region16: #{fwd.67} parent=0 // pred_region
    _
  $region17: #{fwd.67} parent=0 // pred_fallthru
    _
  // Predicated region
  $region18: #{fwd.67} parent=0 // pred_check
    _
  $region19: #{fwd.67} parent=0 // pred_check_branch
    %174 = sbr.rel (0) target = $region21
  $region20: #{fwd.67} parent=0 // pred_region
    _
  $region21: #{fwd.67} parent=0 // pred_fallthru
    _

// kernel: fwd.66
$region0: #{fwd.66}
  #allocation0 [shape = 'u32[]', space=smem, size = 0x4, offset = 0x4, fixed_abs, tag = 'smem constant byte address 0x4 - core index']
  #allocation1 [shape = 'u32[144,128]{1,0:T(1,128)}', space=vmem, size = 0x12000, scoped, tag = 'internal scratch']
  %s0 = inlined_call_operand.vmem [shape: bf16[32,256], index: 0, kind: input, shape index: {}]
  %s1 = inlined_call_operand.vmem [shape: bf16[256,128], index: 1, kind: input, shape index: {}]
  %s2 = inlined_call_operand.vmem [shape: f32[1,128], index: 2, kind: input, shape index: {}]
  %s3 = inlined_call_operand.vmem [shape: bf16[32,128], index: 3, kind: output, shape index: {}]
  %s4 = sld [smem:[#allocation0]]
  $region22: #{fwd.66} parent=0
    _
  %s6 = ssub.s32 1, %s4
  %s7 = scalar_select 0, %s6, %s4
  // Predicated region
  $region2: #{fwd.66} parent=0 // pred_check
    _
  $region3: #{fwd.66} parent=0 // pred_check_branch
    %9 = sbr.rel (0) target = $region5
  $region4: #{fwd.66} parent=0 // pred_region
    _
  $region5: #{fwd.66} parent=0 // pred_fallthru
    _
  // Predicated region
  $region6: #{fwd.66} parent=0 // pred_check
    _
  $region7: #{fwd.66} parent=0 // pred_check_branch
    %11 = sbr.rel (0) target = $region9
  $region8: #{fwd.66} parent=0 // pred_region
    _
  $region9: #{fwd.66} parent=0 // pred_fallthru
    _
  // Predicated region
  $region10: #{fwd.66} parent=0 // pred_check
    _
  $region11: #{fwd.66} parent=0 // pred_check_branch
    %13 = sbr.rel (0) target = $region13
  $region12: #{fwd.66} parent=0 // pred_region
    _
  $region13: #{fwd.66} parent=0 // pred_fallthru
    _
  %v15 = vld [vmem:[%s0] sm:$0xff]
  %v16 = vld [vmem:[%s0 + $0x8] sm:$0xff]
  %v17 = vld [vmem:[%s0 + $0x10] sm:$0xff]
  %v18 = vld [vmem:[%s0 + $0x18] sm:$0xff]
  %v19 = vld [vmem:[%s1] sm:$0xf]
  %v20 = vld [vmem:[%s1 + $0x4] sm:$0xf]
  %v21 = vld [vmem:[%s1 + $0x8] sm:$0xf]
  %v22 = vld [vmem:[%s1 + $0xc] sm:$0xf]
  %v23 = vld [vmem:[%s1 + $0x10] sm:$0xf]
  %v24 = vld [vmem:[%s1 + $0x14] sm:$0xf]
  %v25 = vld [vmem:[%s1 + $0x18] sm:$0xf]
  %v26 = vld [vmem:[%s1 + $0x1c] sm:$0xf]
  %v27 = vld [vmem:[%s1 + $0x20] sm:$0xf]
  %v28 = vld [vmem:[%s1 + $0x24] sm:$0xf]
  %v29 = vld [vmem:[%s1 + $0x28] sm:$0xf]
  %v30 = vld [vmem:[%s1 + $0x2c] sm:$0xf]
  %v31 = vld [vmem:[%s1 + $0x30] sm:$0xf]
  %v32 = vld [vmem:[%s1 + $0x34] sm:$0xf]
  %v33 = vld [vmem:[%s1 + $0x38] sm:$0xf]
  %v34 = vld [vmem:[%s1 + $0x3c] sm:$0xf]
  %v35 = vld [vmem:[%s1 + $0x40] sm:$0xf]
  %v36 = vld [vmem:[%s1 + $0x44] sm:$0xf]
  %v37 = vld [vmem:[%s1 + $0x48] sm:$0xf]
  %v38 = vld [vmem:[%s1 + $0x4c] sm:$0xf]
  %v39 = vld [vmem:[%s1 + $0x50] sm:$0xf]
  %v40 = vld [vmem:[%s1 + $0x54] sm:$0xf]
  %v41 = vld [vmem:[%s1 + $0x58] sm:$0xf]
  %v42 = vld [vmem:[%s1 + $0x5c] sm:$0xf]
  %v43 = vld [vmem:[%s1 + $0x60] sm:$0xf]
  %v44 = vld [vmem:[%s1 + $0x64] sm:$0xf]
  %v45 = vld [vmem:[%s1 + $0x68] sm:$0xf]
  %v46 = vld [vmem:[%s1 + $0x6c] sm:$0xf]
  %v47 = vld [vmem:[%s1 + $0x70] sm:$0xf]
  %v48 = vld [vmem:[%s1 + $0x74] sm:$0xf]
  %v49 = vld [vmem:[%s1 + $0x78] sm:$0xf]
  %v50 = vld [vmem:[%s1 + $0x7c] sm:$0xf]
  %v51 = vld [vmem:[%s2] sm:$0x1]
  %v53 = vlaneseq
  %v54 = vshrl.u32 %v53, 7
  %v55 = vsub.s32 0, %v54
  %v56 = vrot.slane %v51, %v55
  %v62 = vunpack.c.l.b16 %v15
  %v63 = vunpack.c.h.b16 %v15
  %v64 = vunpack.c.l.b16 %v16
  %v65 = vunpack.c.h.b16 %v16
  %v66 = vunpack.c.l.b16 %v17
  %v67 = vunpack.c.h.b16 %v17
  %v68 = vunpack.c.l.b16 %v18
  %v69 = vunpack.c.h.b16 %v18
  %v70 = vpack.c.b16 %v64, %v62
  %v71 = vpack.c.b16 %v65, %v63
  %v72 = vpack.c.b16 %v68, %v66
  %v73 = vpack.c.b16 %v69, %v67
  %v110 = vunpack.c.l.b16 %v19
  %v111 = vunpack.c.l.b16 %v20
  %v112 = vunpack.c.l.b16 %v21
  %v113 = vunpack.c.l.b16 %v22
  %v114 = vunpack.c.l.b16 %v23
  %v115 = vunpack.c.l.b16 %v24
  %v116 = vunpack.c.l.b16 %v25
  %v117 = vunpack.c.l.b16 %v26
  %v118 = vunpack.c.l.b16 %v27
  %v119 = vunpack.c.l.b16 %v28
  %v120 = vunpack.c.l.b16 %v29
  %v121 = vunpack.c.l.b16 %v30
  %v122 = vunpack.c.l.b16 %v31
  %v123 = vunpack.c.l.b16 %v32
  %v124 = vunpack.c.l.b16 %v33
  %v125 = vunpack.c.l.b16 %v34
  %v126 = vunpack.c.l.b16 %v35
  %v127 = vunpack.c.l.b16 %v36
  %v128 = vunpack.c.l.b16 %v37
  %v129 = vunpack.c.l.b16 %v38
  %v130 = vunpack.c.l.b16 %v39
  %v131 = vunpack.c.l.b16 %v40
  %v132 = vunpack.c.l.b16 %v41
  %v133 = vunpack.c.l.b16 %v42
  %v134 = vunpack.c.l.b16 %v43
  %v135 = vunpack.c.l.b16 %v44
  %v136 = vunpack.c.l.b16 %v45
  %v137 = vunpack.c.l.b16 %v46
  %v138 = vunpack.c.l.b16 %v47
  %v139 = vunpack.c.l.b16 %v48
  %v140 = vunpack.c.l.b16 %v49
  %v141 = vunpack.c.l.b16 %v50
  %v142 = vpack.c.b16 %v111, %v110
  %v143 = vpack.c.b16 %v113, %v112
  %v144 = vpack.c.b16 %v115, %v114
  %v145 = vpack.c.b16 %v117, %v116
  %v146 = vpack.c.b16 %v119, %v118
  %v147 = vpack.c.b16 %v121, %v120
  %v148 = vpack.c.b16 %v123, %v122
  %v149 = vpack.c.b16 %v125, %v124
  %v150 = vpack.c.b16 %v127, %v126
  %v151 = vpack.c.b16 %v129, %v128
  %v152 = vpack.c.b16 %v131, %v130
  %v153 = vpack.c.b16 %v133, %v132
  %v154 = vpack.c.b16 %v135, %v134
  %v155 = vpack.c.b16 %v137, %v136
  %v156 = vpack.c.b16 %v139, %v138
  %v157 = vpack.c.b16 %v141, %v140
  %174 = vmatprep.subr.bf16.mxu0 0
  %175 = vmatpush1.bf16.msra.mxu0 %v142
  %176 = vmatprep.subr.bf16.mxu0 0
  %177 = vmatpush1.bf16.msra.mxu0 %v143
  %178 = vmatprep.subr.bf16.mxu0 0
  %179 = vmatpush1.bf16.msra.mxu0 %v144
  %180 = vmatprep.subr.bf16.mxu0 0
  %181 = vmatpush1.bf16.msra.mxu0 %v145
  %182 = vmatprep.subr.bf16.mxu0 0
  %183 = vmatpush1.bf16.msra.mxu0 %v146
  %184 = vmatprep.subr.bf16.mxu0 0
  %185 = vmatpush1.bf16.msra.mxu0 %v147
  %186 = vmatprep.subr.bf16.mxu0 0
  %187 = vmatpush1.bf16.msra.mxu0 %v148
  %188 = vmatprep.subr.bf16.mxu0 0
  %189 = vmatpush1.bf16.msra.mxu0 %v149
  %190 = vmatprep.subr.bf16.mxu0 0
  %191 = vmatpush1.bf16.msra.mxu0 %v150
  %192 = vmatprep.subr.bf16.mxu0 0
  %193 = vmatpush1.bf16.msra.mxu0 %v151
  %194 = vmatprep.subr.bf16.mxu0 0
  %195 = vmatpush1.bf16.msra.mxu0 %v152
  %196 = vmatprep.subr.bf16.mxu0 0
  %197 = vmatpush1.bf16.msra.mxu0 %v153
  %198 = vmatprep.subr.bf16.mxu0 0
  %199 = vmatpush1.bf16.msra.mxu0 %v154
  %200 = vmatprep.subr.bf16.mxu0 0
  %201 = vmatpush1.bf16.msra.mxu0 %v155
  %202 = vmatprep.subr.bf16.mxu0 0
  %203 = vmatpush1.bf16.msra.mxu0 %v156
  %204 = vmatprep.subr.bf16.mxu0 0
  %205 = vmatpush1.bf16.msra.mxu0 %v157
  %206 = vmatprep.mubr.bf16.mxu0 %v71
  %207 = vmatmul.mubr.bf16.gmra.mrb[0].mxu0 %v70
  %v208 = vpop.f32.mrb[0].mxu0
  %v209 = vadd.f32 %v56, %v208
  %v210 = vpop.f32.mrb[0].mxu0
  %v211 = vpop.f32.mrb[0].mxu0
  %v212 = vadd.f32 %v56, %v211
  %v213 = vpop.f32.mrb[0].mxu0
  %214 = vmatprep.mubr.bf16.mxu0 %v73
  %215 = vmatmul.mubr.bf16.gmra.mrb[0].mxu0 %v72
  %v216 = vpop.f32.mrb[0].mxu0
  %v217 = vadd.f32 %v56, %v216
  %v218 = vpop.f32.mrb[0].mxu0
  %v219 = vpop.f32.mrb[0].mxu0
  %v220 = vadd.f32 %v56, %v219
  %v221 = vpop.f32.mrb[0].mxu0
  %222 = vdwg.mxu0
  %v223 = vmax.f32 %v209, 0.0
  %v224 = vmax.f32 %v212, 0.0
  %v225 = vmax.f32 %v217, 0.0
  %v226 = vmax.f32 %v220, 0.0
  %v227 = vpack.c.bf16 %v224, %v223
  %v228 = vpack.c.bf16 %v226, %v225
  %v231 = vunpack.c.l.b16 %v227
  %v232 = vunpack.c.h.b16 %v227
  %v233 = vunpack.c.l.b16 %v228
  %v234 = vunpack.c.h.b16 %v228
  %v235 = vpack.c.b16 %v231, %v231
  %v236 = vpack.c.b16 %v232, %v232
  %v237 = vpack.c.b16 %v233, %v233
  %v238 = vpack.c.b16 %v234, %v234
  %243 = vst [vmem:[%s3] sm:$0xf] %v235
  %244 = vst [vmem:[%s3 + $0x4] sm:$0xf] %v236
  %245 = vst [vmem:[%s3 + $0x8] sm:$0xf] %v237
  %246 = vst [vmem:[%s3 + $0xc] sm:$0xf] %v238
  // Predicated region
  $region14: #{fwd.66} parent=0 // pred_check
    _
  $region15: #{fwd.66} parent=0 // pred_check_branch
    %248 = sbr.rel (0) target = $region17
  $region16: #{fwd.66} parent=0 // pred_region
    _
  $region17: #{fwd.66} parent=0 // pred_fallthru
    _
  // Predicated region
  $region18: #{fwd.66} parent=0 // pred_check
    _
  $region19: #{fwd.66} parent=0 // pred_check_branch
    %250 = sbr.rel (0) target = $region21
  $region20: #{fwd.66} parent=0 // pred_region
    _
  $region21: #{fwd.66} parent=0 // pred_fallthru
    _

// kernel: fwd.68
$region0: #{fwd.68}
  #allocation0 [shape = 'u32[]', space=smem, size = 0x4, offset = 0x4, fixed_abs, tag = 'smem constant byte address 0x4 - core index']
  #allocation1 [shape = 'u32[144,128]{1,0:T(1,128)}', space=vmem, size = 0x12000, scoped, tag = 'internal scratch']
  %s0 = inlined_call_operand.vmem [shape: bf16[32,128], index: 0, kind: input, shape index: {}]
  %s1 = inlined_call_operand.vmem [shape: bf16[128,128], index: 1, kind: input, shape index: {}]
  %s2 = inlined_call_operand.vmem [shape: f32[1,128], index: 2, kind: input, shape index: {}]
  %s3 = inlined_call_operand.vmem [shape: bf16[32,128], index: 3, kind: input, shape index: {}]
  %s4 = inlined_call_operand.vmem [shape: bf16[32,128], index: 4, kind: output, shape index: {}]
  %s5 = sld [smem:[#allocation0]]
  $region26: #{fwd.68} parent=0
    _
  %s7 = ssub.s32 1, %s5
  %s8 = scalar_select 0, %s7, %s5
  // Predicated region
  $region2: #{fwd.68} parent=0 // pred_check
    _
  $region3: #{fwd.68} parent=0 // pred_check_branch
    %10 = sbr.rel (0) target = $region5
  $region4: #{fwd.68} parent=0 // pred_region
    _
  $region5: #{fwd.68} parent=0 // pred_fallthru
    _
  // Predicated region
  $region6: #{fwd.68} parent=0 // pred_check
    _
  $region7: #{fwd.68} parent=0 // pred_check_branch
    %12 = sbr.rel (0) target = $region9
  $region8: #{fwd.68} parent=0 // pred_region
    _
  $region9: #{fwd.68} parent=0 // pred_fallthru
    _
  // Predicated region
  $region10: #{fwd.68} parent=0 // pred_check
    _
  $region11: #{fwd.68} parent=0 // pred_check_branch
    %14 = sbr.rel (0) target = $region13
  $region12: #{fwd.68} parent=0 // pred_region
    _
  $region13: #{fwd.68} parent=0 // pred_fallthru
    _
  // Predicated region
  $region14: #{fwd.68} parent=0 // pred_check
    _
  $region15: #{fwd.68} parent=0 // pred_check_branch
    %16 = sbr.rel (0) target = $region17
  $region16: #{fwd.68} parent=0 // pred_region
    _
  $region17: #{fwd.68} parent=0 // pred_fallthru
    _
  %v18 = vld [vmem:[%s0] sm:$0xf]
  %v19 = vld [vmem:[%s0 + $0x4] sm:$0xf]
  %v20 = vld [vmem:[%s0 + $0x8] sm:$0xf]
  %v21 = vld [vmem:[%s0 + $0xc] sm:$0xf]
  %v22 = vld [vmem:[%s1] sm:$0xf]
  %v23 = vld [vmem:[%s1 + $0x4] sm:$0xf]
  %v24 = vld [vmem:[%s1 + $0x8] sm:$0xf]
  %v25 = vld [vmem:[%s1 + $0xc] sm:$0xf]
  %v26 = vld [vmem:[%s1 + $0x10] sm:$0xf]
  %v27 = vld [vmem:[%s1 + $0x14] sm:$0xf]
  %v28 = vld [vmem:[%s1 + $0x18] sm:$0xf]
  %v29 = vld [vmem:[%s1 + $0x1c] sm:$0xf]
  %v30 = vld [vmem:[%s1 + $0x20] sm:$0xf]
  %v31 = vld [vmem:[%s1 + $0x24] sm:$0xf]
  %v32 = vld [vmem:[%s1 + $0x28] sm:$0xf]
  %v33 = vld [vmem:[%s1 + $0x2c] sm:$0xf]
  %v34 = vld [vmem:[%s1 + $0x30] sm:$0xf]
  %v35 = vld [vmem:[%s1 + $0x34] sm:$0xf]
  %v36 = vld [vmem:[%s1 + $0x38] sm:$0xf]
  %v37 = vld [vmem:[%s1 + $0x3c] sm:$0xf]
  %v38 = vld [vmem:[%s2] sm:$0x1]
  %v40 = vlaneseq
  %v41 = vshrl.u32 %v40, 7
  %v42 = vsub.s32 0, %v41
  %v43 = vrot.slane %v38, %v42
  %v49 = vunpack.c.l.b16 %v18
  %v50 = vunpack.c.l.b16 %v19
  %v51 = vunpack.c.l.b16 %v20
  %v52 = vunpack.c.l.b16 %v21
  %v53 = vpack.c.b16 %v50, %v49
  %v54 = vpack.c.b16 %v52, %v51
  %v73 = vunpack.c.l.b16 %v22
  %v74 = vunpack.c.l.b16 %v23
  %v75 = vunpack.c.l.b16 %v24
  %v76 = vunpack.c.l.b16 %v25
  %v77 = vunpack.c.l.b16 %v26
  %v78 = vunpack.c.l.b16 %v27
  %v79 = vunpack.c.l.b16 %v28
  %v80 = vunpack.c.l.b16 %v29
  %v81 = vunpack.c.l.b16 %v30
  %v82 = vunpack.c.l.b16 %v31
  %v83 = vunpack.c.l.b16 %v32
  %v84 = vunpack.c.l.b16 %v33
  %v85 = vunpack.c.l.b16 %v34
  %v86 = vunpack.c.l.b16 %v35
  %v87 = vunpack.c.l.b16 %v36
  %v88 = vunpack.c.l.b16 %v37
  %v89 = vpack.c.b16 %v74, %v73
  %v90 = vpack.c.b16 %v76, %v75
  %v91 = vpack.c.b16 %v78, %v77
  %v92 = vpack.c.b16 %v80, %v79
  %v93 = vpack.c.b16 %v82, %v81
  %v94 = vpack.c.b16 %v84, %v83
  %v95 = vpack.c.b16 %v86, %v85
  %v96 = vpack.c.b16 %v88, %v87
  %105 = vmatprep.subr.bf16.mxu0 0
  %106 = vmatpush1.bf16.msra.mxu0 %v89
  %107 = vmatprep.subr.bf16.mxu0 0
  %108 = vmatpush1.bf16.msra.mxu0 %v90
  %109 = vmatprep.subr.bf16.mxu0 0
  %110 = vmatpush1.bf16.msra.mxu0 %v91
  %111 = vmatprep.subr.bf16.mxu0 0
  %112 = vmatpush1.bf16.msra.mxu0 %v92
  %113 = vmatprep.subr.bf16.mxu0 0
  %114 = vmatpush1.bf16.msra.mxu0 %v93
  %115 = vmatprep.subr.bf16.mxu0 0
  %116 = vmatpush1.bf16.msra.mxu0 %v94
  %117 = vmatprep.subr.bf16.mxu0 0
  %118 = vmatpush1.bf16.msra.mxu0 %v95
  %119 = vmatprep.subr.bf16.mxu0 0
  %120 = vmatpush1.bf16.msra.mxu0 %v96
  %121 = vmatprep.subr.bf16.mxu0 0
  %122 = vmatpush1.bf16.msra.mxu0 0
  %123 = vmatprep.subr.bf16.mxu0 0
  %124 = vmatpush1.bf16.msra.mxu0 0
  %125 = vmatprep.subr.bf16.mxu0 0
  %126 = vmatpush1.bf16.msra.mxu0 0
  %127 = vmatprep.subr.bf16.mxu0 0
  %128 = vmatpush1.bf16.msra.mxu0 0
  %129 = vmatprep.subr.bf16.mxu0 0
  %130 = vmatpush1.bf16.msra.mxu0 0
  %131 = vmatprep.subr.bf16.mxu0 0
  %132 = vmatpush1.bf16.msra.mxu0 0
  %133 = vmatprep.subr.bf16.mxu0 0
  %134 = vmatpush1.bf16.msra.mxu0 0
  %135 = vmatprep.subr.bf16.mxu0 0
  %136 = vmatpush1.bf16.msra.mxu0 0
  %137 = vmatprep.mubr.bf16.mxu0 0
  %138 = vmatmul.mubr.bf16.gmra.mrb[0].mxu0 %v53
  %v139 = vpop.f32.mrb[0].mxu0
  %v140 = vadd.f32 %v43, %v139
  %v141 = vpop.f32.mrb[0].mxu0
  %v142 = vpop.f32.mrb[0].mxu0
  %v143 = vadd.f32 %v43, %v142
  %v144 = vpop.f32.mrb[0].mxu0
  %145 = vmatprep.mubr.bf16.mxu0 0
  %146 = vmatmul.mubr.bf16.gmra.mrb[0].mxu0 %v54
  %v147 = vpop.f32.mrb[0].mxu0
  %v148 = vadd.f32 %v43, %v147
  %v149 = vpop.f32.mrb[0].mxu0
  %v150 = vpop.f32.mrb[0].mxu0
  %v151 = vadd.f32 %v43, %v150
  %v152 = vpop.f32.mrb[0].mxu0
  %153 = vdwg.mxu0
  %v154 = vld [vmem:[%s3] sm:$0xf]
  %v155 = vld [vmem:[%s3 + $0x4] sm:$0xf]
  %v156 = vld [vmem:[%s3 + $0x8] sm:$0xf]
  %v157 = vld [vmem:[%s3 + $0xc] sm:$0xf]
  %v158 = vunpack.c.l.bf16 %v154
  %v159 = vunpack.c.l.bf16 %v155
  %v160 = vunpack.c.l.bf16 %v156
  %v161 = vunpack.c.l.bf16 %v157
  %v162 = vadd.f32 %v140, %v158
  %v163 = vadd.f32 %v143, %v159
  %v164 = vadd.f32 %v148, %v160
  %v165 = vadd.f32 %v151, %v161
  %v166 = vmax.f32 %v162, 0.0
  %v167 = vmax.f32 %v163, 0.0
  %v168 = vmax.f32 %v164, 0.0
  %v169 = vmax.f32 %v165, 0.0
  %v170 = vpack.c.bf16 %v167, %v166
  %v171 = vpack.c.bf16 %v169, %v168
  %v174 = vunpack.c.l.b16 %v170
  %v175 = vunpack.c.h.b16 %v170
  %v176 = vunpack.c.l.b16 %v171
  %v177 = vunpack.c.h.b16 %v171
  %v178 = vpack.c.b16 %v174, %v174
  %v179 = vpack.c.b16 %v175, %v175
  %v180 = vpack.c.b16 %v176, %v176
  %v181 = vpack.c.b16 %v177, %v177
  %186 = vst [vmem:[%s4] sm:$0xf] %v178
  %187 = vst [vmem:[%s4 + $0x4] sm:$0xf] %v179
  %188 = vst [vmem:[%s4 + $0x8] sm:$0xf] %v180
  %189 = vst [vmem:[%s4 + $0xc] sm:$0xf] %v181
  // Predicated region
  $region18: #{fwd.68} parent=0 // pred_check
    _
  $region19: #{fwd.68} parent=0 // pred_check_branch
    %191 = sbr.rel (0) target = $region21
  $region20: #{fwd.68} parent=0 // pred_region
    _
  $region21: #{fwd.68} parent=0 // pred_fallthru
    _
  // Predicated region
  $region22: #{fwd.68} parent=0 // pred_check
    _
  $region23: #{fwd.68} parent=0 // pred_check_branch
    %193 = sbr.rel (0) target = $region25
  $region24: #{fwd.68} parent=0 // pred_region
    _
  $region25: #{fwd.68} parent=0 // pred_fallthru
    _

// kernel: fwd.69
$region0: #{fwd.69}
  #allocation0 [shape = 'u32[]', space=smem, size = 0x4, offset = 0x4, fixed_abs, tag = 'smem constant byte address 0x4 - core index']
  #allocation1 [shape = 'u32[144,128]{1,0:T(1,128)}', space=vmem, size = 0x12000, scoped, tag = 'internal scratch']
  %s0 = inlined_call_operand.vmem [shape: bf16[32,128], index: 0, kind: input, shape index: {}]
  %s1 = inlined_call_operand.vmem [shape: bf16[128,128], index: 1, kind: input, shape index: {}]
  %s2 = inlined_call_operand.vmem [shape: f32[1,128], index: 2, kind: input, shape index: {}]
  %s3 = inlined_call_operand.vmem [shape: bf16[32,128], index: 3, kind: output, shape index: {}]
  %s4 = sld [smem:[#allocation0]]
  $region22: #{fwd.69} parent=0
    _
  %s6 = ssub.s32 1, %s4
  %s7 = scalar_select 0, %s6, %s4
  // Predicated region
  $region2: #{fwd.69} parent=0 // pred_check
    _
  $region3: #{fwd.69} parent=0 // pred_check_branch
    %9 = sbr.rel (0) target = $region5
  $region4: #{fwd.69} parent=0 // pred_region
    _
  $region5: #{fwd.69} parent=0 // pred_fallthru
    _
  // Predicated region
  $region6: #{fwd.69} parent=0 // pred_check
    _
  $region7: #{fwd.69} parent=0 // pred_check_branch
    %11 = sbr.rel (0) target = $region9
  $region8: #{fwd.69} parent=0 // pred_region
    _
  $region9: #{fwd.69} parent=0 // pred_fallthru
    _
  // Predicated region
  $region10: #{fwd.69} parent=0 // pred_check
    _
  $region11: #{fwd.69} parent=0 // pred_check_branch
    %13 = sbr.rel (0) target = $region13
  $region12: #{fwd.69} parent=0 // pred_region
    _
  $region13: #{fwd.69} parent=0 // pred_fallthru
    _
  %v15 = vld [vmem:[%s0] sm:$0xf]
  %v16 = vld [vmem:[%s0 + $0x4] sm:$0xf]
  %v17 = vld [vmem:[%s0 + $0x8] sm:$0xf]
  %v18 = vld [vmem:[%s0 + $0xc] sm:$0xf]
  %v19 = vld [vmem:[%s1] sm:$0xf]
  %v20 = vld [vmem:[%s1 + $0x4] sm:$0xf]
  %v21 = vld [vmem:[%s1 + $0x8] sm:$0xf]
  %v22 = vld [vmem:[%s1 + $0xc] sm:$0xf]
  %v23 = vld [vmem:[%s1 + $0x10] sm:$0xf]
  %v24 = vld [vmem:[%s1 + $0x14] sm:$0xf]
  %v25 = vld [vmem:[%s1 + $0x18] sm:$0xf]
  %v26 = vld [vmem:[%s1 + $0x1c] sm:$0xf]
  %v27 = vld [vmem:[%s1 + $0x20] sm:$0xf]
  %v28 = vld [vmem:[%s1 + $0x24] sm:$0xf]
  %v29 = vld [vmem:[%s1 + $0x28] sm:$0xf]
  %v30 = vld [vmem:[%s1 + $0x2c] sm:$0xf]
  %v31 = vld [vmem:[%s1 + $0x30] sm:$0xf]
  %v32 = vld [vmem:[%s1 + $0x34] sm:$0xf]
  %v33 = vld [vmem:[%s1 + $0x38] sm:$0xf]
  %v34 = vld [vmem:[%s1 + $0x3c] sm:$0xf]
  %v35 = vld [vmem:[%s2] sm:$0x1]
  %v37 = vlaneseq
  %v38 = vshrl.u32 %v37, 7
  %v39 = vsub.s32 0, %v38
  %v40 = vrot.slane %v35, %v39
  %v46 = vunpack.c.l.b16 %v15
  %v47 = vunpack.c.l.b16 %v16
  %v48 = vunpack.c.l.b16 %v17
  %v49 = vunpack.c.l.b16 %v18
  %v50 = vpack.c.b16 %v47, %v46
  %v51 = vpack.c.b16 %v49, %v48
  %v70 = vunpack.c.l.b16 %v19
  %v71 = vunpack.c.l.b16 %v20
  %v72 = vunpack.c.l.b16 %v21
  %v73 = vunpack.c.l.b16 %v22
  %v74 = vunpack.c.l.b16 %v23
  %v75 = vunpack.c.l.b16 %v24
  %v76 = vunpack.c.l.b16 %v25
  %v77 = vunpack.c.l.b16 %v26
  %v78 = vunpack.c.l.b16 %v27
  %v79 = vunpack.c.l.b16 %v28
  %v80 = vunpack.c.l.b16 %v29
  %v81 = vunpack.c.l.b16 %v30
  %v82 = vunpack.c.l.b16 %v31
  %v83 = vunpack.c.l.b16 %v32
  %v84 = vunpack.c.l.b16 %v33
  %v85 = vunpack.c.l.b16 %v34
  %v86 = vpack.c.b16 %v71, %v70
  %v87 = vpack.c.b16 %v73, %v72
  %v88 = vpack.c.b16 %v75, %v74
  %v89 = vpack.c.b16 %v77, %v76
  %v90 = vpack.c.b16 %v79, %v78
  %v91 = vpack.c.b16 %v81, %v80
  %v92 = vpack.c.b16 %v83, %v82
  %v93 = vpack.c.b16 %v85, %v84
  %102 = vmatprep.subr.bf16.mxu0 0
  %103 = vmatpush1.bf16.msra.mxu0 %v86
  %104 = vmatprep.subr.bf16.mxu0 0
  %105 = vmatpush1.bf16.msra.mxu0 %v87
  %106 = vmatprep.subr.bf16.mxu0 0
  %107 = vmatpush1.bf16.msra.mxu0 %v88
  %108 = vmatprep.subr.bf16.mxu0 0
  %109 = vmatpush1.bf16.msra.mxu0 %v89
  %110 = vmatprep.subr.bf16.mxu0 0
  %111 = vmatpush1.bf16.msra.mxu0 %v90
  %112 = vmatprep.subr.bf16.mxu0 0
  %113 = vmatpush1.bf16.msra.mxu0 %v91
  %114 = vmatprep.subr.bf16.mxu0 0
  %115 = vmatpush1.bf16.msra.mxu0 %v92
  %116 = vmatprep.subr.bf16.mxu0 0
  %117 = vmatpush1.bf16.msra.mxu0 %v93
  %118 = vmatprep.subr.bf16.mxu0 0
  %119 = vmatpush1.bf16.msra.mxu0 0
  %120 = vmatprep.subr.bf16.mxu0 0
  %121 = vmatpush1.bf16.msra.mxu0 0
  %122 = vmatprep.subr.bf16.mxu0 0
  %123 = vmatpush1.bf16.msra.mxu0 0
  %124 = vmatprep.subr.bf16.mxu0 0
  %125 = vmatpush1.bf16.msra.mxu0 0
  %126 = vmatprep.subr.bf16.mxu0 0
  %127 = vmatpush1.bf16.msra.mxu0 0
  %128 = vmatprep.subr.bf16.mxu0 0
  %129 = vmatpush1.bf16.msra.mxu0 0
  %130 = vmatprep.subr.bf16.mxu0 0
  %131 = vmatpush1.bf16.msra.mxu0 0
  %132 = vmatprep.subr.bf16.mxu0 0
  %133 = vmatpush1.bf16.msra.mxu0 0
  %134 = vmatprep.mubr.bf16.mxu0 0
  %135 = vmatmul.mubr.bf16.gmra.mrb[0].mxu0 %v50
  %v136 = vpop.f32.mrb[0].mxu0
  %v137 = vadd.f32 %v40, %v136
  %v138 = vpop.f32.mrb[0].mxu0
  %v139 = vpop.f32.mrb[0].mxu0
  %v140 = vadd.f32 %v40, %v139
  %v141 = vpop.f32.mrb[0].mxu0
  %142 = vmatprep.mubr.bf16.mxu0 0
  %143 = vmatmul.mubr.bf16.gmra.mrb[0].mxu0 %v51
  %v144 = vpop.f32.mrb[0].mxu0
  %v145 = vadd.f32 %v40, %v144
  %v146 = vpop.f32.mrb[0].mxu0
  %v147 = vpop.f32.mrb[0].mxu0
  %v148 = vadd.f32 %v40, %v147
  %v149 = vpop.f32.mrb[0].mxu0
  %150 = vdwg.mxu0
  %v151 = vmax.f32 %v137, 0.0
  %v152 = vmax.f32 %v140, 0.0
  %v153 = vmax.f32 %v145, 0.0
  %v154 = vmax.f32 %v148, 0.0
  %v155 = vpack.c.bf16 %v152, %v151
  %v156 = vpack.c.bf16 %v154, %v153
  %v159 = vunpack.c.l.b16 %v155
  %v160 = vunpack.c.h.b16 %v155
  %v161 = vunpack.c.l.b16 %v156
  %v162 = vunpack.c.h.b16 %v156
  %v163 = vpack.c.b16 %v159, %v159
  %v164 = vpack.c.b16 %v160, %v160
  %v165 = vpack.c.b16 %v161, %v161
  %v166 = vpack.c.b16 %v162, %v162
  %171 = vst [vmem:[%s3] sm:$0xf] %v163
  %172 = vst [vmem:[%s3 + $0x4] sm:$0xf] %v164
  %173 = vst [vmem:[%s3 + $0x8] sm:$0xf] %v165
  %174 = vst [vmem:[%s3 + $0xc] sm:$0xf] %v166
  // Predicated region
  $region14: #{fwd.69} parent=0 // pred_check
    _
  $region15: #{fwd.69} parent=0 // pred_check_branch
    %176 = sbr.rel (0) target = $region17
  $region16: #{fwd.69} parent=0 // pred_region
    _
  $region17: #{fwd.69} parent=0 // pred_fallthru
    _
  // Predicated region
  $region18: #{fwd.69} parent=0 // pred_check
    _
  $region19: #{fwd.69} parent=0 // pred_check_branch
    %178 = sbr.rel (0) target = $region21
  $region20: #{fwd.69} parent=0 // pred_region
    _
  $region21: #{fwd.69} parent=0 // pred_fallthru
    _

// kernel: fwd.80
$region0: #{fwd.80}
  #allocation0 [shape = 'u32[]', space=smem, size = 0x4, offset = 0x4, fixed_abs, tag = 'smem constant byte address 0x4 - core index']
  #allocation1 [shape = 'u32[144,128]{1,0:T(1,128)}', space=vmem, size = 0x12000, scoped, tag = 'internal scratch']
  %s0 = inlined_call_operand.vmem [shape: bf16[8,128], index: 0, kind: input, shape index: {}]
  %s1 = inlined_call_operand.vmem [shape: bf16[128,128], index: 1, kind: input, shape index: {}]
  %s2 = inlined_call_operand.vmem [shape: f32[1,128], index: 2, kind: input, shape index: {}]
  %s3 = inlined_call_operand.vmem [shape: bf16[8,128], index: 3, kind: output, shape index: {}]
  %s4 = sld [smem:[#allocation0]]
  $region22: #{fwd.80} parent=0
    _
  %s6 = ssub.s32 1, %s4
  %s7 = scalar_select 0, %s6, %s4
  // Predicated region
  $region2: #{fwd.80} parent=0 // pred_check
    _
  $region3: #{fwd.80} parent=0 // pred_check_branch
    %9 = sbr.rel (0) target = $region5
  $region4: #{fwd.80} parent=0 // pred_region
    _
  $region5: #{fwd.80} parent=0 // pred_fallthru
    _
  // Predicated region
  $region6: #{fwd.80} parent=0 // pred_check
    _
  $region7: #{fwd.80} parent=0 // pred_check_branch
    %11 = sbr.rel (0) target = $region9
  $region8: #{fwd.80} parent=0 // pred_region
    _
  $region9: #{fwd.80} parent=0 // pred_fallthru
    _
  // Predicated region
  $region10: #{fwd.80} parent=0 // pred_check
    _
  $region11: #{fwd.80} parent=0 // pred_check_branch
    %13 = sbr.rel (0) target = $region13
  $region12: #{fwd.80} parent=0 // pred_region
    _
  $region13: #{fwd.80} parent=0 // pred_fallthru
    _
  %v15 = vld [vmem:[%s0] sm:$0xf]
  %v16 = vld [vmem:[%s1] sm:$0xf]
  %v17 = vld [vmem:[%s1 + $0x4] sm:$0xf]
  %v18 = vld [vmem:[%s1 + $0x8] sm:$0xf]
  %v19 = vld [vmem:[%s1 + $0xc] sm:$0xf]
  %v20 = vld [vmem:[%s1 + $0x10] sm:$0xf]
  %v21 = vld [vmem:[%s1 + $0x14] sm:$0xf]
  %v22 = vld [vmem:[%s1 + $0x18] sm:$0xf]
  %v23 = vld [vmem:[%s1 + $0x1c] sm:$0xf]
  %v24 = vld [vmem:[%s1 + $0x20] sm:$0xf]
  %v25 = vld [vmem:[%s1 + $0x24] sm:$0xf]
  %v26 = vld [vmem:[%s1 + $0x28] sm:$0xf]
  %v27 = vld [vmem:[%s1 + $0x2c] sm:$0xf]
  %v28 = vld [vmem:[%s1 + $0x30] sm:$0xf]
  %v29 = vld [vmem:[%s1 + $0x34] sm:$0xf]
  %v30 = vld [vmem:[%s1 + $0x38] sm:$0xf]
  %v31 = vld [vmem:[%s1 + $0x3c] sm:$0xf]
  %v32 = vld [vmem:[%s2] sm:$0x1]
  %v34 = vlaneseq
  %v35 = vshrl.u32 %v34, 7
  %v36 = vsub.s32 0, %v35
  %v37 = vrot.slane %v32, %v36
  %v55 = vunpack.c.l.b16 %v16
  %v56 = vunpack.c.l.b16 %v17
  %v57 = vunpack.c.l.b16 %v18
  %v58 = vunpack.c.l.b16 %v19
  %v59 = vunpack.c.l.b16 %v20
  %v60 = vunpack.c.l.b16 %v21
  %v61 = vunpack.c.l.b16 %v22
  %v62 = vunpack.c.l.b16 %v23
  %v63 = vunpack.c.l.b16 %v24
  %v64 = vunpack.c.l.b16 %v25
  %v65 = vunpack.c.l.b16 %v26
  %v66 = vunpack.c.l.b16 %v27
  %v67 = vunpack.c.l.b16 %v28
  %v68 = vunpack.c.l.b16 %v29
  %v69 = vunpack.c.l.b16 %v30
  %v70 = vunpack.c.l.b16 %v31
  %v71 = vpack.c.b16 %v56, %v55
  %v72 = vpack.c.b16 %v58, %v57
  %v73 = vpack.c.b16 %v60, %v59
  %v74 = vpack.c.b16 %v62, %v61
  %v75 = vpack.c.b16 %v64, %v63
  %v76 = vpack.c.b16 %v66, %v65
  %v77 = vpack.c.b16 %v68, %v67
  %v78 = vpack.c.b16 %v70, %v69
  %87 = vmatprep.subr.bf16.mxu0 0
  %88 = vmatpush1.bf16.msra.mxu0 %v71
  %89 = vmatprep.subr.bf16.mxu0 0
  %90 = vmatpush1.bf16.msra.mxu0 %v72
  %91 = vmatprep.subr.bf16.mxu0 0
  %92 = vmatpush1.bf16.msra.mxu0 %v73
  %93 = vmatprep.subr.bf16.mxu0 0
  %94 = vmatpush1.bf16.msra.mxu0 %v74
  %95 = vmatprep.subr.bf16.mxu0 0
  %96 = vmatpush1.bf16.msra.mxu0 %v75
  %97 = vmatprep.subr.bf16.mxu0 0
  %98 = vmatpush1.bf16.msra.mxu0 %v76
  %99 = vmatprep.subr.bf16.mxu0 0
  %100 = vmatpush1.bf16.msra.mxu0 %v77
  %101 = vmatprep.subr.bf16.mxu0 0
  %102 = vmatpush1.bf16.msra.mxu0 %v78
  %103 = vmatprep.subr.bf16.mxu0 0
  %104 = vmatpush1.bf16.msra.mxu0 0
  %105 = vmatprep.subr.bf16.mxu0 0
  %106 = vmatpush1.bf16.msra.mxu0 0
  %107 = vmatprep.subr.bf16.mxu0 0
  %108 = vmatpush1.bf16.msra.mxu0 0
  %109 = vmatprep.subr.bf16.mxu0 0
  %110 = vmatpush1.bf16.msra.mxu0 0
  %111 = vmatprep.subr.bf16.mxu0 0
  %112 = vmatpush1.bf16.msra.mxu0 0
  %113 = vmatprep.subr.bf16.mxu0 0
  %114 = vmatpush1.bf16.msra.mxu0 0
  %115 = vmatprep.subr.bf16.mxu0 0
  %116 = vmatpush1.bf16.msra.mxu0 0
  %117 = vmatprep.subr.bf16.mxu0 0
  %118 = vmatpush1.bf16.msra.mxu0 0
  %119 = vmatprep.mubr.bf16.mxu0 0
  %120 = vmatmul.mubr.bf16.gmra.mrb[0].mxu0 %v15
  %v121 = vpop.f32.mrb[0].mxu0
  %v122 = vadd.f32 %v37, %v121
  %v123 = vpop.f32.mrb[0].mxu0
  %v124 = vpop.f32.mrb[0].mxu0
  %v125 = vpop.f32.mrb[0].mxu0
  %126 = vdwg.mxu0
  %v127 = vpack.c.bf16 %v122, %v122
  %128 = vst [vmem:[%s3] sm:$0xf] %v127
  // Predicated region
  $region14: #{fwd.80} parent=0 // pred_check
    _
  $region15: #{fwd.80} parent=0 // pred_check_branch
    %130 = sbr.rel (0) target = $region17
  $region16: #{fwd.80} parent=0 // pred_region
    _
  $region17: #{fwd.80} parent=0 // pred_fallthru
    _
  // Predicated region
  $region18: #{fwd.80} parent=0 // pred_check
    _
  $region19: #{fwd.80} parent=0 // pred_check_branch
    %132 = sbr.rel (0) target = $region21
  $region20: #{fwd.80} parent=0 // pred_region
    _
  $region21: #{fwd.80} parent=0 // pred_fallthru
    _

// kernel: fwd.81
$region0: #{fwd.81}
  #allocation0 [shape = 'u32[]', space=smem, size = 0x4, offset = 0x4, fixed_abs, tag = 'smem constant byte address 0x4 - core index']
  #allocation1 [shape = 'u32[144,128]{1,0:T(1,128)}', space=vmem, size = 0x12000, scoped, tag = 'internal scratch']
  %s0 = inlined_call_operand.vmem [shape: bf16[8,128], index: 0, kind: input, shape index: {}]
  %s1 = inlined_call_operand.vmem [shape: bf16[128,128], index: 1, kind: input, shape index: {}]
  %s2 = inlined_call_operand.hbm [shape: f32[1,128], index: 2, kind: input, shape index: {}]
  %s3 = inlined_call_operand.vmem [shape: bf16[8,128], index: 3, kind: input, shape index: {}]
  %s4 = inlined_call_operand.vmem [shape: bf16[8,128], index: 4, kind: output, shape index: {}]
  %s5 = sld [smem:[#allocation0]]
  $region30: #{fwd.81} parent=0
    _
  %s7 = ssub.s32 1, %s5
  %s8 = scalar_select 0, %s7, %s5
  $region1: #{fwd.81} parent=0
    #allocation2 [shape = 'u8[512]{0}', space=vmem, size = 0x400, scoped, tag = 'input window, operand 2, single buffered']
    #allocation3 [shape = 's32[1]{0}', space=sflag, size = 0x4, scoped, tag = 'scoped memory for fwd.81']
    %9 = vsyncpa [#allocation3], 0
    // Predicated region
    $region2: #{fwd.81} parent=1 // pred_check
      _
    $region3: #{fwd.81} parent=1 // pred_check_branch
      %11 = sbr.rel (0) target = $region5
    $region4: #{fwd.81} parent=1 // pred_region
      _
    $region5: #{fwd.81} parent=1 // pred_fallthru
      _
    // Predicated region
    $region6: #{fwd.81} parent=1 // pred_check
      _
    $region7: #{fwd.81} parent=1 // pred_check_branch
      %13 = sbr.rel (0) target = $region9
    $region8: #{fwd.81} parent=1 // pred_region
      _
    $region9: #{fwd.81} parent=1 // pred_fallthru
      _
    // Predicated region
    $region10: #{fwd.81} parent=1 // pred_check
      _
    $region11: #{fwd.81} parent=1 // pred_check_branch
      %15 = sbr.rel (0) target = $region13
    $region12: #{fwd.81} parent=1 // pred_region
      %s17 = ssub.s32 16, 16
      %18 = vsyncadd [#allocation3], %s17
      %s20 = sshll.u32 [#allocation2], 4
      %s21 = int_to_ptr.vmem [resolvable:$true] %s20
      %23 = dma.hbm_to_vmem [thread:$0]  %s2, 16, %s21, [#allocation3]
    $region13: #{fwd.81} parent=1 // pred_fallthru
      _
    // Predicated region
    $region14: #{fwd.81} parent=1 // pred_check
      _
    $region15: #{fwd.81} parent=1 // pred_check_branch
      %25 = sbr.rel (0) target = $region17
    $region16: #{fwd.81} parent=1 // pred_region
      _
    $region17: #{fwd.81} parent=1 // pred_fallthru
      _
    // Predicated region
    $region18: #{fwd.81} parent=1 // pred_check
      _
    $region19: #{fwd.81} parent=1 // pred_check_branch
      %27 = sbr.rel (0) target = $region21
    $region20: #{fwd.81} parent=1 // pred_region
      %28 = dma.done [#allocation3], 16
    $region21: #{fwd.81} parent=1 // pred_fallthru
      _
    %v30 = vld [vmem:[%s0] sm:$0xf]
    %v31 = vld [vmem:[%s1] sm:$0xf]
    %v32 = vld [vmem:[%s1 + $0x4] sm:$0xf]
    %v33 = vld [vmem:[%s1 + $0x8] sm:$0xf]
    %v34 = vld [vmem:[%s1 + $0xc] sm:$0xf]
    %v35 = vld [vmem:[%s1 + $0x10] sm:$0xf]
    %v36 = vld [vmem:[%s1 + $0x14] sm:$0xf]
    %v37 = vld [vmem:[%s1 + $0x18] sm:$0xf]
    %v38 = vld [vmem:[%s1 + $0x1c] sm:$0xf]
    %v39 = vld [vmem:[%s1 + $0x20] sm:$0xf]
    %v40 = vld [vmem:[%s1 + $0x24] sm:$0xf]
    %v41 = vld [vmem:[%s1 + $0x28] sm:$0xf]
    %v42 = vld [vmem:[%s1 + $0x2c] sm:$0xf]
    %v43 = vld [vmem:[%s1 + $0x30] sm:$0xf]
    %v44 = vld [vmem:[%s1 + $0x34] sm:$0xf]
    %v45 = vld [vmem:[%s1 + $0x38] sm:$0xf]
    %v46 = vld [vmem:[%s1 + $0x3c] sm:$0xf]
    %v47 = vld [vmem:[#allocation2] sm:$0x1]
    %v49 = vlaneseq
    %v50 = vshrl.u32 %v49, 7
    %v51 = vsub.s32 0, %v50
    %v52 = vrot.slane %v47, %v51
    %v70 = vunpack.c.l.b16 %v31
    %v71 = vunpack.c.l.b16 %v32
    %v72 = vunpack.c.l.b16 %v33
    %v73 = vunpack.c.l.b16 %v34
    %v74 = vunpack.c.l.b16 %v35
    %v75 = vunpack.c.l.b16 %v36
    %v76 = vunpack.c.l.b16 %v37
    %v77 = vunpack.c.l.b16 %v38
    %v78 = vunpack.c.l.b16 %v39
    %v79 = vunpack.c.l.b16 %v40
    %v80 = vunpack.c.l.b16 %v41
    %v81 = vunpack.c.l.b16 %v42
    %v82 = vunpack.c.l.b16 %v43
    %v83 = vunpack.c.l.b16 %v44
    %v84 = vunpack.c.l.b16 %v45
    %v85 = vunpack.c.l.b16 %v46
    %v86 = vpack.c.b16 %v71, %v70
    %v87 = vpack.c.b16 %v73, %v72
    %v88 = vpack.c.b16 %v75, %v74
    %v89 = vpack.c.b16 %v77, %v76
    %v90 = vpack.c.b16 %v79, %v78
    %v91 = vpack.c.b16 %v81, %v80
    %v92 = vpack.c.b16 %v83, %v82
    %v93 = vpack.c.b16 %v85, %v84
    %102 = vmatprep.subr.bf16.mxu0 0
    %103 = vmatpush1.bf16.msra.mxu0 %v86
    %104 = vmatprep.subr.bf16.mxu0 0
    %105 = vmatpush1.bf16.msra.mxu0 %v87
    %106 = vmatprep.subr.bf16.mxu0 0
    %107 = vmatpush1.bf16.msra.mxu0 %v88
    %108 = vmatprep.subr.bf16.mxu0 0
    %109 = vmatpush1.bf16.msra.mxu0 %v89
    %110 = vmatprep.subr.bf16.mxu0 0
    %111 = vmatpush1.bf16.msra.mxu0 %v90
    %112 = vmatprep.subr.bf16.mxu0 0
    %113 = vmatpush1.bf16.msra.mxu0 %v91
    %114 = vmatprep.subr.bf16.mxu0 0
    %115 = vmatpush1.bf16.msra.mxu0 %v92
    %116 = vmatprep.subr.bf16.mxu0 0
    %117 = vmatpush1.bf16.msra.mxu0 %v93
    %118 = vmatprep.subr.bf16.mxu0 0
    %119 = vmatpush1.bf16.msra.mxu0 0
    %120 = vmatprep.subr.bf16.mxu0 0
    %121 = vmatpush1.bf16.msra.mxu0 0
    %122 = vmatprep.subr.bf16.mxu0 0
    %123 = vmatpush1.bf16.msra.mxu0 0
    %124 = vmatprep.subr.bf16.mxu0 0
    %125 = vmatpush1.bf16.msra.mxu0 0
    %126 = vmatprep.subr.bf16.mxu0 0
    %127 = vmatpush1.bf16.msra.mxu0 0
    %128 = vmatprep.subr.bf16.mxu0 0
    %129 = vmatpush1.bf16.msra.mxu0 0
    %130 = vmatprep.subr.bf16.mxu0 0
    %131 = vmatpush1.bf16.msra.mxu0 0
    %132 = vmatprep.subr.bf16.mxu0 0
    %133 = vmatpush1.bf16.msra.mxu0 0
    %134 = vmatprep.mubr.bf16.mxu0 0
    %135 = vmatmul.mubr.bf16.gmra.mrb[0].mxu0 %v30
    %v136 = vpop.f32.mrb[0].mxu0
    %v137 = vadd.f32 %v52, %v136
    %v138 = vpop.f32.mrb[0].mxu0
    %v139 = vpop.f32.mrb[0].mxu0
    %v140 = vpop.f32.mrb[0].mxu0
    %141 = vdwg.mxu0
    %v142 = vld [vmem:[%s3] sm:$0xf]
    %v143 = vunpack.c.l.bf16 %v142
    %v144 = vadd.f32 %v137, %v143
    %v145 = vmax.f32 %v144, 0.0
    %v146 = vpack.c.bf16 %v145, %v145
    %147 = vst [vmem:[%s4] sm:$0xf] %v146
    // Predicated region
    $region22: #{fwd.81} parent=1 // pred_check
      _
    $region23: #{fwd.81} parent=1 // pred_check_branch
      %149 = sbr.rel (0) target = $region25
    $region24: #{fwd.81} parent=1 // pred_region
      _
    $region25: #{fwd.81} parent=1 // pred_fallthru
      _
    // Predicated region
    $region26: #{fwd.81} parent=1 // pred_check
      _
    $region27: #{fwd.81} parent=1 // pred_check_branch
      %151 = sbr.rel (0) target = $region29
    $region28: #{fwd.81} parent=1 // pred_region
      _
    $region29: #{fwd.81} parent=1 // pred_fallthru
      _
    %152 = vsyncpa [#allocation3], 1

// kernel: fwd.79
$region0: #{fwd.79}
  #allocation0 [shape = 'u32[]', space=smem, size = 0x4, offset = 0x4, fixed_abs, tag = 'smem constant byte address 0x4 - core index']
  #allocation1 [shape = 'u32[144,128]{1,0:T(1,128)}', space=vmem, size = 0x12000, scoped, tag = 'internal scratch']
  %s0 = inlined_call_operand.vmem [shape: bf16[8,384], index: 0, kind: input, shape index: {}]
  %s1 = inlined_call_operand.vmem [shape: bf16[384,128], index: 1, kind: input, shape index: {}]
  %s2 = inlined_call_operand.hbm [shape: f32[1,128], index: 2, kind: input, shape index: {}]
  %s3 = inlined_call_operand.vmem [shape: bf16[8,128], index: 3, kind: output, shape index: {}]
  %s4 = sld [smem:[#allocation0]]
  $region26: #{fwd.79} parent=0
    _
  %s6 = ssub.s32 1, %s4
  %s7 = scalar_select 0, %s6, %s4
  $region1: #{fwd.79} parent=0
    #allocation2 [shape = 'u8[512]{0}', space=vmem, size = 0x400, scoped, tag = 'input window, operand 2, single buffered']
    #allocation3 [shape = 's32[1]{0}', space=sflag, size = 0x4, scoped, tag = 'scoped memory for fwd.79']
    %8 = vsyncpa [#allocation3], 0
    // Predicated region
    $region2: #{fwd.79} parent=1 // pred_check
      _
    $region3: #{fwd.79} parent=1 // pred_check_branch
      %10 = sbr.rel (0) target = $region5
    $region4: #{fwd.79} parent=1 // pred_region
      _
    $region5: #{fwd.79} parent=1 // pred_fallthru
      _
    // Predicated region
    $region6: #{fwd.79} parent=1 // pred_check
      _
    $region7: #{fwd.79} parent=1 // pred_check_branch
      %12 = sbr.rel (0) target = $region9
    $region8: #{fwd.79} parent=1 // pred_region
      _
    $region9: #{fwd.79} parent=1 // pred_fallthru
      _
    // Predicated region
    $region10: #{fwd.79} parent=1 // pred_check
      _
    $region11: #{fwd.79} parent=1 // pred_check_branch
      %14 = sbr.rel (0) target = $region13
    $region12: #{fwd.79} parent=1 // pred_region
      %s16 = ssub.s32 16, 16
      %17 = vsyncadd [#allocation3], %s16
      %s19 = sshll.u32 [#allocation2], 4
      %s20 = int_to_ptr.vmem [resolvable:$true] %s19
      %22 = dma.hbm_to_vmem [thread:$0]  %s2, 16, %s20, [#allocation3]
    $region13: #{fwd.79} parent=1 // pred_fallthru
      _
    // Predicated region
    $region14: #{fwd.79} parent=1 // pred_check
      _
    $region15: #{fwd.79} parent=1 // pred_check_branch
      %24 = sbr.rel (0) target = $region17
    $region16: #{fwd.79} parent=1 // pred_region
      %25 = dma.done [#allocation3], 16
    $region17: #{fwd.79} parent=1 // pred_fallthru
      _
    %v27 = vld [vmem:[%s0] sm:$0xff]
    %v28 = vld [vmem:[%s0 + $0x8] sm:$0xf]
    %v29 = vld [vmem:[%s1] sm:$0xf]
    %v30 = vld [vmem:[%s1 + $0x4] sm:$0xf]
    %v31 = vld [vmem:[%s1 + $0x8] sm:$0xf]
    %v32 = vld [vmem:[%s1 + $0xc] sm:$0xf]
    %v33 = vld [vmem:[%s1 + $0x10] sm:$0xf]
    %v34 = vld [vmem:[%s1 + $0x14] sm:$0xf]
    %v35 = vld [vmem:[%s1 + $0x18] sm:$0xf]
    %v36 = vld [vmem:[%s1 + $0x1c] sm:$0xf]
    %v37 = vld [vmem:[%s1 + $0x20] sm:$0xf]
    %v38 = vld [vmem:[%s1 + $0x24] sm:$0xf]
    %v39 = vld [vmem:[%s1 + $0x28] sm:$0xf]
    %v40 = vld [vmem:[%s1 + $0x2c] sm:$0xf]
    %v41 = vld [vmem:[%s1 + $0x30] sm:$0xf]
    %v42 = vld [vmem:[%s1 + $0x34] sm:$0xf]
    %v43 = vld [vmem:[%s1 + $0x38] sm:$0xf]
    %v44 = vld [vmem:[%s1 + $0x3c] sm:$0xf]
    %v45 = vld [vmem:[%s1 + $0x40] sm:$0xf]
    %v46 = vld [vmem:[%s1 + $0x44] sm:$0xf]
    %v47 = vld [vmem:[%s1 + $0x48] sm:$0xf]
    %v48 = vld [vmem:[%s1 + $0x4c] sm:$0xf]
    %v49 = vld [vmem:[%s1 + $0x50] sm:$0xf]
    %v50 = vld [vmem:[%s1 + $0x54] sm:$0xf]
    %v51 = vld [vmem:[%s1 + $0x58] sm:$0xf]
    %v52 = vld [vmem:[%s1 + $0x5c] sm:$0xf]
    %v53 = vld [vmem:[%s1 + $0x60] sm:$0xf]
    %v54 = vld [vmem:[%s1 + $0x64] sm:$0xf]
    %v55 = vld [vmem:[%s1 + $0x68] sm:$0xf]
    %v56 = vld [vmem:[%s1 + $0x6c] sm:$0xf]
    %v57 = vld [vmem:[%s1 + $0x70] sm:$0xf]
    %v58 = vld [vmem:[%s1 + $0x74] sm:$0xf]
    %v59 = vld [vmem:[%s1 + $0x78] sm:$0xf]
    %v60 = vld [vmem:[%s1 + $0x7c] sm:$0xf]
    %v61 = vld [vmem:[%s1 + $0x80] sm:$0xf]
    %v62 = vld [vmem:[%s1 + $0x84] sm:$0xf]
    %v63 = vld [vmem:[%s1 + $0x88] sm:$0xf]
    %v64 = vld [vmem:[%s1 + $0x8c] sm:$0xf]
    %v65 = vld [vmem:[%s1 + $0x90] sm:$0xf]
    %v66 = vld [vmem:[%s1 + $0x94] sm:$0xf]
    %v67 = vld [vmem:[%s1 + $0x98] sm:$0xf]
    %v68 = vld [vmem:[%s1 + $0x9c] sm:$0xf]
    %v69 = vld [vmem:[%s1 + $0xa0] sm:$0xf]
    %v70 = vld [vmem:[%s1 + $0xa4] sm:$0xf]
    %v71 = vld [vmem:[%s1 + $0xa8] sm:$0xf]
    %v72 = vld [vmem:[%s1 + $0xac] sm:$0xf]
    %v73 = vld [vmem:[%s1 + $0xb0] sm:$0xf]
    %v74 = vld [vmem:[%s1 + $0xb4] sm:$0xf]
    %v75 = vld [vmem:[%s1 + $0xb8] sm:$0xf]
    %v76 = vld [vmem:[%s1 + $0xbc] sm:$0xf]
    %v77 = vld [vmem:[#allocation2] sm:$0x1]
    %v79 = vlaneseq
    %v80 = vshrl.u32 %v79, 7
    %v81 = vsub.s32 0, %v80
    %v82 = vrot.slane %v77, %v81
    %v86 = vunpack.c.l.b16 %v27
    %v87 = vunpack.c.h.b16 %v27
    %v88 = vunpack.c.l.b16 %v28
    %v89 = vpack.c.b16 %v86, %v86
    %v90 = vpack.c.b16 %v87, %v87
    %v91 = vpack.c.b16 %v88, %v88
    %v143 = vunpack.c.l.b16 %v29
    %v144 = vunpack.c.l.b16 %v30
    %v145 = vunpack.c.l.b16 %v31
    %v146 = vunpack.c.l.b16 %v32
    %v147 = vunpack.c.l.b16 %v33
    %v148 = vunpack.c.l.b16 %v34
    %v149 = vunpack.c.l.b16 %v35
    %v150 = vunpack.c.l.b16 %v36
    %v151 = vunpack.c.l.b16 %v37
    %v152 = vunpack.c.l.b16 %v38
    %v153 = vunpack.c.l.b16 %v39
    %v154 = vunpack.c.l.b16 %v40
    %v155 = vunpack.c.l.b16 %v41
    %v156 = vunpack.c.l.b16 %v42
    %v157 = vunpack.c.l.b16 %v43
    %v158 = vunpack.c.l.b16 %v44
    %v159 = vunpack.c.l.b16 %v45
    %v160 = vunpack.c.l.b16 %v46
    %v161 = vunpack.c.l.b16 %v47
    %v162 = vunpack.c.l.b16 %v48
    %v163 = vunpack.c.l.b16 %v49
    %v164 = vunpack.c.l.b16 %v50
    %v165 = vunpack.c.l.b16 %v51
    %v166 = vunpack.c.l.b16 %v52
    %v167 = vunpack.c.l.b16 %v53
    %v168 = vunpack.c.l.b16 %v54
    %v169 = vunpack.c.l.b16 %v55
    %v170 = vunpack.c.l.b16 %v56
    %v171 = vunpack.c.l.b16 %v57
    %v172 = vunpack.c.l.b16 %v58
    %v173 = vunpack.c.l.b16 %v59
    %v174 = vunpack.c.l.b16 %v60
    %v175 = vunpack.c.l.b16 %v61
    %v176 = vunpack.c.l.b16 %v62
    %v177 = vunpack.c.l.b16 %v63
    %v178 = vunpack.c.l.b16 %v64
    %v179 = vunpack.c.l.b16 %v65
    %v180 = vunpack.c.l.b16 %v66
    %v181 = vunpack.c.l.b16 %v67
    %v182 = vunpack.c.l.b16 %v68
    %v183 = vunpack.c.l.b16 %v69
    %v184 = vunpack.c.l.b16 %v70
    %v185 = vunpack.c.l.b16 %v71
    %v186 = vunpack.c.l.b16 %v72
    %v187 = vunpack.c.l.b16 %v73
    %v188 = vunpack.c.l.b16 %v74
    %v189 = vunpack.c.l.b16 %v75
    %v190 = vunpack.c.l.b16 %v76
    %v191 = vpack.c.b16 %v144, %v143
    %v192 = vpack.c.b16 %v146, %v145
    %v193 = vpack.c.b16 %v148, %v147
    %v194 = vpack.c.b16 %v150, %v149
    %v195 = vpack.c.b16 %v152, %v151
    %v196 = vpack.c.b16 %v154, %v153
    %v197 = vpack.c.b16 %v156, %v155
    %v198 = vpack.c.b16 %v158, %v157
    %v199 = vpack.c.b16 %v160, %v159
    %v200 = vpack.c.b16 %v162, %v161
    %v201 = vpack.c.b16 %v164, %v163
    %v202 = vpack.c.b16 %v166, %v165
    %v203 = vpack.c.b16 %v168, %v167
    %v204 = vpack.c.b16 %v170, %v169
    %v205 = vpack.c.b16 %v172, %v171
    %v206 = vpack.c.b16 %v174, %v173
    %v207 = vpack.c.b16 %v176, %v175
    %v208 = vpack.c.b16 %v178, %v177
    %v209 = vpack.c.b16 %v180, %v179
    %v210 = vpack.c.b16 %v182, %v181
    %v211 = vpack.c.b16 %v184, %v183
    %v212 = vpack.c.b16 %v186, %v185
    %v213 = vpack.c.b16 %v188, %v187
    %v214 = vpack.c.b16 %v190, %v189
    %239 = vmatprep.subr.bf16.mxu0 0
    %240 = vmatpush1.bf16.msra.mxu0 %v191
    %241 = vmatprep.subr.bf16.mxu0 0
    %242 = vmatpush1.bf16.msra.mxu0 %v192
    %243 = vmatprep.subr.bf16.mxu0 0
    %244 = vmatpush1.bf16.msra.mxu0 %v193
    %245 = vmatprep.subr.bf16.mxu0 0
    %246 = vmatpush1.bf16.msra.mxu0 %v194
    %247 = vmatprep.subr.bf16.mxu0 0
    %248 = vmatpush1.bf16.msra.mxu0 %v195
    %249 = vmatprep.subr.bf16.mxu0 0
    %250 = vmatpush1.bf16.msra.mxu0 %v196
    %251 = vmatprep.subr.bf16.mxu0 0
    %252 = vmatpush1.bf16.msra.mxu0 %v197
    %253 = vmatprep.subr.bf16.mxu0 0
    %254 = vmatpush1.bf16.msra.mxu0 %v198
    %255 = vmatprep.subr.bf16.mxu0 0
    %256 = vmatpush1.bf16.msra.mxu0 %v199
    %257 = vmatprep.subr.bf16.mxu0 0
    %258 = vmatpush1.bf16.msra.mxu0 %v200
    %259 = vmatprep.subr.bf16.mxu0 0
    %260 = vmatpush1.bf16.msra.mxu0 %v201
    %261 = vmatprep.subr.bf16.mxu0 0
    %262 = vmatpush1.bf16.msra.mxu0 %v202
    %263 = vmatprep.subr.bf16.mxu0 0
    %264 = vmatpush1.bf16.msra.mxu0 %v203
    %265 = vmatprep.subr.bf16.mxu0 0
    %266 = vmatpush1.bf16.msra.mxu0 %v204
    %267 = vmatprep.subr.bf16.mxu0 0
    %268 = vmatpush1.bf16.msra.mxu0 %v205
    %269 = vmatprep.subr.bf16.mxu0 0
    %270 = vmatpush1.bf16.msra.mxu0 %v206
    %271 = vmatprep.mubr.bf16.mxu0 %v90
    %272 = vmatmul.mubr.bf16.gmra.mrb[0].mxu0 %v89
    %v273 = vpop.f32.mrb[0].mxu0
    %v274 = vadd.f32 %v82, %v273
    %v275 = vpop.f32.mrb[0].mxu0
    %v276 = vpop.f32.mrb[0].mxu0
    %v277 = vpop.f32.mrb[0].mxu0
    %278 = vdwg.mxu0
    %279 = vmatprep.subr.bf16.mxu0 0
    %280 = vmatpush1.bf16.msra.mxu0 %v207
    %281 = vmatprep.subr.bf16.mxu0 0
    %282 = vmatpush1.bf16.msra.mxu0 %v208
    %283 = vmatprep.subr.bf16.mxu0 0
    %284 = vmatpush1.bf16.msra.mxu0 %v209
    %285 = vmatprep.subr.bf16.mxu0 0
    %286 = vmatpush1.bf16.msra.mxu0 %v210
    %287 = vmatprep.subr.bf16.mxu0 0
    %288 = vmatpush1.bf16.msra.mxu0 %v211
    %289 = vmatprep.subr.bf16.mxu0 0
    %290 = vmatpush1.bf16.msra.mxu0 %v212
    %291 = vmatprep.subr.bf16.mxu0 0
    %292 = vmatpush1.bf16.msra.mxu0 %v213
    %293 = vmatprep.subr.bf16.mxu0 0
    %294 = vmatpush1.bf16.msra.mxu0 %v214
    %295 = vmatprep.subr.bf16.mxu0 0
    %296 = vmatpush1.bf16.msra.mxu0 0
    %297 = vmatprep.subr.bf16.mxu0 0
    %298 = vmatpush1.bf16.msra.mxu0 0
    %299 = vmatprep.subr.bf16.mxu0 0
    %300 = vmatpush1.bf16.msra.mxu0 0
    %301 = vmatprep.subr.bf16.mxu0 0
    %302 = vmatpush1.bf16.msra.mxu0 0
    %303 = vmatprep.subr.bf16.mxu0 0
    %304 = vmatpush1.bf16.msra.mxu0 0
    %305 = vmatprep.subr.bf16.mxu0 0
    %306 = vmatpush1.bf16.msra.mxu0 0
    %307 = vmatprep.subr.bf16.mxu0 0
    %308 = vmatpush1.bf16.msra.mxu0 0
    %309 = vmatprep.subr.bf16.mxu0 0
    %310 = vmatpush1.bf16.msra.mxu0 0
    %311 = vmatprep.mubr.bf16.mxu0 0
    %312 = vmatmul.mubr.bf16.gmra.mrb[0].mxu0 %v91
    %v313 = vpop.f32.mrb[0].mxu0
    %v314 = vadd.f32 %v274, %v313
    %v315 = vpop.f32.mrb[0].mxu0
    %v316 = vpop.f32.mrb[0].mxu0
    %v317 = vpop.f32.mrb[0].mxu0
    %318 = vdwg.mxu0
    %v319 = vmax.f32 %v314, 0.0
    %v320 = vpack.c.bf16 %v319, %v319
    %321 = vst [vmem:[%s3] sm:$0xf] %v320
    // Predicated region
    $region18: #{fwd.79} parent=1 // pred_check
      _
    $region19: #{fwd.79} parent=1 // pred_check_branch
      %323 = sbr.rel (0) target = $region21
    $region20: #{fwd.79} parent=1 // pred_region
      _
    $region21: #{fwd.79} parent=1 // pred_fallthru
      _
    // Predicated region
    $region22: #{fwd.79} parent=1 // pred_check
      _
    $region23: #{fwd.79} parent=1 // pred_check_branch
      %325 = sbr.rel (0) target = $region25
    $region24: #{fwd.79} parent=1 // pred_region
      _
    $region25: #{fwd.79} parent=1 // pred_fallthru
      _
    %326 = vsyncpa [#allocation3], 1

// kernel: fwd.82
$region0: #{fwd.82}
  #allocation0 [shape = 'u32[]', space=smem, size = 0x4, offset = 0x4, fixed_abs, tag = 'smem constant byte address 0x4 - core index']
  #allocation1 [shape = 'u32[144,128]{1,0:T(1,128)}', space=vmem, size = 0x12000, scoped, tag = 'internal scratch']
  %s0 = inlined_call_operand.vmem [shape: bf16[8,128], index: 0, kind: input, shape index: {}]
  %s1 = inlined_call_operand.vmem [shape: bf16[128,128], index: 1, kind: input, shape index: {}]
  %s2 = inlined_call_operand.hbm [shape: f32[1,128], index: 2, kind: input, shape index: {}]
  %s3 = inlined_call_operand.vmem [shape: bf16[8,128], index: 3, kind: output, shape index: {}]
  %s4 = sld [smem:[#allocation0]]
  $region26: #{fwd.82} parent=0
    _
  %s6 = ssub.s32 1, %s4
  %s7 = scalar_select 0, %s6, %s4
  $region1: #{fwd.82} parent=0
    #allocation2 [shape = 'u8[512]{0}', space=vmem, size = 0x400, scoped, tag = 'input window, operand 2, single buffered']
    #allocation3 [shape = 's32[1]{0}', space=sflag, size = 0x4, scoped, tag = 'scoped memory for fwd.82']
    %8 = vsyncpa [#allocation3], 0
    // Predicated region
    $region2: #{fwd.82} parent=1 // pred_check
      _
    $region3: #{fwd.82} parent=1 // pred_check_branch
      %10 = sbr.rel (0) target = $region5
    $region4: #{fwd.82} parent=1 // pred_region
      _
    $region5: #{fwd.82} parent=1 // pred_fallthru
      _
    // Predicated region
    $region6: #{fwd.82} parent=1 // pred_check
      _
    $region7: #{fwd.82} parent=1 // pred_check_branch
      %12 = sbr.rel (0) target = $region9
    $region8: #{fwd.82} parent=1 // pred_region
      _
    $region9: #{fwd.82} parent=1 // pred_fallthru
      _
    // Predicated region
    $region10: #{fwd.82} parent=1 // pred_check
      _
    $region11: #{fwd.82} parent=1 // pred_check_branch
      %14 = sbr.rel (0) target = $region13
    $region12: #{fwd.82} parent=1 // pred_region
      %s16 = ssub.s32 16, 16
      %17 = vsyncadd [#allocation3], %s16
      %s19 = sshll.u32 [#allocation2], 4
      %s20 = int_to_ptr.vmem [resolvable:$true] %s19
      %22 = dma.hbm_to_vmem [thread:$0]  %s2, 16, %s20, [#allocation3]
    $region13: #{fwd.82} parent=1 // pred_fallthru
      _
    // Predicated region
    $region14: #{fwd.82} parent=1 // pred_check
      _
    $region15: #{fwd.82} parent=1 // pred_check_branch
      %24 = sbr.rel (0) target = $region17
    $region16: #{fwd.82} parent=1 // pred_region
      %25 = dma.done [#allocation3], 16
    $region17: #{fwd.82} parent=1 // pred_fallthru
      _
    %v27 = vld [vmem:[%s0] sm:$0xf]
    %v28 = vld [vmem:[%s1] sm:$0xf]
    %v29 = vld [vmem:[%s1 + $0x4] sm:$0xf]
    %v30 = vld [vmem:[%s1 + $0x8] sm:$0xf]
    %v31 = vld [vmem:[%s1 + $0xc] sm:$0xf]
    %v32 = vld [vmem:[%s1 + $0x10] sm:$0xf]
    %v33 = vld [vmem:[%s1 + $0x14] sm:$0xf]
    %v34 = vld [vmem:[%s1 + $0x18] sm:$0xf]
    %v35 = vld [vmem:[%s1 + $0x1c] sm:$0xf]
    %v36 = vld [vmem:[%s1 + $0x20] sm:$0xf]
    %v37 = vld [vmem:[%s1 + $0x24] sm:$0xf]
    %v38 = vld [vmem:[%s1 + $0x28] sm:$0xf]
    %v39 = vld [vmem:[%s1 + $0x2c] sm:$0xf]
    %v40 = vld [vmem:[%s1 + $0x30] sm:$0xf]
    %v41 = vld [vmem:[%s1 + $0x34] sm:$0xf]
    %v42 = vld [vmem:[%s1 + $0x38] sm:$0xf]
    %v43 = vld [vmem:[%s1 + $0x3c] sm:$0xf]
    %v44 = vld [vmem:[#allocation2] sm:$0x1]
    %v46 = vlaneseq
    %v47 = vshrl.u32 %v46, 7
    %v48 = vsub.s32 0, %v47
    %v49 = vrot.slane %v44, %v48
    %v67 = vunpack.c.l.b16 %v28
    %v68 = vunpack.c.l.b16 %v29
    %v69 = vunpack.c.l.b16 %v30
    %v70 = vunpack.c.l.b16 %v31
    %v71 = vunpack.c.l.b16 %v32
    %v72 = vunpack.c.l.b16 %v33
    %v73 = vunpack.c.l.b16 %v34
    %v74 = vunpack.c.l.b16 %v35
    %v75 = vunpack.c.l.b16 %v36
    %v76 = vunpack.c.l.b16 %v37
    %v77 = vunpack.c.l.b16 %v38
    %v78 = vunpack.c.l.b16 %v39
    %v79 = vunpack.c.l.b16 %v40
    %v80 = vunpack.c.l.b16 %v41
    %v81 = vunpack.c.l.b16 %v42
    %v82 = vunpack.c.l.b16 %v43
    %v83 = vpack.c.b16 %v68, %v67
    %v84 = vpack.c.b16 %v70, %v69
    %v85 = vpack.c.b16 %v72, %v71
    %v86 = vpack.c.b16 %v74, %v73
    %v87 = vpack.c.b16 %v76, %v75
    %v88 = vpack.c.b16 %v78, %v77
    %v89 = vpack.c.b16 %v80, %v79
    %v90 = vpack.c.b16 %v82, %v81
    %99 = vmatprep.subr.bf16.mxu0 0
    %100 = vmatpush1.bf16.msra.mxu0 %v83
    %101 = vmatprep.subr.bf16.mxu0 0
    %102 = vmatpush1.bf16.msra.mxu0 %v84
    %103 = vmatprep.subr.bf16.mxu0 0
    %104 = vmatpush1.bf16.msra.mxu0 %v85
    %105 = vmatprep.subr.bf16.mxu0 0
    %106 = vmatpush1.bf16.msra.mxu0 %v86
    %107 = vmatprep.subr.bf16.mxu0 0
    %108 = vmatpush1.bf16.msra.mxu0 %v87
    %109 = vmatprep.subr.bf16.mxu0 0
    %110 = vmatpush1.bf16.msra.mxu0 %v88
    %111 = vmatprep.subr.bf16.mxu0 0
    %112 = vmatpush1.bf16.msra.mxu0 %v89
    %113 = vmatprep.subr.bf16.mxu0 0
    %114 = vmatpush1.bf16.msra.mxu0 %v90
    %115 = vmatprep.subr.bf16.mxu0 0
    %116 = vmatpush1.bf16.msra.mxu0 0
    %117 = vmatprep.subr.bf16.mxu0 0
    %118 = vmatpush1.bf16.msra.mxu0 0
    %119 = vmatprep.subr.bf16.mxu0 0
    %120 = vmatpush1.bf16.msra.mxu0 0
    %121 = vmatprep.subr.bf16.mxu0 0
    %122 = vmatpush1.bf16.msra.mxu0 0
    %123 = vmatprep.subr.bf16.mxu0 0
    %124 = vmatpush1.bf16.msra.mxu0 0
    %125 = vmatprep.subr.bf16.mxu0 0
    %126 = vmatpush1.bf16.msra.mxu0 0
    %127 = vmatprep.subr.bf16.mxu0 0
    %128 = vmatpush1.bf16.msra.mxu0 0
    %129 = vmatprep.subr.bf16.mxu0 0
    %130 = vmatpush1.bf16.msra.mxu0 0
    %131 = vmatprep.mubr.bf16.mxu0 0
    %132 = vmatmul.mubr.bf16.gmra.mrb[0].mxu0 %v27
    %v133 = vpop.f32.mrb[0].mxu0
    %v134 = vadd.f32 %v49, %v133
    %v135 = vpop.f32.mrb[0].mxu0
    %v136 = vpop.f32.mrb[0].mxu0
    %v137 = vpop.f32.mrb[0].mxu0
    %138 = vdwg.mxu0
    %v139 = vmax.f32 %v134, 0.0
    %v140 = vpack.c.bf16 %v139, %v139
    %141 = vst [vmem:[%s3] sm:$0xf] %v140
    // Predicated region
    $region18: #{fwd.82} parent=1 // pred_check
      _
    $region19: #{fwd.82} parent=1 // pred_check_branch
      %143 = sbr.rel (0) target = $region21
    $region20: #{fwd.82} parent=1 // pred_region
      _
    $region21: #{fwd.82} parent=1 // pred_fallthru
      _
    // Predicated region
    $region22: #{fwd.82} parent=1 // pred_check
      _
    $region23: #{fwd.82} parent=1 // pred_check_branch
      %145 = sbr.rel (0) target = $region25
    $region24: #{fwd.82} parent=1 // pred_region
      _
    $region25: #{fwd.82} parent=1 // pred_fallthru
      _
    %146 = vsyncpa [#allocation3], 1

// kernel: fwd.100
$region0: #{fwd.100}
  #allocation0 [shape = 'u32[]', space=smem, size = 0x4, offset = 0x4, fixed_abs, tag = 'smem constant byte address 0x4 - core index']
  #allocation1 [shape = 'u32[144,128]{1,0:T(1,128)}', space=vmem, size = 0x12000, scoped, tag = 'internal scratch']
  %s0 = inlined_call_operand.vmem [shape: bf16[8,128], index: 0, kind: input, shape index: {}]
  %s1 = inlined_call_operand.vmem [shape: bf16[128,256], index: 1, kind: input, shape index: {}]
  %s2 = inlined_call_operand.vmem [shape: f32[1,256], index: 2, kind: input, shape index: {}]
  %s3 = inlined_call_operand.vmem [shape: bf16[8,256], index: 3, kind: input, shape index: {}]
  %s4 = inlined_call_operand.vmem [shape: bf16[8,256], index: 4, kind: output, shape index: {}]
  %s5 = sld [smem:[#allocation0]]
  $region26: #{fwd.100} parent=0
    _
  %s7 = ssub.s32 1, %s5
  %s8 = scalar_select 0, %s7, %s5
  // Predicated region
  $region2: #{fwd.100} parent=0 // pred_check
    _
  $region3: #{fwd.100} parent=0 // pred_check_branch
    %10 = sbr.rel (0) target = $region5
  $region4: #{fwd.100} parent=0 // pred_region
    _
  $region5: #{fwd.100} parent=0 // pred_fallthru
    _
  // Predicated region
  $region6: #{fwd.100} parent=0 // pred_check
    _
  $region7: #{fwd.100} parent=0 // pred_check_branch
    %12 = sbr.rel (0) target = $region9
  $region8: #{fwd.100} parent=0 // pred_region
    _
  $region9: #{fwd.100} parent=0 // pred_fallthru
    _
  // Predicated region
  $region10: #{fwd.100} parent=0 // pred_check
    _
  $region11: #{fwd.100} parent=0 // pred_check_branch
    %14 = sbr.rel (0) target = $region13
  $region12: #{fwd.100} parent=0 // pred_region
    _
  $region13: #{fwd.100} parent=0 // pred_fallthru
    _
  // Predicated region
  $region14: #{fwd.100} parent=0 // pred_check
    _
  $region15: #{fwd.100} parent=0 // pred_check_branch
    %16 = sbr.rel (0) target = $region17
  $region16: #{fwd.100} parent=0 // pred_region
    _
  $region17: #{fwd.100} parent=0 // pred_fallthru
    _
  %v18 = vld [vmem:[%s0] sm:$0xf]
  %v19 = vld [vmem:[%s1] sm:$0xff]
  %v20 = vld [vmem:[%s1 + $0x8] sm:$0xff]
  %v21 = vld [vmem:[%s1 + $0x10] sm:$0xff]
  %v22 = vld [vmem:[%s1 + $0x18] sm:$0xff]
  %v23 = vld [vmem:[%s1 + $0x20] sm:$0xff]
  %v24 = vld [vmem:[%s1 + $0x28] sm:$0xff]
  %v25 = vld [vmem:[%s1 + $0x30] sm:$0xff]
  %v26 = vld [vmem:[%s1 + $0x38] sm:$0xff]
  %v27 = vld [vmem:[%s1 + $0x40] sm:$0xff]
  %v28 = vld [vmem:[%s1 + $0x48] sm:$0xff]
  %v29 = vld [vmem:[%s1 + $0x50] sm:$0xff]
  %v30 = vld [vmem:[%s1 + $0x58] sm:$0xff]
  %v31 = vld [vmem:[%s1 + $0x60] sm:$0xff]
  %v32 = vld [vmem:[%s1 + $0x68] sm:$0xff]
  %v33 = vld [vmem:[%s1 + $0x70] sm:$0xff]
  %v34 = vld [vmem:[%s1 + $0x78] sm:$0xff]
  %v35 = vld [vmem:[%s2] sm:$0x3]
  %v37 = vlaneseq
  %v38 = vshrl.u32 %v37, 7
  %v39 = vsub.s32 0, %v38
  %v40 = vrot.slane %v35, %v39
  %v41 = vlaneseq
  %v42 = vshrl.u32 %v41, 7
  %v43 = vsub.s32 1, %v42
  %v44 = vrot.slane %v35, %v43
  %v63 = vunpack.c.l.b16 %v19
  %v64 = vunpack.c.h.b16 %v19
  %v65 = vunpack.c.l.b16 %v20
  %v66 = vunpack.c.h.b16 %v20
  %v67 = vunpack.c.l.b16 %v21
  %v68 = vunpack.c.h.b16 %v21
  %v69 = vunpack.c.l.b16 %v22
  %v70 = vunpack.c.h.b16 %v22
  %v71 = vunpack.c.l.b16 %v23
  %v72 = vunpack.c.h.b16 %v23
  %v73 = vunpack.c.l.b16 %v24
  %v74 = vunpack.c.h.b16 %v24
  %v75 = vunpack.c.l.b16 %v25
  %v76 = vunpack.c.h.b16 %v25
  %v77 = vunpack.c.l.b16 %v26
  %v78 = vunpack.c.h.b16 %v26
  %v79 = vunpack.c.l.b16 %v27
  %v80 = vunpack.c.h.b16 %v27
  %v81 = vunpack.c.l.b16 %v28
  %v82 = vunpack.c.h.b16 %v28
  %v83 = vunpack.c.l.b16 %v29
  %v84 = vunpack.c.h.b16 %v29
  %v85 = vunpack.c.l.b16 %v30
  %v86 = vunpack.c.h.b16 %v30
  %v87 = vunpack.c.l.b16 %v31
  %v88 = vunpack.c.h.b16 %v31
  %v89 = vunpack.c.l.b16 %v32
  %v90 = vunpack.c.h.b16 %v32
  %v91 = vunpack.c.l.b16 %v33
  %v92 = vunpack.c.h.b16 %v33
  %v93 = vunpack.c.l.b16 %v34
  %v94 = vunpack.c.h.b16 %v34
  %v95 = vpack.c.b16 %v65, %v63
  %v96 = vpack.c.b16 %v66, %v64
  %v97 = vpack.c.b16 %v69, %v67
  %v98 = vpack.c.b16 %v70, %v68
  %v99 = vpack.c.b16 %v73, %v71
  %v100 = vpack.c.b16 %v74, %v72
  %v101 = vpack.c.b16 %v77, %v75
  %v102 = vpack.c.b16 %v78, %v76
  %v103 = vpack.c.b16 %v81, %v79
  %v104 = vpack.c.b16 %v82, %v80
  %v105 = vpack.c.b16 %v85, %v83
  %v106 = vpack.c.b16 %v86, %v84
  %v107 = vpack.c.b16 %v89, %v87
  %v108 = vpack.c.b16 %v90, %v88
  %v109 = vpack.c.b16 %v93, %v91
  %v110 = vpack.c.b16 %v94, %v92
  %127 = vmatprep.subr.bf16.mxu0 %v96
  %128 = vmatpush1.bf16.msra.mxu0 %v95
  %129 = vmatprep.subr.bf16.mxu0 %v98
  %130 = vmatpush1.bf16.msra.mxu0 %v97
  %131 = vmatprep.subr.bf16.mxu0 %v100
  %132 = vmatpush1.bf16.msra.mxu0 %v99
  %133 = vmatprep.subr.bf16.mxu0 %v102
  %134 = vmatpush1.bf16.msra.mxu0 %v101
  %135 = vmatprep.subr.bf16.mxu0 %v104
  %136 = vmatpush1.bf16.msra.mxu0 %v103
  %137 = vmatprep.subr.bf16.mxu0 %v106
  %138 = vmatpush1.bf16.msra.mxu0 %v105
  %139 = vmatprep.subr.bf16.mxu0 %v108
  %140 = vmatpush1.bf16.msra.mxu0 %v107
  %141 = vmatprep.subr.bf16.mxu0 %v110
  %142 = vmatpush1.bf16.msra.mxu0 %v109
  %143 = vmatprep.subr.bf16.mxu0 0
  %144 = vmatpush1.bf16.msra.mxu0 0
  %145 = vmatprep.subr.bf16.mxu0 0
  %146 = vmatpush1.bf16.msra.mxu0 0
  %147 = vmatprep.subr.bf16.mxu0 0
  %148 = vmatpush1.bf16.msra.mxu0 0
  %149 = vmatprep.subr.bf16.mxu0 0
  %150 = vmatpush1.bf16.msra.mxu0 0
  %151 = vmatprep.subr.bf16.mxu0 0
  %152 = vmatpush1.bf16.msra.mxu0 0
  %153 = vmatprep.subr.bf16.mxu0 0
  %154 = vmatpush1.bf16.msra.mxu0 0
  %155 = vmatprep.subr.bf16.mxu0 0
  %156 = vmatpush1.bf16.msra.mxu0 0
  %157 = vmatprep.subr.bf16.mxu0 0
  %158 = vmatpush1.bf16.msra.mxu0 0
  %159 = vmatprep.mubr.bf16.mxu0 0
  %160 = vmatmul.mubr.bf16.gmra.mrb[0].mxu0 %v18
  %v161 = vpop.f32.mrb[0].mxu0
  %v162 = vadd.f32 %v40, %v161
  %v163 = vpop.f32.mrb[0].mxu0
  %v164 = vadd.f32 %v44, %v163
  %v165 = vpop.f32.mrb[0].mxu0
  %v166 = vpop.f32.mrb[0].mxu0
  %167 = vdwg.mxu0
  %v168 = vld [vmem:[%s3] sm:$0xff]
  %v169 = vunpack.c.l.bf16 %v168
  %v170 = vunpack.c.h.bf16 %v168
  %v171 = vadd.f32 %v162, %v169
  %v172 = vadd.f32 %v164, %v170
  %v173 = vmax.f32 %v171, 0.0
  %v174 = vmax.f32 %v172, 0.0
  %v175 = vpack.c.bf16 %v173, %v173
  %v176 = vpack.c.bf16 %v174, %v174
  %v179 = vunpack.c.l.b16 %v175
  %v180 = vunpack.c.l.b16 %v176
  %v181 = vpack.c.b16 %v180, %v179
  %183 = vst [vmem:[%s4] sm:$0xff] %v181
  // Predicated region
  $region18: #{fwd.100} parent=0 // pred_check
    _
  $region19: #{fwd.100} parent=0 // pred_check_branch
    %185 = sbr.rel (0) target = $region21
  $region20: #{fwd.100} parent=0 // pred_region
    _
  $region21: #{fwd.100} parent=0 // pred_fallthru
    _
  // Predicated region
  $region22: #{fwd.100} parent=0 // pred_check
    _
  $region23: #{fwd.100} parent=0 // pred_check_branch
    %187 = sbr.rel (0) target = $region25
  $region24: #{fwd.100} parent=0 // pred_region
    _
  $region25: #{fwd.100} parent=0 // pred_fallthru
    _

// kernel: fwd.99
$region0: #{fwd.99}
  #allocation0 [shape = 'u32[]', space=smem, size = 0x4, offset = 0x4, fixed_abs, tag = 'smem constant byte address 0x4 - core index']
  #allocation1 [shape = 'u32[144,128]{1,0:T(1,128)}', space=vmem, size = 0x12000, scoped, tag = 'internal scratch']
  %s0 = inlined_call_operand.vmem [shape: bf16[8,128], index: 0, kind: input, shape index: {}]
  %s1 = inlined_call_operand.vmem [shape: bf16[128,256], index: 1, kind: input, shape index: {}]
  %s2 = inlined_call_operand.hbm [shape: f32[1,256], index: 2, kind: input, shape index: {}]
  %s3 = inlined_call_operand.vmem [shape: bf16[8,256], index: 3, kind: output, shape index: {}]
  %s4 = sld [smem:[#allocation0]]
  $region26: #{fwd.99} parent=0
    _
  %s6 = ssub.s32 1, %s4
  %s7 = scalar_select 0, %s6, %s4
  $region1: #{fwd.99} parent=0
    #allocation2 [shape = 'u8[1024]{0}', space=vmem, size = 0x400, scoped, tag = 'input window, operand 2, single buffered']
    #allocation3 [shape = 's32[1]{0}', space=sflag, size = 0x4, scoped, tag = 'scoped memory for fwd.99']
    %8 = vsyncpa [#allocation3], 0
    // Predicated region
    $region2: #{fwd.99} parent=1 // pred_check
      _
    $region3: #{fwd.99} parent=1 // pred_check_branch
      %10 = sbr.rel (0) target = $region5
    $region4: #{fwd.99} parent=1 // pred_region
      _
    $region5: #{fwd.99} parent=1 // pred_fallthru
      _
    // Predicated region
    $region6: #{fwd.99} parent=1 // pred_check
      _
    $region7: #{fwd.99} parent=1 // pred_check_branch
      %12 = sbr.rel (0) target = $region9
    $region8: #{fwd.99} parent=1 // pred_region
      _
    $region9: #{fwd.99} parent=1 // pred_fallthru
      _
    // Predicated region
    $region10: #{fwd.99} parent=1 // pred_check
      _
    $region11: #{fwd.99} parent=1 // pred_check_branch
      %14 = sbr.rel (0) target = $region13
    $region12: #{fwd.99} parent=1 // pred_region
      %s16 = ssub.s32 32, 32
      %17 = vsyncadd [#allocation3], %s16
      %s19 = sshll.u32 [#allocation2], 4
      %s20 = int_to_ptr.vmem [resolvable:$true] %s19
      %22 = dma.hbm_to_vmem [thread:$0]  %s2, 32, %s20, [#allocation3]
    $region13: #{fwd.99} parent=1 // pred_fallthru
      _
    // Predicated region
    $region14: #{fwd.99} parent=1 // pred_check
      _
    $region15: #{fwd.99} parent=1 // pred_check_branch
      %24 = sbr.rel (0) target = $region17
    $region16: #{fwd.99} parent=1 // pred_region
      %25 = dma.done [#allocation3], 32
    $region17: #{fwd.99} parent=1 // pred_fallthru
      _
    %v27 = vld [vmem:[%s0] sm:$0xf]
    %v28 = vld [vmem:[%s1] sm:$0xff]
    %v29 = vld [vmem:[%s1 + $0x8] sm:$0xff]
    %v30 = vld [vmem:[%s1 + $0x10] sm:$0xff]
    %v31 = vld [vmem:[%s1 + $0x18] sm:$0xff]
    %v32 = vld [vmem:[%s1 + $0x20] sm:$0xff]
    %v33 = vld [vmem:[%s1 + $0x28] sm:$0xff]
    %v34 = vld [vmem:[%s1 + $0x30] sm:$0xff]
    %v35 = vld [vmem:[%s1 + $0x38] sm:$0xff]
    %v36 = vld [vmem:[%s1 + $0x40] sm:$0xff]
    %v37 = vld [vmem:[%s1 + $0x48] sm:$0xff]
    %v38 = vld [vmem:[%s1 + $0x50] sm:$0xff]
    %v39 = vld [vmem:[%s1 + $0x58] sm:$0xff]
    %v40 = vld [vmem:[%s1 + $0x60] sm:$0xff]
    %v41 = vld [vmem:[%s1 + $0x68] sm:$0xff]
    %v42 = vld [vmem:[%s1 + $0x70] sm:$0xff]
    %v43 = vld [vmem:[%s1 + $0x78] sm:$0xff]
    %v44 = vld [vmem:[#allocation2] sm:$0x3]
    %v46 = vlaneseq
    %v47 = vshrl.u32 %v46, 7
    %v48 = vsub.s32 0, %v47
    %v49 = vrot.slane %v44, %v48
    %v50 = vlaneseq
    %v51 = vshrl.u32 %v50, 7
    %v52 = vsub.s32 1, %v51
    %v53 = vrot.slane %v44, %v52
    %v72 = vunpack.c.l.b16 %v28
    %v73 = vunpack.c.h.b16 %v28
    %v74 = vunpack.c.l.b16 %v29
    %v75 = vunpack.c.h.b16 %v29
    %v76 = vunpack.c.l.b16 %v30
    %v77 = vunpack.c.h.b16 %v30
    %v78 = vunpack.c.l.b16 %v31
    %v79 = vunpack.c.h.b16 %v31
    %v80 = vunpack.c.l.b16 %v32
    %v81 = vunpack.c.h.b16 %v32
    %v82 = vunpack.c.l.b16 %v33
    %v83 = vunpack.c.h.b16 %v33
    %v84 = vunpack.c.l.b16 %v34
    %v85 = vunpack.c.h.b16 %v34
    %v86 = vunpack.c.l.b16 %v35
    %v87 = vunpack.c.h.b16 %v35
    %v88 = vunpack.c.l.b16 %v36
    %v89 = vunpack.c.h.b16 %v36
    %v90 = vunpack.c.l.b16 %v37
    %v91 = vunpack.c.h.b16 %v37
    %v92 = vunpack.c.l.b16 %v38
    %v93 = vunpack.c.h.b16 %v38
    %v94 = vunpack.c.l.b16 %v39
    %v95 = vunpack.c.h.b16 %v39
    %v96 = vunpack.c.l.b16 %v40
    %v97 = vunpack.c.h.b16 %v40
    %v98 = vunpack.c.l.b16 %v41
    %v99 = vunpack.c.h.b16 %v41
    %v100 = vunpack.c.l.b16 %v42
    %v101 = vunpack.c.h.b16 %v42
    %v102 = vunpack.c.l.b16 %v43
    %v103 = vunpack.c.h.b16 %v43
    %v104 = vpack.c.b16 %v74, %v72
    %v105 = vpack.c.b16 %v75, %v73
    %v106 = vpack.c.b16 %v78, %v76
    %v107 = vpack.c.b16 %v79, %v77
    %v108 = vpack.c.b16 %v82, %v80
    %v109 = vpack.c.b16 %v83, %v81
    %v110 = vpack.c.b16 %v86, %v84
    %v111 = vpack.c.b16 %v87, %v85
    %v112 = vpack.c.b16 %v90, %v88
    %v113 = vpack.c.b16 %v91, %v89
    %v114 = vpack.c.b16 %v94, %v92
    %v115 = vpack.c.b16 %v95, %v93
    %v116 = vpack.c.b16 %v98, %v96
    %v117 = vpack.c.b16 %v99, %v97
    %v118 = vpack.c.b16 %v102, %v100
    %v119 = vpack.c.b16 %v103, %v101
    %136 = vmatprep.subr.bf16.mxu0 %v105
    %137 = vmatpush1.bf16.msra.mxu0 %v104
    %138 = vmatprep.subr.bf16.mxu0 %v107
    %139 = vmatpush1.bf16.msra.mxu0 %v106
    %140 = vmatprep.subr.bf16.mxu0 %v109
    %141 = vmatpush1.bf16.msra.mxu0 %v108
    %142 = vmatprep.subr.bf16.mxu0 %v111
    %143 = vmatpush1.bf16.msra.mxu0 %v110
    %144 = vmatprep.subr.bf16.mxu0 %v113
    %145 = vmatpush1.bf16.msra.mxu0 %v112
    %146 = vmatprep.subr.bf16.mxu0 %v115
    %147 = vmatpush1.bf16.msra.mxu0 %v114
    %148 = vmatprep.subr.bf16.mxu0 %v117
    %149 = vmatpush1.bf16.msra.mxu0 %v116
    %150 = vmatprep.subr.bf16.mxu0 %v119
    %151 = vmatpush1.bf16.msra.mxu0 %v118
    %152 = vmatprep.subr.bf16.mxu0 0
    %153 = vmatpush1.bf16.msra.mxu0 0
    %154 = vmatprep.subr.bf16.mxu0 0
    %155 = vmatpush1.bf16.msra.mxu0 0
    %156 = vmatprep.subr.bf16.mxu0 0
    %157 = vmatpush1.bf16.msra.mxu0 0
    %158 = vmatprep.subr.bf16.mxu0 0
    %159 = vmatpush1.bf16.msra.mxu0 0
    %160 = vmatprep.subr.bf16.mxu0 0
    %161 = vmatpush1.bf16.msra.mxu0 0
    %162 = vmatprep.subr.bf16.mxu0 0
    %163 = vmatpush1.bf16.msra.mxu0 0
    %164 = vmatprep.subr.bf16.mxu0 0
    %165 = vmatpush1.bf16.msra.mxu0 0
    %166 = vmatprep.subr.bf16.mxu0 0
    %167 = vmatpush1.bf16.msra.mxu0 0
    %168 = vmatprep.mubr.bf16.mxu0 0
    %169 = vmatmul.mubr.bf16.gmra.mrb[0].mxu0 %v27
    %v170 = vpop.f32.mrb[0].mxu0
    %v171 = vadd.f32 %v49, %v170
    %v172 = vpop.f32.mrb[0].mxu0
    %v173 = vadd.f32 %v53, %v172
    %v174 = vpop.f32.mrb[0].mxu0
    %v175 = vpop.f32.mrb[0].mxu0
    %176 = vdwg.mxu0
    %v177 = vpack.c.bf16 %v171, %v171
    %v178 = vpack.c.bf16 %v173, %v173
    %v181 = vunpack.c.l.b16 %v177
    %v182 = vunpack.c.l.b16 %v178
    %v183 = vpack.c.b16 %v182, %v181
    %185 = vst [vmem:[%s3] sm:$0xff] %v183
    // Predicated region
    $region18: #{fwd.99} parent=1 // pred_check
      _
    $region19: #{fwd.99} parent=1 // pred_check_branch
      %187 = sbr.rel (0) target = $region21
    $region20: #{fwd.99} parent=1 // pred_region
      _
    $region21: #{fwd.99} parent=1 // pred_fallthru
      _
    // Predicated region
    $region22: #{fwd.99} parent=1 // pred_check
      _
    $region23: #{fwd.99} parent=1 // pred_check_branch
      %189 = sbr.rel (0) target = $region25
    $region24: #{fwd.99} parent=1 // pred_region
      _
    $region25: #{fwd.99} parent=1 // pred_fallthru
      _
    %190 = vsyncpa [#allocation3], 1

// kernel: fwd.101
$region0: #{fwd.101}
  #allocation0 [shape = 'u32[]', space=smem, size = 0x4, offset = 0x4, fixed_abs, tag = 'smem constant byte address 0x4 - core index']
  #allocation1 [shape = 'u32[144,128]{1,0:T(1,128)}', space=vmem, size = 0x12000, scoped, tag = 'internal scratch']
  %s0 = inlined_call_operand.vmem [shape: bf16[8,256], index: 0, kind: input, shape index: {}]
  %s1 = inlined_call_operand.vmem [shape: bf16[256,128], index: 1, kind: input, shape index: {}]
  %s2 = inlined_call_operand.hbm [shape: f32[1,128], index: 2, kind: input, shape index: {}]
  %s3 = inlined_call_operand.vmem [shape: bf16[8,128], index: 3, kind: output, shape index: {}]
  %s4 = sld [smem:[#allocation0]]
  $region26: #{fwd.101} parent=0
    _
  %s6 = ssub.s32 1, %s4
  %s7 = scalar_select 0, %s6, %s4
  $region1: #{fwd.101} parent=0
    #allocation2 [shape = 'u8[512]{0}', space=vmem, size = 0x400, scoped, tag = 'input window, operand 2, single buffered']
    #allocation3 [shape = 's32[1]{0}', space=sflag, size = 0x4, scoped, tag = 'scoped memory for fwd.101']
    %8 = vsyncpa [#allocation3], 0
    // Predicated region
    $region2: #{fwd.101} parent=1 // pred_check
      _
    $region3: #{fwd.101} parent=1 // pred_check_branch
      %10 = sbr.rel (0) target = $region5
    $region4: #{fwd.101} parent=1 // pred_region
      _
    $region5: #{fwd.101} parent=1 // pred_fallthru
      _
    // Predicated region
    $region6: #{fwd.101} parent=1 // pred_check
      _
    $region7: #{fwd.101} parent=1 // pred_check_branch
      %12 = sbr.rel (0) target = $region9
    $region8: #{fwd.101} parent=1 // pred_region
      _
    $region9: #{fwd.101} parent=1 // pred_fallthru
      _
    // Predicated region
    $region10: #{fwd.101} parent=1 // pred_check
      _
    $region11: #{fwd.101} parent=1 // pred_check_branch
      %14 = sbr.rel (0) target = $region13
    $region12: #{fwd.101} parent=1 // pred_region
      %s16 = ssub.s32 16, 16
      %17 = vsyncadd [#allocation3], %s16
      %s19 = sshll.u32 [#allocation2], 4
      %s20 = int_to_ptr.vmem [resolvable:$true] %s19
      %22 = dma.hbm_to_vmem [thread:$0]  %s2, 16, %s20, [#allocation3]
    $region13: #{fwd.101} parent=1 // pred_fallthru
      _
    // Predicated region
    $region14: #{fwd.101} parent=1 // pred_check
      _
    $region15: #{fwd.101} parent=1 // pred_check_branch
      %24 = sbr.rel (0) target = $region17
    $region16: #{fwd.101} parent=1 // pred_region
      %25 = dma.done [#allocation3], 16
    $region17: #{fwd.101} parent=1 // pred_fallthru
      _
    %v27 = vld [vmem:[%s0] sm:$0xff]
    %v28 = vld [vmem:[%s1] sm:$0xf]
    %v29 = vld [vmem:[%s1 + $0x4] sm:$0xf]
    %v30 = vld [vmem:[%s1 + $0x8] sm:$0xf]
    %v31 = vld [vmem:[%s1 + $0xc] sm:$0xf]
    %v32 = vld [vmem:[%s1 + $0x10] sm:$0xf]
    %v33 = vld [vmem:[%s1 + $0x14] sm:$0xf]
    %v34 = vld [vmem:[%s1 + $0x18] sm:$0xf]
    %v35 = vld [vmem:[%s1 + $0x1c] sm:$0xf]
    %v36 = vld [vmem:[%s1 + $0x20] sm:$0xf]
    %v37 = vld [vmem:[%s1 + $0x24] sm:$0xf]
    %v38 = vld [vmem:[%s1 + $0x28] sm:$0xf]
    %v39 = vld [vmem:[%s1 + $0x2c] sm:$0xf]
    %v40 = vld [vmem:[%s1 + $0x30] sm:$0xf]
    %v41 = vld [vmem:[%s1 + $0x34] sm:$0xf]
    %v42 = vld [vmem:[%s1 + $0x38] sm:$0xf]
    %v43 = vld [vmem:[%s1 + $0x3c] sm:$0xf]
    %v44 = vld [vmem:[%s1 + $0x40] sm:$0xf]
    %v45 = vld [vmem:[%s1 + $0x44] sm:$0xf]
    %v46 = vld [vmem:[%s1 + $0x48] sm:$0xf]
    %v47 = vld [vmem:[%s1 + $0x4c] sm:$0xf]
    %v48 = vld [vmem:[%s1 + $0x50] sm:$0xf]
    %v49 = vld [vmem:[%s1 + $0x54] sm:$0xf]
    %v50 = vld [vmem:[%s1 + $0x58] sm:$0xf]
    %v51 = vld [vmem:[%s1 + $0x5c] sm:$0xf]
    %v52 = vld [vmem:[%s1 + $0x60] sm:$0xf]
    %v53 = vld [vmem:[%s1 + $0x64] sm:$0xf]
    %v54 = vld [vmem:[%s1 + $0x68] sm:$0xf]
    %v55 = vld [vmem:[%s1 + $0x6c] sm:$0xf]
    %v56 = vld [vmem:[%s1 + $0x70] sm:$0xf]
    %v57 = vld [vmem:[%s1 + $0x74] sm:$0xf]
    %v58 = vld [vmem:[%s1 + $0x78] sm:$0xf]
    %v59 = vld [vmem:[%s1 + $0x7c] sm:$0xf]
    %v60 = vld [vmem:[#allocation2] sm:$0x1]
    %v62 = vlaneseq
    %v63 = vshrl.u32 %v62, 7
    %v64 = vsub.s32 0, %v63
    %v65 = vrot.slane %v60, %v64
    %v68 = vunpack.c.l.b16 %v27
    %v69 = vunpack.c.h.b16 %v27
    %v70 = vpack.c.b16 %v68, %v68
    %v71 = vpack.c.b16 %v69, %v69
    %v106 = vunpack.c.l.b16 %v28
    %v107 = vunpack.c.l.b16 %v29
    %v108 = vunpack.c.l.b16 %v30
    %v109 = vunpack.c.l.b16 %v31
    %v110 = vunpack.c.l.b16 %v32
    %v111 = vunpack.c.l.b16 %v33
    %v112 = vunpack.c.l.b16 %v34
    %v113 = vunpack.c.l.b16 %v35
    %v114 = vunpack.c.l.b16 %v36
    %v115 = vunpack.c.l.b16 %v37
    %v116 = vunpack.c.l.b16 %v38
    %v117 = vunpack.c.l.b16 %v39
    %v118 = vunpack.c.l.b16 %v40
    %v119 = vunpack.c.l.b16 %v41
    %v120 = vunpack.c.l.b16 %v42
    %v121 = vunpack.c.l.b16 %v43
    %v122 = vunpack.c.l.b16 %v44
    %v123 = vunpack.c.l.b16 %v45
    %v124 = vunpack.c.l.b16 %v46
    %v125 = vunpack.c.l.b16 %v47
    %v126 = vunpack.c.l.b16 %v48
    %v127 = vunpack.c.l.b16 %v49
    %v128 = vunpack.c.l.b16 %v50
    %v129 = vunpack.c.l.b16 %v51
    %v130 = vunpack.c.l.b16 %v52
    %v131 = vunpack.c.l.b16 %v53
    %v132 = vunpack.c.l.b16 %v54
    %v133 = vunpack.c.l.b16 %v55
    %v134 = vunpack.c.l.b16 %v56
    %v135 = vunpack.c.l.b16 %v57
    %v136 = vunpack.c.l.b16 %v58
    %v137 = vunpack.c.l.b16 %v59
    %v138 = vpack.c.b16 %v107, %v106
    %v139 = vpack.c.b16 %v109, %v108
    %v140 = vpack.c.b16 %v111, %v110
    %v141 = vpack.c.b16 %v113, %v112
    %v142 = vpack.c.b16 %v115, %v114
    %v143 = vpack.c.b16 %v117, %v116
    %v144 = vpack.c.b16 %v119, %v118
    %v145 = vpack.c.b16 %v121, %v120
    %v146 = vpack.c.b16 %v123, %v122
    %v147 = vpack.c.b16 %v125, %v124
    %v148 = vpack.c.b16 %v127, %v126
    %v149 = vpack.c.b16 %v129, %v128
    %v150 = vpack.c.b16 %v131, %v130
    %v151 = vpack.c.b16 %v133, %v132
    %v152 = vpack.c.b16 %v135, %v134
    %v153 = vpack.c.b16 %v137, %v136
    %170 = vmatprep.subr.bf16.mxu0 0
    %171 = vmatpush1.bf16.msra.mxu0 %v138
    %172 = vmatprep.subr.bf16.mxu0 0
    %173 = vmatpush1.bf16.msra.mxu0 %v139
    %174 = vmatprep.subr.bf16.mxu0 0
    %175 = vmatpush1.bf16.msra.mxu0 %v140
    %176 = vmatprep.subr.bf16.mxu0 0
    %177 = vmatpush1.bf16.msra.mxu0 %v141
    %178 = vmatprep.subr.bf16.mxu0 0
    %179 = vmatpush1.bf16.msra.mxu0 %v142
    %180 = vmatprep.subr.bf16.mxu0 0
    %181 = vmatpush1.bf16.msra.mxu0 %v143
    %182 = vmatprep.subr.bf16.mxu0 0
    %183 = vmatpush1.bf16.msra.mxu0 %v144
    %184 = vmatprep.subr.bf16.mxu0 0
    %185 = vmatpush1.bf16.msra.mxu0 %v145
    %186 = vmatprep.subr.bf16.mxu0 0
    %187 = vmatpush1.bf16.msra.mxu0 %v146
    %188 = vmatprep.subr.bf16.mxu0 0
    %189 = vmatpush1.bf16.msra.mxu0 %v147
    %190 = vmatprep.subr.bf16.mxu0 0
    %191 = vmatpush1.bf16.msra.mxu0 %v148
    %192 = vmatprep.subr.bf16.mxu0 0
    %193 = vmatpush1.bf16.msra.mxu0 %v149
    %194 = vmatprep.subr.bf16.mxu0 0
    %195 = vmatpush1.bf16.msra.mxu0 %v150
    %196 = vmatprep.subr.bf16.mxu0 0
    %197 = vmatpush1.bf16.msra.mxu0 %v151
    %198 = vmatprep.subr.bf16.mxu0 0
    %199 = vmatpush1.bf16.msra.mxu0 %v152
    %200 = vmatprep.subr.bf16.mxu0 0
    %201 = vmatpush1.bf16.msra.mxu0 %v153
    %202 = vmatprep.mubr.bf16.mxu0 %v71
    %203 = vmatmul.mubr.bf16.gmra.mrb[0].mxu0 %v70
    %v204 = vpop.f32.mrb[0].mxu0
    %v205 = vadd.f32 %v65, %v204
    %v206 = vpop.f32.mrb[0].mxu0
    %v207 = vpop.f32.mrb[0].mxu0
    %v208 = vpop.f32.mrb[0].mxu0
    %209 = vdwg.mxu0
    %v210 = vmax.f32 %v205, 0.0
    %v211 = vpack.c.bf16 %v210, %v210
    %212 = vst [vmem:[%s3] sm:$0xf] %v211
    // Predicated region
    $region18: #{fwd.101} parent=1 // pred_check
      _
    $region19: #{fwd.101} parent=1 // pred_check_branch
      %214 = sbr.rel (0) target = $region21
    $region20: #{fwd.101} parent=1 // pred_region
      _
    $region21: #{fwd.101} parent=1 // pred_fallthru
      _
    // Predicated region
    $region22: #{fwd.101} parent=1 // pred_check
      _
    $region23: #{fwd.101} parent=1 // pred_check_branch
      %216 = sbr.rel (0) target = $region25
    $region24: #{fwd.101} parent=1 // pred_region
      _
    $region25: #{fwd.101} parent=1 // pred_fallthru
      _
    %217 = vsyncpa [#allocation3], 1

// kernel: fwd.98
$region0: #{fwd.98}
  #allocation0 [shape = 'u32[]', space=smem, size = 0x4, offset = 0x4, fixed_abs, tag = 'smem constant byte address 0x4 - core index']
  #allocation1 [shape = 'u32[144,128]{1,0:T(1,128)}', space=vmem, size = 0x12000, scoped, tag = 'internal scratch']
  %s0 = inlined_call_operand.vmem [shape: bf16[8,640], index: 0, kind: input, shape index: {}]
  %s1 = inlined_call_operand.vmem [shape: bf16[640,128], index: 1, kind: input, shape index: {}]
  %s2 = inlined_call_operand.hbm [shape: f32[1,128], index: 2, kind: input, shape index: {}]
  %s3 = inlined_call_operand.vmem [shape: bf16[8,128], index: 3, kind: output, shape index: {}]
  %s4 = sld [smem:[#allocation0]]
  $region26: #{fwd.98} parent=0
    _
  %s6 = ssub.s32 1, %s4
  %s7 = scalar_select 0, %s6, %s4
  $region1: #{fwd.98} parent=0
    #allocation2 [shape = 'u8[512]{0}', space=vmem, size = 0x400, scoped, tag = 'input window, operand 2, single buffered']
    #allocation3 [shape = 's32[1]{0}', space=sflag, size = 0x4, scoped, tag = 'scoped memory for fwd.98']
    %8 = vsyncpa [#allocation3], 0
    // Predicated region
    $region2: #{fwd.98} parent=1 // pred_check
      _
    $region3: #{fwd.98} parent=1 // pred_check_branch
      %10 = sbr.rel (0) target = $region5
    $region4: #{fwd.98} parent=1 // pred_region
      _
    $region5: #{fwd.98} parent=1 // pred_fallthru
      _
    // Predicated region
    $region6: #{fwd.98} parent=1 // pred_check
      _
    $region7: #{fwd.98} parent=1 // pred_check_branch
      %12 = sbr.rel (0) target = $region9
    $region8: #{fwd.98} parent=1 // pred_region
      _
    $region9: #{fwd.98} parent=1 // pred_fallthru
      _
    // Predicated region
    $region10: #{fwd.98} parent=1 // pred_check
      _
    $region11: #{fwd.98} parent=1 // pred_check_branch
      %14 = sbr.rel (0) target = $region13
    $region12: #{fwd.98} parent=1 // pred_region
      %s16 = ssub.s32 16, 16
      %17 = vsyncadd [#allocation3], %s16
      %s19 = sshll.u32 [#allocation2], 4
      %s20 = int_to_ptr.vmem [resolvable:$true] %s19
      %22 = dma.hbm_to_vmem [thread:$0]  %s2, 16, %s20, [#allocation3]
    $region13: #{fwd.98} parent=1 // pred_fallthru
      _
    // Predicated region
    $region14: #{fwd.98} parent=1 // pred_check
      _
    $region15: #{fwd.98} parent=1 // pred_check_branch
      %24 = sbr.rel (0) target = $region17
    $region16: #{fwd.98} parent=1 // pred_region
      %25 = dma.done [#allocation3], 16
    $region17: #{fwd.98} parent=1 // pred_fallthru
      _
    %v27 = vld [vmem:[%s0] sm:$0xff]
    %v28 = vld [vmem:[%s0 + $0x8] sm:$0xff]
    %v29 = vld [vmem:[%s0 + $0x10] sm:$0xf]
    %v30 = vld [vmem:[%s1] sm:$0xf]
    %v31 = vld [vmem:[%s1 + $0x4] sm:$0xf]
    %v32 = vld [vmem:[%s1 + $0x8] sm:$0xf]
    %v33 = vld [vmem:[%s1 + $0xc] sm:$0xf]
    %v34 = vld [vmem:[%s1 + $0x10] sm:$0xf]
    %v35 = vld [vmem:[%s1 + $0x14] sm:$0xf]
    %v36 = vld [vmem:[%s1 + $0x18] sm:$0xf]
    %v37 = vld [vmem:[%s1 + $0x1c] sm:$0xf]
    %v38 = vld [vmem:[%s1 + $0x20] sm:$0xf]
    %v39 = vld [vmem:[%s1 + $0x24] sm:$0xf]
    %v40 = vld [vmem:[%s1 + $0x28] sm:$0xf]
    %v41 = vld [vmem:[%s1 + $0x2c] sm:$0xf]
    %v42 = vld [vmem:[%s1 + $0x30] sm:$0xf]
    %v43 = vld [vmem:[%s1 + $0x34] sm:$0xf]
    %v44 = vld [vmem:[%s1 + $0x38] sm:$0xf]
    %v45 = vld [vmem:[%s1 + $0x3c] sm:$0xf]
    %v46 = vld [vmem:[%s1 + $0x40] sm:$0xf]
    %v47 = vld [vmem:[%s1 + $0x44] sm:$0xf]
    %v48 = vld [vmem:[%s1 + $0x48] sm:$0xf]
    %v49 = vld [vmem:[%s1 + $0x4c] sm:$0xf]
    %v50 = vld [vmem:[%s1 + $0x50] sm:$0xf]
    %v51 = vld [vmem:[%s1 + $0x54] sm:$0xf]
    %v52 = vld [vmem:[%s1 + $0x58] sm:$0xf]
    %v53 = vld [vmem:[%s1 + $0x5c] sm:$0xf]
    %v54 = vld [vmem:[%s1 + $0x60] sm:$0xf]
    %v55 = vld [vmem:[%s1 + $0x64] sm:$0xf]
    %v56 = vld [vmem:[%s1 + $0x68] sm:$0xf]
    %v57 = vld [vmem:[%s1 + $0x6c] sm:$0xf]
    %v58 = vld [vmem:[%s1 + $0x70] sm:$0xf]
    %v59 = vld [vmem:[%s1 + $0x74] sm:$0xf]
    %v60 = vld [vmem:[%s1 + $0x78] sm:$0xf]
    %v61 = vld [vmem:[%s1 + $0x7c] sm:$0xf]
    %v62 = vld [vmem:[%s1 + $0x80] sm:$0xf]
    %v63 = vld [vmem:[%s1 + $0x84] sm:$0xf]
    %v64 = vld [vmem:[%s1 + $0x88] sm:$0xf]
    %v65 = vld [vmem:[%s1 + $0x8c] sm:$0xf]
    %v66 = vld [vmem:[%s1 + $0x90] sm:$0xf]
    %v67 = vld [vmem:[%s1 + $0x94] sm:$0xf]
    %v68 = vld [vmem:[%s1 + $0x98] sm:$0xf]
    %v69 = vld [vmem:[%s1 + $0x9c] sm:$0xf]
    %v70 = vld [vmem:[%s1 + $0xa0] sm:$0xf]
    %v71 = vld [vmem:[%s1 + $0xa4] sm:$0xf]
    %v72 = vld [vmem:[%s1 + $0xa8] sm:$0xf]
    %v73 = vld [vmem:[%s1 + $0xac] sm:$0xf]
    %v74 = vld [vmem:[%s1 + $0xb0] sm:$0xf]
    %v75 = vld [vmem:[%s1 + $0xb4] sm:$0xf]
    %v76 = vld [vmem:[%s1 + $0xb8] sm:$0xf]
    %v77 = vld [vmem:[%s1 + $0xbc] sm:$0xf]
    %v78 = vld [vmem:[%s1 + $0xc0] sm:$0xf]
    %v79 = vld [vmem:[%s1 + $0xc4] sm:$0xf]
    %v80 = vld [vmem:[%s1 + $0xc8] sm:$0xf]
    %v81 = vld [vmem:[%s1 + $0xcc] sm:$0xf]
    %v82 = vld [vmem:[%s1 + $0xd0] sm:$0xf]
    %v83 = vld [vmem:[%s1 + $0xd4] sm:$0xf]
    %v84 = vld [vmem:[%s1 + $0xd8] sm:$0xf]
    %v85 = vld [vmem:[%s1 + $0xdc] sm:$0xf]
    %v86 = vld [vmem:[%s1 + $0xe0] sm:$0xf]
    %v87 = vld [vmem:[%s1 + $0xe4] sm:$0xf]
    %v88 = vld [vmem:[%s1 + $0xe8] sm:$0xf]
    %v89 = vld [vmem:[%s1 + $0xec] sm:$0xf]
    %v90 = vld [vmem:[%s1 + $0xf0] sm:$0xf]
    %v91 = vld [vmem:[%s1 + $0xf4] sm:$0xf]
    %v92 = vld [vmem:[%s1 + $0xf8] sm:$0xf]
    %v93 = vld [vmem:[%s1 + $0xfc] sm:$0xf]
    %v94 = vld [vmem:[%s1 + $0x100] sm:$0xf]
    %v95 = vld [vmem:[%s1 + $0x104] sm:$0xf]
    %v96 = vld [vmem:[%s1 + $0x108] sm:$0xf]
    %v97 = vld [vmem:[%s1 + $0x10c] sm:$0xf]
    %v98 = vld [vmem:[%s1 + $0x110] sm:$0xf]
    %v99 = vld [vmem:[%s1 + $0x114] sm:$0xf]
    %v100 = vld [vmem:[%s1 + $0x118] sm:$0xf]
    %v101 = vld [vmem:[%s1 + $0x11c] sm:$0xf]
    %v102 = vld [vmem:[%s1 + $0x120] sm:$0xf]
    %v103 = vld [vmem:[%s1 + $0x124] sm:$0xf]
    %v104 = vld [vmem:[%s1 + $0x128] sm:$0xf]
    %v105 = vld [vmem:[%s1 + $0x12c] sm:$0xf]
    %v106 = vld [vmem:[%s1 + $0x130] sm:$0xf]
    %v107 = vld [vmem:[%s1 + $0x134] sm:$0xf]
    %v108 = vld [vmem:[%s1 + $0x138] sm:$0xf]
    %v109 = vld [vmem:[%s1 + $0x13c] sm:$0xf]
    %v110 = vld [vmem:[#allocation2] sm:$0x1]
    %v112 = vlaneseq
    %v113 = vshrl.u32 %v112, 7
    %v114 = vsub.s32 0, %v113
    %v115 = vrot.slane %v110, %v114
    %v120 = vunpack.c.l.b16 %v27
    %v121 = vunpack.c.h.b16 %v27
    %v122 = vunpack.c.l.b16 %v28
    %v123 = vunpack.c.h.b16 %v28
    %v124 = vunpack.c.l.b16 %v29
    %v125 = vpack.c.b16 %v120, %v120
    %v126 = vpack.c.b16 %v121, %v121
    %v127 = vpack.c.b16 %v122, %v122
    %v128 = vpack.c.b16 %v123, %v123
    %v129 = vpack.c.b16 %v124, %v124
    %v215 = vunpack.c.l.b16 %v30
    %v216 = vunpack.c.l.b16 %v31
    %v217 = vunpack.c.l.b16 %v32
    %v218 = vunpack.c.l.b16 %v33
    %v219 = vunpack.c.l.b16 %v34
    %v220 = vunpack.c.l.b16 %v35
    %v221 = vunpack.c.l.b16 %v36
    %v222 = vunpack.c.l.b16 %v37
    %v223 = vunpack.c.l.b16 %v38
    %v224 = vunpack.c.l.b16 %v39
    %v225 = vunpack.c.l.b16 %v40
    %v226 = vunpack.c.l.b16 %v41
    %v227 = vunpack.c.l.b16 %v42
    %v228 = vunpack.c.l.b16 %v43
    %v229 = vunpack.c.l.b16 %v44
    %v230 = vunpack.c.l.b16 %v45
    %v231 = vunpack.c.l.b16 %v46
    %v232 = vunpack.c.l.b16 %v47
    %v233 = vunpack.c.l.b16 %v48
    %v234 = vunpack.c.l.b16 %v49
    %v235 = vunpack.c.l.b16 %v50
    %v236 = vunpack.c.l.b16 %v51
    %v237 = vunpack.c.l.b16 %v52
    %v238 = vunpack.c.l.b16 %v53
    %v239 = vunpack.c.l.b16 %v54
    %v240 = vunpack.c.l.b16 %v55
    %v241 = vunpack.c.l.b16 %v56
    %v242 = vunpack.c.l.b16 %v57
    %v243 = vunpack.c.l.b16 %v58
    %v244 = vunpack.c.l.b16 %v59
    %v245 = vunpack.c.l.b16 %v60
    %v246 = vunpack.c.l.b16 %v61
    %v247 = vunpack.c.l.b16 %v62
    %v248 = vunpack.c.l.b16 %v63
    %v249 = vunpack.c.l.b16 %v64
    %v250 = vunpack.c.l.b16 %v65
    %v251 = vunpack.c.l.b16 %v66
    %v252 = vunpack.c.l.b16 %v67
    %v253 = vunpack.c.l.b16 %v68
    %v254 = vunpack.c.l.b16 %v69
    %v255 = vunpack.c.l.b16 %v70
    %v256 = vunpack.c.l.b16 %v71
    %v257 = vunpack.c.l.b16 %v72
    %v258 = vunpack.c.l.b16 %v73
    %v259 = vunpack.c.l.b16 %v74
    %v260 = vunpack.c.l.b16 %v75
    %v261 = vunpack.c.l.b16 %v76
    %v262 = vunpack.c.l.b16 %v77
    %v263 = vunpack.c.l.b16 %v78
    %v264 = vunpack.c.l.b16 %v79
    %v265 = vunpack.c.l.b16 %v80
    %v266 = vunpack.c.l.b16 %v81
    %v267 = vunpack.c.l.b16 %v82
    %v268 = vunpack.c.l.b16 %v83
    %v269 = vunpack.c.l.b16 %v84
    %v270 = vunpack.c.l.b16 %v85
    %v271 = vunpack.c.l.b16 %v86
    %v272 = vunpack.c.l.b16 %v87
    %v273 = vunpack.c.l.b16 %v88
    %v274 = vunpack.c.l.b16 %v89
    %v275 = vunpack.c.l.b16 %v90
    %v276 = vunpack.c.l.b16 %v91
    %v277 = vunpack.c.l.b16 %v92
    %v278 = vunpack.c.l.b16 %v93
    %v279 = vunpack.c.l.b16 %v94
    %v280 = vunpack.c.l.b16 %v95
    %v281 = vunpack.c.l.b16 %v96
    %v282 = vunpack.c.l.b16 %v97
    %v283 = vunpack.c.l.b16 %v98
    %v284 = vunpack.c.l.b16 %v99
    %v285 = vunpack.c.l.b16 %v100
    %v286 = vunpack.c.l.b16 %v101
    %v287 = vunpack.c.l.b16 %v102
    %v288 = vunpack.c.l.b16 %v103
    %v289 = vunpack.c.l.b16 %v104
    %v290 = vunpack.c.l.b16 %v105
    %v291 = vunpack.c.l.b16 %v106
    %v292 = vunpack.c.l.b16 %v107
    %v293 = vunpack.c.l.b16 %v108
    %v294 = vunpack.c.l.b16 %v109
    %v295 = vpack.c.b16 %v216, %v215
    %v296 = vpack.c.b16 %v218, %v217
    %v297 = vpack.c.b16 %v220, %v219
    %v298 = vpack.c.b16 %v222, %v221
    %v299 = vpack.c.b16 %v224, %v223
    %v300 = vpack.c.b16 %v226, %v225
    %v301 = vpack.c.b16 %v228, %v227
    %v302 = vpack.c.b16 %v230, %v229
    %v303 = vpack.c.b16 %v232, %v231
    %v304 = vpack.c.b16 %v234, %v233
    %v305 = vpack.c.b16 %v236, %v235
    %v306 = vpack.c.b16 %v238, %v237
    %v307 = vpack.c.b16 %v240, %v239
    %v308 = vpack.c.b16 %v242, %v241
    %v309 = vpack.c.b16 %v244, %v243
    %v310 = vpack.c.b16 %v246, %v245
    %v311 = vpack.c.b16 %v248, %v247
    %v312 = vpack.c.b16 %v250, %v249
    %v313 = vpack.c.b16 %v252, %v251
    %v314 = vpack.c.b16 %v254, %v253
    %v315 = vpack.c.b16 %v256, %v255
    %v316 = vpack.c.b16 %v258, %v257
    %v317 = vpack.c.b16 %v260, %v259
    %v318 = vpack.c.b16 %v262, %v261
    %v319 = vpack.c.b16 %v264, %v263
    %v320 = vpack.c.b16 %v266, %v265
    %v321 = vpack.c.b16 %v268, %v267
    %v322 = vpack.c.b16 %v270, %v269
    %v323 = vpack.c.b16 %v272, %v271
    %v324 = vpack.c.b16 %v274, %v273
    %v325 = vpack.c.b16 %v276, %v275
    %v326 = vpack.c.b16 %v278, %v277
    %v327 = vpack.c.b16 %v280, %v279
    %v328 = vpack.c.b16 %v282, %v281
    %v329 = vpack.c.b16 %v284, %v283
    %v330 = vpack.c.b16 %v286, %v285
    %v331 = vpack.c.b16 %v288, %v287
    %v332 = vpack.c.b16 %v290, %v289
    %v333 = vpack.c.b16 %v292, %v291
    %v334 = vpack.c.b16 %v294, %v293
    %375 = vmatprep.subr.bf16.mxu0 0
    %376 = vmatpush1.bf16.msra.mxu0 %v295
    %377 = vmatprep.subr.bf16.mxu0 0
    %378 = vmatpush1.bf16.msra.mxu0 %v296
    %379 = vmatprep.subr.bf16.mxu0 0
    %380 = vmatpush1.bf16.msra.mxu0 %v297
    %381 = vmatprep.subr.bf16.mxu0 0
    %382 = vmatpush1.bf16.msra.mxu0 %v298
    %383 = vmatprep.subr.bf16.mxu0 0
    %384 = vmatpush1.bf16.msra.mxu0 %v299
    %385 = vmatprep.subr.bf16.mxu0 0
    %386 = vmatpush1.bf16.msra.mxu0 %v300
    %387 = vmatprep.subr.bf16.mxu0 0
    %388 = vmatpush1.bf16.msra.mxu0 %v301
    %389 = vmatprep.subr.bf16.mxu0 0
    %390 = vmatpush1.bf16.msra.mxu0 %v302
    %391 = vmatprep.subr.bf16.mxu0 0
    %392 = vmatpush1.bf16.msra.mxu0 %v303
    %393 = vmatprep.subr.bf16.mxu0 0
    %394 = vmatpush1.bf16.msra.mxu0 %v304
    %395 = vmatprep.subr.bf16.mxu0 0
    %396 = vmatpush1.bf16.msra.mxu0 %v305
    %397 = vmatprep.subr.bf16.mxu0 0
    %398 = vmatpush1.bf16.msra.mxu0 %v306
    %399 = vmatprep.subr.bf16.mxu0 0
    %400 = vmatpush1.bf16.msra.mxu0 %v307
    %401 = vmatprep.subr.bf16.mxu0 0
    %402 = vmatpush1.bf16.msra.mxu0 %v308
    %403 = vmatprep.subr.bf16.mxu0 0
    %404 = vmatpush1.bf16.msra.mxu0 %v309
    %405 = vmatprep.subr.bf16.mxu0 0
    %406 = vmatpush1.bf16.msra.mxu0 %v310
    %407 = vmatprep.mubr.bf16.mxu0 %v126
    %408 = vmatmul.mubr.bf16.gmra.mrb[0].mxu0 %v125
    %v409 = vpop.f32.mrb[0].mxu0
    %v410 = vadd.f32 %v115, %v409
    %v411 = vpop.f32.mrb[0].mxu0
    %v412 = vpop.f32.mrb[0].mxu0
    %v413 = vpop.f32.mrb[0].mxu0
    %414 = vdwg.mxu0
    %415 = vmatprep.subr.bf16.mxu0 0
    %416 = vmatpush1.bf16.msra.mxu0 %v311
    %417 = vmatprep.subr.bf16.mxu0 0
    %418 = vmatpush1.bf16.msra.mxu0 %v312
    %419 = vmatprep.subr.bf16.mxu0 0
    %420 = vmatpush1.bf16.msra.mxu0 %v313
    %421 = vmatprep.subr.bf16.mxu0 0
    %422 = vmatpush1.bf16.msra.mxu0 %v314
    %423 = vmatprep.subr.bf16.mxu0 0
    %424 = vmatpush1.bf16.msra.mxu0 %v315
    %425 = vmatprep.subr.bf16.mxu0 0
    %426 = vmatpush1.bf16.msra.mxu0 %v316
    %427 = vmatprep.subr.bf16.mxu0 0
    %428 = vmatpush1.bf16.msra.mxu0 %v317
    %429 = vmatprep.subr.bf16.mxu0 0
    %430 = vmatpush1.bf16.msra.mxu0 %v318
    %431 = vmatprep.subr.bf16.mxu0 0
    %432 = vmatpush1.bf16.msra.mxu0 %v319
    %433 = vmatprep.subr.bf16.mxu0 0
    %434 = vmatpush1.bf16.msra.mxu0 %v320
    %435 = vmatprep.subr.bf16.mxu0 0
    %436 = vmatpush1.bf16.msra.mxu0 %v321
    %437 = vmatprep.subr.bf16.mxu0 0
    %438 = vmatpush1.bf16.msra.mxu0 %v322
    %439 = vmatprep.subr.bf16.mxu0 0
    %440 = vmatpush1.bf16.msra.mxu0 %v323
    %441 = vmatprep.subr.bf16.mxu0 0
    %442 = vmatpush1.bf16.msra.mxu0 %v324
    %443 = vmatprep.subr.bf16.mxu0 0
    %444 = vmatpush1.bf16.msra.mxu0 %v325
    %445 = vmatprep.subr.bf16.mxu0 0
    %446 = vmatpush1.bf16.msra.mxu0 %v326
    %447 = vmatprep.mubr.bf16.mxu0 %v128
    %448 = vmatmul.mubr.bf16.gmra.mrb[0].mxu0 %v127
    %v449 = vpop.f32.mrb[0].mxu0
    %v450 = vadd.f32 %v410, %v449
    %v451 = vpop.f32.mrb[0].mxu0
    %v452 = vpop.f32.mrb[0].mxu0
    %v453 = vpop.f32.mrb[0].mxu0
    %454 = vdwg.mxu0
    %455 = vmatprep.subr.bf16.mxu0 0
    %456 = vmatpush1.bf16.msra.mxu0 %v327
    %457 = vmatprep.subr.bf16.mxu0 0
    %458 = vmatpush1.bf16.msra.mxu0 %v328
    %459 = vmatprep.subr.bf16.mxu0 0
    %460 = vmatpush1.bf16.msra.mxu0 %v329
    %461 = vmatprep.subr.bf16.mxu0 0
    %462 = vmatpush1.bf16.msra.mxu0 %v330
    %463 = vmatprep.subr.bf16.mxu0 0
    %464 = vmatpush1.bf16.msra.mxu0 %v331
    %465 = vmatprep.subr.bf16.mxu0 0
    %466 = vmatpush1.bf16.msra.mxu0 %v332
    %467 = vmatprep.subr.bf16.mxu0 0
    %468 = vmatpush1.bf16.msra.mxu0 %v333
    %469 = vmatprep.subr.bf16.mxu0 0
    %470 = vmatpush1.bf16.msra.mxu0 %v334
    %471 = vmatprep.subr.bf16.mxu0 0
    %472 = vmatpush1.bf16.msra.mxu0 0
    %473 = vmatprep.subr.bf16.mxu0 0
    %474 = vmatpush1.bf16.msra.mxu0 0
    %475 = vmatprep.subr.bf16.mxu0 0
    %476 = vmatpush1.bf16.msra.mxu0 0
    %477 = vmatprep.subr.bf16.mxu0 0
    %478 = vmatpush1.bf16.msra.mxu0 0
    %479 = vmatprep.subr.bf16.mxu0 0
    %480 = vmatpush1.bf16.msra.mxu0 0
    %481 = vmatprep.subr.bf16.mxu0 0
    %482 = vmatpush1.bf16.msra.mxu0 0
    %483 = vmatprep.subr.bf16.mxu0 0
    %484 = vmatpush1.bf16.msra.mxu0 0
    %485 = vmatprep.subr.bf16.mxu0 0
    %486 = vmatpush1.bf16.msra.mxu0 0
    %487 = vmatprep.mubr.bf16.mxu0 0
    %488 = vmatmul.mubr.bf16.gmra.mrb[0].mxu0 %v129
    %v489 = vpop.f32.mrb[0].mxu0
    %v490 = vadd.f32 %v450, %v489
    %v491 = vpop.f32.mrb[0].mxu0
    %v492 = vpop.f32.mrb[0].mxu0
    %v493 = vpop.f32.mrb[0].mxu0
    %494 = vdwg.mxu0
    %v495 = vmax.f32 %v490, 0.0
    %v496 = vpack.c.bf16 %v495, %v495
    %497 = vst [vmem:[%s3] sm:$0xf] %v496
    // Predicated region
    $region18: #{fwd.98} parent=1 // pred_check
      _
    $region19: #{fwd.98} parent=1 // pred_check_branch
      %499 = sbr.rel (0) target = $region21
    $region20: #{fwd.98} parent=1 // pred_region
      _
    $region21: #{fwd.98} parent=1 // pred_fallthru
      _
    // Predicated region
    $region22: #{fwd.98} parent=1 // pred_check
      _
    $region23: #{fwd.98} parent=1 // pred_check_branch
      %501 = sbr.rel (0) target = $region25
    $region24: #{fwd.98} parent=1 // pred_region
      _
    $region25: #{fwd.98} parent=1 // pred_fallthru
      _
    %502 = vsyncpa [#allocation3], 1

// kernel: fwd.103
$region0: #{fwd.103}
  #allocation0 [shape = 'u32[]', space=smem, size = 0x4, offset = 0x4, fixed_abs, tag = 'smem constant byte address 0x4 - core index']
  #allocation1 [shape = 'u32[144,128]{1,0:T(1,128)}', space=vmem, size = 0x12000, scoped, tag = 'internal scratch']
  %s0 = inlined_call_operand.vmem [shape: bf16[8,128], index: 0, kind: input, shape index: {}]
  %s1 = inlined_call_operand.vmem [shape: bf16[128,256], index: 1, kind: input, shape index: {}]
  %s2 = inlined_call_operand.hbm [shape: f32[1,256], index: 2, kind: input, shape index: {}]
  %s3 = inlined_call_operand.vmem [shape: bf16[8,256], index: 3, kind: input, shape index: {}]
  %s4 = inlined_call_operand.vmem [shape: bf16[8,256], index: 4, kind: output, shape index: {}]
  %s5 = sld [smem:[#allocation0]]
  $region30: #{fwd.103} parent=0
    _
  %s7 = ssub.s32 1, %s5
  %s8 = scalar_select 0, %s7, %s5
  $region1: #{fwd.103} parent=0
    #allocation2 [shape = 'u8[1024]{0}', space=vmem, size = 0x400, scoped, tag = 'input window, operand 2, single buffered']
    #allocation3 [shape = 's32[1]{0}', space=sflag, size = 0x4, scoped, tag = 'scoped memory for fwd.103']
    %9 = vsyncpa [#allocation3], 0
    // Predicated region
    $region2: #{fwd.103} parent=1 // pred_check
      _
    $region3: #{fwd.103} parent=1 // pred_check_branch
      %11 = sbr.rel (0) target = $region5
    $region4: #{fwd.103} parent=1 // pred_region
      _
    $region5: #{fwd.103} parent=1 // pred_fallthru
      _
    // Predicated region
    $region6: #{fwd.103} parent=1 // pred_check
      _
    $region7: #{fwd.103} parent=1 // pred_check_branch
      %13 = sbr.rel (0) target = $region9
    $region8: #{fwd.103} parent=1 // pred_region
      _
    $region9: #{fwd.103} parent=1 // pred_fallthru
      _
    // Predicated region
    $region10: #{fwd.103} parent=1 // pred_check
      _
    $region11: #{fwd.103} parent=1 // pred_check_branch
      %15 = sbr.rel (0) target = $region13
    $region12: #{fwd.103} parent=1 // pred_region
      %s17 = ssub.s32 32, 32
      %18 = vsyncadd [#allocation3], %s17
      %s20 = sshll.u32 [#allocation2], 4
      %s21 = int_to_ptr.vmem [resolvable:$true] %s20
      %23 = dma.hbm_to_vmem [thread:$0]  %s2, 32, %s21, [#allocation3]
    $region13: #{fwd.103} parent=1 // pred_fallthru
      _
    // Predicated region
    $region14: #{fwd.103} parent=1 // pred_check
      _
    $region15: #{fwd.103} parent=1 // pred_check_branch
      %25 = sbr.rel (0) target = $region17
    $region16: #{fwd.103} parent=1 // pred_region
      _
    $region17: #{fwd.103} parent=1 // pred_fallthru
      _
    // Predicated region
    $region18: #{fwd.103} parent=1 // pred_check
      _
    $region19: #{fwd.103} parent=1 // pred_check_branch
      %27 = sbr.rel (0) target = $region21
    $region20: #{fwd.103} parent=1 // pred_region
      %28 = dma.done [#allocation3], 32
    $region21: #{fwd.103} parent=1 // pred_fallthru
      _
    %v30 = vld [vmem:[%s0] sm:$0xf]
    %v31 = vld [vmem:[%s1] sm:$0xff]
    %v32 = vld [vmem:[%s1 + $0x8] sm:$0xff]
    %v33 = vld [vmem:[%s1 + $0x10] sm:$0xff]
    %v34 = vld [vmem:[%s1 + $0x18] sm:$0xff]
    %v35 = vld [vmem:[%s1 + $0x20] sm:$0xff]
    %v36 = vld [vmem:[%s1 + $0x28] sm:$0xff]
    %v37 = vld [vmem:[%s1 + $0x30] sm:$0xff]
    %v38 = vld [vmem:[%s1 + $0x38] sm:$0xff]
    %v39 = vld [vmem:[%s1 + $0x40] sm:$0xff]
    %v40 = vld [vmem:[%s1 + $0x48] sm:$0xff]
    %v41 = vld [vmem:[%s1 + $0x50] sm:$0xff]
    %v42 = vld [vmem:[%s1 + $0x58] sm:$0xff]
    %v43 = vld [vmem:[%s1 + $0x60] sm:$0xff]
    %v44 = vld [vmem:[%s1 + $0x68] sm:$0xff]
    %v45 = vld [vmem:[%s1 + $0x70] sm:$0xff]
    %v46 = vld [vmem:[%s1 + $0x78] sm:$0xff]
    %v47 = vld [vmem:[#allocation2] sm:$0x3]
    %v49 = vlaneseq
    %v50 = vshrl.u32 %v49, 7
    %v51 = vsub.s32 0, %v50
    %v52 = vrot.slane %v47, %v51
    %v53 = vlaneseq
    %v54 = vshrl.u32 %v53, 7
    %v55 = vsub.s32 1, %v54
    %v56 = vrot.slane %v47, %v55
    %v75 = vunpack.c.l.b16 %v31
    %v76 = vunpack.c.h.b16 %v31
    %v77 = vunpack.c.l.b16 %v32
    %v78 = vunpack.c.h.b16 %v32
    %v79 = vunpack.c.l.b16 %v33
    %v80 = vunpack.c.h.b16 %v33
    %v81 = vunpack.c.l.b16 %v34
    %v82 = vunpack.c.h.b16 %v34
    %v83 = vunpack.c.l.b16 %v35
    %v84 = vunpack.c.h.b16 %v35
    %v85 = vunpack.c.l.b16 %v36
    %v86 = vunpack.c.h.b16 %v36
    %v87 = vunpack.c.l.b16 %v37
    %v88 = vunpack.c.h.b16 %v37
    %v89 = vunpack.c.l.b16 %v38
    %v90 = vunpack.c.h.b16 %v38
    %v91 = vunpack.c.l.b16 %v39
    %v92 = vunpack.c.h.b16 %v39
    %v93 = vunpack.c.l.b16 %v40
    %v94 = vunpack.c.h.b16 %v40
    %v95 = vunpack.c.l.b16 %v41
    %v96 = vunpack.c.h.b16 %v41
    %v97 = vunpack.c.l.b16 %v42
    %v98 = vunpack.c.h.b16 %v42
    %v99 = vunpack.c.l.b16 %v43
    %v100 = vunpack.c.h.b16 %v43
    %v101 = vunpack.c.l.b16 %v44
    %v102 = vunpack.c.h.b16 %v44
    %v103 = vunpack.c.l.b16 %v45
    %v104 = vunpack.c.h.b16 %v45
    %v105 = vunpack.c.l.b16 %v46
    %v106 = vunpack.c.h.b16 %v46
    %v107 = vpack.c.b16 %v77, %v75
    %v108 = vpack.c.b16 %v78, %v76
    %v109 = vpack.c.b16 %v81, %v79
    %v110 = vpack.c.b16 %v82, %v80
    %v111 = vpack.c.b16 %v85, %v83
    %v112 = vpack.c.b16 %v86, %v84
    %v113 = vpack.c.b16 %v89, %v87
    %v114 = vpack.c.b16 %v90, %v88
    %v115 = vpack.c.b16 %v93, %v91
    %v116 = vpack.c.b16 %v94, %v92
    %v117 = vpack.c.b16 %v97, %v95
    %v118 = vpack.c.b16 %v98, %v96
    %v119 = vpack.c.b16 %v101, %v99
    %v120 = vpack.c.b16 %v102, %v100
    %v121 = vpack.c.b16 %v105, %v103
    %v122 = vpack.c.b16 %v106, %v104
    %139 = vmatprep.subr.bf16.mxu0 %v108
    %140 = vmatpush1.bf16.msra.mxu0 %v107
    %141 = vmatprep.subr.bf16.mxu0 %v110
    %142 = vmatpush1.bf16.msra.mxu0 %v109
    %143 = vmatprep.subr.bf16.mxu0 %v112
    %144 = vmatpush1.bf16.msra.mxu0 %v111
    %145 = vmatprep.subr.bf16.mxu0 %v114
    %146 = vmatpush1.bf16.msra.mxu0 %v113
    %147 = vmatprep.subr.bf16.mxu0 %v116
    %148 = vmatpush1.bf16.msra.mxu0 %v115
    %149 = vmatprep.subr.bf16.mxu0 %v118
    %150 = vmatpush1.bf16.msra.mxu0 %v117
    %151 = vmatprep.subr.bf16.mxu0 %v120
    %152 = vmatpush1.bf16.msra.mxu0 %v119
    %153 = vmatprep.subr.bf16.mxu0 %v122
    %154 = vmatpush1.bf16.msra.mxu0 %v121
    %155 = vmatprep.subr.bf16.mxu0 0
    %156 = vmatpush1.bf16.msra.mxu0 0
    %157 = vmatprep.subr.bf16.mxu0 0
    %158 = vmatpush1.bf16.msra.mxu0 0
    %159 = vmatprep.subr.bf16.mxu0 0
    %160 = vmatpush1.bf16.msra.mxu0 0
    %161 = vmatprep.subr.bf16.mxu0 0
    %162 = vmatpush1.bf16.msra.mxu0 0
    %163 = vmatprep.subr.bf16.mxu0 0
    %164 = vmatpush1.bf16.msra.mxu0 0
    %165 = vmatprep.subr.bf16.mxu0 0
    %166 = vmatpush1.bf16.msra.mxu0 0
    %167 = vmatprep.subr.bf16.mxu0 0
    %168 = vmatpush1.bf16.msra.mxu0 0
    %169 = vmatprep.subr.bf16.mxu0 0
    %170 = vmatpush1.bf16.msra.mxu0 0
    %171 = vmatprep.mubr.bf16.mxu0 0
    %172 = vmatmul.mubr.bf16.gmra.mrb[0].mxu0 %v30
    %v173 = vpop.f32.mrb[0].mxu0
    %v174 = vadd.f32 %v52, %v173
    %v175 = vpop.f32.mrb[0].mxu0
    %v176 = vadd.f32 %v56, %v175
    %v177 = vpop.f32.mrb[0].mxu0
    %v178 = vpop.f32.mrb[0].mxu0
    %179 = vdwg.mxu0
    %v180 = vld [vmem:[%s3] sm:$0xff]
    %v181 = vunpack.c.l.bf16 %v180
    %v182 = vunpack.c.h.bf16 %v180
    %v183 = vadd.f32 %v174, %v181
    %v184 = vadd.f32 %v176, %v182
    %v185 = vmax.f32 %v183, 0.0
    %v186 = vmax.f32 %v184, 0.0
    %v187 = vpack.c.bf16 %v185, %v185
    %v188 = vpack.c.bf16 %v186, %v186
    %v191 = vunpack.c.l.b16 %v187
    %v192 = vunpack.c.l.b16 %v188
    %v193 = vpack.c.b16 %v192, %v191
    %195 = vst [vmem:[%s4] sm:$0xff] %v193
    // Predicated region
    $region22: #{fwd.103} parent=1 // pred_check
      _
    $region23: #{fwd.103} parent=1 // pred_check_branch
      %197 = sbr.rel (0) target = $region25
    $region24: #{fwd.103} parent=1 // pred_region
      _
    $region25: #{fwd.103} parent=1 // pred_fallthru
      _
    // Predicated region
    $region26: #{fwd.103} parent=1 // pred_check
      _
    $region27: #{fwd.103} parent=1 // pred_check_branch
      %199 = sbr.rel (0) target = $region29
    $region28: #{fwd.103} parent=1 // pred_region
      _
    $region29: #{fwd.103} parent=1 // pred_fallthru
      _
    %200 = vsyncpa [#allocation3], 1

// kernel: fwd.107
$region0: #{fwd.107}
  #allocation0 [shape = 'u32[]', space=smem, size = 0x4, offset = 0x4, fixed_abs, tag = 'smem constant byte address 0x4 - core index']
  #allocation1 [shape = 'u32[144,128]{1,0:T(1,128)}', space=vmem, size = 0x12000, scoped, tag = 'internal scratch']
  %s0 = inlined_call_operand.vmem [shape: bf16[2,1,256], index: 0, kind: input, shape index: {}]
  %s1 = inlined_call_operand.vmem [shape: bf16[256,1024], index: 1, kind: input, shape index: {}]
  %s2 = inlined_call_operand.vmem [shape: f32[1,1024], index: 2, kind: input, shape index: {}]
  %s3 = inlined_call_operand.vmem [shape: bf16[1024,512], index: 3, kind: input, shape index: {}]
  %s4 = inlined_call_operand.vmem [shape: f32[1,512], index: 4, kind: input, shape index: {}]
  %s5 = inlined_call_operand.vmem [shape: bf16[512,128], index: 5, kind: input, shape index: {}]
  %s6 = inlined_call_operand.hbm [shape: f32[1,128], index: 6, kind: input, shape index: {}]
  %s7 = inlined_call_operand.hbm [shape: f32[2,128], index: 7, kind: output, shape index: {}]
  %s8 = sld [smem:[#allocation0]]
  $region42: #{fwd.107} parent=0
    _
  %s10 = ssub.s32 1, %s8
  %s11 = scalar_select 0, %s10, %s8
  $region1: #{fwd.107} parent=0
    #allocation2 [shape = 'u8[512]{0}', space=vmem, size = 0x400, scoped, tag = 'input window, operand 6, single buffered']
    #allocation3 [shape = 's32[1]{0}', space=sflag, size = 0x4, scoped, tag = 'scoped memory for fwd.107']
    #allocation4 [shape = 's32[1]{0}', space=sflag, size = 0x4, scoped, tag = 'scoped memory for fwd.107']
    #allocation5 [shape = 'u8[1024]{0}', space=vmem, size = 0x400, scoped, tag = 'output window, operand 0, single buffered']
    %12 = vsyncpa [#allocation3], 0
    %13 = vsyncpa [#allocation4], 0
    // Predicated region
    $region2: #{fwd.107} parent=1 // pred_check
      _
    $region3: #{fwd.107} parent=1 // pred_check_branch
      %15 = sbr.rel (0) target = $region5
    $region4: #{fwd.107} parent=1 // pred_region
      _
    $region5: #{fwd.107} parent=1 // pred_fallthru
      _
    // Predicated region
    $region6: #{fwd.107} parent=1 // pred_check
      _
    $region7: #{fwd.107} parent=1 // pred_check_branch
      %17 = sbr.rel (0) target = $region9
    $region8: #{fwd.107} parent=1 // pred_region
      _
    $region9: #{fwd.107} parent=1 // pred_fallthru
      _
    // Predicated region
    $region10: #{fwd.107} parent=1 // pred_check
      _
    $region11: #{fwd.107} parent=1 // pred_check_branch
      %19 = sbr.rel (0) target = $region13
    $region12: #{fwd.107} parent=1 // pred_region
      _
    $region13: #{fwd.107} parent=1 // pred_fallthru
      _
    // Predicated region
    $region14: #{fwd.107} parent=1 // pred_check
      _
    $region15: #{fwd.107} parent=1 // pred_check_branch
      %21 = sbr.rel (0) target = $region17
    $region16: #{fwd.107} parent=1 // pred_region
      _
    $region17: #{fwd.107} parent=1 // pred_fallthru
      _
    // Predicated region
    $region18: #{fwd.107} parent=1 // pred_check
      _
    $region19: #{fwd.107} parent=1 // pred_check_branch
      %23 = sbr.rel (0) target = $region21
    $region20: #{fwd.107} parent=1 // pred_region
      _
    $region21: #{fwd.107} parent=1 // pred_fallthru
      _
    // Predicated region
    $region22: #{fwd.107} parent=1 // pred_check
      _
    $region23: #{fwd.107} parent=1 // pred_check_branch
      %25 = sbr.rel (0) target = $region25
    $region24: #{fwd.107} parent=1 // pred_region
      _
    $region25: #{fwd.107} parent=1 // pred_fallthru
      _
    // Predicated region
    $region26: #{fwd.107} parent=1 // pred_check
      _
    $region27: #{fwd.107} parent=1 // pred_check_branch
      %27 = sbr.rel (0) target = $region29
    $region28: #{fwd.107} parent=1 // pred_region
      %s29 = ssub.s32 16, 16
      %30 = vsyncadd [#allocation3], %s29
      %s32 = sshll.u32 [#allocation2], 4
      %s33 = int_to_ptr.vmem [resolvable:$true] %s32
      %35 = dma.hbm_to_vmem [thread:$0]  %s6, 16, %s33, [#allocation3]
    $region29: #{fwd.107} parent=1 // pred_fallthru
      _
    // Predicated region
    $region30: #{fwd.107} parent=1 // pred_check
      _
    $region31: #{fwd.107} parent=1 // pred_check_branch
      %37 = sbr.rel (0) target = $region33
    $region32: #{fwd.107} parent=1 // pred_region
      %38 = dma.done [#allocation3], 16
    $region33: #{fwd.107} parent=1 // pred_fallthru
      _
    %v40 = vld [vmem:[%s0] sm:$0x3]
    %v41 = vld [vmem:[%s0 + $0x2] sm:$0x3]
    %v42 = vunpack.c.l.bf16 %v40
    %v43 = vunpack.c.l.bf16 %v41
    %v44 = vadd.f32 %v42, 0.0
    %v45 = vadd.f32 %v43, 0.0
    %v48 = vlaneseq
    %v49 = vshrl.u32 %v48, 7
    %v50 = vsub.s32 0, %v49
    %v51 = vrot.slane %v44, %v50
    %v52 = vlaneseq
    %v53 = vshrl.u32 %v52, 7
    %v54 = vsub.s32 2, %v53
    %v55 = vrot.slane %v44, %v54
    %v56 = vlaneseq
    %v57 = vshrl.u32 %v56, 7
    %v58 = vsub.s32 0, %v57
    %v59 = vrot.slane %v45, %v58
    %v60 = vlaneseq
    %v61 = vshrl.u32 %v60, 7
    %v62 = vsub.s32 2, %v61
    %v63 = vrot.slane %v45, %v62
    %v68 = vpack.c.bf16 %v51, %v51
    %v69 = vpack.c.bf16 %v55, %v55
    %v70 = vpack.c.bf16 %v59, %v59
    %v71 = vpack.c.bf16 %v63, %v63
    %v72 = vld [vmem:[%s1] sm:$0xff]
    %v73 = vld [vmem:[%s1 + $0x8] sm:$0xff]
    %v74 = vld [vmem:[%s1 + $0x10] sm:$0xff]
    %v75 = vld [vmem:[%s1 + $0x18] sm:$0xff]
    %v76 = vld [vmem:[%s1 + $0x20] sm:$0xff]
    %v77 = vld [vmem:[%s1 + $0x28] sm:$0xff]
    %v78 = vld [vmem:[%s1 + $0x30] sm:$0xff]
    %v79 = vld [vmem:[%s1 + $0x38] sm:$0xff]
    %v80 = vld [vmem:[%s1 + $0x40] sm:$0xff]
    %v81 = vld [vmem:[%s1 + $0x48] sm:$0xff]
    %v82 = vld [vmem:[%s1 + $0x50] sm:$0xff]
    %v83 = vld [vmem:[%s1 + $0x58] sm:$0xff]
    %v84 = vld [vmem:[%s1 + $0x60] sm:$0xff]
    %v85 = vld [vmem:[%s1 + $0x68] sm:$0xff]
    %v86 = vld [vmem:[%s1 + $0x70] sm:$0xff]
    %v87 = vld [vmem:[%s1 + $0x78] sm:$0xff]
    %v88 = vld [vmem:[%s1 + $0x80] sm:$0xff]
    %v89 = vld [vmem:[%s1 + $0x88] sm:$0xff]
    %v90 = vld [vmem:[%s1 + $0x90] sm:$0xff]
    %v91 = vld [vmem:[%s1 + $0x98] sm:$0xff]
    %v92 = vld [vmem:[%s1 + $0xa0] sm:$0xff]
    %v93 = vld [vmem:[%s1 + $0xa8] sm:$0xff]
    %v94 = vld [vmem:[%s1 + $0xb0] sm:$0xff]
    %v95 = vld [vmem:[%s1 + $0xb8] sm:$0xff]
    %v96 = vld [vmem:[%s1 + $0xc0] sm:$0xff]
    %v97 = vld [vmem:[%s1 + $0xc8] sm:$0xff]
    %v98 = vld [vmem:[%s1 + $0xd0] sm:$0xff]
    %v99 = vld [vmem:[%s1 + $0xd8] sm:$0xff]
    %v100 = vld [vmem:[%s1 + $0xe0] sm:$0xff]
    %v101 = vld [vmem:[%s1 + $0xe8] sm:$0xff]
    %v102 = vld [vmem:[%s1 + $0xf0] sm:$0xff]
    %v103 = vld [vmem:[%s1 + $0xf8] sm:$0xff]
    %v104 = vld [vmem:[%s1 + $0x100] sm:$0xff]
    %v105 = vld [vmem:[%s1 + $0x108] sm:$0xff]
    %v106 = vld [vmem:[%s1 + $0x110] sm:$0xff]
    %v107 = vld [vmem:[%s1 + $0x118] sm:$0xff]
    %v108 = vld [vmem:[%s1 + $0x120] sm:$0xff]
    %v109 = vld [vmem:[%s1 + $0x128] sm:$0xff]
    %v110 = vld [vmem:[%s1 + $0x130] sm:$0xff]
    %v111 = vld [vmem:[%s1 + $0x138] sm:$0xff]
    %v112 = vld [vmem:[%s1 + $0x140] sm:$0xff]
    %v113 = vld [vmem:[%s1 + $0x148] sm:$0xff]
    %v114 = vld [vmem:[%s1 + $0x150] sm:$0xff]
    %v115 = vld [vmem:[%s1 + $0x158] sm:$0xff]
    %v116 = vld [vmem:[%s1 + $0x160] sm:$0xff]
    %v117 = vld [vmem:[%s1 + $0x168] sm:$0xff]
    %v118 = vld [vmem:[%s1 + $0x170] sm:$0xff]
    %v119 = vld [vmem:[%s1 + $0x178] sm:$0xff]
    %v120 = vld [vmem:[%s1 + $0x180] sm:$0xff]
    %v121 = vld [vmem:[%s1 + $0x188] sm:$0xff]
    %v122 = vld [vmem:[%s1 + $0x190] sm:$0xff]
    %v123 = vld [vmem:[%s1 + $0x198] sm:$0xff]
    %v124 = vld [vmem:[%s1 + $0x1a0] sm:$0xff]
    %v125 = vld [vmem:[%s1 + $0x1a8] sm:$0xff]
    %v126 = vld [vmem:[%s1 + $0x1b0] sm:$0xff]
    %v127 = vld [vmem:[%s1 + $0x1b8] sm:$0xff]
    %v128 = vld [vmem:[%s1 + $0x1c0] sm:$0xff]
    %v129 = vld [vmem:[%s1 + $0x1c8] sm:$0xff]
    %v130 = vld [vmem:[%s1 + $0x1d0] sm:$0xff]
    %v131 = vld [vmem:[%s1 + $0x1d8] sm:$0xff]
    %v132 = vld [vmem:[%s1 + $0x1e0] sm:$0xff]
    %v133 = vld [vmem:[%s1 + $0x1e8] sm:$0xff]
    %v134 = vld [vmem:[%s1 + $0x1f0] sm:$0xff]
    %v135 = vld [vmem:[%s1 + $0x1f8] sm:$0xff]
    %v136 = vld [vmem:[%s1 + $0x200] sm:$0xff]
    %v137 = vld [vmem:[%s1 + $0x208] sm:$0xff]
    %v138 = vld [vmem:[%s1 + $0x210] sm:$0xff]
    %v139 = vld [vmem:[%s1 + $0x218] sm:$0xff]
    %v140 = vld [vmem:[%s1 + $0x220] sm:$0xff]
    %v141 = vld [vmem:[%s1 + $0x228] sm:$0xff]
    %v142 = vld [vmem:[%s1 + $0x230] sm:$0xff]
    %v143 = vld [vmem:[%s1 + $0x238] sm:$0xff]
    %v144 = vld [vmem:[%s1 + $0x240] sm:$0xff]
    %v145 = vld [vmem:[%s1 + $0x248] sm:$0xff]
    %v146 = vld [vmem:[%s1 + $0x250] sm:$0xff]
    %v147 = vld [vmem:[%s1 + $0x258] sm:$0xff]
    %v148 = vld [vmem:[%s1 + $0x260] sm:$0xff]
    %v149 = vld [vmem:[%s1 + $0x268] sm:$0xff]
    %v150 = vld [vmem:[%s1 + $0x270] sm:$0xff]
    %v151 = vld [vmem:[%s1 + $0x278] sm:$0xff]
    %v152 = vld [vmem:[%s1 + $0x280] sm:$0xff]
    %v153 = vld [vmem:[%s1 + $0x288] sm:$0xff]
    %v154 = vld [vmem:[%s1 + $0x290] sm:$0xff]
    %v155 = vld [vmem:[%s1 + $0x298] sm:$0xff]
    %v156 = vld [vmem:[%s1 + $0x2a0] sm:$0xff]
    %v157 = vld [vmem:[%s1 + $0x2a8] sm:$0xff]
    %v158 = vld [vmem:[%s1 + $0x2b0] sm:$0xff]
    %v159 = vld [vmem:[%s1 + $0x2b8] sm:$0xff]
    %v160 = vld [vmem:[%s1 + $0x2c0] sm:$0xff]
    %v161 = vld [vmem:[%s1 + $0x2c8] sm:$0xff]
    %v162 = vld [vmem:[%s1 + $0x2d0] sm:$0xff]
    %v163 = vld [vmem:[%s1 + $0x2d8] sm:$0xff]
    %v164 = vld [vmem:[%s1 + $0x2e0] sm:$0xff]
    %v165 = vld [vmem:[%s1 + $0x2e8] sm:$0xff]
    %v166 = vld [vmem:[%s1 + $0x2f0] sm:$0xff]
    %v167 = vld [vmem:[%s1 + $0x2f8] sm:$0xff]
    %v168 = vld [vmem:[%s1 + $0x300] sm:$0xff]
    %v169 = vld [vmem:[%s1 + $0x308] sm:$0xff]
    %v170 = vld [vmem:[%s1 + $0x310] sm:$0xff]
    %v171 = vld [vmem:[%s1 + $0x318] sm:$0xff]
    %v172 = vld [vmem:[%s1 + $0x320] sm:$0xff]
    %v173 = vld [vmem:[%s1 + $0x328] sm:$0xff]
    %v174 = vld [vmem:[%s1 + $0x330] sm:$0xff]
    %v175 = vld [vmem:[%s1 + $0x338] sm:$0xff]
    %v176 = vld [vmem:[%s1 + $0x340] sm:$0xff]
    %v177 = vld [vmem:[%s1 + $0x348] sm:$0xff]
    %v178 = vld [vmem:[%s1 + $0x350] sm:$0xff]
    %v179 = vld [vmem:[%s1 + $0x358] sm:$0xff]
    %v180 = vld [vmem:[%s1 + $0x360] sm:$0xff]
    %v181 = vld [vmem:[%s1 + $0x368] sm:$0xff]
    %v182 = vld [vmem:[%s1 + $0x370] sm:$0xff]
    %v183 = vld [vmem:[%s1 + $0x378] sm:$0xff]
    %v184 = vld [vmem:[%s1 + $0x380] sm:$0xff]
    %v185 = vld [vmem:[%s1 + $0x388] sm:$0xff]
    %v186 = vld [vmem:[%s1 + $0x390] sm:$0xff]
    %v187 = vld [vmem:[%s1 + $0x398] sm:$0xff]
    %v188 = vld [vmem:[%s1 + $0x3a0] sm:$0xff]
    %v189 = vld [vmem:[%s1 + $0x3a8] sm:$0xff]
    %v190 = vld [vmem:[%s1 + $0x3b0] sm:$0xff]
    %v191 = vld [vmem:[%s1 + $0x3b8] sm:$0xff]
    %v192 = vld [vmem:[%s1 + $0x3c0] sm:$0xff]
    %v193 = vld [vmem:[%s1 + $0x3c8] sm:$0xff]
    %v194 = vld [vmem:[%s1 + $0x3d0] sm:$0xff]
    %v195 = vld [vmem:[%s1 + $0x3d8] sm:$0xff]
    %v196 = vld [vmem:[%s1 + $0x3e0] sm:$0xff]
    %v197 = vld [vmem:[%s1 + $0x3e8] sm:$0xff]
    %v198 = vld [vmem:[%s1 + $0x3f0] sm:$0xff]
    %v199 = vld [vmem:[%s1 + $0x3f8] sm:$0xff]
    %v200 = vld [vmem:[%s2] sm:$0xff]
    %v202 = vlaneseq
    %v203 = vshrl.u32 %v202, 7
    %v204 = vsub.s32 0, %v203
    %v205 = vrot.slane %v200, %v204
    %v206 = vlaneseq
    %v207 = vshrl.u32 %v206, 7
    %v208 = vsub.s32 1, %v207
    %v209 = vrot.slane %v200, %v208
    %v210 = vlaneseq
    %v211 = vshrl.u32 %v210, 7
    %v212 = vsub.s32 2, %v211
    %v213 = vrot.slane %v200, %v212
    %v214 = vlaneseq
    %v215 = vshrl.u32 %v214, 7
    %v216 = vsub.s32 3, %v215
    %v217 = vrot.slane %v200, %v216
    %v218 = vlaneseq
    %v219 = vshrl.u32 %v218, 7
    %v220 = vsub.s32 4, %v219
    %v221 = vrot.slane %v200, %v220
    %v222 = vlaneseq
    %v223 = vshrl.u32 %v222, 7
    %v224 = vsub.s32 5, %v223
    %v225 = vrot.slane %v200, %v224
    %v226 = vlaneseq
    %v227 = vshrl.u32 %v226, 7
    %v228 = vsub.s32 6, %v227
    %v229 = vrot.slane %v200, %v228
    %v230 = vlaneseq
    %v231 = vshrl.u32 %v230, 7
    %v232 = vsub.s32 7, %v231
    %v233 = vrot.slane %v200, %v232
    %v246 = vunpack.c.l.b16 %v68
    %v247 = vunpack.c.l.b16 %v69
    %v248 = vunpack.c.l.b16 %v70
    %v249 = vunpack.c.l.b16 %v71
    %v250 = vrot.slane %v248, 7
    %vm251 = vcmask 1041409
    %v252 = vsel %vm251, %v250, %v246
    %v253 = vrot.slane %v249, 7
    %v254 = vsel %vm251, %v253, %v247
    %v255 = vpack.c.b16 %v252, %v252
    %v256 = vpack.c.b16 %v254, %v254
    %v387 = vunpack.c.l.b16 %v72
    %v388 = vunpack.c.h.b16 %v72
    %v389 = vunpack.c.l.b16 %v73
    %v390 = vunpack.c.h.b16 %v73
    %v391 = vunpack.c.l.b16 %v74
    %v392 = vunpack.c.h.b16 %v74
    %v393 = vunpack.c.l.b16 %v75
    %v394 = vunpack.c.h.b16 %v75
    %v395 = vunpack.c.l.b16 %v76
    %v396 = vunpack.c.h.b16 %v76
    %v397 = vunpack.c.l.b16 %v77
    %v398 = vunpack.c.h.b16 %v77
    %v399 = vunpack.c.l.b16 %v78
    %v400 = vunpack.c.h.b16 %v78
    %v401 = vunpack.c.l.b16 %v79
    %v402 = vunpack.c.h.b16 %v79
    %v403 = vunpack.c.l.b16 %v80
    %v404 = vunpack.c.h.b16 %v80
    %v405 = vunpack.c.l.b16 %v81
    %v406 = vunpack.c.h.b16 %v81
    %v407 = vunpack.c.l.b16 %v82
    %v408 = vunpack.c.h.b16 %v82
    %v409 = vunpack.c.l.b16 %v83
    %v410 = vunpack.c.h.b16 %v83
    %v411 = vunpack.c.l.b16 %v84
    %v412 = vunpack.c.h.b16 %v84
    %v413 = vunpack.c.l.b16 %v85
    %v414 = vunpack.c.h.b16 %v85
    %v415 = vunpack.c.l.b16 %v86
    %v416 = vunpack.c.h.b16 %v86
    %v417 = vunpack.c.l.b16 %v87
    %v418 = vunpack.c.h.b16 %v87
    %v419 = vunpack.c.l.b16 %v88
    %v420 = vunpack.c.h.b16 %v88
    %v421 = vunpack.c.l.b16 %v89
    %v422 = vunpack.c.h.b16 %v89
    %v423 = vunpack.c.l.b16 %v90
    %v424 = vunpack.c.h.b16 %v90
    %v425 = vunpack.c.l.b16 %v91
    %v426 = vunpack.c.h.b16 %v91
    %v427 = vunpack.c.l.b16 %v92
    %v428 = vunpack.c.h.b16 %v92
    %v429 = vunpack.c.l.b16 %v93
    %v430 = vunpack.c.h.b16 %v93
    %v431 = vunpack.c.l.b16 %v94
    %v432 = vunpack.c.h.b16 %v94
    %v433 = vunpack.c.l.b16 %v95
    %v434 = vunpack.c.h.b16 %v95
    %v435 = vunpack.c.l.b16 %v96
    %v436 = vunpack.c.h.b16 %v96
    %v437 = vunpack.c.l.b16 %v97
    %v438 = vunpack.c.h.b16 %v97
    %v439 = vunpack.c.l.b16 %v98
    %v440 = vunpack.c.h.b16 %v98
    %v441 = vunpack.c.l.b16 %v99
    %v442 = vunpack.c.h.b16 %v99
    %v443 = vunpack.c.l.b16 %v100
    %v444 = vunpack.c.h.b16 %v100
    %v445 = vunpack.c.l.b16 %v101
    %v446 = vunpack.c.h.b16 %v101
    %v447 = vunpack.c.l.b16 %v102
    %v448 = vunpack.c.h.b16 %v102
    %v449 = vunpack.c.l.b16 %v103
    %v450 = vunpack.c.h.b16 %v103
    %v451 = vunpack.c.l.b16 %v104
    %v452 = vunpack.c.h.b16 %v104
    %v453 = vunpack.c.l.b16 %v105
    %v454 = vunpack.c.h.b16 %v105
    %v455 = vunpack.c.l.b16 %v106
    %v456 = vunpack.c.h.b16 %v106
    %v457 = vunpack.c.l.b16 %v107
    %v458 = vunpack.c.h.b16 %v107
    %v459 = vunpack.c.l.b16 %v108
    %v460 = vunpack.c.h.b16 %v108
    %v461 = vunpack.c.l.b16 %v109
    %v462 = vunpack.c.h.b16 %v109
    %v463 = vunpack.c.l.b16 %v110
    %v464 = vunpack.c.h.b16 %v110
    %v465 = vunpack.c.l.b16 %v111
    %v466 = vunpack.c.h.b16 %v111
    %v467 = vunpack.c.l.b16 %v112
    %v468 = vunpack.c.h.b16 %v112
    %v469 = vunpack.c.l.b16 %v113
    %v470 = vunpack.c.h.b16 %v113
    %v471 = vunpack.c.l.b16 %v114
    %v472 = vunpack.c.h.b16 %v114
    %v473 = vunpack.c.l.b16 %v115
    %v474 = vunpack.c.h.b16 %v115
    %v475 = vunpack.c.l.b16 %v116
    %v476 = vunpack.c.h.b16 %v116
    %v477 = vunpack.c.l.b16 %v117
    %v478 = vunpack.c.h.b16 %v117
    %v479 = vunpack.c.l.b16 %v118
    %v480 = vunpack.c.h.b16 %v118
    %v481 = vunpack.c.l.b16 %v119
    %v482 = vunpack.c.h.b16 %v119
    %v483 = vunpack.c.l.b16 %v120
    %v484 = vunpack.c.h.b16 %v120
    %v485 = vunpack.c.l.b16 %v121
    %v486 = vunpack.c.h.b16 %v121
    %v487 = vunpack.c.l.b16 %v122
    %v488 = vunpack.c.h.b16 %v122
    %v489 = vunpack.c.l.b16 %v123
    %v490 = vunpack.c.h.b16 %v123
    %v491 = vunpack.c.l.b16 %v124
    %v492 = vunpack.c.h.b16 %v124
    %v493 = vunpack.c.l.b16 %v125
    %v494 = vunpack.c.h.b16 %v125
    %v495 = vunpack.c.l.b16 %v126
    %v496 = vunpack.c.h.b16 %v126
    %v497 = vunpack.c.l.b16 %v127
    %v498 = vunpack.c.h.b16 %v127
    %v499 = vunpack.c.l.b16 %v128
    %v500 = vunpack.c.h.b16 %v128
    %v501 = vunpack.c.l.b16 %v129
    %v502 = vunpack.c.h.b16 %v129
    %v503 = vunpack.c.l.b16 %v130
    %v504 = vunpack.c.h.b16 %v130
    %v505 = vunpack.c.l.b16 %v131
    %v506 = vunpack.c.h.b16 %v131
    %v507 = vunpack.c.l.b16 %v132
    %v508 = vunpack.c.h.b16 %v132
    %v509 = vunpack.c.l.b16 %v133
    %v510 = vunpack.c.h.b16 %v133
    %v511 = vunpack.c.l.b16 %v134
    %v512 = vunpack.c.h.b16 %v134
    %v513 = vunpack.c.l.b16 %v135
    %v514 = vunpack.c.h.b16 %v135
    %v515 = vunpack.c.l.b16 %v136
    %v516 = vunpack.c.h.b16 %v136
    %v517 = vunpack.c.l.b16 %v137
    %v518 = vunpack.c.h.b16 %v137
    %v519 = vunpack.c.l.b16 %v138
    %v520 = vunpack.c.h.b16 %v138
    %v521 = vunpack.c.l.b16 %v139
    %v522 = vunpack.c.h.b16 %v139
    %v523 = vunpack.c.l.b16 %v140
    %v524 = vunpack.c.h.b16 %v140
    %v525 = vunpack.c.l.b16 %v141
    %v526 = vunpack.c.h.b16 %v141
    %v527 = vunpack.c.l.b16 %v142
    %v528 = vunpack.c.h.b16 %v142
    %v529 = vunpack.c.l.b16 %v143
    %v530 = vunpack.c.h.b16 %v143
    %v531 = vunpack.c.l.b16 %v144
    %v532 = vunpack.c.h.b16 %v144
    %v533 = vunpack.c.l.b16 %v145
    %v534 = vunpack.c.h.b16 %v145
    %v535 = vunpack.c.l.b16 %v146
    %v536 = vunpack.c.h.b16 %v146
    %v537 = vunpack.c.l.b16 %v147
    %v538 = vunpack.c.h.b16 %v147
    %v539 = vunpack.c.l.b16 %v148
    %v540 = vunpack.c.h.b16 %v148
    %v541 = vunpack.c.l.b16 %v149
    %v542 = vunpack.c.h.b16 %v149
    %v543 = vunpack.c.l.b16 %v150
    %v544 = vunpack.c.h.b16 %v150
    %v545 = vunpack.c.l.b16 %v151
    %v546 = vunpack.c.h.b16 %v151
    %v547 = vunpack.c.l.b16 %v152
    %v548 = vunpack.c.h.b16 %v152
    %v549 = vunpack.c.l.b16 %v153
    %v550 = vunpack.c.h.b16 %v153
    %v551 = vunpack.c.l.b16 %v154
    %v552 = vunpack.c.h.b16 %v154
    %v553 = vunpack.c.l.b16 %v155
    %v554 = vunpack.c.h.b16 %v155
    %v555 = vunpack.c.l.b16 %v156
    %v556 = vunpack.c.h.b16 %v156
    %v557 = vunpack.c.l.b16 %v157
    %v558 = vunpack.c.h.b16 %v157
    %v559 = vunpack.c.l.b16 %v158
    %v560 = vunpack.c.h.b16 %v158
    %v561 = vunpack.c.l.b16 %v159
    %v562 = vunpack.c.h.b16 %v159
    %v563 = vunpack.c.l.b16 %v160
    %v564 = vunpack.c.h.b16 %v160
    %v565 = vunpack.c.l.b16 %v161
    %v566 = vunpack.c.h.b16 %v161
    %v567 = vunpack.c.l.b16 %v162
    %v568 = vunpack.c.h.b16 %v162
    %v569 = vunpack.c.l.b16 %v163
    %v570 = vunpack.c.h.b16 %v163
    %v571 = vunpack.c.l.b16 %v164
    %v572 = vunpack.c.h.b16 %v164
    %v573 = vunpack.c.l.b16 %v165
    %v574 = vunpack.c.h.b16 %v165
    %v575 = vunpack.c.l.b16 %v166
    %v576 = vunpack.c.h.b16 %v166
    %v577 = vunpack.c.l.b16 %v167
    %v578 = vunpack.c.h.b16 %v167
    %v579 = vunpack.c.l.b16 %v168
    %v580 = vunpack.c.h.b16 %v168
    %v581 = vunpack.c.l.b16 %v169
    %v582 = vunpack.c.h.b16 %v169
    %v583 = vunpack.c.l.b16 %v170
    %v584 = vunpack.c.h.b16 %v170
    %v585 = vunpack.c.l.b16 %v171
    %v586 = vunpack.c.h.b16 %v171
    %v587 = vunpack.c.l.b16 %v172
    %v588 = vunpack.c.h.b16 %v172
    %v589 = vunpack.c.l.b16 %v173
    %v590 = vunpack.c.h.b16 %v173
    %v591 = vunpack.c.l.b16 %v174
    %v592 = vunpack.c.h.b16 %v174
    %v593 = vunpack.c.l.b16 %v175
    %v594 = vunpack.c.h.b16 %v175
    %v595 = vunpack.c.l.b16 %v176
    %v596 = vunpack.c.h.b16 %v176
    %v597 = vunpack.c.l.b16 %v177
    %v598 = vunpack.c.h.b16 %v177
    %v599 = vunpack.c.l.b16 %v178
    %v600 = vunpack.c.h.b16 %v178
    %v601 = vunpack.c.l.b16 %v179
    %v602 = vunpack.c.h.b16 %v179
    %v603 = vunpack.c.l.b16 %v180
    %v604 = vunpack.c.h.b16 %v180
    %v605 = vunpack.c.l.b16 %v181
    %v606 = vunpack.c.h.b16 %v181
    %v607 = vunpack.c.l.b16 %v182
    %v608 = vunpack.c.h.b16 %v182
    %v609 = vunpack.c.l.b16 %v183
    %v610 = vunpack.c.h.b16 %v183
    %v611 = vunpack.c.l.b16 %v184
    %v612 = vunpack.c.h.b16 %v184
    %v613 = vunpack.c.l.b16 %v185
    %v614 = vunpack.c.h.b16 %v185
    %v615 = vunpack.c.l.b16 %v186
    %v616 = vunpack.c.h.b16 %v186
    %v617 = vunpack.c.l.b16 %v187
    %v618 = vunpack.c.h.b16 %v187
    %v619 = vunpack.c.l.b16 %v188
    %v620 = vunpack.c.h.b16 %v188
    %v621 = vunpack.c.l.b16 %v189
    %v622 = vunpack.c.h.b16 %v189
    %v623 = vunpack.c.l.b16 %v190
    %v624 = vunpack.c.h.b16 %v190
    %v625 = vunpack.c.l.b16 %v191
    %v626 = vunpack.c.h.b16 %v191
    %v627 = vunpack.c.l.b16 %v192
    %v628 = vunpack.c.h.b16 %v192
    %v629 = vunpack.c.l.b16 %v193
    %v630 = vunpack.c.h.b16 %v193
    %v631 = vunpack.c.l.b16 %v194
    %v632 = vunpack.c.h.b16 %v194
    %v633 = vunpack.c.l.b16 %v195
    %v634 = vunpack.c.h.b16 %v195
    %v635 = vunpack.c.l.b16 %v196
    %v636 = vunpack.c.h.b16 %v196
    %v637 = vunpack.c.l.b16 %v197
    %v638 = vunpack.c.h.b16 %v197
    %v639 = vunpack.c.l.b16 %v198
    %v640 = vunpack.c.h.b16 %v198
    %v641 = vunpack.c.l.b16 %v199
    %v642 = vunpack.c.h.b16 %v199
    %v643 = vpack.c.b16 %v395, %v387
    %v644 = vpack.c.b16 %v396, %v388
    %v645 = vpack.c.b16 %v397, %v389
    %v646 = vpack.c.b16 %v398, %v390
    %v647 = vpack.c.b16 %v399, %v391
    %v648 = vpack.c.b16 %v400, %v392
    %v649 = vpack.c.b16 %v401, %v393
    %v650 = vpack.c.b16 %v402, %v394
    %v651 = vpack.c.b16 %v411, %v403
    %v652 = vpack.c.b16 %v412, %v404
    %v653 = vpack.c.b16 %v413, %v405
    %v654 = vpack.c.b16 %v414, %v406
    %v655 = vpack.c.b16 %v415, %v407
    %v656 = vpack.c.b16 %v416, %v408
    %v657 = vpack.c.b16 %v417, %v409
    %v658 = vpack.c.b16 %v418, %v410
    %v659 = vpack.c.b16 %v427, %v419
    %v660 = vpack.c.b16 %v428, %v420
    %v661 = vpack.c.b16 %v429, %v421
    %v662 = vpack.c.b16 %v430, %v422
    %v663 = vpack.c.b16 %v431, %v423
    %v664 = vpack.c.b16 %v432, %v424
    %v665 = vpack.c.b16 %v433, %v425
    %v666 = vpack.c.b16 %v434, %v426
    %v667 = vpack.c.b16 %v443, %v435
    %v668 = vpack.c.b16 %v444, %v436
    %v669 = vpack.c.b16 %v445, %v437
    %v670 = vpack.c.b16 %v446, %v438
    %v671 = vpack.c.b16 %v447, %v439
    %v672 = vpack.c.b16 %v448, %v440
    %v673 = vpack.c.b16 %v449, %v441
    %v674 = vpack.c.b16 %v450, %v442
    %v675 = vpack.c.b16 %v459, %v451
    %v676 = vpack.c.b16 %v460, %v452
    %v677 = vpack.c.b16 %v461, %v453
    %v678 = vpack.c.b16 %v462, %v454
    %v679 = vpack.c.b16 %v463, %v455
    %v680 = vpack.c.b16 %v464, %v456
    %v681 = vpack.c.b16 %v465, %v457
    %v682 = vpack.c.b16 %v466, %v458
    %v683 = vpack.c.b16 %v475, %v467
    %v684 = vpack.c.b16 %v476, %v468
    %v685 = vpack.c.b16 %v477, %v469
    %v686 = vpack.c.b16 %v478, %v470
    %v687 = vpack.c.b16 %v479, %v471
    %v688 = vpack.c.b16 %v480, %v472
    %v689 = vpack.c.b16 %v481, %v473
    %v690 = vpack.c.b16 %v482, %v474
    %v691 = vpack.c.b16 %v491, %v483
    %v692 = vpack.c.b16 %v492, %v484
    %v693 = vpack.c.b16 %v493, %v485
    %v694 = vpack.c.b16 %v494, %v486
    %v695 = vpack.c.b16 %v495, %v487
    %v696 = vpack.c.b16 %v496, %v488
    %v697 = vpack.c.b16 %v497, %v489
    %v698 = vpack.c.b16 %v498, %v490
    %v699 = vpack.c.b16 %v507, %v499
    %v700 = vpack.c.b16 %v508, %v500
    %v701 = vpack.c.b16 %v509, %v501
    %v702 = vpack.c.b16 %v510, %v502
    %v703 = vpack.c.b16 %v511, %v503
    %v704 = vpack.c.b16 %v512, %v504
    %v705 = vpack.c.b16 %v513, %v505
    %v706 = vpack.c.b16 %v514, %v506
    %v707 = vpack.c.b16 %v523, %v515
    %v708 = vpack.c.b16 %v524, %v516
    %v709 = vpack.c.b16 %v525, %v517
    %v710 = vpack.c.b16 %v526, %v518
    %v711 = vpack.c.b16 %v527, %v519
    %v712 = vpack.c.b16 %v528, %v520
    %v713 = vpack.c.b16 %v529, %v521
    %v714 = vpack.c.b16 %v530, %v522
    %v715 = vpack.c.b16 %v539, %v531
    %v716 = vpack.c.b16 %v540, %v532
    %v717 = vpack.c.b16 %v541, %v533
    %v718 = vpack.c.b16 %v542, %v534
    %v719 = vpack.c.b16 %v543, %v535
    %v720 = vpack.c.b16 %v544, %v536
    %v721 = vpack.c.b16 %v545, %v537
    %v722 = vpack.c.b16 %v546, %v538
    %v723 = vpack.c.b16 %v555, %v547
    %v724 = vpack.c.b16 %v556, %v548
    %v725 = vpack.c.b16 %v557, %v549
    %v726 = vpack.c.b16 %v558, %v550
    %v727 = vpack.c.b16 %v559, %v551
    %v728 = vpack.c.b16 %v560, %v552
    %v729 = vpack.c.b16 %v561, %v553
    %v730 = vpack.c.b16 %v562, %v554
    %v731 = vpack.c.b16 %v571, %v563
    %v732 = vpack.c.b16 %v572, %v564
    %v733 = vpack.c.b16 %v573, %v565
    %v734 = vpack.c.b16 %v574, %v566
    %v735 = vpack.c.b16 %v575, %v567
    %v736 = vpack.c.b16 %v576, %v568
    %v737 = vpack.c.b16 %v577, %v569
    %v738 = vpack.c.b16 %v578, %v570
    %v739 = vpack.c.b16 %v587, %v579
    %v740 = vpack.c.b16 %v588, %v580
    %v741 = vpack.c.b16 %v589, %v581
    %v742 = vpack.c.b16 %v590, %v582
    %v743 = vpack.c.b16 %v591, %v583
    %v744 = vpack.c.b16 %v592, %v584
    %v745 = vpack.c.b16 %v593, %v585
    %v746 = vpack.c.b16 %v594, %v586
    %v747 = vpack.c.b16 %v603, %v595
    %v748 = vpack.c.b16 %v604, %v596
    %v749 = vpack.c.b16 %v605, %v597
    %v750 = vpack.c.b16 %v606, %v598
    %v751 = vpack.c.b16 %v607, %v599
    %v752 = vpack.c.b16 %v608, %v600
    %v753 = vpack.c.b16 %v609, %v601
    %v754 = vpack.c.b16 %v610, %v602
    %v755 = vpack.c.b16 %v619, %v611
    %v756 = vpack.c.b16 %v620, %v612
    %v757 = vpack.c.b16 %v621, %v613
    %v758 = vpack.c.b16 %v622, %v614
    %v759 = vpack.c.b16 %v623, %v615
    %v760 = vpack.c.b16 %v624, %v616
    %v761 = vpack.c.b16 %v625, %v617
    %v762 = vpack.c.b16 %v626, %v618
    %v763 = vpack.c.b16 %v635, %v627
    %v764 = vpack.c.b16 %v636, %v628
    %v765 = vpack.c.b16 %v637, %v629
    %v766 = vpack.c.b16 %v638, %v630
    %v767 = vpack.c.b16 %v639, %v631
    %v768 = vpack.c.b16 %v640, %v632
    %v769 = vpack.c.b16 %v641, %v633
    %v770 = vpack.c.b16 %v642, %v634
    %899 = vmatprep.subr.bf16.mxu0 %v644
    %900 = vmatpush1.bf16.msra.mxu0 %v643
    %901 = vmatprep.subr.bf16.mxu0 %v652
    %902 = vmatpush1.bf16.msra.mxu0 %v651
    %903 = vmatprep.subr.bf16.mxu0 %v660
    %904 = vmatpush1.bf16.msra.mxu0 %v659
    %905 = vmatprep.subr.bf16.mxu0 %v668
    %906 = vmatpush1.bf16.msra.mxu0 %v667
    %907 = vmatprep.subr.bf16.mxu0 %v676
    %908 = vmatpush1.bf16.msra.mxu0 %v675
    %909 = vmatprep.subr.bf16.mxu0 %v684
    %910 = vmatpush1.bf16.msra.mxu0 %v683
    %911 = vmatprep.subr.bf16.mxu0 %v692
    %912 = vmatpush1.bf16.msra.mxu0 %v691
    %913 = vmatprep.subr.bf16.mxu0 %v700
    %914 = vmatpush1.bf16.msra.mxu0 %v699
    %915 = vmatprep.subr.bf16.mxu0 %v708
    %916 = vmatpush1.bf16.msra.mxu0 %v707
    %917 = vmatprep.subr.bf16.mxu0 %v716
    %918 = vmatpush1.bf16.msra.mxu0 %v715
    %919 = vmatprep.subr.bf16.mxu0 %v724
    %920 = vmatpush1.bf16.msra.mxu0 %v723
    %921 = vmatprep.subr.bf16.mxu0 %v732
    %922 = vmatpush1.bf16.msra.mxu0 %v731
    %923 = vmatprep.subr.bf16.mxu0 %v740
    %924 = vmatpush1.bf16.msra.mxu0 %v739
    %925 = vmatprep.subr.bf16.mxu0 %v748
    %926 = vmatpush1.bf16.msra.mxu0 %v747
    %927 = vmatprep.subr.bf16.mxu0 %v756
    %928 = vmatpush1.bf16.msra.mxu0 %v755
    %929 = vmatprep.subr.bf16.mxu0 %v764
    %930 = vmatpush1.bf16.msra.mxu0 %v763
    %931 = vmatprep.mubr.bf16.mxu0 %v256
    %932 = vmatmul.mubr.bf16.gmra.mrb[0].mxu0 %v255
    %v933 = vpop.f32.mrb[0].mxu0
    %v934 = vadd.f32 %v205, %v933
    %v935 = vpop.f32.mrb[0].mxu0
    %v936 = vadd.f32 %v209, %v935
    %v937 = vpop.f32.mrb[0].mxu0
    %v938 = vpop.f32.mrb[0].mxu0
    %939 = vdwg.mxu0
    %940 = vmatprep.subr.bf16.mxu0 %v646
    %941 = vmatpush1.bf16.msra.mxu0 %v645
    %942 = vmatprep.subr.bf16.mxu0 %v654
    %943 = vmatpush1.bf16.msra.mxu0 %v653
    %944 = vmatprep.subr.bf16.mxu0 %v662
    %945 = vmatpush1.bf16.msra.mxu0 %v661
    %946 = vmatprep.subr.bf16.mxu0 %v670
    %947 = vmatpush1.bf16.msra.mxu0 %v669
    %948 = vmatprep.subr.bf16.mxu0 %v678
    %949 = vmatpush1.bf16.msra.mxu0 %v677
    %950 = vmatprep.subr.bf16.mxu0 %v686
    %951 = vmatpush1.bf16.msra.mxu0 %v685
    %952 = vmatprep.subr.bf16.mxu0 %v694
    %953 = vmatpush1.bf16.msra.mxu0 %v693
    %954 = vmatprep.subr.bf16.mxu0 %v702
    %955 = vmatpush1.bf16.msra.mxu0 %v701
    %956 = vmatprep.subr.bf16.mxu0 %v710
    %957 = vmatpush1.bf16.msra.mxu0 %v709
    %958 = vmatprep.subr.bf16.mxu0 %v718
    %959 = vmatpush1.bf16.msra.mxu0 %v717
    %960 = vmatprep.subr.bf16.mxu0 %v726
    %961 = vmatpush1.bf16.msra.mxu0 %v725
    %962 = vmatprep.subr.bf16.mxu0 %v734
    %963 = vmatpush1.bf16.msra.mxu0 %v733
    %964 = vmatprep.subr.bf16.mxu0 %v742
    %965 = vmatpush1.bf16.msra.mxu0 %v741
    %966 = vmatprep.subr.bf16.mxu0 %v750
    %967 = vmatpush1.bf16.msra.mxu0 %v749
    %968 = vmatprep.subr.bf16.mxu0 %v758
    %969 = vmatpush1.bf16.msra.mxu0 %v757
    %970 = vmatprep.subr.bf16.mxu0 %v766
    %971 = vmatpush1.bf16.msra.mxu0 %v765
    %972 = vmatprep.mubr.bf16.mxu0 %v256
    %973 = vmatmul.mubr.bf16.gmra.mrb[0].mxu0 %v255
    %v974 = vpop.f32.mrb[0].mxu0
    %v975 = vadd.f32 %v213, %v974
    %v976 = vpop.f32.mrb[0].mxu0
    %v977 = vadd.f32 %v217, %v976
    %v978 = vpop.f32.mrb[0].mxu0
    %v979 = vpop.f32.mrb[0].mxu0
    %980 = vdwg.mxu0
    %981 = vmatprep.subr.bf16.mxu0 %v648
    %982 = vmatpush1.bf16.msra.mxu0 %v647
    %983 = vmatprep.subr.bf16.mxu0 %v656
    %984 = vmatpush1.bf16.msra.mxu0 %v655
    %985 = vmatprep.subr.bf16.mxu0 %v664
    %986 = vmatpush1.bf16.msra.mxu0 %v663
    %987 = vmatprep.subr.bf16.mxu0 %v672
    %988 = vmatpush1.bf16.msra.mxu0 %v671
    %989 = vmatprep.subr.bf16.mxu0 %v680
    %990 = vmatpush1.bf16.msra.mxu0 %v679
    %991 = vmatprep.subr.bf16.mxu0 %v688
    %992 = vmatpush1.bf16.msra.mxu0 %v687
    %993 = vmatprep.subr.bf16.mxu0 %v696
    %994 = vmatpush1.bf16.msra.mxu0 %v695
    %995 = vmatprep.subr.bf16.mxu0 %v704
    %996 = vmatpush1.bf16.msra.mxu0 %v703
    %997 = vmatprep.subr.bf16.mxu0 %v712
    %998 = vmatpush1.bf16.msra.mxu0 %v711
    %999 = vmatprep.subr.bf16.mxu0 %v720
    %1000 = vmatpush1.bf16.msra.mxu0 %v719
    %1001 = vmatprep.subr.bf16.mxu0 %v728
    %1002 = vmatpush1.bf16.msra.mxu0 %v727
    %1003 = vmatprep.subr.bf16.mxu0 %v736
    %1004 = vmatpush1.bf16.msra.mxu0 %v735
    %1005 = vmatprep.subr.bf16.mxu0 %v744
    %1006 = vmatpush1.bf16.msra.mxu0 %v743
    %1007 = vmatprep.subr.bf16.mxu0 %v752
    %1008 = vmatpush1.bf16.msra.mxu0 %v751
    %1009 = vmatprep.subr.bf16.mxu0 %v760
    %1010 = vmatpush1.bf16.msra.mxu0 %v759
    %1011 = vmatprep.subr.bf16.mxu0 %v768
    %1012 = vmatpush1.bf16.msra.mxu0 %v767
    %1013 = vmatprep.mubr.bf16.mxu0 %v256
    %1014 = vmatmul.mubr.bf16.gmra.mrb[0].mxu0 %v255
    %v1015 = vpop.f32.mrb[0].mxu0
    %v1016 = vadd.f32 %v221, %v1015
    %v1017 = vpop.f32.mrb[0].mxu0
    %v1018 = vadd.f32 %v225, %v1017
    %v1019 = vpop.f32.mrb[0].mxu0
    %v1020 = vpop.f32.mrb[0].mxu0
    %1021 = vdwg.mxu0
    %1022 = vmatprep.subr.bf16.mxu0 %v650
    %1023 = vmatpush1.bf16.msra.mxu0 %v649
    %1024 = vmatprep.subr.bf16.mxu0 %v658
    %1025 = vmatpush1.bf16.msra.mxu0 %v657
    %1026 = vmatprep.subr.bf16.mxu0 %v666
    %1027 = vmatpush1.bf16.msra.mxu0 %v665
    %1028 = vmatprep.subr.bf16.mxu0 %v674
    %1029 = vmatpush1.bf16.msra.mxu0 %v673
    %1030 = vmatprep.subr.bf16.mxu0 %v682
    %1031 = vmatpush1.bf16.msra.mxu0 %v681
    %1032 = vmatprep.subr.bf16.mxu0 %v690
    %1033 = vmatpush1.bf16.msra.mxu0 %v689
    %1034 = vmatprep.subr.bf16.mxu0 %v698
    %1035 = vmatpush1.bf16.msra.mxu0 %v697
    %1036 = vmatprep.subr.bf16.mxu0 %v706
    %1037 = vmatpush1.bf16.msra.mxu0 %v705
    %1038 = vmatprep.subr.bf16.mxu0 %v714
    %1039 = vmatpush1.bf16.msra.mxu0 %v713
    %1040 = vmatprep.subr.bf16.mxu0 %v722
    %1041 = vmatpush1.bf16.msra.mxu0 %v721
    %1042 = vmatprep.subr.bf16.mxu0 %v730
    %1043 = vmatpush1.bf16.msra.mxu0 %v729
    %1044 = vmatprep.subr.bf16.mxu0 %v738
    %1045 = vmatpush1.bf16.msra.mxu0 %v737
    %1046 = vmatprep.subr.bf16.mxu0 %v746
    %1047 = vmatpush1.bf16.msra.mxu0 %v745
    %1048 = vmatprep.subr.bf16.mxu0 %v754
    %1049 = vmatpush1.bf16.msra.mxu0 %v753
    %1050 = vmatprep.subr.bf16.mxu0 %v762
    %1051 = vmatpush1.bf16.msra.mxu0 %v761
    %1052 = vmatprep.subr.bf16.mxu0 %v770
    %1053 = vmatpush1.bf16.msra.mxu0 %v769
    %1054 = vmatprep.mubr.bf16.mxu0 %v256
    %1055 = vmatmul.mubr.bf16.gmra.mrb[0].mxu0 %v255
    %v1056 = vpop.f32.mrb[0].mxu0
    %v1057 = vadd.f32 %v229, %v1056
    %v1058 = vpop.f32.mrb[0].mxu0
    %v1059 = vadd.f32 %v233, %v1058
    %v1060 = vpop.f32.mrb[0].mxu0
    %v1061 = vpop.f32.mrb[0].mxu0
    %1062 = vdwg.mxu0
    %v1063 = vmax.f32 %v934, 0.0
    %v1064 = vmax.f32 %v936, 0.0
    %v1065 = vmax.f32 %v975, 0.0
    %v1066 = vmax.f32 %v977, 0.0
    %v1067 = vmax.f32 %v1016, 0.0
    %v1068 = vmax.f32 %v1018, 0.0
    %v1069 = vmax.f32 %v1057, 0.0
    %v1070 = vmax.f32 %v1059, 0.0
    %v1071 = vpack.c.bf16 %v1063, %v1063
    %v1072 = vpack.c.bf16 %v1064, %v1064
    %v1073 = vpack.c.bf16 %v1065, %v1065
    %v1074 = vpack.c.bf16 %v1066, %v1066
    %v1075 = vpack.c.bf16 %v1067, %v1067
    %v1076 = vpack.c.bf16 %v1068, %v1068
    %v1077 = vpack.c.bf16 %v1069, %v1069
    %v1078 = vpack.c.bf16 %v1070, %v1070
    %v1079 = vld [vmem:[%s3] sm:$0xff]
    %v1080 = vld [vmem:[%s3 + $0x8] sm:$0xff]
    %v1081 = vld [vmem:[%s3 + $0x10] sm:$0xff]
    %v1082 = vld [vmem:[%s3 + $0x18] sm:$0xff]
    %v1083 = vld [vmem:[%s3 + $0x20] sm:$0xff]
    %v1084 = vld [vmem:[%s3 + $0x28] sm:$0xff]
    %v1085 = vld [vmem:[%s3 + $0x30] sm:$0xff]
    %v1086 = vld [vmem:[%s3 + $0x38] sm:$0xff]
    %v1087 = vld [vmem:[%s3 + $0x40] sm:$0xff]
    %v1088 = vld [vmem:[%s3 + $0x48] sm:$0xff]
    %v1089 = vld [vmem:[%s3 + $0x50] sm:$0xff]
    %v1090 = vld [vmem:[%s3 + $0x58] sm:$0xff]
    %v1091 = vld [vmem:[%s3 + $0x60] sm:$0xff]
    %v1092 = vld [vmem:[%s3 + $0x68] sm:$0xff]
    %v1093 = vld [vmem:[%s3 + $0x70] sm:$0xff]
    %v1094 = vld [vmem:[%s3 + $0x78] sm:$0xff]
    %v1095 = vld [vmem:[%s3 + $0x80] sm:$0xff]
    %v1096 = vld [vmem:[%s3 + $0x88] sm:$0xff]
    %v1097 = vld [vmem:[%s3 + $0x90] sm:$0xff]
    %v1098 = vld [vmem:[%s3 + $0x98] sm:$0xff]
    %v1099 = vld [vmem:[%s3 + $0xa0] sm:$0xff]
    %v1100 = vld [vmem:[%s3 + $0xa8] sm:$0xff]
    %v1101 = vld [vmem:[%s3 + $0xb0] sm:$0xff]
    %v1102 = vld [vmem:[%s3 + $0xb8] sm:$0xff]
    %v1103 = vld [vmem:[%s3 + $0xc0] sm:$0xff]
    %v1104 = vld [vmem:[%s3 + $0xc8] sm:$0xff]
    %v1105 = vld [vmem:[%s3 + $0xd0] sm:$0xff]
    %v1106 = vld [vmem:[%s3 + $0xd8] sm:$0xff]
    %v1107 = vld [vmem:[%s3 + $0xe0] sm:$0xff]
    %v1108 = vld [vmem:[%s3 + $0xe8] sm:$0xff]
    %v1109 = vld [vmem:[%s3 + $0xf0] sm:$0xff]
    %v1110 = vld [vmem:[%s3 + $0xf8] sm:$0xff]
    %v1111 = vld [vmem:[%s3 + $0x100] sm:$0xff]
    %v1112 = vld [vmem:[%s3 + $0x108] sm:$0xff]
    %v1113 = vld [vmem:[%s3 + $0x110] sm:$0xff]
    %v1114 = vld [vmem:[%s3 + $0x118] sm:$0xff]
    %v1115 = vld [vmem:[%s3 + $0x120] sm:$0xff]
    %v1116 = vld [vmem:[%s3 + $0x128] sm:$0xff]
    %v1117 = vld [vmem:[%s3 + $0x130] sm:$0xff]
    %v1118 = vld [vmem:[%s3 + $0x138] sm:$0xff]
    %v1119 = vld [vmem:[%s3 + $0x140] sm:$0xff]
    %v1120 = vld [vmem:[%s3 + $0x148] sm:$0xff]
    %v1121 = vld [vmem:[%s3 + $0x150] sm:$0xff]
    %v1122 = vld [vmem:[%s3 + $0x158] sm:$0xff]
    %v1123 = vld [vmem:[%s3 + $0x160] sm:$0xff]
    %v1124 = vld [vmem:[%s3 + $0x168] sm:$0xff]
    %v1125 = vld [vmem:[%s3 + $0x170] sm:$0xff]
    %v1126 = vld [vmem:[%s3 + $0x178] sm:$0xff]
    %v1127 = vld [vmem:[%s3 + $0x180] sm:$0xff]
    %v1128 = vld [vmem:[%s3 + $0x188] sm:$0xff]
    %v1129 = vld [vmem:[%s3 + $0x190] sm:$0xff]
    %v1130 = vld [vmem:[%s3 + $0x198] sm:$0xff]
    %v1131 = vld [vmem:[%s3 + $0x1a0] sm:$0xff]
    %v1132 = vld [vmem:[%s3 + $0x1a8] sm:$0xff]
    %v1133 = vld [vmem:[%s3 + $0x1b0] sm:$0xff]
    %v1134 = vld [vmem:[%s3 + $0x1b8] sm:$0xff]
    %v1135 = vld [vmem:[%s3 + $0x1c0] sm:$0xff]
    %v1136 = vld [vmem:[%s3 + $0x1c8] sm:$0xff]
    %v1137 = vld [vmem:[%s3 + $0x1d0] sm:$0xff]
    %v1138 = vld [vmem:[%s3 + $0x1d8] sm:$0xff]
    %v1139 = vld [vmem:[%s3 + $0x1e0] sm:$0xff]
    %v1140 = vld [vmem:[%s3 + $0x1e8] sm:$0xff]
    %v1141 = vld [vmem:[%s3 + $0x1f0] sm:$0xff]
    %v1142 = vld [vmem:[%s3 + $0x1f8] sm:$0xff]
    %v1143 = vld [vmem:[%s3 + $0x200] sm:$0xff]
    %v1144 = vld [vmem:[%s3 + $0x208] sm:$0xff]
    %v1145 = vld [vmem:[%s3 + $0x210] sm:$0xff]
    %v1146 = vld [vmem:[%s3 + $0x218] sm:$0xff]
    %v1147 = vld [vmem:[%s3 + $0x220] sm:$0xff]
    %v1148 = vld [vmem:[%s3 + $0x228] sm:$0xff]
    %v1149 = vld [vmem:[%s3 + $0x230] sm:$0xff]
    %v1150 = vld [vmem:[%s3 + $0x238] sm:$0xff]
    %v1151 = vld [vmem:[%s3 + $0x240] sm:$0xff]
    %v1152 = vld [vmem:[%s3 + $0x248] sm:$0xff]
    %v1153 = vld [vmem:[%s3 + $0x250] sm:$0xff]
    %v1154 = vld [vmem:[%s3 + $0x258] sm:$0xff]
    %v1155 = vld [vmem:[%s3 + $0x260] sm:$0xff]
    %v1156 = vld [vmem:[%s3 + $0x268] sm:$0xff]
    %v1157 = vld [vmem:[%s3 + $0x270] sm:$0xff]
    %v1158 = vld [vmem:[%s3 + $0x278] sm:$0xff]
    %v1159 = vld [vmem:[%s3 + $0x280] sm:$0xff]
    %v1160 = vld [vmem:[%s3 + $0x288] sm:$0xff]
    %v1161 = vld [vmem:[%s3 + $0x290] sm:$0xff]
    %v1162 = vld [vmem:[%s3 + $0x298] sm:$0xff]
    %v1163 = vld [vmem:[%s3 + $0x2a0] sm:$0xff]
    %v1164 = vld [vmem:[%s3 + $0x2a8] sm:$0xff]
    %v1165 = vld [vmem:[%s3 + $0x2b0] sm:$0xff]
    %v1166 = vld [vmem:[%s3 + $0x2b8] sm:$0xff]
    %v1167 = vld [vmem:[%s3 + $0x2c0] sm:$0xff]
    %v1168 = vld [vmem:[%s3 + $0x2c8] sm:$0xff]
    %v1169 = vld [vmem:[%s3 + $0x2d0] sm:$0xff]
    %v1170 = vld [vmem:[%s3 + $0x2d8] sm:$0xff]
    %v1171 = vld [vmem:[%s3 + $0x2e0] sm:$0xff]
    %v1172 = vld [vmem:[%s3 + $0x2e8] sm:$0xff]
    %v1173 = vld [vmem:[%s3 + $0x2f0] sm:$0xff]
    %v1174 = vld [vmem:[%s3 + $0x2f8] sm:$0xff]
    %v1175 = vld [vmem:[%s3 + $0x300] sm:$0xff]
    %v1176 = vld [vmem:[%s3 + $0x308] sm:$0xff]
    %v1177 = vld [vmem:[%s3 + $0x310] sm:$0xff]
    %v1178 = vld [vmem:[%s3 + $0x318] sm:$0xff]
    %v1179 = vld [vmem:[%s3 + $0x320] sm:$0xff]
    %v1180 = vld [vmem:[%s3 + $0x328] sm:$0xff]
    %v1181 = vld [vmem:[%s3 + $0x330] sm:$0xff]
    %v1182 = vld [vmem:[%s3 + $0x338] sm:$0xff]
    %v1183 = vld [vmem:[%s3 + $0x340] sm:$0xff]
    %v1184 = vld [vmem:[%s3 + $0x348] sm:$0xff]
    %v1185 = vld [vmem:[%s3 + $0x350] sm:$0xff]
    %v1186 = vld [vmem:[%s3 + $0x358] sm:$0xff]
    %v1187 = vld [vmem:[%s3 + $0x360] sm:$0xff]
    %v1188 = vld [vmem:[%s3 + $0x368] sm:$0xff]
    %v1189 = vld [vmem:[%s3 + $0x370] sm:$0xff]
    %v1190 = vld [vmem:[%s3 + $0x378] sm:$0xff]
    %v1191 = vld [vmem:[%s3 + $0x380] sm:$0xff]
    %v1192 = vld [vmem:[%s3 + $0x388] sm:$0xff]
    %v1193 = vld [vmem:[%s3 + $0x390] sm:$0xff]
    %v1194 = vld [vmem:[%s3 + $0x398] sm:$0xff]
    %v1195 = vld [vmem:[%s3 + $0x3a0] sm:$0xff]
    %v1196 = vld [vmem:[%s3 + $0x3a8] sm:$0xff]
    %v1197 = vld [vmem:[%s3 + $0x3b0] sm:$0xff]
    %v1198 = vld [vmem:[%s3 + $0x3b8] sm:$0xff]
    %v1199 = vld [vmem:[%s3 + $0x3c0] sm:$0xff]
    %v1200 = vld [vmem:[%s3 + $0x3c8] sm:$0xff]
    %v1201 = vld [vmem:[%s3 + $0x3d0] sm:$0xff]
    %v1202 = vld [vmem:[%s3 + $0x3d8] sm:$0xff]
    %v1203 = vld [vmem:[%s3 + $0x3e0] sm:$0xff]
    %v1204 = vld [vmem:[%s3 + $0x3e8] sm:$0xff]
    %v1205 = vld [vmem:[%s3 + $0x3f0] sm:$0xff]
    %v1206 = vld [vmem:[%s3 + $0x3f8] sm:$0xff]
    %v1207 = vld [vmem:[%s3 + $0x400] sm:$0xff]
    %v1208 = vld [vmem:[%s3 + $0x408] sm:$0xff]
    %v1209 = vld [vmem:[%s3 + $0x410] sm:$0xff]
    %v1210 = vld [vmem:[%s3 + $0x418] sm:$0xff]
    %v1211 = vld [vmem:[%s3 + $0x420] sm:$0xff]
    %v1212 = vld [vmem:[%s3 + $0x428] sm:$0xff]
    %v1213 = vld [vmem:[%s3 + $0x430] sm:$0xff]
    %v1214 = vld [vmem:[%s3 + $0x438] sm:$0xff]
    %v1215 = vld [vmem:[%s3 + $0x440] sm:$0xff]
    %v1216 = vld [vmem:[%s3 + $0x448] sm:$0xff]
    %v1217 = vld [vmem:[%s3 + $0x450] sm:$0xff]
    %v1218 = vld [vmem:[%s3 + $0x458] sm:$0xff]
    %v1219 = vld [vmem:[%s3 + $0x460] sm:$0xff]
    %v1220 = vld [vmem:[%s3 + $0x468] sm:$0xff]
    %v1221 = vld [vmem:[%s3 + $0x470] sm:$0xff]
    %v1222 = vld [vmem:[%s3 + $0x478] sm:$0xff]
    %v1223 = vld [vmem:[%s3 + $0x480] sm:$0xff]
    %v1224 = vld [vmem:[%s3 + $0x488] sm:$0xff]
    %v1225 = vld [vmem:[%s3 + $0x490] sm:$0xff]
    %v1226 = vld [vmem:[%s3 + $0x498] sm:$0xff]
    %v1227 = vld [vmem:[%s3 + $0x4a0] sm:$0xff]
    %v1228 = vld [vmem:[%s3 + $0x4a8] sm:$0xff]
    %v1229 = vld [vmem:[%s3 + $0x4b0] sm:$0xff]
    %v1230 = vld [vmem:[%s3 + $0x4b8] sm:$0xff]
    %v1231 = vld [vmem:[%s3 + $0x4c0] sm:$0xff]
    %v1232 = vld [vmem:[%s3 + $0x4c8] sm:$0xff]
    %v1233 = vld [vmem:[%s3 + $0x4d0] sm:$0xff]
    %v1234 = vld [vmem:[%s3 + $0x4d8] sm:$0xff]
    %v1235 = vld [vmem:[%s3 + $0x4e0] sm:$0xff]
    %v1236 = vld [vmem:[%s3 + $0x4e8] sm:$0xff]
    %v1237 = vld [vmem:[%s3 + $0x4f0] sm:$0xff]
    %v1238 = vld [vmem:[%s3 + $0x4f8] sm:$0xff]
    %v1239 = vld [vmem:[%s3 + $0x500] sm:$0xff]
    %v1240 = vld [vmem:[%s3 + $0x508] sm:$0xff]
    %v1241 = vld [vmem:[%s3 + $0x510] sm:$0xff]
    %v1242 = vld [vmem:[%s3 + $0x518] sm:$0xff]
    %v1243 = vld [vmem:[%s3 + $0x520] sm:$0xff]
    %v1244 = vld [vmem:[%s3 + $0x528] sm:$0xff]
    %v1245 = vld [vmem:[%s3 + $0x530] sm:$0xff]
    %v1246 = vld [vmem:[%s3 + $0x538] sm:$0xff]
    %v1247 = vld [vmem:[%s3 + $0x540] sm:$0xff]
    %v1248 = vld [vmem:[%s3 + $0x548] sm:$0xff]
    %v1249 = vld [vmem:[%s3 + $0x550] sm:$0xff]
    %v1250 = vld [vmem:[%s3 + $0x558] sm:$0xff]
    %v1251 = vld [vmem:[%s3 + $0x560] sm:$0xff]
    %v1252 = vld [vmem:[%s3 + $0x568] sm:$0xff]
    %v1253 = vld [vmem:[%s3 + $0x570] sm:$0xff]
    %v1254 = vld [vmem:[%s3 + $0x578] sm:$0xff]
    %v1255 = vld [vmem:[%s3 + $0x580] sm:$0xff]
    %v1256 = vld [vmem:[%s3 + $0x588] sm:$0xff]
    %v1257 = vld [vmem:[%s3 + $0x590] sm:$0xff]
    %v1258 = vld [vmem:[%s3 + $0x598] sm:$0xff]
    %v1259 = vld [vmem:[%s3 + $0x5a0] sm:$0xff]
    %v1260 = vld [vmem:[%s3 + $0x5a8] sm:$0xff]
    %v1261 = vld [vmem:[%s3 + $0x5b0] sm:$0xff]
    %v1262 = vld [vmem:[%s3 + $0x5b8] sm:$0xff]
    %v1263 = vld [vmem:[%s3 + $0x5c0] sm:$0xff]
    %v1264 = vld [vmem:[%s3 + $0x5c8] sm:$0xff]
    %v1265 = vld [vmem:[%s3 + $0x5d0] sm:$0xff]
    %v1266 = vld [vmem:[%s3 + $0x5d8] sm:$0xff]
    %v1267 = vld [vmem:[%s3 + $0x5e0] sm:$0xff]
    %v1268 = vld [vmem:[%s3 + $0x5e8] sm:$0xff]
    %v1269 = vld [vmem:[%s3 + $0x5f0] sm:$0xff]
    %v1270 = vld [vmem:[%s3 + $0x5f8] sm:$0xff]
    %v1271 = vld [vmem:[%s3 + $0x600] sm:$0xff]
    %v1272 = vld [vmem:[%s3 + $0x608] sm:$0xff]
    %v1273 = vld [vmem:[%s3 + $0x610] sm:$0xff]
    %v1274 = vld [vmem:[%s3 + $0x618] sm:$0xff]
    %v1275 = vld [vmem:[%s3 + $0x620] sm:$0xff]
    %v1276 = vld [vmem:[%s3 + $0x628] sm:$0xff]
    %v1277 = vld [vmem:[%s3 + $0x630] sm:$0xff]
    %v1278 = vld [vmem:[%s3 + $0x638] sm:$0xff]
    %v1279 = vld [vmem:[%s3 + $0x640] sm:$0xff]
    %v1280 = vld [vmem:[%s3 + $0x648] sm:$0xff]
    %v1281 = vld [vmem:[%s3 + $0x650] sm:$0xff]
    %v1282 = vld [vmem:[%s3 + $0x658] sm:$0xff]
    %v1283 = vld [vmem:[%s3 + $0x660] sm:$0xff]
    %v1284 = vld [vmem:[%s3 + $0x668] sm:$0xff]
    %v1285 = vld [vmem:[%s3 + $0x670] sm:$0xff]
    %v1286 = vld [vmem:[%s3 + $0x678] sm:$0xff]
    %v1287 = vld [vmem:[%s3 + $0x680] sm:$0xff]
    %v1288 = vld [vmem:[%s3 + $0x688] sm:$0xff]
    %v1289 = vld [vmem:[%s3 + $0x690] sm:$0xff]
    %v1290 = vld [vmem:[%s3 + $0x698] sm:$0xff]
    %v1291 = vld [vmem:[%s3 + $0x6a0] sm:$0xff]
    %v1292 = vld [vmem:[%s3 + $0x6a8] sm:$0xff]
    %v1293 = vld [vmem:[%s3 + $0x6b0] sm:$0xff]
    %v1294 = vld [vmem:[%s3 + $0x6b8] sm:$0xff]
    %v1295 = vld [vmem:[%s3 + $0x6c0] sm:$0xff]
    %v1296 = vld [vmem:[%s3 + $0x6c8] sm:$0xff]
    %v1297 = vld [vmem:[%s3 + $0x6d0] sm:$0xff]
    %v1298 = vld [vmem:[%s3 + $0x6d8] sm:$0xff]
    %v1299 = vld [vmem:[%s3 + $0x6e0] sm:$0xff]
    %v1300 = vld [vmem:[%s3 + $0x6e8] sm:$0xff]
    %v1301 = vld [vmem:[%s3 + $0x6f0] sm:$0xff]
    %v1302 = vld [vmem:[%s3 + $0x6f8] sm:$0xff]
    %v1303 = vld [vmem:[%s3 + $0x700] sm:$0xff]
    %v1304 = vld [vmem:[%s3 + $0x708] sm:$0xff]
    %v1305 = vld [vmem:[%s3 + $0x710] sm:$0xff]
    %v1306 = vld [vmem:[%s3 + $0x718] sm:$0xff]
    %v1307 = vld [vmem:[%s3 + $0x720] sm:$0xff]
    %v1308 = vld [vmem:[%s3 + $0x728] sm:$0xff]
    %v1309 = vld [vmem:[%s3 + $0x730] sm:$0xff]
    %v1310 = vld [vmem:[%s3 + $0x738] sm:$0xff]
    %v1311 = vld [vmem:[%s3 + $0x740] sm:$0xff]
    %v1312 = vld [vmem:[%s3 + $0x748] sm:$0xff]
    %v1313 = vld [vmem:[%s3 + $0x750] sm:$0xff]
    %v1314 = vld [vmem:[%s3 + $0x758] sm:$0xff]
    %v1315 = vld [vmem:[%s3 + $0x760] sm:$0xff]
    %v1316 = vld [vmem:[%s3 + $0x768] sm:$0xff]
    %v1317 = vld [vmem:[%s3 + $0x770] sm:$0xff]
    %v1318 = vld [vmem:[%s3 + $0x778] sm:$0xff]
    %v1319 = vld [vmem:[%s3 + $0x780] sm:$0xff]
    %v1320 = vld [vmem:[%s3 + $0x788] sm:$0xff]
    %v1321 = vld [vmem:[%s3 + $0x790] sm:$0xff]
    %v1322 = vld [vmem:[%s3 + $0x798] sm:$0xff]
    %v1323 = vld [vmem:[%s3 + $0x7a0] sm:$0xff]
    %v1324 = vld [vmem:[%s3 + $0x7a8] sm:$0xff]
    %v1325 = vld [vmem:[%s3 + $0x7b0] sm:$0xff]
    %v1326 = vld [vmem:[%s3 + $0x7b8] sm:$0xff]
    %v1327 = vld [vmem:[%s3 + $0x7c0] sm:$0xff]
    %v1328 = vld [vmem:[%s3 + $0x7c8] sm:$0xff]
    %v1329 = vld [vmem:[%s3 + $0x7d0] sm:$0xff]
    %v1330 = vld [vmem:[%s3 + $0x7d8] sm:$0xff]
    %v1331 = vld [vmem:[%s3 + $0x7e0] sm:$0xff]
    %v1332 = vld [vmem:[%s3 + $0x7e8] sm:$0xff]
    %v1333 = vld [vmem:[%s3 + $0x7f0] sm:$0xff]
    %v1334 = vld [vmem:[%s3 + $0x7f8] sm:$0xff]
    %v1335 = vld [vmem:[%s4] sm:$0xf]
    %v1337 = vlaneseq
    %v1338 = vshrl.u32 %v1337, 7
    %v1339 = vsub.s32 0, %v1338
    %v1340 = vrot.slane %v1335, %v1339
    %v1341 = vlaneseq
    %v1342 = vshrl.u32 %v1341, 7
    %v1343 = vsub.s32 1, %v1342
    %v1344 = vrot.slane %v1335, %v1343
    %v1345 = vlaneseq
    %v1346 = vshrl.u32 %v1345, 7
    %v1347 = vsub.s32 2, %v1346
    %v1348 = vrot.slane %v1335, %v1347
    %v1349 = vlaneseq
    %v1350 = vshrl.u32 %v1349, 7
    %v1351 = vsub.s32 3, %v1350
    %v1352 = vrot.slane %v1335, %v1351
    %v1613 = vunpack.c.l.b16 %v1079
    %v1614 = vunpack.c.h.b16 %v1079
    %v1615 = vunpack.c.l.b16 %v1080
    %v1616 = vunpack.c.h.b16 %v1080
    %v1617 = vunpack.c.l.b16 %v1081
    %v1618 = vunpack.c.h.b16 %v1081
    %v1619 = vunpack.c.l.b16 %v1082
    %v1620 = vunpack.c.h.b16 %v1082
    %v1621 = vunpack.c.l.b16 %v1083
    %v1622 = vunpack.c.h.b16 %v1083
    %v1623 = vunpack.c.l.b16 %v1084
    %v1624 = vunpack.c.h.b16 %v1084
    %v1625 = vunpack.c.l.b16 %v1085
    %v1626 = vunpack.c.h.b16 %v1085
    %v1627 = vunpack.c.l.b16 %v1086
    %v1628 = vunpack.c.h.b16 %v1086
    %v1629 = vunpack.c.l.b16 %v1087
    %v1630 = vunpack.c.h.b16 %v1087
    %v1631 = vunpack.c.l.b16 %v1088
    %v1632 = vunpack.c.h.b16 %v1088
    %v1633 = vunpack.c.l.b16 %v1089
    %v1634 = vunpack.c.h.b16 %v1089
    %v1635 = vunpack.c.l.b16 %v1090
    %v1636 = vunpack.c.h.b16 %v1090
    %v1637 = vunpack.c.l.b16 %v1091
    %v1638 = vunpack.c.h.b16 %v1091
    %v1639 = vunpack.c.l.b16 %v1092
    %v1640 = vunpack.c.h.b16 %v1092
    %v1641 = vunpack.c.l.b16 %v1093
    %v1642 = vunpack.c.h.b16 %v1093
    %v1643 = vunpack.c.l.b16 %v1094
    %v1644 = vunpack.c.h.b16 %v1094
    %v1645 = vunpack.c.l.b16 %v1095
    %v1646 = vunpack.c.h.b16 %v1095
    %v1647 = vunpack.c.l.b16 %v1096
    %v1648 = vunpack.c.h.b16 %v1096
    %v1649 = vunpack.c.l.b16 %v1097
    %v1650 = vunpack.c.h.b16 %v1097
    %v1651 = vunpack.c.l.b16 %v1098
    %v1652 = vunpack.c.h.b16 %v1098
    %v1653 = vunpack.c.l.b16 %v1099
    %v1654 = vunpack.c.h.b16 %v1099
    %v1655 = vunpack.c.l.b16 %v1100
    %v1656 = vunpack.c.h.b16 %v1100
    %v1657 = vunpack.c.l.b16 %v1101
    %v1658 = vunpack.c.h.b16 %v1101
    %v1659 = vunpack.c.l.b16 %v1102
    %v1660 = vunpack.c.h.b16 %v1102
    %v1661 = vunpack.c.l.b16 %v1103
    %v1662 = vunpack.c.h.b16 %v1103
    %v1663 = vunpack.c.l.b16 %v1104
    %v1664 = vunpack.c.h.b16 %v1104
    %v1665 = vunpack.c.l.b16 %v1105
    %v1666 = vunpack.c.h.b16 %v1105
    %v1667 = vunpack.c.l.b16 %v1106
    %v1668 = vunpack.c.h.b16 %v1106
    %v1669 = vunpack.c.l.b16 %v1107
    %v1670 = vunpack.c.h.b16 %v1107
    %v1671 = vunpack.c.l.b16 %v1108
    %v1672 = vunpack.c.h.b16 %v1108
    %v1673 = vunpack.c.l.b16 %v1109
    %v1674 = vunpack.c.h.b16 %v1109
    %v1675 = vunpack.c.l.b16 %v1110
    %v1676 = vunpack.c.h.b16 %v1110
    %v1677 = vunpack.c.l.b16 %v1111
    %v1678 = vunpack.c.h.b16 %v1111
    %v1679 = vunpack.c.l.b16 %v1112
    %v1680 = vunpack.c.h.b16 %v1112
    %v1681 = vunpack.c.l.b16 %v1113
    %v1682 = vunpack.c.h.b16 %v1113
    %v1683 = vunpack.c.l.b16 %v1114
    %v1684 = vunpack.c.h.b16 %v1114
    %v1685 = vunpack.c.l.b16 %v1115
    %v1686 = vunpack.c.h.b16 %v1115
    %v1687 = vunpack.c.l.b16 %v1116
    %v1688 = vunpack.c.h.b16 %v1116
    %v1689 = vunpack.c.l.b16 %v1117
    %v1690 = vunpack.c.h.b16 %v1117
    %v1691 = vunpack.c.l.b16 %v1118
    %v1692 = vunpack.c.h.b16 %v1118
    %v1693 = vunpack.c.l.b16 %v1119
    %v1694 = vunpack.c.h.b16 %v1119
    %v1695 = vunpack.c.l.b16 %v1120
    %v1696 = vunpack.c.h.b16 %v1120
    %v1697 = vunpack.c.l.b16 %v1121
    %v1698 = vunpack.c.h.b16 %v1121
    %v1699 = vunpack.c.l.b16 %v1122
    %v1700 = vunpack.c.h.b16 %v1122
    %v1701 = vunpack.c.l.b16 %v1123
    %v1702 = vunpack.c.h.b16 %v1123
    %v1703 = vunpack.c.l.b16 %v1124
    %v1704 = vunpack.c.h.b16 %v1124
    %v1705 = vunpack.c.l.b16 %v1125
    %v1706 = vunpack.c.h.b16 %v1125
    %v1707 = vunpack.c.l.b16 %v1126
    %v1708 = vunpack.c.h.b16 %v1126
    %v1709 = vunpack.c.l.b16 %v1127
    %v1710 = vunpack.c.h.b16 %v1127
    %v1711 = vunpack.c.l.b16 %v1128
    %v1712 = vunpack.c.h.b16 %v1128
    %v1713 = vunpack.c.l.b16 %v1129
    %v1714 = vunpack.c.h.b16 %v1129
    %v1715 = vunpack.c.l.b16 %v1130
    %v1716 = vunpack.c.h.b16 %v1130
    %v1717 = vunpack.c.l.b16 %v1131
    %v1718 = vunpack.c.h.b16 %v1131
    %v1719 = vunpack.c.l.b16 %v1132
    %v1720 = vunpack.c.h.b16 %v1132
    %v1721 = vunpack.c.l.b16 %v1133
    %v1722 = vunpack.c.h.b16 %v1133
    %v1723 = vunpack.c.l.b16 %v1134
    %v1724 = vunpack.c.h.b16 %v1134
    %v1725 = vunpack.c.l.b16 %v1135
    %v1726 = vunpack.c.h.b16 %v1135
    %v1727 = vunpack.c.l.b16 %v1136
    %v1728 = vunpack.c.h.b16 %v1136
    %v1729 = vunpack.c.l.b16 %v1137
    %v1730 = vunpack.c.h.b16 %v1137
    %v1731 = vunpack.c.l.b16 %v1138
    %v1732 = vunpack.c.h.b16 %v1138
    %v1733 = vunpack.c.l.b16 %v1139
    %v1734 = vunpack.c.h.b16 %v1139
    %v1735 = vunpack.c.l.b16 %v1140
    %v1736 = vunpack.c.h.b16 %v1140
    %v1737 = vunpack.c.l.b16 %v1141
    %v1738 = vunpack.c.h.b16 %v1141
    %v1739 = vunpack.c.l.b16 %v1142
    %v1740 = vunpack.c.h.b16 %v1142
    %v1741 = vunpack.c.l.b16 %v1143
    %v1742 = vunpack.c.h.b16 %v1143
    %v1743 = vunpack.c.l.b16 %v1144
    %v1744 = vunpack.c.h.b16 %v1144
    %v1745 = vunpack.c.l.b16 %v1145
    %v1746 = vunpack.c.h.b16 %v1145
    %v1747 = vunpack.c.l.b16 %v1146
    %v1748 = vunpack.c.h.b16 %v1146
    %v1749 = vunpack.c.l.b16 %v1147
    %v1750 = vunpack.c.h.b16 %v1147
    %v1751 = vunpack.c.l.b16 %v1148
    %v1752 = vunpack.c.h.b16 %v1148
    %v1753 = vunpack.c.l.b16 %v1149
    %v1754 = vunpack.c.h.b16 %v1149
    %v1755 = vunpack.c.l.b16 %v1150
    %v1756 = vunpack.c.h.b16 %v1150
    %v1757 = vunpack.c.l.b16 %v1151
    %v1758 = vunpack.c.h.b16 %v1151
    %v1759 = vunpack.c.l.b16 %v1152
    %v1760 = vunpack.c.h.b16 %v1152
    %v1761 = vunpack.c.l.b16 %v1153
    %v1762 = vunpack.c.h.b16 %v1153
    %v1763 = vunpack.c.l.b16 %v1154
    %v1764 = vunpack.c.h.b16 %v1154
    %v1765 = vunpack.c.l.b16 %v1155
    %v1766 = vunpack.c.h.b16 %v1155
    %v1767 = vunpack.c.l.b16 %v1156
    %v1768 = vunpack.c.h.b16 %v1156
    %v1769 = vunpack.c.l.b16 %v1157
    %v1770 = vunpack.c.h.b16 %v1157
    %v1771 = vunpack.c.l.b16 %v1158
    %v1772 = vunpack.c.h.b16 %v1158
    %v1773 = vunpack.c.l.b16 %v1159
    %v1774 = vunpack.c.h.b16 %v1159
    %v1775 = vunpack.c.l.b16 %v1160
    %v1776 = vunpack.c.h.b16 %v1160
    %v1777 = vunpack.c.l.b16 %v1161
    %v1778 = vunpack.c.h.b16 %v1161
    %v1779 = vunpack.c.l.b16 %v1162
    %v1780 = vunpack.c.h.b16 %v1162
    %v1781 = vunpack.c.l.b16 %v1163
    %v1782 = vunpack.c.h.b16 %v1163
    %v1783 = vunpack.c.l.b16 %v1164
    %v1784 = vunpack.c.h.b16 %v1164
    %v1785 = vunpack.c.l.b16 %v1165
    %v1786 = vunpack.c.h.b16 %v1165
    %v1787 = vunpack.c.l.b16 %v1166
    %v1788 = vunpack.c.h.b16 %v1166
    %v1789 = vunpack.c.l.b16 %v1167
    %v1790 = vunpack.c.h.b16 %v1167
    %v1791 = vunpack.c.l.b16 %v1168
    %v1792 = vunpack.c.h.b16 %v1168
    %v1793 = vunpack.c.l.b16 %v1169
    %v1794 = vunpack.c.h.b16 %v1169
    %v1795 = vunpack.c.l.b16 %v1170
    %v1796 = vunpack.c.h.b16 %v1170
    %v1797 = vunpack.c.l.b16 %v1171
    %v1798 = vunpack.c.h.b16 %v1171
    %v1799 = vunpack.c.l.b16 %v1172
    %v1800 = vunpack.c.h.b16 %v1172
    %v1801 = vunpack.c.l.b16 %v1173
    %v1802 = vunpack.c.h.b16 %v1173
    %v1803 = vunpack.c.l.b16 %v1174
    %v1804 = vunpack.c.h.b16 %v1174
    %v1805 = vunpack.c.l.b16 %v1175
    %v1806 = vunpack.c.h.b16 %v1175
    %v1807 = vunpack.c.l.b16 %v1176
    %v1808 = vunpack.c.h.b16 %v1176
    %v1809 = vunpack.c.l.b16 %v1177
    %v1810 = vunpack.c.h.b16 %v1177
    %v1811 = vunpack.c.l.b16 %v1178
    %v1812 = vunpack.c.h.b16 %v1178
    %v1813 = vunpack.c.l.b16 %v1179
    %v1814 = vunpack.c.h.b16 %v1179
    %v1815 = vunpack.c.l.b16 %v1180
    %v1816 = vunpack.c.h.b16 %v1180
    %v1817 = vunpack.c.l.b16 %v1181
    %v1818 = vunpack.c.h.b16 %v1181
    %v1819 = vunpack.c.l.b16 %v1182
    %v1820 = vunpack.c.h.b16 %v1182
    %v1821 = vunpack.c.l.b16 %v1183
    %v1822 = vunpack.c.h.b16 %v1183
    %v1823 = vunpack.c.l.b16 %v1184
    %v1824 = vunpack.c.h.b16 %v1184
    %v1825 = vunpack.c.l.b16 %v1185
    %v1826 = vunpack.c.h.b16 %v1185
    %v1827 = vunpack.c.l.b16 %v1186
    %v1828 = vunpack.c.h.b16 %v1186
    %v1829 = vunpack.c.l.b16 %v1187
    %v1830 = vunpack.c.h.b16 %v1187
    %v1831 = vunpack.c.l.b16 %v1188
    %v1832 = vunpack.c.h.b16 %v1188
    %v1833 = vunpack.c.l.b16 %v1189
    %v1834 = vunpack.c.h.b16 %v1189
    %v1835 = vunpack.c.l.b16 %v1190
    %v1836 = vunpack.c.h.b16 %v1190
    %v1837 = vunpack.c.l.b16 %v1191
    %v1838 = vunpack.c.h.b16 %v1191
    %v1839 = vunpack.c.l.b16 %v1192
    %v1840 = vunpack.c.h.b16 %v1192
    %v1841 = vunpack.c.l.b16 %v1193
    %v1842 = vunpack.c.h.b16 %v1193
    %v1843 = vunpack.c.l.b16 %v1194
    %v1844 = vunpack.c.h.b16 %v1194
    %v1845 = vunpack.c.l.b16 %v1195
    %v1846 = vunpack.c.h.b16 %v1195
    %v1847 = vunpack.c.l.b16 %v1196
    %v1848 = vunpack.c.h.b16 %v1196
    %v1849 = vunpack.c.l.b16 %v1197
    %v1850 = vunpack.c.h.b16 %v1197
    %v1851 = vunpack.c.l.b16 %v1198
    %v1852 = vunpack.c.h.b16 %v1198
    %v1853 = vunpack.c.l.b16 %v1199
    %v1854 = vunpack.c.h.b16 %v1199
    %v1855 = vunpack.c.l.b16 %v1200
    %v1856 = vunpack.c.h.b16 %v1200
    %v1857 = vunpack.c.l.b16 %v1201
    %v1858 = vunpack.c.h.b16 %v1201
    %v1859 = vunpack.c.l.b16 %v1202
    %v1860 = vunpack.c.h.b16 %v1202
    %v1861 = vunpack.c.l.b16 %v1203
    %v1862 = vunpack.c.h.b16 %v1203
    %v1863 = vunpack.c.l.b16 %v1204
    %v1864 = vunpack.c.h.b16 %v1204
    %v1865 = vunpack.c.l.b16 %v1205
    %v1866 = vunpack.c.h.b16 %v1205
    %v1867 = vunpack.c.l.b16 %v1206
    %v1868 = vunpack.c.h.b16 %v1206
    %v1869 = vunpack.c.l.b16 %v1207
    %v1870 = vunpack.c.h.b16 %v1207
    %v1871 = vunpack.c.l.b16 %v1208
    %v1872 = vunpack.c.h.b16 %v1208
    %v1873 = vunpack.c.l.b16 %v1209
    %v1874 = vunpack.c.h.b16 %v1209
    %v1875 = vunpack.c.l.b16 %v1210
    %v1876 = vunpack.c.h.b16 %v1210
    %v1877 = vunpack.c.l.b16 %v1211
    %v1878 = vunpack.c.h.b16 %v1211
    %v1879 = vunpack.c.l.b16 %v1212
    %v1880 = vunpack.c.h.b16 %v1212
    %v1881 = vunpack.c.l.b16 %v1213
    %v1882 = vunpack.c.h.b16 %v1213
    %v1883 = vunpack.c.l.b16 %v1214
    %v1884 = vunpack.c.h.b16 %v1214
    %v1885 = vunpack.c.l.b16 %v1215
    %v1886 = vunpack.c.h.b16 %v1215
    %v1887 = vunpack.c.l.b16 %v1216
    %v1888 = vunpack.c.h.b16 %v1216
    %v1889 = vunpack.c.l.b16 %v1217
    %v1890 = vunpack.c.h.b16 %v1217
    %v1891 = vunpack.c.l.b16 %v1218
    %v1892 = vunpack.c.h.b16 %v1218
    %v1893 = vunpack.c.l.b16 %v1219
    %v1894 = vunpack.c.h.b16 %v1219
    %v1895 = vunpack.c.l.b16 %v1220
    %v1896 = vunpack.c.h.b16 %v1220
    %v1897 = vunpack.c.l.b16 %v1221
    %v1898 = vunpack.c.h.b16 %v1221
    %v1899 = vunpack.c.l.b16 %v1222
    %v1900 = vunpack.c.h.b16 %v1222
    %v1901 = vunpack.c.l.b16 %v1223
    %v1902 = vunpack.c.h.b16 %v1223
    %v1903 = vunpack.c.l.b16 %v1224
    %v1904 = vunpack.c.h.b16 %v1224
    %v1905 = vunpack.c.l.b16 %v1225
    %v1906 = vunpack.c.h.b16 %v1225
    %v1907 = vunpack.c.l.b16 %v1226
    %v1908 = vunpack.c.h.b16 %v1226
    %v1909 = vunpack.c.l.b16 %v1227
    %v1910 = vunpack.c.h.b16 %v1227
    %v1911 = vunpack.c.l.b16 %v1228
    %v1912 = vunpack.c.h.b16 %v1228
    %v1913 = vunpack.c.l.b16 %v1229
    %v1914 = vunpack.c.h.b16 %v1229
    %v1915 = vunpack.c.l.b16 %v1230
    %v1916 = vunpack.c.h.b16 %v1230
    %v1917 = vunpack.c.l.b16 %v1231
    %v1918 = vunpack.c.h.b16 %v1231
    %v1919 = vunpack.c.l.b16 %v1232
    %v1920 = vunpack.c.h.b16 %v1232
    %v1921 = vunpack.c.l.b16 %v1233
    %v1922 = vunpack.c.h.b16 %v1233
    %v1923 = vunpack.c.l.b16 %v1234
    %v1924 = vunpack.c.h.b16 %v1234
    %v1925 = vunpack.c.l.b16 %v1235
    %v1926 = vunpack.c.h.b16 %v1235
    %v1927 = vunpack.c.l.b16 %v1236
    %v1928 = vunpack.c.h.b16 %v1236
    %v1929 = vunpack.c.l.b16 %v1237
    %v1930 = vunpack.c.h.b16 %v1237
    %v1931 = vunpack.c.l.b16 %v1238
    %v1932 = vunpack.c.h.b16 %v1238
    %v1933 = vunpack.c.l.b16 %v1239
    %v1934 = vunpack.c.h.b16 %v1239
    %v1935 = vunpack.c.l.b16 %v1240
    %v1936 = vunpack.c.h.b16 %v1240
    %v1937 = vunpack.c.l.b16 %v1241
    %v1938 = vunpack.c.h.b16 %v1241
    %v1939 = vunpack.c.l.b16 %v1242
    %v1940 = vunpack.c.h.b16 %v1242
    %v1941 = vunpack.c.l.b16 %v1243
    %v1942 = vunpack.c.h.b16 %v1243
    %v1943 = vunpack.c.l.b16 %v1244
    %v1944 = vunpack.c.h.b16 %v1244
    %v1945 = vunpack.c.l.b16 %v1245
    %v1946 = vunpack.c.h.b16 %v1245
    %v1947 = vunpack.c.l.b16 %v1246
    %v1948 = vunpack.c.h.b16 %v1246
    %v1949 = vunpack.c.l.b16 %v1247
    %v1950 = vunpack.c.h.b16 %v1247
    %v1951 = vunpack.c.l.b16 %v1248
    %v1952 = vunpack.c.h.b16 %v1248
    %v1953 = vunpack.c.l.b16 %v1249
    %v1954 = vunpack.c.h.b16 %v1249
    %v1955 = vunpack.c.l.b16 %v1250
    %v1956 = vunpack.c.h.b16 %v1250
    %v1957 = vunpack.c.l.b16 %v1251
    %v1958 = vunpack.c.h.b16 %v1251
    %v1959 = vunpack.c.l.b16 %v1252
    %v1960 = vunpack.c.h.b16 %v1252
    %v1961 = vunpack.c.l.b16 %v1253
    %v1962 = vunpack.c.h.b16 %v1253
    %v1963 = vunpack.c.l.b16 %v1254
    %v1964 = vunpack.c.h.b16 %v1254
    %v1965 = vunpack.c.l.b16 %v1255
    %v1966 = vunpack.c.h.b16 %v1255
    %v1967 = vunpack.c.l.b16 %v1256
    %v1968 = vunpack.c.h.b16 %v1256
    %v1969 = vunpack.c.l.b16 %v1257
    %v1970 = vunpack.c.h.b16 %v1257
    %v1971 = vunpack.c.l.b16 %v1258
    %v1972 = vunpack.c.h.b16 %v1258
    %v1973 = vunpack.c.l.b16 %v1259
    %v1974 = vunpack.c.h.b16 %v1259
    %v1975 = vunpack.c.l.b16 %v1260
    %v1976 = vunpack.c.h.b16 %v1260
    %v1977 = vunpack.c.l.b16 %v1261
    %v1978 = vunpack.c.h.b16 %v1261
    %v1979 = vunpack.c.l.b16 %v1262
    %v1980 = vunpack.c.h.b16 %v1262
    %v1981 = vunpack.c.l.b16 %v1263
    %v1982 = vunpack.c.h.b16 %v1263
    %v1983 = vunpack.c.l.b16 %v1264
    %v1984 = vunpack.c.h.b16 %v1264
    %v1985 = vunpack.c.l.b16 %v1265
    %v1986 = vunpack.c.h.b16 %v1265
    %v1987 = vunpack.c.l.b16 %v1266
    %v1988 = vunpack.c.h.b16 %v1266
    %v1989 = vunpack.c.l.b16 %v1267
    %v1990 = vunpack.c.h.b16 %v1267
    %v1991 = vunpack.c.l.b16 %v1268
    %v1992 = vunpack.c.h.b16 %v1268
    %v1993 = vunpack.c.l.b16 %v1269
    %v1994 = vunpack.c.h.b16 %v1269
    %v1995 = vunpack.c.l.b16 %v1270
    %v1996 = vunpack.c.h.b16 %v1270
    %v1997 = vunpack.c.l.b16 %v1271
    %v1998 = vunpack.c.h.b16 %v1271
    %v1999 = vunpack.c.l.b16 %v1272
    %v2000 = vunpack.c.h.b16 %v1272
    %v2001 = vunpack.c.l.b16 %v1273
    %v2002 = vunpack.c.h.b16 %v1273
    %v2003 = vunpack.c.l.b16 %v1274
    %v2004 = vunpack.c.h.b16 %v1274
    %v2005 = vunpack.c.l.b16 %v1275
    %v2006 = vunpack.c.h.b16 %v1275
    %v2007 = vunpack.c.l.b16 %v1276
    %v2008 = vunpack.c.h.b16 %v1276
    %v2009 = vunpack.c.l.b16 %v1277
    %v2010 = vunpack.c.h.b16 %v1277
    %v2011 = vunpack.c.l.b16 %v1278
    %v2012 = vunpack.c.h.b16 %v1278
    %v2013 = vunpack.c.l.b16 %v1279
    %v2014 = vunpack.c.h.b16 %v1279
    %v2015 = vunpack.c.l.b16 %v1280
    %v2016 = vunpack.c.h.b16 %v1280
    %v2017 = vunpack.c.l.b16 %v1281
    %v2018 = vunpack.c.h.b16 %v1281
    %v2019 = vunpack.c.l.b16 %v1282
    %v2020 = vunpack.c.h.b16 %v1282
    %v2021 = vunpack.c.l.b16 %v1283
    %v2022 = vunpack.c.h.b16 %v1283
    %v2023 = vunpack.c.l.b16 %v1284
    %v2024 = vunpack.c.h.b16 %v1284
    %v2025 = vunpack.c.l.b16 %v1285
    %v2026 = vunpack.c.h.b16 %v1285
    %v2027 = vunpack.c.l.b16 %v1286
    %v2028 = vunpack.c.h.b16 %v1286
    %v2029 = vunpack.c.l.b16 %v1287
    %v2030 = vunpack.c.h.b16 %v1287
    %v2031 = vunpack.c.l.b16 %v1288
    %v2032 = vunpack.c.h.b16 %v1288
    %v2033 = vunpack.c.l.b16 %v1289
    %v2034 = vunpack.c.h.b16 %v1289
    %v2035 = vunpack.c.l.b16 %v1290
    %v2036 = vunpack.c.h.b16 %v1290
    %v2037 = vunpack.c.l.b16 %v1291
    %v2038 = vunpack.c.h.b16 %v1291
    %v2039 = vunpack.c.l.b16 %v1292
    %v2040 = vunpack.c.h.b16 %v1292
    %v2041 = vunpack.c.l.b16 %v1293
    %v2042 = vunpack.c.h.b16 %v1293
    %v2043 = vunpack.c.l.b16 %v1294
    %v2044 = vunpack.c.h.b16 %v1294
    %v2045 = vunpack.c.l.b16 %v1295
    %v2046 = vunpack.c.h.b16 %v1295
    %v2047 = vunpack.c.l.b16 %v1296
    %v2048 = vunpack.c.h.b16 %v1296
    %v2049 = vunpack.c.l.b16 %v1297
    %v2050 = vunpack.c.h.b16 %v1297
    %v2051 = vunpack.c.l.b16 %v1298
    %v2052 = vunpack.c.h.b16 %v1298
    %v2053 = vunpack.c.l.b16 %v1299
    %v2054 = vunpack.c.h.b16 %v1299
    %v2055 = vunpack.c.l.b16 %v1300
    %v2056 = vunpack.c.h.b16 %v1300
    %v2057 = vunpack.c.l.b16 %v1301
    %v2058 = vunpack.c.h.b16 %v1301
    %v2059 = vunpack.c.l.b16 %v1302
    %v2060 = vunpack.c.h.b16 %v1302
    %v2061 = vunpack.c.l.b16 %v1303
    %v2062 = vunpack.c.h.b16 %v1303
    %v2063 = vunpack.c.l.b16 %v1304
    %v2064 = vunpack.c.h.b16 %v1304
    %v2065 = vunpack.c.l.b16 %v1305
    %v2066 = vunpack.c.h.b16 %v1305
    %v2067 = vunpack.c.l.b16 %v1306
    %v2068 = vunpack.c.h.b16 %v1306
    %v2069 = vunpack.c.l.b16 %v1307
    %v2070 = vunpack.c.h.b16 %v1307
    %v2071 = vunpack.c.l.b16 %v1308
    %v2072 = vunpack.c.h.b16 %v1308
    %v2073 = vunpack.c.l.b16 %v1309
    %v2074 = vunpack.c.h.b16 %v1309
    %v2075 = vunpack.c.l.b16 %v1310
    %v2076 = vunpack.c.h.b16 %v1310
    %v2077 = vunpack.c.l.b16 %v1311
    %v2078 = vunpack.c.h.b16 %v1311
    %v2079 = vunpack.c.l.b16 %v1312
    %v2080 = vunpack.c.h.b16 %v1312
    %v2081 = vunpack.c.l.b16 %v1313
    %v2082 = vunpack.c.h.b16 %v1313
    %v2083 = vunpack.c.l.b16 %v1314
    %v2084 = vunpack.c.h.b16 %v1314
    %v2085 = vunpack.c.l.b16 %v1315
    %v2086 = vunpack.c.h.b16 %v1315
    %v2087 = vunpack.c.l.b16 %v1316
    %v2088 = vunpack.c.h.b16 %v1316
    %v2089 = vunpack.c.l.b16 %v1317
    %v2090 = vunpack.c.h.b16 %v1317
    %v2091 = vunpack.c.l.b16 %v1318
    %v2092 = vunpack.c.h.b16 %v1318
    %v2093 = vunpack.c.l.b16 %v1319
    %v2094 = vunpack.c.h.b16 %v1319
    %v2095 = vunpack.c.l.b16 %v1320
    %v2096 = vunpack.c.h.b16 %v1320
    %v2097 = vunpack.c.l.b16 %v1321
    %v2098 = vunpack.c.h.b16 %v1321
    %v2099 = vunpack.c.l.b16 %v1322
    %v2100 = vunpack.c.h.b16 %v1322
    %v2101 = vunpack.c.l.b16 %v1323
    %v2102 = vunpack.c.h.b16 %v1323
    %v2103 = vunpack.c.l.b16 %v1324
    %v2104 = vunpack.c.h.b16 %v1324
    %v2105 = vunpack.c.l.b16 %v1325
    %v2106 = vunpack.c.h.b16 %v1325
    %v2107 = vunpack.c.l.b16 %v1326
    %v2108 = vunpack.c.h.b16 %v1326
    %v2109 = vunpack.c.l.b16 %v1327
    %v2110 = vunpack.c.h.b16 %v1327
    %v2111 = vunpack.c.l.b16 %v1328
    %v2112 = vunpack.c.h.b16 %v1328
    %v2113 = vunpack.c.l.b16 %v1329
    %v2114 = vunpack.c.h.b16 %v1329
    %v2115 = vunpack.c.l.b16 %v1330
    %v2116 = vunpack.c.h.b16 %v1330
    %v2117 = vunpack.c.l.b16 %v1331
    %v2118 = vunpack.c.h.b16 %v1331
    %v2119 = vunpack.c.l.b16 %v1332
    %v2120 = vunpack.c.h.b16 %v1332
    %v2121 = vunpack.c.l.b16 %v1333
    %v2122 = vunpack.c.h.b16 %v1333
    %v2123 = vunpack.c.l.b16 %v1334
    %v2124 = vunpack.c.h.b16 %v1334
    %v2125 = vpack.c.b16 %v1617, %v1613
    %v2126 = vpack.c.b16 %v1618, %v1614
    %v2127 = vpack.c.b16 %v1619, %v1615
    %v2128 = vpack.c.b16 %v1620, %v1616
    %v2129 = vpack.c.b16 %v1625, %v1621
    %v2130 = vpack.c.b16 %v1626, %v1622
    %v2131 = vpack.c.b16 %v1627, %v1623
    %v2132 = vpack.c.b16 %v1628, %v1624
    %v2133 = vpack.c.b16 %v1633, %v1629
    %v2134 = vpack.c.b16 %v1634, %v1630
    %v2135 = vpack.c.b16 %v1635, %v1631
    %v2136 = vpack.c.b16 %v1636, %v1632
    %v2137 = vpack.c.b16 %v1641, %v1637
    %v2138 = vpack.c.b16 %v1642, %v1638
    %v2139 = vpack.c.b16 %v1643, %v1639
    %v2140 = vpack.c.b16 %v1644, %v1640
    %v2141 = vpack.c.b16 %v1649, %v1645
    %v2142 = vpack.c.b16 %v1650, %v1646
    %v2143 = vpack.c.b16 %v1651, %v1647
    %v2144 = vpack.c.b16 %v1652, %v1648
    %v2145 = vpack.c.b16 %v1657, %v1653
    %v2146 = vpack.c.b16 %v1658, %v1654
    %v2147 = vpack.c.b16 %v1659, %v1655
    %v2148 = vpack.c.b16 %v1660, %v1656
    %v2149 = vpack.c.b16 %v1665, %v1661
    %v2150 = vpack.c.b16 %v1666, %v1662
    %v2151 = vpack.c.b16 %v1667, %v1663
    %v2152 = vpack.c.b16 %v1668, %v1664
    %v2153 = vpack.c.b16 %v1673, %v1669
    %v2154 = vpack.c.b16 %v1674, %v1670
    %v2155 = vpack.c.b16 %v1675, %v1671
    %v2156 = vpack.c.b16 %v1676, %v1672
    %v2157 = vpack.c.b16 %v1681, %v1677
    %v2158 = vpack.c.b16 %v1682, %v1678
    %v2159 = vpack.c.b16 %v1683, %v1679
    %v2160 = vpack.c.b16 %v1684, %v1680
    %v2161 = vpack.c.b16 %v1689, %v1685
    %v2162 = vpack.c.b16 %v1690, %v1686
    %v2163 = vpack.c.b16 %v1691, %v1687
    %v2164 = vpack.c.b16 %v1692, %v1688
    %v2165 = vpack.c.b16 %v1697, %v1693
    %v2166 = vpack.c.b16 %v1698, %v1694
    %v2167 = vpack.c.b16 %v1699, %v1695
    %v2168 = vpack.c.b16 %v1700, %v1696
    %v2169 = vpack.c.b16 %v1705, %v1701
    %v2170 = vpack.c.b16 %v1706, %v1702
    %v2171 = vpack.c.b16 %v1707, %v1703
    %v2172 = vpack.c.b16 %v1708, %v1704
    %v2173 = vpack.c.b16 %v1713, %v1709
    %v2174 = vpack.c.b16 %v1714, %v1710
    %v2175 = vpack.c.b16 %v1715, %v1711
    %v2176 = vpack.c.b16 %v1716, %v1712
    %v2177 = vpack.c.b16 %v1721, %v1717
    %v2178 = vpack.c.b16 %v1722, %v1718
    %v2179 = vpack.c.b16 %v1723, %v1719
    %v2180 = vpack.c.b16 %v1724, %v1720
    %v2181 = vpack.c.b16 %v1729, %v1725
    %v2182 = vpack.c.b16 %v1730, %v1726
    %v2183 = vpack.c.b16 %v1731, %v1727
    %v2184 = vpack.c.b16 %v1732, %v1728
    %v2185 = vpack.c.b16 %v1737, %v1733
    %v2186 = vpack.c.b16 %v1738, %v1734
    %v2187 = vpack.c.b16 %v1739, %v1735
    %v2188 = vpack.c.b16 %v1740, %v1736
    %v2189 = vpack.c.b16 %v1745, %v1741
    %v2190 = vpack.c.b16 %v1746, %v1742
    %v2191 = vpack.c.b16 %v1747, %v1743
    %v2192 = vpack.c.b16 %v1748, %v1744
    %v2193 = vpack.c.b16 %v1753, %v1749
    %v2194 = vpack.c.b16 %v1754, %v1750
    %v2195 = vpack.c.b16 %v1755, %v1751
    %v2196 = vpack.c.b16 %v1756, %v1752
    %v2197 = vpack.c.b16 %v1761, %v1757
    %v2198 = vpack.c.b16 %v1762, %v1758
    %v2199 = vpack.c.b16 %v1763, %v1759
    %v2200 = vpack.c.b16 %v1764, %v1760
    %v2201 = vpack.c.b16 %v1769, %v1765
    %v2202 = vpack.c.b16 %v1770, %v1766
    %v2203 = vpack.c.b16 %v1771, %v1767
    %v2204 = vpack.c.b16 %v1772, %v1768
    %v2205 = vpack.c.b16 %v1777, %v1773
    %v2206 = vpack.c.b16 %v1778, %v1774
    %v2207 = vpack.c.b16 %v1779, %v1775
    %v2208 = vpack.c.b16 %v1780, %v1776
    %v2209 = vpack.c.b16 %v1785, %v1781
    %v2210 = vpack.c.b16 %v1786, %v1782
    %v2211 = vpack.c.b16 %v1787, %v1783
    %v2212 = vpack.c.b16 %v1788, %v1784
    %v2213 = vpack.c.b16 %v1793, %v1789
    %v2214 = vpack.c.b16 %v1794, %v1790
    %v2215 = vpack.c.b16 %v1795, %v1791
    %v2216 = vpack.c.b16 %v1796, %v1792
    %v2217 = vpack.c.b16 %v1801, %v1797
    %v2218 = vpack.c.b16 %v1802, %v1798
    %v2219 = vpack.c.b16 %v1803, %v1799
    %v2220 = vpack.c.b16 %v1804, %v1800
    %v2221 = vpack.c.b16 %v1809, %v1805
    %v2222 = vpack.c.b16 %v1810, %v1806
    %v2223 = vpack.c.b16 %v1811, %v1807
    %v2224 = vpack.c.b16 %v1812, %v1808
    %v2225 = vpack.c.b16 %v1817, %v1813
    %v2226 = vpack.c.b16 %v1818, %v1814
    %v2227 = vpack.c.b16 %v1819, %v1815
    %v2228 = vpack.c.b16 %v1820, %v1816
    %v2229 = vpack.c.b16 %v1825, %v1821
    %v2230 = vpack.c.b16 %v1826, %v1822
    %v2231 = vpack.c.b16 %v1827, %v1823
    %v2232 = vpack.c.b16 %v1828, %v1824
    %v2233 = vpack.c.b16 %v1833, %v1829
    %v2234 = vpack.c.b16 %v1834, %v1830
    %v2235 = vpack.c.b16 %v1835, %v1831
    %v2236 = vpack.c.b16 %v1836, %v1832
    %v2237 = vpack.c.b16 %v1841, %v1837
    %v2238 = vpack.c.b16 %v1842, %v1838
    %v2239 = vpack.c.b16 %v1843, %v1839
    %v2240 = vpack.c.b16 %v1844, %v1840
    %v2241 = vpack.c.b16 %v1849, %v1845
    %v2242 = vpack.c.b16 %v1850, %v1846
    %v2243 = vpack.c.b16 %v1851, %v1847
    %v2244 = vpack.c.b16 %v1852, %v1848
    %v2245 = vpack.c.b16 %v1857, %v1853
    %v2246 = vpack.c.b16 %v1858, %v1854
    %v2247 = vpack.c.b16 %v1859, %v1855
    %v2248 = vpack.c.b16 %v1860, %v1856
    %v2249 = vpack.c.b16 %v1865, %v1861
    %v2250 = vpack.c.b16 %v1866, %v1862
    %v2251 = vpack.c.b16 %v1867, %v1863
    %v2252 = vpack.c.b16 %v1868, %v1864
    %v2253 = vpack.c.b16 %v1873, %v1869
    %v2254 = vpack.c.b16 %v1874, %v1870
    %v2255 = vpack.c.b16 %v1875, %v1871
    %v2256 = vpack.c.b16 %v1876, %v1872
    %v2257 = vpack.c.b16 %v1881, %v1877
    %v2258 = vpack.c.b16 %v1882, %v1878
    %v2259 = vpack.c.b16 %v1883, %v1879
    %v2260 = vpack.c.b16 %v1884, %v1880
    %v2261 = vpack.c.b16 %v1889, %v1885
    %v2262 = vpack.c.b16 %v1890, %v1886
    %v2263 = vpack.c.b16 %v1891, %v1887
    %v2264 = vpack.c.b16 %v1892, %v1888
    %v2265 = vpack.c.b16 %v1897, %v1893
    %v2266 = vpack.c.b16 %v1898, %v1894
    %v2267 = vpack.c.b16 %v1899, %v1895
    %v2268 = vpack.c.b16 %v1900, %v1896
    %v2269 = vpack.c.b16 %v1905, %v1901
    %v2270 = vpack.c.b16 %v1906, %v1902
    %v2271 = vpack.c.b16 %v1907, %v1903
    %v2272 = vpack.c.b16 %v1908, %v1904
    %v2273 = vpack.c.b16 %v1913, %v1909
    %v2274 = vpack.c.b16 %v1914, %v1910
    %v2275 = vpack.c.b16 %v1915, %v1911
    %v2276 = vpack.c.b16 %v1916, %v1912
    %v2277 = vpack.c.b16 %v1921, %v1917
    %v2278 = vpack.c.b16 %v1922, %v1918
    %v2279 = vpack.c.b16 %v1923, %v1919
    %v2280 = vpack.c.b16 %v1924, %v1920
    %v2281 = vpack.c.b16 %v1929, %v1925
    %v2282 = vpack.c.b16 %v1930, %v1926
    %v2283 = vpack.c.b16 %v1931, %v1927
    %v2284 = vpack.c.b16 %v1932, %v1928
    %v2285 = vpack.c.b16 %v1937, %v1933
    %v2286 = vpack.c.b16 %v1938, %v1934
    %v2287 = vpack.c.b16 %v1939, %v1935
    %v2288 = vpack.c.b16 %v1940, %v1936
    %v2289 = vpack.c.b16 %v1945, %v1941
    %v2290 = vpack.c.b16 %v1946, %v1942
    %v2291 = vpack.c.b16 %v1947, %v1943
    %v2292 = vpack.c.b16 %v1948, %v1944
    %v2293 = vpack.c.b16 %v1953, %v1949
    %v2294 = vpack.c.b16 %v1954, %v1950
    %v2295 = vpack.c.b16 %v1955, %v1951
    %v2296 = vpack.c.b16 %v1956, %v1952
    %v2297 = vpack.c.b16 %v1961, %v1957
    %v2298 = vpack.c.b16 %v1962, %v1958
    %v2299 = vpack.c.b16 %v1963, %v1959
    %v2300 = vpack.c.b16 %v1964, %v1960
    %v2301 = vpack.c.b16 %v1969, %v1965
    %v2302 = vpack.c.b16 %v1970, %v1966
    %v2303 = vpack.c.b16 %v1971, %v1967
    %v2304 = vpack.c.b16 %v1972, %v1968
    %v2305 = vpack.c.b16 %v1977, %v1973
    %v2306 = vpack.c.b16 %v1978, %v1974
    %v2307 = vpack.c.b16 %v1979, %v1975
    %v2308 = vpack.c.b16 %v1980, %v1976
    %v2309 = vpack.c.b16 %v1985, %v1981
    %v2310 = vpack.c.b16 %v1986, %v1982
    %v2311 = vpack.c.b16 %v1987, %v1983
    %v2312 = vpack.c.b16 %v1988, %v1984
    %v2313 = vpack.c.b16 %v1993, %v1989
    %v2314 = vpack.c.b16 %v1994, %v1990
    %v2315 = vpack.c.b16 %v1995, %v1991
    %v2316 = vpack.c.b16 %v1996, %v1992
    %v2317 = vpack.c.b16 %v2001, %v1997
    %v2318 = vpack.c.b16 %v2002, %v1998
    %v2319 = vpack.c.b16 %v2003, %v1999
    %v2320 = vpack.c.b16 %v2004, %v2000
    %v2321 = vpack.c.b16 %v2009, %v2005
    %v2322 = vpack.c.b16 %v2010, %v2006
    %v2323 = vpack.c.b16 %v2011, %v2007
    %v2324 = vpack.c.b16 %v2012, %v2008
    %v2325 = vpack.c.b16 %v2017, %v2013
    %v2326 = vpack.c.b16 %v2018, %v2014
    %v2327 = vpack.c.b16 %v2019, %v2015
    %v2328 = vpack.c.b16 %v2020, %v2016
    %v2329 = vpack.c.b16 %v2025, %v2021
    %v2330 = vpack.c.b16 %v2026, %v2022
    %v2331 = vpack.c.b16 %v2027, %v2023
    %v2332 = vpack.c.b16 %v2028, %v2024
    %v2333 = vpack.c.b16 %v2033, %v2029
    %v2334 = vpack.c.b16 %v2034, %v2030
    %v2335 = vpack.c.b16 %v2035, %v2031
    %v2336 = vpack.c.b16 %v2036, %v2032
    %v2337 = vpack.c.b16 %v2041, %v2037
    %v2338 = vpack.c.b16 %v2042, %v2038
    %v2339 = vpack.c.b16 %v2043, %v2039
    %v2340 = vpack.c.b16 %v2044, %v2040
    %v2341 = vpack.c.b16 %v2049, %v2045
    %v2342 = vpack.c.b16 %v2050, %v2046
    %v2343 = vpack.c.b16 %v2051, %v2047
    %v2344 = vpack.c.b16 %v2052, %v2048
    %v2345 = vpack.c.b16 %v2057, %v2053
    %v2346 = vpack.c.b16 %v2058, %v2054
    %v2347 = vpack.c.b16 %v2059, %v2055
    %v2348 = vpack.c.b16 %v2060, %v2056
    %v2349 = vpack.c.b16 %v2065, %v2061
    %v2350 = vpack.c.b16 %v2066, %v2062
    %v2351 = vpack.c.b16 %v2067, %v2063
    %v2352 = vpack.c.b16 %v2068, %v2064
    %v2353 = vpack.c.b16 %v2073, %v2069
    %v2354 = vpack.c.b16 %v2074, %v2070
    %v2355 = vpack.c.b16 %v2075, %v2071
    %v2356 = vpack.c.b16 %v2076, %v2072
    %v2357 = vpack.c.b16 %v2081, %v2077
    %v2358 = vpack.c.b16 %v2082, %v2078
    %v2359 = vpack.c.b16 %v2083, %v2079
    %v2360 = vpack.c.b16 %v2084, %v2080
    %v2361 = vpack.c.b16 %v2089, %v2085
    %v2362 = vpack.c.b16 %v2090, %v2086
    %v2363 = vpack.c.b16 %v2091, %v2087
    %v2364 = vpack.c.b16 %v2092, %v2088
    %v2365 = vpack.c.b16 %v2097, %v2093
    %v2366 = vpack.c.b16 %v2098, %v2094
    %v2367 = vpack.c.b16 %v2099, %v2095
    %v2368 = vpack.c.b16 %v2100, %v2096
    %v2369 = vpack.c.b16 %v2105, %v2101
    %v2370 = vpack.c.b16 %v2106, %v2102
    %v2371 = vpack.c.b16 %v2107, %v2103
    %v2372 = vpack.c.b16 %v2108, %v2104
    %v2373 = vpack.c.b16 %v2113, %v2109
    %v2374 = vpack.c.b16 %v2114, %v2110
    %v2375 = vpack.c.b16 %v2115, %v2111
    %v2376 = vpack.c.b16 %v2116, %v2112
    %v2377 = vpack.c.b16 %v2121, %v2117
    %v2378 = vpack.c.b16 %v2122, %v2118
    %v2379 = vpack.c.b16 %v2123, %v2119
    %v2380 = vpack.c.b16 %v2124, %v2120
    %2637 = vmatprep.subr.bf16.mxu0 %v2126
    %2638 = vmatpush1.bf16.msra.mxu0 %v2125
    %2639 = vmatprep.subr.bf16.mxu0 %v2130
    %2640 = vmatpush1.bf16.msra.mxu0 %v2129
    %2641 = vmatprep.subr.bf16.mxu0 %v2134
    %2642 = vmatpush1.bf16.msra.mxu0 %v2133
    %2643 = vmatprep.subr.bf16.mxu0 %v2138
    %2644 = vmatpush1.bf16.msra.mxu0 %v2137
    %2645 = vmatprep.subr.bf16.mxu0 %v2142
    %2646 = vmatpush1.bf16.msra.mxu0 %v2141
    %2647 = vmatprep.subr.bf16.mxu0 %v2146
    %2648 = vmatpush1.bf16.msra.mxu0 %v2145
    %2649 = vmatprep.subr.bf16.mxu0 %v2150
    %2650 = vmatpush1.bf16.msra.mxu0 %v2149
    %2651 = vmatprep.subr.bf16.mxu0 %v2154
    %2652 = vmatpush1.bf16.msra.mxu0 %v2153
    %2653 = vmatprep.subr.bf16.mxu0 %v2158
    %2654 = vmatpush1.bf16.msra.mxu0 %v2157
    %2655 = vmatprep.subr.bf16.mxu0 %v2162
    %2656 = vmatpush1.bf16.msra.mxu0 %v2161
    %2657 = vmatprep.subr.bf16.mxu0 %v2166
    %2658 = vmatpush1.bf16.msra.mxu0 %v2165
    %2659 = vmatprep.subr.bf16.mxu0 %v2170
    %2660 = vmatpush1.bf16.msra.mxu0 %v2169
    %2661 = vmatprep.subr.bf16.mxu0 %v2174
    %2662 = vmatpush1.bf16.msra.mxu0 %v2173
    %2663 = vmatprep.subr.bf16.mxu0 %v2178
    %2664 = vmatpush1.bf16.msra.mxu0 %v2177
    %2665 = vmatprep.subr.bf16.mxu0 %v2182
    %2666 = vmatpush1.bf16.msra.mxu0 %v2181
    %2667 = vmatprep.subr.bf16.mxu0 %v2186
    %2668 = vmatpush1.bf16.msra.mxu0 %v2185
    %2669 = vmatprep.mubr.bf16.mxu0 %v1072
    %2670 = vmatmul.mubr.bf16.gmra.mrb[0].mxu0 %v1071
    %v2671 = vpop.f32.mrb[0].mxu0
    %v2672 = vadd.f32 %v1340, %v2671
    %v2673 = vpop.f32.mrb[0].mxu0
    %v2674 = vadd.f32 %v1344, %v2673
    %v2675 = vpop.f32.mrb[0].mxu0
    %v2676 = vpop.f32.mrb[0].mxu0
    %2677 = vdwg.mxu0
    %2678 = vmatprep.subr.bf16.mxu0 %v2190
    %2679 = vmatpush1.bf16.msra.mxu0 %v2189
    %2680 = vmatprep.subr.bf16.mxu0 %v2194
    %2681 = vmatpush1.bf16.msra.mxu0 %v2193
    %2682 = vmatprep.subr.bf16.mxu0 %v2198
    %2683 = vmatpush1.bf16.msra.mxu0 %v2197
    %2684 = vmatprep.subr.bf16.mxu0 %v2202
    %2685 = vmatpush1.bf16.msra.mxu0 %v2201
    %2686 = vmatprep.subr.bf16.mxu0 %v2206
    %2687 = vmatpush1.bf16.msra.mxu0 %v2205
    %2688 = vmatprep.subr.bf16.mxu0 %v2210
    %2689 = vmatpush1.bf16.msra.mxu0 %v2209
    %2690 = vmatprep.subr.bf16.mxu0 %v2214
    %2691 = vmatpush1.bf16.msra.mxu0 %v2213
    %2692 = vmatprep.subr.bf16.mxu0 %v2218
    %2693 = vmatpush1.bf16.msra.mxu0 %v2217
    %2694 = vmatprep.subr.bf16.mxu0 %v2222
    %2695 = vmatpush1.bf16.msra.mxu0 %v2221
    %2696 = vmatprep.subr.bf16.mxu0 %v2226
    %2697 = vmatpush1.bf16.msra.mxu0 %v2225
    %2698 = vmatprep.subr.bf16.mxu0 %v2230
    %2699 = vmatpush1.bf16.msra.mxu0 %v2229
    %2700 = vmatprep.subr.bf16.mxu0 %v2234
    %2701 = vmatpush1.bf16.msra.mxu0 %v2233
    %2702 = vmatprep.subr.bf16.mxu0 %v2238
    %2703 = vmatpush1.bf16.msra.mxu0 %v2237
    %2704 = vmatprep.subr.bf16.mxu0 %v2242
    %2705 = vmatpush1.bf16.msra.mxu0 %v2241
    %2706 = vmatprep.subr.bf16.mxu0 %v2246
    %2707 = vmatpush1.bf16.msra.mxu0 %v2245
    %2708 = vmatprep.subr.bf16.mxu0 %v2250
    %2709 = vmatpush1.bf16.msra.mxu0 %v2249
    %2710 = vmatprep.mubr.bf16.mxu0 %v1074
    %2711 = vmatmul.mubr.bf16.gmra.mrb[0].mxu0 %v1073
    %v2712 = vpop.f32.mrb[0].mxu0
    %v2713 = vadd.f32 %v2672, %v2712
    %v2714 = vpop.f32.mrb[0].mxu0
    %v2715 = vadd.f32 %v2674, %v2714
    %v2716 = vpop.f32.mrb[0].mxu0
    %v2717 = vpop.f32.mrb[0].mxu0
    %2718 = vdwg.mxu0
    %2719 = vmatprep.subr.bf16.mxu0 %v2254
    %2720 = vmatpush1.bf16.msra.mxu0 %v2253
    %2721 = vmatprep.subr.bf16.mxu0 %v2258
    %2722 = vmatpush1.bf16.msra.mxu0 %v2257
    %2723 = vmatprep.subr.bf16.mxu0 %v2262
    %2724 = vmatpush1.bf16.msra.mxu0 %v2261
    %2725 = vmatprep.subr.bf16.mxu0 %v2266
    %2726 = vmatpush1.bf16.msra.mxu0 %v2265
    %2727 = vmatprep.subr.bf16.mxu0 %v2270
    %2728 = vmatpush1.bf16.msra.mxu0 %v2269
    %2729 = vmatprep.subr.bf16.mxu0 %v2274
    %2730 = vmatpush1.bf16.msra.mxu0 %v2273
    %2731 = vmatprep.subr.bf16.mxu0 %v2278
    %2732 = vmatpush1.bf16.msra.mxu0 %v2277
    %2733 = vmatprep.subr.bf16.mxu0 %v2282
    %2734 = vmatpush1.bf16.msra.mxu0 %v2281
    %2735 = vmatprep.subr.bf16.mxu0 %v2286
    %2736 = vmatpush1.bf16.msra.mxu0 %v2285
    %2737 = vmatprep.subr.bf16.mxu0 %v2290
    %2738 = vmatpush1.bf16.msra.mxu0 %v2289
    %2739 = vmatprep.subr.bf16.mxu0 %v2294
    %2740 = vmatpush1.bf16.msra.mxu0 %v2293
    %2741 = vmatprep.subr.bf16.mxu0 %v2298
    %2742 = vmatpush1.bf16.msra.mxu0 %v2297
    %2743 = vmatprep.subr.bf16.mxu0 %v2302
    %2744 = vmatpush1.bf16.msra.mxu0 %v2301
    %2745 = vmatprep.subr.bf16.mxu0 %v2306
    %2746 = vmatpush1.bf16.msra.mxu0 %v2305
    %2747 = vmatprep.subr.bf16.mxu0 %v2310
    %2748 = vmatpush1.bf16.msra.mxu0 %v2309
    %2749 = vmatprep.subr.bf16.mxu0 %v2314
    %2750 = vmatpush1.bf16.msra.mxu0 %v2313
    %2751 = vmatprep.mubr.bf16.mxu0 %v1076
    %2752 = vmatmul.mubr.bf16.gmra.mrb[0].mxu0 %v1075
    %v2753 = vpop.f32.mrb[0].mxu0
    %v2754 = vadd.f32 %v2713, %v2753
    %v2755 = vpop.f32.mrb[0].mxu0
    %v2756 = vadd.f32 %v2715, %v2755
    %v2757 = vpop.f32.mrb[0].mxu0
    %v2758 = vpop.f32.mrb[0].mxu0
    %2759 = vdwg.mxu0
    %2760 = vmatprep.subr.bf16.mxu0 %v2318
    %2761 = vmatpush1.bf16.msra.mxu0 %v2317
    %2762 = vmatprep.subr.bf16.mxu0 %v2322
    %2763 = vmatpush1.bf16.msra.mxu0 %v2321
    %2764 = vmatprep.subr.bf16.mxu0 %v2326
    %2765 = vmatpush1.bf16.msra.mxu0 %v2325
    %2766 = vmatprep.subr.bf16.mxu0 %v2330
    %2767 = vmatpush1.bf16.msra.mxu0 %v2329
    %2768 = vmatprep.subr.bf16.mxu0 %v2334
    %2769 = vmatpush1.bf16.msra.mxu0 %v2333
    %2770 = vmatprep.subr.bf16.mxu0 %v2338
    %2771 = vmatpush1.bf16.msra.mxu0 %v2337
    %2772 = vmatprep.subr.bf16.mxu0 %v2342
    %2773 = vmatpush1.bf16.msra.mxu0 %v2341
    %2774 = vmatprep.subr.bf16.mxu0 %v2346
    %2775 = vmatpush1.bf16.msra.mxu0 %v2345
    %2776 = vmatprep.subr.bf16.mxu0 %v2350
    %2777 = vmatpush1.bf16.msra.mxu0 %v2349
    %2778 = vmatprep.subr.bf16.mxu0 %v2354
    %2779 = vmatpush1.bf16.msra.mxu0 %v2353
    %2780 = vmatprep.subr.bf16.mxu0 %v2358
    %2781 = vmatpush1.bf16.msra.mxu0 %v2357
    %2782 = vmatprep.subr.bf16.mxu0 %v2362
    %2783 = vmatpush1.bf16.msra.mxu0 %v2361
    %2784 = vmatprep.subr.bf16.mxu0 %v2366
    %2785 = vmatpush1.bf16.msra.mxu0 %v2365
    %2786 = vmatprep.subr.bf16.mxu0 %v2370
    %2787 = vmatpush1.bf16.msra.mxu0 %v2369
    %2788 = vmatprep.subr.bf16.mxu0 %v2374
    %2789 = vmatpush1.bf16.msra.mxu0 %v2373
    %2790 = vmatprep.subr.bf16.mxu0 %v2378
    %2791 = vmatpush1.bf16.msra.mxu0 %v2377
    %2792 = vmatprep.mubr.bf16.mxu0 %v1078
    %2793 = vmatmul.mubr.bf16.gmra.mrb[0].mxu0 %v1077
    %v2794 = vpop.f32.mrb[0].mxu0
    %v2795 = vadd.f32 %v2754, %v2794
    %v2796 = vpop.f32.mrb[0].mxu0
    %v2797 = vadd.f32 %v2756, %v2796
    %v2798 = vpop.f32.mrb[0].mxu0
    %v2799 = vpop.f32.mrb[0].mxu0
    %2800 = vdwg.mxu0
    %2801 = vmatprep.subr.bf16.mxu0 %v2128
    %2802 = vmatpush1.bf16.msra.mxu0 %v2127
    %2803 = vmatprep.subr.bf16.mxu0 %v2132
    %2804 = vmatpush1.bf16.msra.mxu0 %v2131
    %2805 = vmatprep.subr.bf16.mxu0 %v2136
    %2806 = vmatpush1.bf16.msra.mxu0 %v2135
    %2807 = vmatprep.subr.bf16.mxu0 %v2140
    %2808 = vmatpush1.bf16.msra.mxu0 %v2139
    %2809 = vmatprep.subr.bf16.mxu0 %v2144
    %2810 = vmatpush1.bf16.msra.mxu0 %v2143
    %2811 = vmatprep.subr.bf16.mxu0 %v2148
    %2812 = vmatpush1.bf16.msra.mxu0 %v2147
    %2813 = vmatprep.subr.bf16.mxu0 %v2152
    %2814 = vmatpush1.bf16.msra.mxu0 %v2151
    %2815 = vmatprep.subr.bf16.mxu0 %v2156
    %2816 = vmatpush1.bf16.msra.mxu0 %v2155
    %2817 = vmatprep.subr.bf16.mxu0 %v2160
    %2818 = vmatpush1.bf16.msra.mxu0 %v2159
    %2819 = vmatprep.subr.bf16.mxu0 %v2164
    %2820 = vmatpush1.bf16.msra.mxu0 %v2163
    %2821 = vmatprep.subr.bf16.mxu0 %v2168
    %2822 = vmatpush1.bf16.msra.mxu0 %v2167
    %2823 = vmatprep.subr.bf16.mxu0 %v2172
    %2824 = vmatpush1.bf16.msra.mxu0 %v2171
    %2825 = vmatprep.subr.bf16.mxu0 %v2176
    %2826 = vmatpush1.bf16.msra.mxu0 %v2175
    %2827 = vmatprep.subr.bf16.mxu0 %v2180
    %2828 = vmatpush1.bf16.msra.mxu0 %v2179
    %2829 = vmatprep.subr.bf16.mxu0 %v2184
    %2830 = vmatpush1.bf16.msra.mxu0 %v2183
    %2831 = vmatprep.subr.bf16.mxu0 %v2188
    %2832 = vmatpush1.bf16.msra.mxu0 %v2187
    %2833 = vmatprep.mubr.bf16.mxu0 %v1072
    %2834 = vmatmul.mubr.bf16.gmra.mrb[0].mxu0 %v1071
    %v2835 = vpop.f32.mrb[0].mxu0
    %v2836 = vadd.f32 %v1348, %v2835
    %v2837 = vpop.f32.mrb[0].mxu0
    %v2838 = vadd.f32 %v1352, %v2837
    %v2839 = vpop.f32.mrb[0].mxu0
    %v2840 = vpop.f32.mrb[0].mxu0
    %2841 = vdwg.mxu0
    %2842 = vmatprep.subr.bf16.mxu0 %v2192
    %2843 = vmatpush1.bf16.msra.mxu0 %v2191
    %2844 = vmatprep.subr.bf16.mxu0 %v2196
    %2845 = vmatpush1.bf16.msra.mxu0 %v2195
    %2846 = vmatprep.subr.bf16.mxu0 %v2200
    %2847 = vmatpush1.bf16.msra.mxu0 %v2199
    %2848 = vmatprep.subr.bf16.mxu0 %v2204
    %2849 = vmatpush1.bf16.msra.mxu0 %v2203
    %2850 = vmatprep.subr.bf16.mxu0 %v2208
    %2851 = vmatpush1.bf16.msra.mxu0 %v2207
    %2852 = vmatprep.subr.bf16.mxu0 %v2212
    %2853 = vmatpush1.bf16.msra.mxu0 %v2211
    %2854 = vmatprep.subr.bf16.mxu0 %v2216
    %2855 = vmatpush1.bf16.msra.mxu0 %v2215
    %2856 = vmatprep.subr.bf16.mxu0 %v2220
    %2857 = vmatpush1.bf16.msra.mxu0 %v2219
    %2858 = vmatprep.subr.bf16.mxu0 %v2224
    %2859 = vmatpush1.bf16.msra.mxu0 %v2223
    %2860 = vmatprep.subr.bf16.mxu0 %v2228
    %2861 = vmatpush1.bf16.msra.mxu0 %v2227
    %2862 = vmatprep.subr.bf16.mxu0 %v2232
    %2863 = vmatpush1.bf16.msra.mxu0 %v2231
    %2864 = vmatprep.subr.bf16.mxu0 %v2236
    %2865 = vmatpush1.bf16.msra.mxu0 %v2235
    %2866 = vmatprep.subr.bf16.mxu0 %v2240
    %2867 = vmatpush1.bf16.msra.mxu0 %v2239
    %2868 = vmatprep.subr.bf16.mxu0 %v2244
    %2869 = vmatpush1.bf16.msra.mxu0 %v2243
    %2870 = vmatprep.subr.bf16.mxu0 %v2248
    %2871 = vmatpush1.bf16.msra.mxu0 %v2247
    %2872 = vmatprep.subr.bf16.mxu0 %v2252
    %2873 = vmatpush1.bf16.msra.mxu0 %v2251
    %2874 = vmatprep.mubr.bf16.mxu0 %v1074
    %2875 = vmatmul.mubr.bf16.gmra.mrb[0].mxu0 %v1073
    %v2876 = vpop.f32.mrb[0].mxu0
    %v2877 = vadd.f32 %v2836, %v2876
    %v2878 = vpop.f32.mrb[0].mxu0
    %v2879 = vadd.f32 %v2838, %v2878
    %v2880 = vpop.f32.mrb[0].mxu0
    %v2881 = vpop.f32.mrb[0].mxu0
    %2882 = vdwg.mxu0
    %2883 = vmatprep.subr.bf16.mxu0 %v2256
    %2884 = vmatpush1.bf16.msra.mxu0 %v2255
    %2885 = vmatprep.subr.bf16.mxu0 %v2260
    %2886 = vmatpush1.bf16.msra.mxu0 %v2259
    %2887 = vmatprep.subr.bf16.mxu0 %v2264
    %2888 = vmatpush1.bf16.msra.mxu0 %v2263
    %2889 = vmatprep.subr.bf16.mxu0 %v2268
    %2890 = vmatpush1.bf16.msra.mxu0 %v2267
    %2891 = vmatprep.subr.bf16.mxu0 %v2272
    %2892 = vmatpush1.bf16.msra.mxu0 %v2271
    %2893 = vmatprep.subr.bf16.mxu0 %v2276
    %2894 = vmatpush1.bf16.msra.mxu0 %v2275
    %2895 = vmatprep.subr.bf16.mxu0 %v2280
    %2896 = vmatpush1.bf16.msra.mxu0 %v2279
    %2897 = vmatprep.subr.bf16.mxu0 %v2284
    %2898 = vmatpush1.bf16.msra.mxu0 %v2283
    %2899 = vmatprep.subr.bf16.mxu0 %v2288
    %2900 = vmatpush1.bf16.msra.mxu0 %v2287
    %2901 = vmatprep.subr.bf16.mxu0 %v2292
    %2902 = vmatpush1.bf16.msra.mxu0 %v2291
    %2903 = vmatprep.subr.bf16.mxu0 %v2296
    %2904 = vmatpush1.bf16.msra.mxu0 %v2295
    %2905 = vmatprep.subr.bf16.mxu0 %v2300
    %2906 = vmatpush1.bf16.msra.mxu0 %v2299
    %2907 = vmatprep.subr.bf16.mxu0 %v2304
    %2908 = vmatpush1.bf16.msra.mxu0 %v2303
    %2909 = vmatprep.subr.bf16.mxu0 %v2308
    %2910 = vmatpush1.bf16.msra.mxu0 %v2307
    %2911 = vmatprep.subr.bf16.mxu0 %v2312
    %2912 = vmatpush1.bf16.msra.mxu0 %v2311
    %2913 = vmatprep.subr.bf16.mxu0 %v2316
    %2914 = vmatpush1.bf16.msra.mxu0 %v2315
    %2915 = vmatprep.mubr.bf16.mxu0 %v1076
    %2916 = vmatmul.mubr.bf16.gmra.mrb[0].mxu0 %v1075
    %v2917 = vpop.f32.mrb[0].mxu0
    %v2918 = vadd.f32 %v2877, %v2917
    %v2919 = vpop.f32.mrb[0].mxu0
    %v2920 = vadd.f32 %v2879, %v2919
    %v2921 = vpop.f32.mrb[0].mxu0
    %v2922 = vpop.f32.mrb[0].mxu0
    %2923 = vdwg.mxu0
    %2924 = vmatprep.subr.bf16.mxu0 %v2320
    %2925 = vmatpush1.bf16.msra.mxu0 %v2319
    %2926 = vmatprep.subr.bf16.mxu0 %v2324
    %2927 = vmatpush1.bf16.msra.mxu0 %v2323
    %2928 = vmatprep.subr.bf16.mxu0 %v2328
    %2929 = vmatpush1.bf16.msra.mxu0 %v2327
    %2930 = vmatprep.subr.bf16.mxu0 %v2332
    %2931 = vmatpush1.bf16.msra.mxu0 %v2331
    %2932 = vmatprep.subr.bf16.mxu0 %v2336
    %2933 = vmatpush1.bf16.msra.mxu0 %v2335
    %2934 = vmatprep.subr.bf16.mxu0 %v2340
    %2935 = vmatpush1.bf16.msra.mxu0 %v2339
    %2936 = vmatprep.subr.bf16.mxu0 %v2344
    %2937 = vmatpush1.bf16.msra.mxu0 %v2343
    %2938 = vmatprep.subr.bf16.mxu0 %v2348
    %2939 = vmatpush1.bf16.msra.mxu0 %v2347
    %2940 = vmatprep.subr.bf16.mxu0 %v2352
    %2941 = vmatpush1.bf16.msra.mxu0 %v2351
    %2942 = vmatprep.subr.bf16.mxu0 %v2356
    %2943 = vmatpush1.bf16.msra.mxu0 %v2355
    %2944 = vmatprep.subr.bf16.mxu0 %v2360
    %2945 = vmatpush1.bf16.msra.mxu0 %v2359
    %2946 = vmatprep.subr.bf16.mxu0 %v2364
    %2947 = vmatpush1.bf16.msra.mxu0 %v2363
    %2948 = vmatprep.subr.bf16.mxu0 %v2368
    %2949 = vmatpush1.bf16.msra.mxu0 %v2367
    %2950 = vmatprep.subr.bf16.mxu0 %v2372
    %2951 = vmatpush1.bf16.msra.mxu0 %v2371
    %2952 = vmatprep.subr.bf16.mxu0 %v2376
    %2953 = vmatpush1.bf16.msra.mxu0 %v2375
    %2954 = vmatprep.subr.bf16.mxu0 %v2380
    %2955 = vmatpush1.bf16.msra.mxu0 %v2379
    %2956 = vmatprep.mubr.bf16.mxu0 %v1078
    %2957 = vmatmul.mubr.bf16.gmra.mrb[0].mxu0 %v1077
    %v2958 = vpop.f32.mrb[0].mxu0
    %v2959 = vadd.f32 %v2918, %v2958
    %v2960 = vpop.f32.mrb[0].mxu0
    %v2961 = vadd.f32 %v2920, %v2960
    %v2962 = vpop.f32.mrb[0].mxu0
    %v2963 = vpop.f32.mrb[0].mxu0
    %2964 = vdwg.mxu0
    %v2965 = vmax.f32 %v2795, 0.0
    %v2966 = vmax.f32 %v2797, 0.0
    %v2967 = vmax.f32 %v2959, 0.0
    %v2968 = vmax.f32 %v2961, 0.0
    %v2969 = vpack.c.bf16 %v2965, %v2965
    %v2970 = vpack.c.bf16 %v2966, %v2966
    %v2971 = vpack.c.bf16 %v2967, %v2967
    %v2972 = vpack.c.bf16 %v2968, %v2968
    %v2973 = vld [vmem:[%s5] sm:$0xf]
    %v2974 = vld [vmem:[%s5 + $0x4] sm:$0xf]
    %v2975 = vld [vmem:[%s5 + $0x8] sm:$0xf]
    %v2976 = vld [vmem:[%s5 + $0xc] sm:$0xf]
    %v2977 = vld [vmem:[%s5 + $0x10] sm:$0xf]
    %v2978 = vld [vmem:[%s5 + $0x14] sm:$0xf]
    %v2979 = vld [vmem:[%s5 + $0x18] sm:$0xf]
    %v2980 = vld [vmem:[%s5 + $0x1c] sm:$0xf]
    %v2981 = vld [vmem:[%s5 + $0x20] sm:$0xf]
    %v2982 = vld [vmem:[%s5 + $0x24] sm:$0xf]
    %v2983 = vld [vmem:[%s5 + $0x28] sm:$0xf]
    %v2984 = vld [vmem:[%s5 + $0x2c] sm:$0xf]
    %v2985 = vld [vmem:[%s5 + $0x30] sm:$0xf]
    %v2986 = vld [vmem:[%s5 + $0x34] sm:$0xf]
    %v2987 = vld [vmem:[%s5 + $0x38] sm:$0xf]
    %v2988 = vld [vmem:[%s5 + $0x3c] sm:$0xf]
    %v2989 = vld [vmem:[%s5 + $0x40] sm:$0xf]
    %v2990 = vld [vmem:[%s5 + $0x44] sm:$0xf]
    %v2991 = vld [vmem:[%s5 + $0x48] sm:$0xf]
    %v2992 = vld [vmem:[%s5 + $0x4c] sm:$0xf]
    %v2993 = vld [vmem:[%s5 + $0x50] sm:$0xf]
    %v2994 = vld [vmem:[%s5 + $0x54] sm:$0xf]
    %v2995 = vld [vmem:[%s5 + $0x58] sm:$0xf]
    %v2996 = vld [vmem:[%s5 + $0x5c] sm:$0xf]
    %v2997 = vld [vmem:[%s5 + $0x60] sm:$0xf]
    %v2998 = vld [vmem:[%s5 + $0x64] sm:$0xf]
    %v2999 = vld [vmem:[%s5 + $0x68] sm:$0xf]
    %v3000 = vld [vmem:[%s5 + $0x6c] sm:$0xf]
    %v3001 = vld [vmem:[%s5 + $0x70] sm:$0xf]
    %v3002 = vld [vmem:[%s5 + $0x74] sm:$0xf]
    %v3003 = vld [vmem:[%s5 + $0x78] sm:$0xf]
    %v3004 = vld [vmem:[%s5 + $0x7c] sm:$0xf]
    %v3005 = vld [vmem:[%s5 + $0x80] sm:$0xf]
    %v3006 = vld [vmem:[%s5 + $0x84] sm:$0xf]
    %v3007 = vld [vmem:[%s5 + $0x88] sm:$0xf]
    %v3008 = vld [vmem:[%s5 + $0x8c] sm:$0xf]
    %v3009 = vld [vmem:[%s5 + $0x90] sm:$0xf]
    %v3010 = vld [vmem:[%s5 + $0x94] sm:$0xf]
    %v3011 = vld [vmem:[%s5 + $0x98] sm:$0xf]
    %v3012 = vld [vmem:[%s5 + $0x9c] sm:$0xf]
    %v3013 = vld [vmem:[%s5 + $0xa0] sm:$0xf]
    %v3014 = vld [vmem:[%s5 + $0xa4] sm:$0xf]
    %v3015 = vld [vmem:[%s5 + $0xa8] sm:$0xf]
    %v3016 = vld [vmem:[%s5 + $0xac] sm:$0xf]
    %v3017 = vld [vmem:[%s5 + $0xb0] sm:$0xf]
    %v3018 = vld [vmem:[%s5 + $0xb4] sm:$0xf]
    %v3019 = vld [vmem:[%s5 + $0xb8] sm:$0xf]
    %v3020 = vld [vmem:[%s5 + $0xbc] sm:$0xf]
    %v3021 = vld [vmem:[%s5 + $0xc0] sm:$0xf]
    %v3022 = vld [vmem:[%s5 + $0xc4] sm:$0xf]
    %v3023 = vld [vmem:[%s5 + $0xc8] sm:$0xf]
    %v3024 = vld [vmem:[%s5 + $0xcc] sm:$0xf]
    %v3025 = vld [vmem:[%s5 + $0xd0] sm:$0xf]
    %v3026 = vld [vmem:[%s5 + $0xd4] sm:$0xf]
    %v3027 = vld [vmem:[%s5 + $0xd8] sm:$0xf]
    %v3028 = vld [vmem:[%s5 + $0xdc] sm:$0xf]
    %v3029 = vld [vmem:[%s5 + $0xe0] sm:$0xf]
    %v3030 = vld [vmem:[%s5 + $0xe4] sm:$0xf]
    %v3031 = vld [vmem:[%s5 + $0xe8] sm:$0xf]
    %v3032 = vld [vmem:[%s5 + $0xec] sm:$0xf]
    %v3033 = vld [vmem:[%s5 + $0xf0] sm:$0xf]
    %v3034 = vld [vmem:[%s5 + $0xf4] sm:$0xf]
    %v3035 = vld [vmem:[%s5 + $0xf8] sm:$0xf]
    %v3036 = vld [vmem:[%s5 + $0xfc] sm:$0xf]
    %v3037 = vld [vmem:[#allocation2] sm:$0x1]
    %v3039 = vlaneseq
    %v3040 = vshrl.u32 %v3039, 7
    %v3041 = vsub.s32 0, %v3040
    %v3042 = vrot.slane %v3037, %v3041
    %v3108 = vunpack.c.l.b16 %v2973
    %v3109 = vunpack.c.l.b16 %v2974
    %v3110 = vunpack.c.l.b16 %v2975
    %v3111 = vunpack.c.l.b16 %v2976
    %v3112 = vunpack.c.l.b16 %v2977
    %v3113 = vunpack.c.l.b16 %v2978
    %v3114 = vunpack.c.l.b16 %v2979
    %v3115 = vunpack.c.l.b16 %v2980
    %v3116 = vunpack.c.l.b16 %v2981
    %v3117 = vunpack.c.l.b16 %v2982
    %v3118 = vunpack.c.l.b16 %v2983
    %v3119 = vunpack.c.l.b16 %v2984
    %v3120 = vunpack.c.l.b16 %v2985
    %v3121 = vunpack.c.l.b16 %v2986
    %v3122 = vunpack.c.l.b16 %v2987
    %v3123 = vunpack.c.l.b16 %v2988
    %v3124 = vunpack.c.l.b16 %v2989
    %v3125 = vunpack.c.l.b16 %v2990
    %v3126 = vunpack.c.l.b16 %v2991
    %v3127 = vunpack.c.l.b16 %v2992
    %v3128 = vunpack.c.l.b16 %v2993
    %v3129 = vunpack.c.l.b16 %v2994
    %v3130 = vunpack.c.l.b16 %v2995
    %v3131 = vunpack.c.l.b16 %v2996
    %v3132 = vunpack.c.l.b16 %v2997
    %v3133 = vunpack.c.l.b16 %v2998
    %v3134 = vunpack.c.l.b16 %v2999
    %v3135 = vunpack.c.l.b16 %v3000
    %v3136 = vunpack.c.l.b16 %v3001
    %v3137 = vunpack.c.l.b16 %v3002
    %v3138 = vunpack.c.l.b16 %v3003
    %v3139 = vunpack.c.l.b16 %v3004
    %v3140 = vunpack.c.l.b16 %v3005
    %v3141 = vunpack.c.l.b16 %v3006
    %v3142 = vunpack.c.l.b16 %v3007
    %v3143 = vunpack.c.l.b16 %v3008
    %v3144 = vunpack.c.l.b16 %v3009
    %v3145 = vunpack.c.l.b16 %v3010
    %v3146 = vunpack.c.l.b16 %v3011
    %v3147 = vunpack.c.l.b16 %v3012
    %v3148 = vunpack.c.l.b16 %v3013
    %v3149 = vunpack.c.l.b16 %v3014
    %v3150 = vunpack.c.l.b16 %v3015
    %v3151 = vunpack.c.l.b16 %v3016
    %v3152 = vunpack.c.l.b16 %v3017
    %v3153 = vunpack.c.l.b16 %v3018
    %v3154 = vunpack.c.l.b16 %v3019
    %v3155 = vunpack.c.l.b16 %v3020
    %v3156 = vunpack.c.l.b16 %v3021
    %v3157 = vunpack.c.l.b16 %v3022
    %v3158 = vunpack.c.l.b16 %v3023
    %v3159 = vunpack.c.l.b16 %v3024
    %v3160 = vunpack.c.l.b16 %v3025
    %v3161 = vunpack.c.l.b16 %v3026
    %v3162 = vunpack.c.l.b16 %v3027
    %v3163 = vunpack.c.l.b16 %v3028
    %v3164 = vunpack.c.l.b16 %v3029
    %v3165 = vunpack.c.l.b16 %v3030
    %v3166 = vunpack.c.l.b16 %v3031
    %v3167 = vunpack.c.l.b16 %v3032
    %v3168 = vunpack.c.l.b16 %v3033
    %v3169 = vunpack.c.l.b16 %v3034
    %v3170 = vunpack.c.l.b16 %v3035
    %v3171 = vunpack.c.l.b16 %v3036
    %v3172 = vpack.c.b16 %v3109, %v3108
    %v3173 = vpack.c.b16 %v3111, %v3110
    %v3174 = vpack.c.b16 %v3113, %v3112
    %v3175 = vpack.c.b16 %v3115, %v3114
    %v3176 = vpack.c.b16 %v3117, %v3116
    %v3177 = vpack.c.b16 %v3119, %v3118
    %v3178 = vpack.c.b16 %v3121, %v3120
    %v3179 = vpack.c.b16 %v3123, %v3122
    %v3180 = vpack.c.b16 %v3125, %v3124
    %v3181 = vpack.c.b16 %v3127, %v3126
    %v3182 = vpack.c.b16 %v3129, %v3128
    %v3183 = vpack.c.b16 %v3131, %v3130
    %v3184 = vpack.c.b16 %v3133, %v3132
    %v3185 = vpack.c.b16 %v3135, %v3134
    %v3186 = vpack.c.b16 %v3137, %v3136
    %v3187 = vpack.c.b16 %v3139, %v3138
    %v3188 = vpack.c.b16 %v3141, %v3140
    %v3189 = vpack.c.b16 %v3143, %v3142
    %v3190 = vpack.c.b16 %v3145, %v3144
    %v3191 = vpack.c.b16 %v3147, %v3146
    %v3192 = vpack.c.b16 %v3149, %v3148
    %v3193 = vpack.c.b16 %v3151, %v3150
    %v3194 = vpack.c.b16 %v3153, %v3152
    %v3195 = vpack.c.b16 %v3155, %v3154
    %v3196 = vpack.c.b16 %v3157, %v3156
    %v3197 = vpack.c.b16 %v3159, %v3158
    %v3198 = vpack.c.b16 %v3161, %v3160
    %v3199 = vpack.c.b16 %v3163, %v3162
    %v3200 = vpack.c.b16 %v3165, %v3164
    %v3201 = vpack.c.b16 %v3167, %v3166
    %v3202 = vpack.c.b16 %v3169, %v3168
    %v3203 = vpack.c.b16 %v3171, %v3170
    %3236 = vmatprep.subr.bf16.mxu0 0
    %3237 = vmatpush1.bf16.msra.mxu0 %v3172
    %3238 = vmatprep.subr.bf16.mxu0 0
    %3239 = vmatpush1.bf16.msra.mxu0 %v3173
    %3240 = vmatprep.subr.bf16.mxu0 0
    %3241 = vmatpush1.bf16.msra.mxu0 %v3174
    %3242 = vmatprep.subr.bf16.mxu0 0
    %3243 = vmatpush1.bf16.msra.mxu0 %v3175
    %3244 = vmatprep.subr.bf16.mxu0 0
    %3245 = vmatpush1.bf16.msra.mxu0 %v3176
    %3246 = vmatprep.subr.bf16.mxu0 0
    %3247 = vmatpush1.bf16.msra.mxu0 %v3177
    %3248 = vmatprep.subr.bf16.mxu0 0
    %3249 = vmatpush1.bf16.msra.mxu0 %v3178
    %3250 = vmatprep.subr.bf16.mxu0 0
    %3251 = vmatpush1.bf16.msra.mxu0 %v3179
    %3252 = vmatprep.subr.bf16.mxu0 0
    %3253 = vmatpush1.bf16.msra.mxu0 %v3180
    %3254 = vmatprep.subr.bf16.mxu0 0
    %3255 = vmatpush1.bf16.msra.mxu0 %v3181
    %3256 = vmatprep.subr.bf16.mxu0 0
    %3257 = vmatpush1.bf16.msra.mxu0 %v3182
    %3258 = vmatprep.subr.bf16.mxu0 0
    %3259 = vmatpush1.bf16.msra.mxu0 %v3183
    %3260 = vmatprep.subr.bf16.mxu0 0
    %3261 = vmatpush1.bf16.msra.mxu0 %v3184
    %3262 = vmatprep.subr.bf16.mxu0 0
    %3263 = vmatpush1.bf16.msra.mxu0 %v3185
    %3264 = vmatprep.subr.bf16.mxu0 0
    %3265 = vmatpush1.bf16.msra.mxu0 %v3186
    %3266 = vmatprep.subr.bf16.mxu0 0
    %3267 = vmatpush1.bf16.msra.mxu0 %v3187
    %3268 = vmatprep.mubr.bf16.mxu0 %v2970
    %3269 = vmatmul.mubr.bf16.gmra.mrb[0].mxu0 %v2969
    %v3270 = vpop.f32.mrb[0].mxu0
    %v3271 = vadd.f32 %v3042, %v3270
    %v3272 = vpop.f32.mrb[0].mxu0
    %v3273 = vpop.f32.mrb[0].mxu0
    %v3274 = vpop.f32.mrb[0].mxu0
    %3275 = vdwg.mxu0
    %3276 = vmatprep.subr.bf16.mxu0 0
    %3277 = vmatpush1.bf16.msra.mxu0 %v3188
    %3278 = vmatprep.subr.bf16.mxu0 0
    %3279 = vmatpush1.bf16.msra.mxu0 %v3189
    %3280 = vmatprep.subr.bf16.mxu0 0
    %3281 = vmatpush1.bf16.msra.mxu0 %v3190
    %3282 = vmatprep.subr.bf16.mxu0 0
    %3283 = vmatpush1.bf16.msra.mxu0 %v3191
    %3284 = vmatprep.subr.bf16.mxu0 0
    %3285 = vmatpush1.bf16.msra.mxu0 %v3192
    %3286 = vmatprep.subr.bf16.mxu0 0
    %3287 = vmatpush1.bf16.msra.mxu0 %v3193
    %3288 = vmatprep.subr.bf16.mxu0 0
    %3289 = vmatpush1.bf16.msra.mxu0 %v3194
    %3290 = vmatprep.subr.bf16.mxu0 0
    %3291 = vmatpush1.bf16.msra.mxu0 %v3195
    %3292 = vmatprep.subr.bf16.mxu0 0
    %3293 = vmatpush1.bf16.msra.mxu0 %v3196
    %3294 = vmatprep.subr.bf16.mxu0 0
    %3295 = vmatpush1.bf16.msra.mxu0 %v3197
    %3296 = vmatprep.subr.bf16.mxu0 0
    %3297 = vmatpush1.bf16.msra.mxu0 %v3198
    %3298 = vmatprep.subr.bf16.mxu0 0
    %3299 = vmatpush1.bf16.msra.mxu0 %v3199
    %3300 = vmatprep.subr.bf16.mxu0 0
    %3301 = vmatpush1.bf16.msra.mxu0 %v3200
    %3302 = vmatprep.subr.bf16.mxu0 0
    %3303 = vmatpush1.bf16.msra.mxu0 %v3201
    %3304 = vmatprep.subr.bf16.mxu0 0
    %3305 = vmatpush1.bf16.msra.mxu0 %v3202
    %3306 = vmatprep.subr.bf16.mxu0 0
    %3307 = vmatpush1.bf16.msra.mxu0 %v3203
    %3308 = vmatprep.mubr.bf16.mxu0 %v2972
    %3309 = vmatmul.mubr.bf16.gmra.mrb[0].mxu0 %v2971
    %v3310 = vpop.f32.mrb[0].mxu0
    %v3311 = vadd.f32 %v3271, %v3310
    %v3312 = vpop.f32.mrb[0].mxu0
    %v3313 = vpop.f32.mrb[0].mxu0
    %v3314 = vpop.f32.mrb[0].mxu0
    %3315 = vdwg.mxu0
    %3316 = vst [vmem:[#allocation5] sm:$0x3] %v3311
    // Predicated region
    $region34: #{fwd.107} parent=1 // pred_check
      _
    $region35: #{fwd.107} parent=1 // pred_check_branch
      %3318 = sbr.rel (0) target = $region37
    $region36: #{fwd.107} parent=1 // pred_region
      %s3320 = ssub.s32 32, 32
      %3321 = vsyncadd [#allocation4], %s3320
      %s3323 = sshll.u32 [#allocation5], 4
      %s3324 = int_to_ptr.vmem [resolvable:$true] %s3323
      %3326 = dma.vmem_to_hbm [thread:$0]  %s3324, 32, %s7, [#allocation4]
    $region37: #{fwd.107} parent=1 // pred_fallthru
      _
    // Predicated region
    $region38: #{fwd.107} parent=1 // pred_check
      _
    $region39: #{fwd.107} parent=1 // pred_check_branch
      %3328 = sbr.rel (0) target = $region41
    $region40: #{fwd.107} parent=1 // pred_region
      %3329 = dma.done [#allocation4], 32
    $region41: #{fwd.107} parent=1 // pred_fallthru
      _
    %3330 = vsyncpa [#allocation3], 1
    %3331 = vsyncpa [#allocation4], 1

</llo_original>
